<compile_context>
chip_gen: v5e
topology: v5e:2x2
jax: 0.10.0
libtpu: 0.0.40
codegen_flags: <defaults>
</compile_context>

<pallas_src>
import functools

import jax
import jax.numpy as jnp
from jax import lax
from jax.experimental import pallas as pl
from jax.experimental.pallas import tpu as pltpu

C_OUT = 5
KH = KW = 3
H_IN = W_IN = 28
H_POOL = W_POOL = 13            # 26x26 conv output, max-pooled 2x2 -> 13x13
P14 = H_IN // 2                 # 14 : even/odd quad spatial extent
FLAT = P14 * P14                # 196: flattened quad / stride-14 pooled plane
QW = 256                        # lane-padded quad width (>= FLAT + 15, mult of 128)
QP = 256                        # lane-padded pooled width per conv channel
FC_IN = C_OUT * H_POOL * W_POOL  # 845
FC_OUT = 10


def _round_up(n, m):
    return ((n + m - 1) // m) * m


def _default_compute_dtype():
    """bf16 on chips whose VPU has a native bf16 path (v6e / v7x); f32 on v2-v5."""
    try:
        kind = jax.devices()[0].device_kind.lower()
    except Exception:
        return jnp.float32
    if any(tag in kind for tag in ("v2", "v3", "v4", "v5")):
        return jnp.float32
    return jnp.bfloat16


def _choose_batch_tiling(B, batch_tile):
    """Pick (tile, padded_batch).

    Big tiles amortize the ~0.35us per-grid-step overhead (v5e/v6e), but we force
    >= 2 tiles whenever the batch allows it so the 'parallel' grid axis can shard
    across the two TensorCores on v7x (one harmless extra step elsewhere)."""
    align = 16                                # sublane-tile safe for bf16 and f32
    b_aligned = _round_up(max(B, 1), align)
    tb = min(_round_up(batch_tile, align), b_aligned)
    if b_aligned >= 2 * align and b_aligned // tb < 2:
        tb = _round_up((b_aligned + 1) // 2, align)
    bp = _round_up(B, tb)
    return tb, bp


def _fused_kernel(c_in, x_ref, cw_ref, cb_ref, fw_ref, fb_ref, o_ref, pool_ref):
    """Fused conv3x3 + bias + ReLU + maxpool2x2 + FC for one batch tile.

    x_ref : (TB, c_in*4*QW)       - even/odd row/col quad-split, flattened, padded
    cw_ref: (1, C_OUT*c_in*9)     - conv weights (compute dtype)
    cb_ref: (1, C_OUT)            - conv bias    (compute dtype)
    fw_ref: (C_OUT*QP, FC_OUT)    - FC weight scattered into pooled layout, zero rows
                                    at invalid / pad positions
    fb_ref: (1, FC_OUT) f32       - FC bias
    o_ref : (TB, FC_OUT) f32      - logits
    pool_ref: (TB, C_OUT*QP) VMEM scratch - pooled activations, all 5 channels
    """
    nb = x_ref.shape[0]
    cdtype = pool_ref.dtype
    zeros_hi = jnp.zeros((nb, QP - 128), cdtype)     # hoisted; zero the pad lanes once

    for di in range(2):                              # 2x2 pool-window position (outer)
        for dj in range(2):
            first = (di == 0) and (dj == 0)
            # Slice only the 9*c_in taps needed for THIS position; every tap of the
            # 3x3 conv is a unit-stride lane slice in the quad-split layout.
            # taps[ci][kh*3+kw][b, i*14+j] = input pixel (ci, 2i+di+kh, 2j+dj+kw)
            taps = []
            for ci in range(c_in):
                per_ci = []
                for kh in range(KH):
                    for kw in range(KW):
                        a, b = di + kh, dj + kw
                        base = (ci * 4 + (a % 2) * 2 + (b % 2)) * QW
                        off = base + (a // 2) * P14 + (b // 2)
                        per_ci.append(x_ref[:, off:off + FLAT])   # (nb, FLAT)
                taps.append(per_ci)
            # Reuse the hot taps across all 5 output channels (VPU MAC chain).
            for c in range(C_OUT):
                conv = None
                for ci in range(c_in):
                    for k in range(KH * KW):
                        widx = (c * c_in + ci) * (KH * KW) + k
                        w = cw_ref[:, widx:widx + 1]              # (1,1), compute dtype
                        term = taps[ci][k] * w
                        conv = term if conv is None else conv + term
                v = jnp.maximum(conv + cb_ref[:, c:c + 1], 0)     # bias + ReLU
                lo = c * QP
                if first:
                    # Initialize: zero the pad lanes (keeps MXU inputs finite), then
                    # write the first pool candidate.  Both stores are lane-aligned.
                    pool_ref[:, lo + 128:lo + QP] = zeros_hi
                    pool_ref[:, lo:lo + FLAT] = v
                else:                                             # elementwise max-pool
                    pool_ref[:, lo:lo + FLAT] = jnp.maximum(pool_ref[:, lo:lo + FLAT], v)

    # Single fused FC matmul on the MXU over all 5 channels (K = C_OUT*QP); the
    # scattered zero rows in fw kill the pooled i=13 / j=13 garbage and pad lanes.
    acc = jnp.dot(pool_ref[...], fw_ref[...], preferred_element_type=jnp.float32)
    o_ref[...] = acc + fb_ref[...]


def net_forward(x, conv_w, conv_b, fc_w, fc_b, *, batch_tile=256, compute_dtype=None):
    """x: (B, c_in, 28, 28). conv_w: (5, c_in, 3, 3), conv_b: (5,),
    fc_w: (10, 845) (PyTorch layout), fc_b: (10,)."""
    B, c_in, H, W = x.shape
    assert (H, W) == (H_IN, W_IN), (H, W)
    cdtype = compute_dtype or _default_compute_dtype()

    # --- glue: quad-split (even/odd rows & cols), flatten, lane-pad, cast -------
    # TODO(synk): the even/odd split could be done in-kernel with XLU strided
    # selects to remove this relayout pass entirely; emitting it in the compute
    # dtype (bf16 on v6e/v7x) already halves its HBM traffic.
    quads = []
    for ci in range(c_in):
        for p in range(2):
            for q in range(2):
                xq = x[:, ci, p::2, q::2].reshape(B, FLAT)           # (B, 196)
                quads.append(jnp.pad(xq, ((0, 0), (0, QW - FLAT))))  # (B, 256)
    xq_all = jnp.concatenate(quads, axis=1).astype(cdtype)           # (B, c_in*4*256)

    c_tot = C_OUT * c_in * KH * KW
    cw = conv_w.reshape(1, c_tot).astype(cdtype)                     # (1, 45)
    cb = conv_b.reshape(1, C_OUT).astype(cdtype)                     # (1, 5)

    # FC weight scattered into the kernel's pooled layout: per channel a 256-lane
    # block holding the (14,14) stride-14 plane with zeros at i=13 / j=13 and at
    # the 60 pad lanes.  Matches torch's .view(-1, 845) ordering.
    w4 = fc_w.reshape(FC_OUT, C_OUT, H_POOL, W_POOL)
    w4 = jnp.pad(w4, ((0, 0), (0, 0), (0, P14 - H_POOL), (0, P14 - W_POOL)))
    w3 = jnp.pad(w4.reshape(FC_OUT, C_OUT, FLAT), ((0, 0), (0, 0), (0, QP - FLAT)))
    fw = jnp.transpose(w3.reshape(FC_OUT, C_OUT * QP), (1, 0)).astype(cdtype)
    fb = fc_b.reshape(1, FC_OUT).astype(jnp.float32)

    # --- batch tiling ------------------------------------------------------------
    TB, Bp = _choose_batch_tiling(B, batch_tile)
    if Bp != B:
        xq_all = jnp.pad(xq_all, ((0, Bp - B), (0, 0)))

    lane_w = c_in * 4 * QW
    out = pl.pallas_call(
        functools.partial(_fused_kernel, c_in),
        out_shape=jax.ShapeDtypeStruct((Bp, FC_OUT), jnp.float32),
        grid=(Bp // TB,),
        in_specs=[
            pl.BlockSpec((TB, lane_w), lambda i: (i, 0)),              # input quads
            pl.BlockSpec((1, c_tot), lambda i: (0, 0)),                # conv weights
            pl.BlockSpec((1, C_OUT), lambda i: (0, 0)),                # conv bias
            pl.BlockSpec((C_OUT * QP, FC_OUT), lambda i: (0, 0)),      # FC weight
            pl.BlockSpec((1, FC_OUT), lambda i: (0, 0)),               # FC bias
        ],
        out_specs=pl.BlockSpec((TB, FC_OUT), lambda i: (i, 0)),
        scratch_shapes=[pltpu.VMEM((TB, C_OUT * QP), cdtype)],         # pooled slab
        compiler_params=pltpu.CompilerParams(dimension_semantics=("parallel",)),
    )(xq_all, cw, cb, fw, fb)
    return out[:B]


def reference_forward(x, conv_w, conv_b, fc_w, fc_b):
    """Pure-JAX reference mirroring the PyTorch forward (high precision)."""
    y = lax.conv_general_dilated(
        x.astype(jnp.float32), conv_w.astype(jnp.float32),
        window_strides=(1, 1), padding="VALID",
        dimension_numbers=("NCHW", "OIHW", "NCHW"),
        precision=lax.Precision.HIGHEST)
    y = y + conv_b.reshape(1, C_OUT, 1, 1)
    y = jnp.maximum(y, 0.0)
    y = lax.reduce_window(y, -jnp.inf, lax.max,
                          (1, 1, 2, 2), (1, 1, 2, 2), "VALID")
    flat = y.reshape(x.shape[0], FC_IN)
    return jnp.dot(flat, fc_w.T, precision=lax.Precision.HIGHEST) + fc_b


if __name__ == "__main__":
    key = jax.random.PRNGKey(0)
    k1, k2, k3, k4, k5 = jax.random.split(key, 5)

    B = 2
    x = jax.random.normal(k1, (B, 1, H_IN, W_IN), jnp.float32)
    # Shapes from nn.Conv2d(1, 5, 3, 1) / nn.Linear(845, 10).
    conv_w = 0.1 * jax.random.normal(k2, (C_OUT, 1, KH, KW), jnp.float32)
    conv_b = 0.1 * jax.random.normal(k3, (C_OUT,), jnp.float32)
    fc_w = 0.05 * jax.random.normal(k4, (FC_OUT, FC_IN), jnp.float32)
    fc_b = 0.05 * jax.random.normal(k5, (FC_OUT,), jnp.float32)

    out = jax.block_until_ready(net_forward(x, conv_w, conv_b, fc_w, fc_b))
    ref = reference_forward(x, conv_w, conv_b, fc_w, fc_b)

    assert out.shape == (B, FC_OUT), out.shape
    max_err = float(jnp.max(jnp.abs(out - ref)))
    assert jnp.allclose(out, ref, atol=1e-2, rtol=1e-2), max_err

    # TODO(synk): quantize()/freeze()/quantize_inference() paths are not part of
    # the float forward() and are not implemented here.
    print("KERNEL_OK")
</pallas_src>

<mosaic_0001>
module attributes {stable_mosaic.version = 11 : i64} {
  func.func @_fused_kernel(%arg0: i32, %arg1: memref<16x1024xbf16, #tpu.memory_space<vmem>>, %arg2: memref<1x45xbf16, #tpu.memory_space<vmem>>, %arg3: memref<1x5xbf16, #tpu.memory_space<vmem>>, %arg4: memref<1280x10xbf16, #tpu.memory_space<vmem>>, %arg5: memref<1x10xf32, #tpu.memory_space<vmem>>, %arg6: memref<16x10xf32, #tpu.memory_space<vmem>>, %arg7: memref<16x1280xbf16, #tpu.memory_space<vmem>>) attributes {dimension_semantics = [#tpu.dimension_semantics<parallel>], iteration_bounds = array<i64: 1>, scalar_prefetch = 0 : i64, scratch_operands = 1 : i64, tpu.core_type = #tpu.core_type<tc>, window_params = [{transform_indices = @transform_0, window_bounds = array<i64: 16, 1024>}, {pipeline_mode = #tpu.pipeline_mode<synchronous>, transform_indices = @transform_1, window_bounds = array<i64: 1, 45>}, {pipeline_mode = #tpu.pipeline_mode<synchronous>, transform_indices = @transform_2, window_bounds = array<i64: 1, 5>}, {pipeline_mode = #tpu.pipeline_mode<synchronous>, transform_indices = @transform_3, window_bounds = array<i64: 1280, 10>}, {pipeline_mode = #tpu.pipeline_mode<synchronous>, transform_indices = @transform_4, window_bounds = array<i64: 1, 10>}, {transform_indices = @transform_5, window_bounds = array<i64: 16, 10>}]} {
    %cst = arith.constant 0.000000e+00 : bf16
    %0 = vector.broadcast %cst : bf16 to vector<16x128xbf16>
    %c0 = arith.constant 0 : index
    %c0_0 = arith.constant 0 : index
    %1 = vector.load %arg1[%c0, %c0_0] : memref<16x1024xbf16, #tpu.memory_space<vmem>>, vector<16x196xbf16>
    %c0_1 = arith.constant 0 : index
    %c256 = arith.constant 256 : index
    %2 = vector.load %arg1[%c0_1, %c256] : memref<16x1024xbf16, #tpu.memory_space<vmem>>, vector<16x196xbf16>
    %c0_2 = arith.constant 0 : index
    %c1 = arith.constant 1 : index
    %3 = vector.load %arg1[%c0_2, %c1] : memref<16x1024xbf16, #tpu.memory_space<vmem>>, vector<16x196xbf16>
    %c0_3 = arith.constant 0 : index
    %c512 = arith.constant 512 : index
    %4 = vector.load %arg1[%c0_3, %c512] : memref<16x1024xbf16, #tpu.memory_space<vmem>>, vector<16x196xbf16>
    %c0_4 = arith.constant 0 : index
    %c768 = arith.constant 768 : index
    %5 = vector.load %arg1[%c0_4, %c768] : memref<16x1024xbf16, #tpu.memory_space<vmem>>, vector<16x196xbf16>
    %c0_5 = arith.constant 0 : index
    %c513 = arith.constant 513 : index
    %6 = vector.load %arg1[%c0_5, %c513] : memref<16x1024xbf16, #tpu.memory_space<vmem>>, vector<16x196xbf16>
    %c0_6 = arith.constant 0 : index
    %c14 = arith.constant 14 : index
    %7 = vector.load %arg1[%c0_6, %c14] : memref<16x1024xbf16, #tpu.memory_space<vmem>>, vector<16x196xbf16>
    %c0_7 = arith.constant 0 : index
    %c270 = arith.constant 270 : index
    %8 = vector.load %arg1[%c0_7, %c270] : memref<16x1024xbf16, #tpu.memory_space<vmem>>, vector<16x196xbf16>
    %c0_8 = arith.constant 0 : index
    %c15 = arith.constant 15 : index
    %9 = vector.load %arg1[%c0_8, %c15] : memref<16x1024xbf16, #tpu.memory_space<vmem>>, vector<16x196xbf16>
    %c0_9 = arith.constant 0 : index
    %c0_10 = arith.constant 0 : index
    %10 = vector.load %arg2[%c0_9, %c0_10] : memref<1x45xbf16, #tpu.memory_space<vmem>>, vector<1x1xbf16>
    %11 = vector.broadcast %10 : vector<1x1xbf16> to vector<16x196xbf16>
    %12 = arith.mulf %1, %11 : vector<16x196xbf16>
    %c0_11 = arith.constant 0 : index
    %c1_12 = arith.constant 1 : index
    %13 = vector.load %arg2[%c0_11, %c1_12] : memref<1x45xbf16, #tpu.memory_space<vmem>>, vector<1x1xbf16>
    %14 = vector.broadcast %13 : vector<1x1xbf16> to vector<16x196xbf16>
    %15 = arith.mulf %2, %14 : vector<16x196xbf16>
    %16 = arith.addf %12, %15 : vector<16x196xbf16>
    %c0_13 = arith.constant 0 : index
    %c2 = arith.constant 2 : index
    %17 = vector.load %arg2[%c0_13, %c2] : memref<1x45xbf16, #tpu.memory_space<vmem>>, vector<1x1xbf16>
    %18 = vector.broadcast %17 : vector<1x1xbf16> to vector<16x196xbf16>
    %19 = arith.mulf %3, %18 : vector<16x196xbf16>
    %20 = arith.addf %16, %19 : vector<16x196xbf16>
    %c0_14 = arith.constant 0 : index
    %c3 = arith.constant 3 : index
    %21 = vector.load %arg2[%c0_14, %c3] : memref<1x45xbf16, #tpu.memory_space<vmem>>, vector<1x1xbf16>
    %22 = vector.broadcast %21 : vector<1x1xbf16> to vector<16x196xbf16>
    %23 = arith.mulf %4, %22 : vector<16x196xbf16>
    %24 = arith.addf %20, %23 : vector<16x196xbf16>
    %c0_15 = arith.constant 0 : index
    %c4 = arith.constant 4 : index
    %25 = vector.load %arg2[%c0_15, %c4] : memref<1x45xbf16, #tpu.memory_space<vmem>>, vector<1x1xbf16>
    %26 = vector.broadcast %25 : vector<1x1xbf16> to vector<16x196xbf16>
    %27 = arith.mulf %5, %26 : vector<16x196xbf16>
    %28 = arith.addf %24, %27 : vector<16x196xbf16>
    %c0_16 = arith.constant 0 : index
    %c5 = arith.constant 5 : index
    %29 = vector.load %arg2[%c0_16, %c5] : memref<1x45xbf16, #tpu.memory_space<vmem>>, vector<1x1xbf16>
    %30 = vector.broadcast %29 : vector<1x1xbf16> to vector<16x196xbf16>
    %31 = arith.mulf %6, %30 : vector<16x196xbf16>
    %32 = arith.addf %28, %31 : vector<16x196xbf16>
    %c0_17 = arith.constant 0 : index
    %c6 = arith.constant 6 : index
    %33 = vector.load %arg2[%c0_17, %c6] : memref<1x45xbf16, #tpu.memory_space<vmem>>, vector<1x1xbf16>
    %34 = vector.broadcast %33 : vector<1x1xbf16> to vector<16x196xbf16>
    %35 = arith.mulf %7, %34 : vector<16x196xbf16>
    %36 = arith.addf %32, %35 : vector<16x196xbf16>
    %c0_18 = arith.constant 0 : index
    %c7 = arith.constant 7 : index
    %37 = vector.load %arg2[%c0_18, %c7] : memref<1x45xbf16, #tpu.memory_space<vmem>>, vector<1x1xbf16>
    %38 = vector.broadcast %37 : vector<1x1xbf16> to vector<16x196xbf16>
    %39 = arith.mulf %8, %38 : vector<16x196xbf16>
    %40 = arith.addf %36, %39 : vector<16x196xbf16>
    %c0_19 = arith.constant 0 : index
    %c8 = arith.constant 8 : index
    %41 = vector.load %arg2[%c0_19, %c8] : memref<1x45xbf16, #tpu.memory_space<vmem>>, vector<1x1xbf16>
    %42 = vector.broadcast %41 : vector<1x1xbf16> to vector<16x196xbf16>
    %43 = arith.mulf %9, %42 : vector<16x196xbf16>
    %44 = arith.addf %40, %43 : vector<16x196xbf16>
    %c0_20 = arith.constant 0 : index
    %c0_21 = arith.constant 0 : index
    %45 = vector.load %arg3[%c0_20, %c0_21] : memref<1x5xbf16, #tpu.memory_space<vmem>>, vector<1x1xbf16>
    %46 = vector.broadcast %45 : vector<1x1xbf16> to vector<16x196xbf16>
    %47 = arith.addf %44, %46 : vector<16x196xbf16>
    %cst_22 = arith.constant 0.000000e+00 : bf16
    %48 = vector.broadcast %cst_22 : bf16 to vector<16x196xbf16>
    %49 = arith.maximumf %47, %48 : vector<16x196xbf16>
    %c0_23 = arith.constant 0 : index
    %c128 = arith.constant 128 : index
    %50 = vector.load %arg7[%c0_23, %c128] : memref<16x1280xbf16, #tpu.memory_space<vmem>>, vector<16x128xbf16>
    tpu.vector_store %arg7[%c0_23, %c128], %0 {strides = array<i32>} : memref<16x1280xbf16, #tpu.memory_space<vmem>>, vector<16x128xbf16>,
    %c0_24 = arith.constant 0 : index
    %c0_25 = arith.constant 0 : index
    %51 = vector.load %arg7[%c0_24, %c0_25] : memref<16x1280xbf16, #tpu.memory_space<vmem>>, vector<16x196xbf16>
    tpu.vector_store %arg7[%c0_24, %c0_25], %49 {strides = array<i32>} : memref<16x1280xbf16, #tpu.memory_space<vmem>>, vector<16x196xbf16>,
    %c0_26 = arith.constant 0 : index
    %c9 = arith.constant 9 : index
    %52 = vector.load %arg2[%c0_26, %c9] : memref<1x45xbf16, #tpu.memory_space<vmem>>, vector<1x1xbf16>
    %53 = vector.broadcast %52 : vector<1x1xbf16> to vector<16x196xbf16>
    %54 = arith.mulf %1, %53 : vector<16x196xbf16>
    %c0_27 = arith.constant 0 : index
    %c10 = arith.constant 10 : index
    %55 = vector.load %arg2[%c0_27, %c10] : memref<1x45xbf16, #tpu.memory_space<vmem>>, vector<1x1xbf16>
    %56 = vector.broadcast %55 : vector<1x1xbf16> to vector<16x196xbf16>
    %57 = arith.mulf %2, %56 : vector<16x196xbf16>
    %58 = arith.addf %54, %57 : vector<16x196xbf16>
    %c0_28 = arith.constant 0 : index
    %c11 = arith.constant 11 : index
    %59 = vector.load %arg2[%c0_28, %c11] : memref<1x45xbf16, #tpu.memory_space<vmem>>, vector<1x1xbf16>
    %60 = vector.broadcast %59 : vector<1x1xbf16> to vector<16x196xbf16>
    %61 = arith.mulf %3, %60 : vector<16x196xbf16>
    %62 = arith.addf %58, %61 : vector<16x196xbf16>
    %c0_29 = arith.constant 0 : index
    %c12 = arith.constant 12 : index
    %63 = vector.load %arg2[%c0_29, %c12] : memref<1x45xbf16, #tpu.memory_space<vmem>>, vector<1x1xbf16>
    %64 = vector.broadcast %63 : vector<1x1xbf16> to vector<16x196xbf16>
    %65 = arith.mulf %4, %64 : vector<16x196xbf16>
    %66 = arith.addf %62, %65 : vector<16x196xbf16>
    %c0_30 = arith.constant 0 : index
    %c13 = arith.constant 13 : index
    %67 = vector.load %arg2[%c0_30, %c13] : memref<1x45xbf16, #tpu.memory_space<vmem>>, vector<1x1xbf16>
    %68 = vector.broadcast %67 : vector<1x1xbf16> to vector<16x196xbf16>
    %69 = arith.mulf %5, %68 : vector<16x196xbf16>
    %70 = arith.addf %66, %69 : vector<16x196xbf16>
    %c0_31 = arith.constant 0 : index
    %c14_32 = arith.constant 14 : index
    %71 = vector.load %arg2[%c0_31, %c14_32] : memref<1x45xbf16, #tpu.memory_space<vmem>>, vector<1x1xbf16>
    %72 = vector.broadcast %71 : vector<1x1xbf16> to vector<16x196xbf16>
    %73 = arith.mulf %6, %72 : vector<16x196xbf16>
    %74 = arith.addf %70, %73 : vector<16x196xbf16>
    %c0_33 = arith.constant 0 : index
    %c15_34 = arith.constant 15 : index
    %75 = vector.load %arg2[%c0_33, %c15_34] : memref<1x45xbf16, #tpu.memory_space<vmem>>, vector<1x1xbf16>
    %76 = vector.broadcast %75 : vector<1x1xbf16> to vector<16x196xbf16>
    %77 = arith.mulf %7, %76 : vector<16x196xbf16>
    %78 = arith.addf %74, %77 : vector<16x196xbf16>
    %c0_35 = arith.constant 0 : index
    %c16 = arith.constant 16 : index
    %79 = vector.load %arg2[%c0_35, %c16] : memref<1x45xbf16, #tpu.memory_space<vmem>>, vector<1x1xbf16>
    %80 = vector.broadcast %79 : vector<1x1xbf16> to vector<16x196xbf16>
    %81 = arith.mulf %8, %80 : vector<16x196xbf16>
    %82 = arith.addf %78, %81 : vector<16x196xbf16>
    %c0_36 = arith.constant 0 : index
    %c17 = arith.constant 17 : index
    %83 = vector.load %arg2[%c0_36, %c17] : memref<1x45xbf16, #tpu.memory_space<vmem>>, vector<1x1xbf16>
    %84 = vector.broadcast %83 : vector<1x1xbf16> to vector<16x196xbf16>
    %85 = arith.mulf %9, %84 : vector<16x196xbf16>
    %86 = arith.addf %82, %85 : vector<16x196xbf16>
    %c0_37 = arith.constant 0 : index
    %c1_38 = arith.constant 1 : index
    %87 = vector.load %arg3[%c0_37, %c1_38] : memref<1x5xbf16, #tpu.memory_space<vmem>>, vector<1x1xbf16>
    %88 = vector.broadcast %87 : vector<1x1xbf16> to vector<16x196xbf16>
    %89 = arith.addf %86, %88 : vector<16x196xbf16>
    %cst_39 = arith.constant 0.000000e+00 : bf16
    %90 = vector.broadcast %cst_39 : bf16 to vector<16x196xbf16>
    %91 = arith.maximumf %89, %90 : vector<16x196xbf16>
    %c0_40 = arith.constant 0 : index
    %c384 = arith.constant 384 : index
    %92 = vector.load %arg7[%c0_40, %c384] : memref<16x1280xbf16, #tpu.memory_space<vmem>>, vector<16x128xbf16>
    tpu.vector_store %arg7[%c0_40, %c384], %0 {strides = array<i32>} : memref<16x1280xbf16, #tpu.memory_space<vmem>>, vector<16x128xbf16>,
    %c0_41 = arith.constant 0 : index
    %c256_42 = arith.constant 256 : index
    %93 = vector.load %arg7[%c0_41, %c256_42] : memref<16x1280xbf16, #tpu.memory_space<vmem>>, vector<16x196xbf16>
    tpu.vector_store %arg7[%c0_41, %c256_42], %91 {strides = array<i32>} : memref<16x1280xbf16, #tpu.memory_space<vmem>>, vector<16x196xbf16>,
    %c0_43 = arith.constant 0 : index
    %c18 = arith.constant 18 : index
    %94 = vector.load %arg2[%c0_43, %c18] : memref<1x45xbf16, #tpu.memory_space<vmem>>, vector<1x1xbf16>
    %95 = vector.broadcast %94 : vector<1x1xbf16> to vector<16x196xbf16>
    %96 = arith.mulf %1, %95 : vector<16x196xbf16>
    %c0_44 = arith.constant 0 : index
    %c19 = arith.constant 19 : index
    %97 = vector.load %arg2[%c0_44, %c19] : memref<1x45xbf16, #tpu.memory_space<vmem>>, vector<1x1xbf16>
    %98 = vector.broadcast %97 : vector<1x1xbf16> to vector<16x196xbf16>
    %99 = arith.mulf %2, %98 : vector<16x196xbf16>
    %100 = arith.addf %96, %99 : vector<16x196xbf16>
    %c0_45 = arith.constant 0 : index
    %c20 = arith.constant 20 : index
    %101 = vector.load %arg2[%c0_45, %c20] : memref<1x45xbf16, #tpu.memory_space<vmem>>, vector<1x1xbf16>
    %102 = vector.broadcast %101 : vector<1x1xbf16> to vector<16x196xbf16>
    %103 = arith.mulf %3, %102 : vector<16x196xbf16>
    %104 = arith.addf %100, %103 : vector<16x196xbf16>
    %c0_46 = arith.constant 0 : index
    %c21 = arith.constant 21 : index
    %105 = vector.load %arg2[%c0_46, %c21] : memref<1x45xbf16, #tpu.memory_space<vmem>>, vector<1x1xbf16>
    %106 = vector.broadcast %105 : vector<1x1xbf16> to vector<16x196xbf16>
    %107 = arith.mulf %4, %106 : vector<16x196xbf16>
    %108 = arith.addf %104, %107 : vector<16x196xbf16>
    %c0_47 = arith.constant 0 : index
    %c22 = arith.constant 22 : index
    %109 = vector.load %arg2[%c0_47, %c22] : memref<1x45xbf16, #tpu.memory_space<vmem>>, vector<1x1xbf16>
    %110 = vector.broadcast %109 : vector<1x1xbf16> to vector<16x196xbf16>
    %111 = arith.mulf %5, %110 : vector<16x196xbf16>
    %112 = arith.addf %108, %111 : vector<16x196xbf16>
    %c0_48 = arith.constant 0 : index
    %c23 = arith.constant 23 : index
    %113 = vector.load %arg2[%c0_48, %c23] : memref<1x45xbf16, #tpu.memory_space<vmem>>, vector<1x1xbf16>
    %114 = vector.broadcast %113 : vector<1x1xbf16> to vector<16x196xbf16>
    %115 = arith.mulf %6, %114 : vector<16x196xbf16>
    %116 = arith.addf %112, %115 : vector<16x196xbf16>
    %c0_49 = arith.constant 0 : index
    %c24 = arith.constant 24 : index
    %117 = vector.load %arg2[%c0_49, %c24] : memref<1x45xbf16, #tpu.memory_space<vmem>>, vector<1x1xbf16>
    %118 = vector.broadcast %117 : vector<1x1xbf16> to vector<16x196xbf16>
    %119 = arith.mulf %7, %118 : vector<16x196xbf16>
    %120 = arith.addf %116, %119 : vector<16x196xbf16>
    %c0_50 = arith.constant 0 : index
    %c25 = arith.constant 25 : index
    %121 = vector.load %arg2[%c0_50, %c25] : memref<1x45xbf16, #tpu.memory_space<vmem>>, vector<1x1xbf16>
    %122 = vector.broadcast %121 : vector<1x1xbf16> to vector<16x196xbf16>
    %123 = arith.mulf %8, %122 : vector<16x196xbf16>
    %124 = arith.addf %120, %123 : vector<16x196xbf16>
    %c0_51 = arith.constant 0 : index
    %c26 = arith.constant 26 : index
    %125 = vector.load %arg2[%c0_51, %c26] : memref<1x45xbf16, #tpu.memory_space<vmem>>, vector<1x1xbf16>
    %126 = vector.broadcast %125 : vector<1x1xbf16> to vector<16x196xbf16>
    %127 = arith.mulf %9, %126 : vector<16x196xbf16>
    %128 = arith.addf %124, %127 : vector<16x196xbf16>
    %c0_52 = arith.constant 0 : index
    %c2_53 = arith.constant 2 : index
    %129 = vector.load %arg3[%c0_52, %c2_53] : memref<1x5xbf16, #tpu.memory_space<vmem>>, vector<1x1xbf16>
    %130 = vector.broadcast %129 : vector<1x1xbf16> to vector<16x196xbf16>
    %131 = arith.addf %128, %130 : vector<16x196xbf16>
    %cst_54 = arith.constant 0.000000e+00 : bf16
    %132 = vector.broadcast %cst_54 : bf16 to vector<16x196xbf16>
    %133 = arith.maximumf %131, %132 : vector<16x196xbf16>
    %c0_55 = arith.constant 0 : index
    %c640 = arith.constant 640 : index
    %134 = vector.load %arg7[%c0_55, %c640] : memref<16x1280xbf16, #tpu.memory_space<vmem>>, vector<16x128xbf16>
    tpu.vector_store %arg7[%c0_55, %c640], %0 {strides = array<i32>} : memref<16x1280xbf16, #tpu.memory_space<vmem>>, vector<16x128xbf16>,
    %c0_56 = arith.constant 0 : index
    %c512_57 = arith.constant 512 : index
    %135 = vector.load %arg7[%c0_56, %c512_57] : memref<16x1280xbf16, #tpu.memory_space<vmem>>, vector<16x196xbf16>
    tpu.vector_store %arg7[%c0_56, %c512_57], %133 {strides = array<i32>} : memref<16x1280xbf16, #tpu.memory_space<vmem>>, vector<16x196xbf16>,
    %c0_58 = arith.constant 0 : index
    %c27 = arith.constant 27 : index
    %136 = vector.load %arg2[%c0_58, %c27] : memref<1x45xbf16, #tpu.memory_space<vmem>>, vector<1x1xbf16>
    %137 = vector.broadcast %136 : vector<1x1xbf16> to vector<16x196xbf16>
    %138 = arith.mulf %1, %137 : vector<16x196xbf16>
    %c0_59 = arith.constant 0 : index
    %c28 = arith.constant 28 : index
    %139 = vector.load %arg2[%c0_59, %c28] : memref<1x45xbf16, #tpu.memory_space<vmem>>, vector<1x1xbf16>
    %140 = vector.broadcast %139 : vector<1x1xbf16> to vector<16x196xbf16>
    %141 = arith.mulf %2, %140 : vector<16x196xbf16>
    %142 = arith.addf %138, %141 : vector<16x196xbf16>
    %c0_60 = arith.constant 0 : index
    %c29 = arith.constant 29 : index
    %143 = vector.load %arg2[%c0_60, %c29] : memref<1x45xbf16, #tpu.memory_space<vmem>>, vector<1x1xbf16>
    %144 = vector.broadcast %143 : vector<1x1xbf16> to vector<16x196xbf16>
    %145 = arith.mulf %3, %144 : vector<16x196xbf16>
    %146 = arith.addf %142, %145 : vector<16x196xbf16>
    %c0_61 = arith.constant 0 : index
    %c30 = arith.constant 30 : index
    %147 = vector.load %arg2[%c0_61, %c30] : memref<1x45xbf16, #tpu.memory_space<vmem>>, vector<1x1xbf16>
    %148 = vector.broadcast %147 : vector<1x1xbf16> to vector<16x196xbf16>
    %149 = arith.mulf %4, %148 : vector<16x196xbf16>
    %150 = arith.addf %146, %149 : vector<16x196xbf16>
    %c0_62 = arith.constant 0 : index
    %c31 = arith.constant 31 : index
    %151 = vector.load %arg2[%c0_62, %c31] : memref<1x45xbf16, #tpu.memory_space<vmem>>, vector<1x1xbf16>
    %152 = vector.broadcast %151 : vector<1x1xbf16> to vector<16x196xbf16>
    %153 = arith.mulf %5, %152 : vector<16x196xbf16>
    %154 = arith.addf %150, %153 : vector<16x196xbf16>
    %c0_63 = arith.constant 0 : index
    %c32 = arith.constant 32 : index
    %155 = vector.load %arg2[%c0_63, %c32] : memref<1x45xbf16, #tpu.memory_space<vmem>>, vector<1x1xbf16>
    %156 = vector.broadcast %155 : vector<1x1xbf16> to vector<16x196xbf16>
    %157 = arith.mulf %6, %156 : vector<16x196xbf16>
    %158 = arith.addf %154, %157 : vector<16x196xbf16>
    %c0_64 = arith.constant 0 : index
    %c33 = arith.constant 33 : index
    %159 = vector.load %arg2[%c0_64, %c33] : memref<1x45xbf16, #tpu.memory_space<vmem>>, vector<1x1xbf16>
    %160 = vector.broadcast %159 : vector<1x1xbf16> to vector<16x196xbf16>
    %161 = arith.mulf %7, %160 : vector<16x196xbf16>
    %162 = arith.addf %158, %161 : vector<16x196xbf16>
    %c0_65 = arith.constant 0 : index
    %c34 = arith.constant 34 : index
    %163 = vector.load %arg2[%c0_65, %c34] : memref<1x45xbf16, #tpu.memory_space<vmem>>, vector<1x1xbf16>
    %164 = vector.broadcast %163 : vector<1x1xbf16> to vector<16x196xbf16>
    %165 = arith.mulf %8, %164 : vector<16x196xbf16>
    %166 = arith.addf %162, %165 : vector<16x196xbf16>
    %c0_66 = arith.constant 0 : index
    %c35 = arith.constant 35 : index
    %167 = vector.load %arg2[%c0_66, %c35] : memref<1x45xbf16, #tpu.memory_space<vmem>>, vector<1x1xbf16>
    %168 = vector.broadcast %167 : vector<1x1xbf16> to vector<16x196xbf16>
    %169 = arith.mulf %9, %168 : vector<16x196xbf16>
    %170 = arith.addf %166, %169 : vector<16x196xbf16>
    %c0_67 = arith.constant 0 : index
    %c3_68 = arith.constant 3 : index
    %171 = vector.load %arg3[%c0_67, %c3_68] : memref<1x5xbf16, #tpu.memory_space<vmem>>, vector<1x1xbf16>
    %172 = vector.broadcast %171 : vector<1x1xbf16> to vector<16x196xbf16>
    %173 = arith.addf %170, %172 : vector<16x196xbf16>
    %cst_69 = arith.constant 0.000000e+00 : bf16
    %174 = vector.broadcast %cst_69 : bf16 to vector<16x196xbf16>
    %175 = arith.maximumf %173, %174 : vector<16x196xbf16>
    %c0_70 = arith.constant 0 : index
    %c896 = arith.constant 896 : index
    %176 = vector.load %arg7[%c0_70, %c896] : memref<16x1280xbf16, #tpu.memory_space<vmem>>, vector<16x128xbf16>
    tpu.vector_store %arg7[%c0_70, %c896], %0 {strides = array<i32>} : memref<16x1280xbf16, #tpu.memory_space<vmem>>, vector<16x128xbf16>,
    %c0_71 = arith.constant 0 : index
    %c768_72 = arith.constant 768 : index
    %177 = vector.load %arg7[%c0_71, %c768_72] : memref<16x1280xbf16, #tpu.memory_space<vmem>>, vector<16x196xbf16>
    tpu.vector_store %arg7[%c0_71, %c768_72], %175 {strides = array<i32>} : memref<16x1280xbf16, #tpu.memory_space<vmem>>, vector<16x196xbf16>,
    %c0_73 = arith.constant 0 : index
    %c36 = arith.constant 36 : index
    %178 = vector.load %arg2[%c0_73, %c36] : memref<1x45xbf16, #tpu.memory_space<vmem>>, vector<1x1xbf16>
    %179 = vector.broadcast %178 : vector<1x1xbf16> to vector<16x196xbf16>
    %180 = arith.mulf %1, %179 : vector<16x196xbf16>
    %c0_74 = arith.constant 0 : index
    %c37 = arith.constant 37 : index
    %181 = vector.load %arg2[%c0_74, %c37] : memref<1x45xbf16, #tpu.memory_space<vmem>>, vector<1x1xbf16>
    %182 = vector.broadcast %181 : vector<1x1xbf16> to vector<16x196xbf16>
    %183 = arith.mulf %2, %182 : vector<16x196xbf16>
    %184 = arith.addf %180, %183 : vector<16x196xbf16>
    %c0_75 = arith.constant 0 : index
    %c38 = arith.constant 38 : index
    %185 = vector.load %arg2[%c0_75, %c38] : memref<1x45xbf16, #tpu.memory_space<vmem>>, vector<1x1xbf16>
    %186 = vector.broadcast %185 : vector<1x1xbf16> to vector<16x196xbf16>
    %187 = arith.mulf %3, %186 : vector<16x196xbf16>
    %188 = arith.addf %184, %187 : vector<16x196xbf16>
    %c0_76 = arith.constant 0 : index
    %c39 = arith.constant 39 : index
    %189 = vector.load %arg2[%c0_76, %c39] : memref<1x45xbf16, #tpu.memory_space<vmem>>, vector<1x1xbf16>
    %190 = vector.broadcast %189 : vector<1x1xbf16> to vector<16x196xbf16>
    %191 = arith.mulf %4, %190 : vector<16x196xbf16>
    %192 = arith.addf %188, %191 : vector<16x196xbf16>
    %c0_77 = arith.constant 0 : index
    %c40 = arith.constant 40 : index
    %193 = vector.load %arg2[%c0_77, %c40] : memref<1x45xbf16, #tpu.memory_space<vmem>>, vector<1x1xbf16>
    %194 = vector.broadcast %193 : vector<1x1xbf16> to vector<16x196xbf16>
    %195 = arith.mulf %5, %194 : vector<16x196xbf16>
    %196 = arith.addf %192, %195 : vector<16x196xbf16>
    %c0_78 = arith.constant 0 : index
    %c41 = arith.constant 41 : index
    %197 = vector.load %arg2[%c0_78, %c41] : memref<1x45xbf16, #tpu.memory_space<vmem>>, vector<1x1xbf16>
    %198 = vector.broadcast %197 : vector<1x1xbf16> to vector<16x196xbf16>
    %199 = arith.mulf %6, %198 : vector<16x196xbf16>
    %200 = arith.addf %196, %199 : vector<16x196xbf16>
    %c0_79 = arith.constant 0 : index
    %c42 = arith.constant 42 : index
    %201 = vector.load %arg2[%c0_79, %c42] : memref<1x45xbf16, #tpu.memory_space<vmem>>, vector<1x1xbf16>
    %202 = vector.broadcast %201 : vector<1x1xbf16> to vector<16x196xbf16>
    %203 = arith.mulf %7, %202 : vector<16x196xbf16>
    %204 = arith.addf %200, %203 : vector<16x196xbf16>
    %c0_80 = arith.constant 0 : index
    %c43 = arith.constant 43 : index
    %205 = vector.load %arg2[%c0_80, %c43] : memref<1x45xbf16, #tpu.memory_space<vmem>>, vector<1x1xbf16>
    %206 = vector.broadcast %205 : vector<1x1xbf16> to vector<16x196xbf16>
    %207 = arith.mulf %8, %206 : vector<16x196xbf16>
    %208 = arith.addf %204, %207 : vector<16x196xbf16>
    %c0_81 = arith.constant 0 : index
    %c44 = arith.constant 44 : index
    %209 = vector.load %arg2[%c0_81, %c44] : memref<1x45xbf16, #tpu.memory_space<vmem>>, vector<1x1xbf16>
    %210 = vector.broadcast %209 : vector<1x1xbf16> to vector<16x196xbf16>
    %211 = arith.mulf %9, %210 : vector<16x196xbf16>
    %212 = arith.addf %208, %211 : vector<16x196xbf16>
    %c0_82 = arith.constant 0 : index
    %c4_83 = arith.constant 4 : index
    %213 = vector.load %arg3[%c0_82, %c4_83] : memref<1x5xbf16, #tpu.memory_space<vmem>>, vector<1x1xbf16>
    %214 = vector.broadcast %213 : vector<1x1xbf16> to vector<16x196xbf16>
    %215 = arith.addf %212, %214 : vector<16x196xbf16>
    %cst_84 = arith.constant 0.000000e+00 : bf16
    %216 = vector.broadcast %cst_84 : bf16 to vector<16x196xbf16>
    %217 = arith.maximumf %215, %216 : vector<16x196xbf16>
    %c0_85 = arith.constant 0 : index
    %c1152 = arith.constant 1152 : index
    %218 = vector.load %arg7[%c0_85, %c1152] : memref<16x1280xbf16, #tpu.memory_space<vmem>>, vector<16x128xbf16>
    tpu.vector_store %arg7[%c0_85, %c1152], %0 {strides = array<i32>} : memref<16x1280xbf16, #tpu.memory_space<vmem>>, vector<16x128xbf16>,
    %c0_86 = arith.constant 0 : index
    %c1024 = arith.constant 1024 : index
    %219 = vector.load %arg7[%c0_86, %c1024] : memref<16x1280xbf16, #tpu.memory_space<vmem>>, vector<16x196xbf16>
    tpu.vector_store %arg7[%c0_86, %c1024], %217 {strides = array<i32>} : memref<16x1280xbf16, #tpu.memory_space<vmem>>, vector<16x196xbf16>,
    %c0_87 = arith.constant 0 : index
    %c256_88 = arith.constant 256 : index
    %220 = vector.load %arg1[%c0_87, %c256_88] : memref<16x1024xbf16, #tpu.memory_space<vmem>>, vector<16x196xbf16>
    %c0_89 = arith.constant 0 : index
    %c1_90 = arith.constant 1 : index
    %221 = vector.load %arg1[%c0_89, %c1_90] : memref<16x1024xbf16, #tpu.memory_space<vmem>>, vector<16x196xbf16>
    %c0_91 = arith.constant 0 : index
    %c257 = arith.constant 257 : index
    %222 = vector.load %arg1[%c0_91, %c257] : memref<16x1024xbf16, #tpu.memory_space<vmem>>, vector<16x196xbf16>
    %c0_92 = arith.constant 0 : index
    %c768_93 = arith.constant 768 : index
    %223 = vector.load %arg1[%c0_92, %c768_93] : memref<16x1024xbf16, #tpu.memory_space<vmem>>, vector<16x196xbf16>
    %c0_94 = arith.constant 0 : index
    %c513_95 = arith.constant 513 : index
    %224 = vector.load %arg1[%c0_94, %c513_95] : memref<16x1024xbf16, #tpu.memory_space<vmem>>, vector<16x196xbf16>
    %c0_96 = arith.constant 0 : index
    %c769 = arith.constant 769 : index
    %225 = vector.load %arg1[%c0_96, %c769] : memref<16x1024xbf16, #tpu.memory_space<vmem>>, vector<16x196xbf16>
    %c0_97 = arith.constant 0 : index
    %c270_98 = arith.constant 270 : index
    %226 = vector.load %arg1[%c0_97, %c270_98] : memref<16x1024xbf16, #tpu.memory_space<vmem>>, vector<16x196xbf16>
    %c0_99 = arith.constant 0 : index
    %c15_100 = arith.constant 15 : index
    %227 = vector.load %arg1[%c0_99, %c15_100] : memref<16x1024xbf16, #tpu.memory_space<vmem>>, vector<16x196xbf16>
    %c0_101 = arith.constant 0 : index
    %c271 = arith.constant 271 : index
    %228 = vector.load %arg1[%c0_101, %c271] : memref<16x1024xbf16, #tpu.memory_space<vmem>>, vector<16x196xbf16>
    %c0_102 = arith.constant 0 : index
    %c0_103 = arith.constant 0 : index
    %229 = vector.load %arg2[%c0_102, %c0_103] : memref<1x45xbf16, #tpu.memory_space<vmem>>, vector<1x1xbf16>
    %230 = vector.broadcast %229 : vector<1x1xbf16> to vector<16x196xbf16>
    %231 = arith.mulf %220, %230 : vector<16x196xbf16>
    %c0_104 = arith.constant 0 : index
    %c1_105 = arith.constant 1 : index
    %232 = vector.load %arg2[%c0_104, %c1_105] : memref<1x45xbf16, #tpu.memory_space<vmem>>, vector<1x1xbf16>
    %233 = vector.broadcast %232 : vector<1x1xbf16> to vector<16x196xbf16>
    %234 = arith.mulf %221, %233 : vector<16x196xbf16>
    %235 = arith.addf %231, %234 : vector<16x196xbf16>
    %c0_106 = arith.constant 0 : index
    %c2_107 = arith.constant 2 : index
    %236 = vector.load %arg2[%c0_106, %c2_107] : memref<1x45xbf16, #tpu.memory_space<vmem>>, vector<1x1xbf16>
    %237 = vector.broadcast %236 : vector<1x1xbf16> to vector<16x196xbf16>
    %238 = arith.mulf %222, %237 : vector<16x196xbf16>
    %239 = arith.addf %235, %238 : vector<16x196xbf16>
    %c0_108 = arith.constant 0 : index
    %c3_109 = arith.constant 3 : index
    %240 = vector.load %arg2[%c0_108, %c3_109] : memref<1x45xbf16, #tpu.memory_space<vmem>>, vector<1x1xbf16>
    %241 = vector.broadcast %240 : vector<1x1xbf16> to vector<16x196xbf16>
    %242 = arith.mulf %223, %241 : vector<16x196xbf16>
    %243 = arith.addf %239, %242 : vector<16x196xbf16>
    %c0_110 = arith.constant 0 : index
    %c4_111 = arith.constant 4 : index
    %244 = vector.load %arg2[%c0_110, %c4_111] : memref<1x45xbf16, #tpu.memory_space<vmem>>, vector<1x1xbf16>
    %245 = vector.broadcast %244 : vector<1x1xbf16> to vector<16x196xbf16>
    %246 = arith.mulf %224, %245 : vector<16x196xbf16>
    %247 = arith.addf %243, %246 : vector<16x196xbf16>
    %c0_112 = arith.constant 0 : index
    %c5_113 = arith.constant 5 : index
    %248 = vector.load %arg2[%c0_112, %c5_113] : memref<1x45xbf16, #tpu.memory_space<vmem>>, vector<1x1xbf16>
    %249 = vector.broadcast %248 : vector<1x1xbf16> to vector<16x196xbf16>
    %250 = arith.mulf %225, %249 : vector<16x196xbf16>
    %251 = arith.addf %247, %250 : vector<16x196xbf16>
    %c0_114 = arith.constant 0 : index
    %c6_115 = arith.constant 6 : index
    %252 = vector.load %arg2[%c0_114, %c6_115] : memref<1x45xbf16, #tpu.memory_space<vmem>>, vector<1x1xbf16>
    %253 = vector.broadcast %252 : vector<1x1xbf16> to vector<16x196xbf16>
    %254 = arith.mulf %226, %253 : vector<16x196xbf16>
    %255 = arith.addf %251, %254 : vector<16x196xbf16>
    %c0_116 = arith.constant 0 : index
    %c7_117 = arith.constant 7 : index
    %256 = vector.load %arg2[%c0_116, %c7_117] : memref<1x45xbf16, #tpu.memory_space<vmem>>, vector<1x1xbf16>
    %257 = vector.broadcast %256 : vector<1x1xbf16> to vector<16x196xbf16>
    %258 = arith.mulf %227, %257 : vector<16x196xbf16>
    %259 = arith.addf %255, %258 : vector<16x196xbf16>
    %c0_118 = arith.constant 0 : index
    %c8_119 = arith.constant 8 : index
    %260 = vector.load %arg2[%c0_118, %c8_119] : memref<1x45xbf16, #tpu.memory_space<vmem>>, vector<1x1xbf16>
    %261 = vector.broadcast %260 : vector<1x1xbf16> to vector<16x196xbf16>
    %262 = arith.mulf %228, %261 : vector<16x196xbf16>
    %263 = arith.addf %259, %262 : vector<16x196xbf16>
    %c0_120 = arith.constant 0 : index
    %c0_121 = arith.constant 0 : index
    %264 = vector.load %arg3[%c0_120, %c0_121] : memref<1x5xbf16, #tpu.memory_space<vmem>>, vector<1x1xbf16>
    %265 = vector.broadcast %264 : vector<1x1xbf16> to vector<16x196xbf16>
    %266 = arith.addf %263, %265 : vector<16x196xbf16>
    %cst_122 = arith.constant 0.000000e+00 : bf16
    %267 = vector.broadcast %cst_122 : bf16 to vector<16x196xbf16>
    %268 = arith.maximumf %266, %267 : vector<16x196xbf16>
    %c0_123 = arith.constant 0 : index
    %c0_124 = arith.constant 0 : index
    %269 = vector.load %arg7[%c0_123, %c0_124] : memref<16x1280xbf16, #tpu.memory_space<vmem>>, vector<16x196xbf16>
    %270 = arith.maximumf %269, %268 : vector<16x196xbf16>
    %c0_125 = arith.constant 0 : index
    %c0_126 = arith.constant 0 : index
    %271 = vector.load %arg7[%c0_125, %c0_126] : memref<16x1280xbf16, #tpu.memory_space<vmem>>, vector<16x196xbf16>
    tpu.vector_store %arg7[%c0_125, %c0_126], %270 {strides = array<i32>} : memref<16x1280xbf16, #tpu.memory_space<vmem>>, vector<16x196xbf16>,
    %c0_127 = arith.constant 0 : index
    %c9_128 = arith.constant 9 : index
    %272 = vector.load %arg2[%c0_127, %c9_128] : memref<1x45xbf16, #tpu.memory_space<vmem>>, vector<1x1xbf16>
    %273 = vector.broadcast %272 : vector<1x1xbf16> to vector<16x196xbf16>
    %274 = arith.mulf %220, %273 : vector<16x196xbf16>
    %c0_129 = arith.constant 0 : index
    %c10_130 = arith.constant 10 : index
    %275 = vector.load %arg2[%c0_129, %c10_130] : memref<1x45xbf16, #tpu.memory_space<vmem>>, vector<1x1xbf16>
    %276 = vector.broadcast %275 : vector<1x1xbf16> to vector<16x196xbf16>
    %277 = arith.mulf %221, %276 : vector<16x196xbf16>
    %278 = arith.addf %274, %277 : vector<16x196xbf16>
    %c0_131 = arith.constant 0 : index
    %c11_132 = arith.constant 11 : index
    %279 = vector.load %arg2[%c0_131, %c11_132] : memref<1x45xbf16, #tpu.memory_space<vmem>>, vector<1x1xbf16>
    %280 = vector.broadcast %279 : vector<1x1xbf16> to vector<16x196xbf16>
    %281 = arith.mulf %222, %280 : vector<16x196xbf16>
    %282 = arith.addf %278, %281 : vector<16x196xbf16>
    %c0_133 = arith.constant 0 : index
    %c12_134 = arith.constant 12 : index
    %283 = vector.load %arg2[%c0_133, %c12_134] : memref<1x45xbf16, #tpu.memory_space<vmem>>, vector<1x1xbf16>
    %284 = vector.broadcast %283 : vector<1x1xbf16> to vector<16x196xbf16>
    %285 = arith.mulf %223, %284 : vector<16x196xbf16>
    %286 = arith.addf %282, %285 : vector<16x196xbf16>
    %c0_135 = arith.constant 0 : index
    %c13_136 = arith.constant 13 : index
    %287 = vector.load %arg2[%c0_135, %c13_136] : memref<1x45xbf16, #tpu.memory_space<vmem>>, vector<1x1xbf16>
    %288 = vector.broadcast %287 : vector<1x1xbf16> to vector<16x196xbf16>
    %289 = arith.mulf %224, %288 : vector<16x196xbf16>
    %290 = arith.addf %286, %289 : vector<16x196xbf16>
    %c0_137 = arith.constant 0 : index
    %c14_138 = arith.constant 14 : index
    %291 = vector.load %arg2[%c0_137, %c14_138] : memref<1x45xbf16, #tpu.memory_space<vmem>>, vector<1x1xbf16>
    %292 = vector.broadcast %291 : vector<1x1xbf16> to vector<16x196xbf16>
    %293 = arith.mulf %225, %292 : vector<16x196xbf16>
    %294 = arith.addf %290, %293 : vector<16x196xbf16>
    %c0_139 = arith.constant 0 : index
    %c15_140 = arith.constant 15 : index
    %295 = vector.load %arg2[%c0_139, %c15_140] : memref<1x45xbf16, #tpu.memory_space<vmem>>, vector<1x1xbf16>
    %296 = vector.broadcast %295 : vector<1x1xbf16> to vector<16x196xbf16>
    %297 = arith.mulf %226, %296 : vector<16x196xbf16>
    %298 = arith.addf %294, %297 : vector<16x196xbf16>
    %c0_141 = arith.constant 0 : index
    %c16_142 = arith.constant 16 : index
    %299 = vector.load %arg2[%c0_141, %c16_142] : memref<1x45xbf16, #tpu.memory_space<vmem>>, vector<1x1xbf16>
    %300 = vector.broadcast %299 : vector<1x1xbf16> to vector<16x196xbf16>
    %301 = arith.mulf %227, %300 : vector<16x196xbf16>
    %302 = arith.addf %298, %301 : vector<16x196xbf16>
    %c0_143 = arith.constant 0 : index
    %c17_144 = arith.constant 17 : index
    %303 = vector.load %arg2[%c0_143, %c17_144] : memref<1x45xbf16, #tpu.memory_space<vmem>>, vector<1x1xbf16>
    %304 = vector.broadcast %303 : vector<1x1xbf16> to vector<16x196xbf16>
    %305 = arith.mulf %228, %304 : vector<16x196xbf16>
    %306 = arith.addf %302, %305 : vector<16x196xbf16>
    %c0_145 = arith.constant 0 : index
    %c1_146 = arith.constant 1 : index
    %307 = vector.load %arg3[%c0_145, %c1_146] : memref<1x5xbf16, #tpu.memory_space<vmem>>, vector<1x1xbf16>
    %308 = vector.broadcast %307 : vector<1x1xbf16> to vector<16x196xbf16>
    %309 = arith.addf %306, %308 : vector<16x196xbf16>
    %cst_147 = arith.constant 0.000000e+00 : bf16
    %310 = vector.broadcast %cst_147 : bf16 to vector<16x196xbf16>
    %311 = arith.maximumf %309, %310 : vector<16x196xbf16>
    %c0_148 = arith.constant 0 : index
    %c256_149 = arith.constant 256 : index
    %312 = vector.load %arg7[%c0_148, %c256_149] : memref<16x1280xbf16, #tpu.memory_space<vmem>>, vector<16x196xbf16>
    %313 = arith.maximumf %312, %311 : vector<16x196xbf16>
    %c0_150 = arith.constant 0 : index
    %c256_151 = arith.constant 256 : index
    %314 = vector.load %arg7[%c0_150, %c256_151] : memref<16x1280xbf16, #tpu.memory_space<vmem>>, vector<16x196xbf16>
    tpu.vector_store %arg7[%c0_150, %c256_151], %313 {strides = array<i32>} : memref<16x1280xbf16, #tpu.memory_space<vmem>>, vector<16x196xbf16>,
    %c0_152 = arith.constant 0 : index
    %c18_153 = arith.constant 18 : index
    %315 = vector.load %arg2[%c0_152, %c18_153] : memref<1x45xbf16, #tpu.memory_space<vmem>>, vector<1x1xbf16>
    %316 = vector.broadcast %315 : vector<1x1xbf16> to vector<16x196xbf16>
    %317 = arith.mulf %220, %316 : vector<16x196xbf16>
    %c0_154 = arith.constant 0 : index
    %c19_155 = arith.constant 19 : index
    %318 = vector.load %arg2[%c0_154, %c19_155] : memref<1x45xbf16, #tpu.memory_space<vmem>>, vector<1x1xbf16>
    %319 = vector.broadcast %318 : vector<1x1xbf16> to vector<16x196xbf16>
    %320 = arith.mulf %221, %319 : vector<16x196xbf16>
    %321 = arith.addf %317, %320 : vector<16x196xbf16>
    %c0_156 = arith.constant 0 : index
    %c20_157 = arith.constant 20 : index
    %322 = vector.load %arg2[%c0_156, %c20_157] : memref<1x45xbf16, #tpu.memory_space<vmem>>, vector<1x1xbf16>
    %323 = vector.broadcast %322 : vector<1x1xbf16> to vector<16x196xbf16>
    %324 = arith.mulf %222, %323 : vector<16x196xbf16>
    %325 = arith.addf %321, %324 : vector<16x196xbf16>
    %c0_158 = arith.constant 0 : index
    %c21_159 = arith.constant 21 : index
    %326 = vector.load %arg2[%c0_158, %c21_159] : memref<1x45xbf16, #tpu.memory_space<vmem>>, vector<1x1xbf16>
    %327 = vector.broadcast %326 : vector<1x1xbf16> to vector<16x196xbf16>
    %328 = arith.mulf %223, %327 : vector<16x196xbf16>
    %329 = arith.addf %325, %328 : vector<16x196xbf16>
    %c0_160 = arith.constant 0 : index
    %c22_161 = arith.constant 22 : index
    %330 = vector.load %arg2[%c0_160, %c22_161] : memref<1x45xbf16, #tpu.memory_space<vmem>>, vector<1x1xbf16>
    %331 = vector.broadcast %330 : vector<1x1xbf16> to vector<16x196xbf16>
    %332 = arith.mulf %224, %331 : vector<16x196xbf16>
    %333 = arith.addf %329, %332 : vector<16x196xbf16>
    %c0_162 = arith.constant 0 : index
    %c23_163 = arith.constant 23 : index
    %334 = vector.load %arg2[%c0_162, %c23_163] : memref<1x45xbf16, #tpu.memory_space<vmem>>, vector<1x1xbf16>
    %335 = vector.broadcast %334 : vector<1x1xbf16> to vector<16x196xbf16>
    %336 = arith.mulf %225, %335 : vector<16x196xbf16>
    %337 = arith.addf %333, %336 : vector<16x196xbf16>
    %c0_164 = arith.constant 0 : index
    %c24_165 = arith.constant 24 : index
    %338 = vector.load %arg2[%c0_164, %c24_165] : memref<1x45xbf16, #tpu.memory_space<vmem>>, vector<1x1xbf16>
    %339 = vector.broadcast %338 : vector<1x1xbf16> to vector<16x196xbf16>
    %340 = arith.mulf %226, %339 : vector<16x196xbf16>
    %341 = arith.addf %337, %340 : vector<16x196xbf16>
    %c0_166 = arith.constant 0 : index
    %c25_167 = arith.constant 25 : index
    %342 = vector.load %arg2[%c0_166, %c25_167] : memref<1x45xbf16, #tpu.memory_space<vmem>>, vector<1x1xbf16>
    %343 = vector.broadcast %342 : vector<1x1xbf16> to vector<16x196xbf16>
    %344 = arith.mulf %227, %343 : vector<16x196xbf16>
    %345 = arith.addf %341, %344 : vector<16x196xbf16>
    %c0_168 = arith.constant 0 : index
    %c26_169 = arith.constant 26 : index
    %346 = vector.load %arg2[%c0_168, %c26_169] : memref<1x45xbf16, #tpu.memory_space<vmem>>, vector<1x1xbf16>
    %347 = vector.broadcast %346 : vector<1x1xbf16> to vector<16x196xbf16>
    %348 = arith.mulf %228, %347 : vector<16x196xbf16>
    %349 = arith.addf %345, %348 : vector<16x196xbf16>
    %c0_170 = arith.constant 0 : index
    %c2_171 = arith.constant 2 : index
    %350 = vector.load %arg3[%c0_170, %c2_171] : memref<1x5xbf16, #tpu.memory_space<vmem>>, vector<1x1xbf16>
    %351 = vector.broadcast %350 : vector<1x1xbf16> to vector<16x196xbf16>
    %352 = arith.addf %349, %351 : vector<16x196xbf16>
    %cst_172 = arith.constant 0.000000e+00 : bf16
    %353 = vector.broadcast %cst_172 : bf16 to vector<16x196xbf16>
    %354 = arith.maximumf %352, %353 : vector<16x196xbf16>
    %c0_173 = arith.constant 0 : index
    %c512_174 = arith.constant 512 : index
    %355 = vector.load %arg7[%c0_173, %c512_174] : memref<16x1280xbf16, #tpu.memory_space<vmem>>, vector<16x196xbf16>
    %356 = arith.maximumf %355, %354 : vector<16x196xbf16>
    %c0_175 = arith.constant 0 : index
    %c512_176 = arith.constant 512 : index
    %357 = vector.load %arg7[%c0_175, %c512_176] : memref<16x1280xbf16, #tpu.memory_space<vmem>>, vector<16x196xbf16>
    tpu.vector_store %arg7[%c0_175, %c512_176], %356 {strides = array<i32>} : memref<16x1280xbf16, #tpu.memory_space<vmem>>, vector<16x196xbf16>,
    %c0_177 = arith.constant 0 : index
    %c27_178 = arith.constant 27 : index
    %358 = vector.load %arg2[%c0_177, %c27_178] : memref<1x45xbf16, #tpu.memory_space<vmem>>, vector<1x1xbf16>
    %359 = vector.broadcast %358 : vector<1x1xbf16> to vector<16x196xbf16>
    %360 = arith.mulf %220, %359 : vector<16x196xbf16>
    %c0_179 = arith.constant 0 : index
    %c28_180 = arith.constant 28 : index
    %361 = vector.load %arg2[%c0_179, %c28_180] : memref<1x45xbf16, #tpu.memory_space<vmem>>, vector<1x1xbf16>
    %362 = vector.broadcast %361 : vector<1x1xbf16> to vector<16x196xbf16>
    %363 = arith.mulf %221, %362 : vector<16x196xbf16>
    %364 = arith.addf %360, %363 : vector<16x196xbf16>
    %c0_181 = arith.constant 0 : index
    %c29_182 = arith.constant 29 : index
    %365 = vector.load %arg2[%c0_181, %c29_182] : memref<1x45xbf16, #tpu.memory_space<vmem>>, vector<1x1xbf16>
    %366 = vector.broadcast %365 : vector<1x1xbf16> to vector<16x196xbf16>
    %367 = arith.mulf %222, %366 : vector<16x196xbf16>
    %368 = arith.addf %364, %367 : vector<16x196xbf16>
    %c0_183 = arith.constant 0 : index
    %c30_184 = arith.constant 30 : index
    %369 = vector.load %arg2[%c0_183, %c30_184] : memref<1x45xbf16, #tpu.memory_space<vmem>>, vector<1x1xbf16>
    %370 = vector.broadcast %369 : vector<1x1xbf16> to vector<16x196xbf16>
    %371 = arith.mulf %223, %370 : vector<16x196xbf16>
    %372 = arith.addf %368, %371 : vector<16x196xbf16>
    %c0_185 = arith.constant 0 : index
    %c31_186 = arith.constant 31 : index
    %373 = vector.load %arg2[%c0_185, %c31_186] : memref<1x45xbf16, #tpu.memory_space<vmem>>, vector<1x1xbf16>
    %374 = vector.broadcast %373 : vector<1x1xbf16> to vector<16x196xbf16>
    %375 = arith.mulf %224, %374 : vector<16x196xbf16>
    %376 = arith.addf %372, %375 : vector<16x196xbf16>
    %c0_187 = arith.constant 0 : index
    %c32_188 = arith.constant 32 : index
    %377 = vector.load %arg2[%c0_187, %c32_188] : memref<1x45xbf16, #tpu.memory_space<vmem>>, vector<1x1xbf16>
    %378 = vector.broadcast %377 : vector<1x1xbf16> to vector<16x196xbf16>
    %379 = arith.mulf %225, %378 : vector<16x196xbf16>
    %380 = arith.addf %376, %379 : vector<16x196xbf16>
    %c0_189 = arith.constant 0 : index
    %c33_190 = arith.constant 33 : index
    %381 = vector.load %arg2[%c0_189, %c33_190] : memref<1x45xbf16, #tpu.memory_space<vmem>>, vector<1x1xbf16>
    %382 = vector.broadcast %381 : vector<1x1xbf16> to vector<16x196xbf16>
    %383 = arith.mulf %226, %382 : vector<16x196xbf16>
    %384 = arith.addf %380, %383 : vector<16x196xbf16>
    %c0_191 = arith.constant 0 : index
    %c34_192 = arith.constant 34 : index
    %385 = vector.load %arg2[%c0_191, %c34_192] : memref<1x45xbf16, #tpu.memory_space<vmem>>, vector<1x1xbf16>
    %386 = vector.broadcast %385 : vector<1x1xbf16> to vector<16x196xbf16>
    %387 = arith.mulf %227, %386 : vector<16x196xbf16>
    %388 = arith.addf %384, %387 : vector<16x196xbf16>
    %c0_193 = arith.constant 0 : index
    %c35_194 = arith.constant 35 : index
    %389 = vector.load %arg2[%c0_193, %c35_194] : memref<1x45xbf16, #tpu.memory_space<vmem>>, vector<1x1xbf16>
    %390 = vector.broadcast %389 : vector<1x1xbf16> to vector<16x196xbf16>
    %391 = arith.mulf %228, %390 : vector<16x196xbf16>
    %392 = arith.addf %388, %391 : vector<16x196xbf16>
    %c0_195 = arith.constant 0 : index
    %c3_196 = arith.constant 3 : index
    %393 = vector.load %arg3[%c0_195, %c3_196] : memref<1x5xbf16, #tpu.memory_space<vmem>>, vector<1x1xbf16>
    %394 = vector.broadcast %393 : vector<1x1xbf16> to vector<16x196xbf16>
    %395 = arith.addf %392, %394 : vector<16x196xbf16>
    %cst_197 = arith.constant 0.000000e+00 : bf16
    %396 = vector.broadcast %cst_197 : bf16 to vector<16x196xbf16>
    %397 = arith.maximumf %395, %396 : vector<16x196xbf16>
    %c0_198 = arith.constant 0 : index
    %c768_199 = arith.constant 768 : index
    %398 = vector.load %arg7[%c0_198, %c768_199] : memref<16x1280xbf16, #tpu.memory_space<vmem>>, vector<16x196xbf16>
    %399 = arith.maximumf %398, %397 : vector<16x196xbf16>
    %c0_200 = arith.constant 0 : index
    %c768_201 = arith.constant 768 : index
    %400 = vector.load %arg7[%c0_200, %c768_201] : memref<16x1280xbf16, #tpu.memory_space<vmem>>, vector<16x196xbf16>
    tpu.vector_store %arg7[%c0_200, %c768_201], %399 {strides = array<i32>} : memref<16x1280xbf16, #tpu.memory_space<vmem>>, vector<16x196xbf16>,
    %c0_202 = arith.constant 0 : index
    %c36_203 = arith.constant 36 : index
    %401 = vector.load %arg2[%c0_202, %c36_203] : memref<1x45xbf16, #tpu.memory_space<vmem>>, vector<1x1xbf16>
    %402 = vector.broadcast %401 : vector<1x1xbf16> to vector<16x196xbf16>
    %403 = arith.mulf %220, %402 : vector<16x196xbf16>
    %c0_204 = arith.constant 0 : index
    %c37_205 = arith.constant 37 : index
    %404 = vector.load %arg2[%c0_204, %c37_205] : memref<1x45xbf16, #tpu.memory_space<vmem>>, vector<1x1xbf16>
    %405 = vector.broadcast %404 : vector<1x1xbf16> to vector<16x196xbf16>
    %406 = arith.mulf %221, %405 : vector<16x196xbf16>
    %407 = arith.addf %403, %406 : vector<16x196xbf16>
    %c0_206 = arith.constant 0 : index
    %c38_207 = arith.constant 38 : index
    %408 = vector.load %arg2[%c0_206, %c38_207] : memref<1x45xbf16, #tpu.memory_space<vmem>>, vector<1x1xbf16>
    %409 = vector.broadcast %408 : vector<1x1xbf16> to vector<16x196xbf16>
    %410 = arith.mulf %222, %409 : vector<16x196xbf16>
    %411 = arith.addf %407, %410 : vector<16x196xbf16>
    %c0_208 = arith.constant 0 : index
    %c39_209 = arith.constant 39 : index
    %412 = vector.load %arg2[%c0_208, %c39_209] : memref<1x45xbf16, #tpu.memory_space<vmem>>, vector<1x1xbf16>
    %413 = vector.broadcast %412 : vector<1x1xbf16> to vector<16x196xbf16>
    %414 = arith.mulf %223, %413 : vector<16x196xbf16>
    %415 = arith.addf %411, %414 : vector<16x196xbf16>
    %c0_210 = arith.constant 0 : index
    %c40_211 = arith.constant 40 : index
    %416 = vector.load %arg2[%c0_210, %c40_211] : memref<1x45xbf16, #tpu.memory_space<vmem>>, vector<1x1xbf16>
    %417 = vector.broadcast %416 : vector<1x1xbf16> to vector<16x196xbf16>
    %418 = arith.mulf %224, %417 : vector<16x196xbf16>
    %419 = arith.addf %415, %418 : vector<16x196xbf16>
    %c0_212 = arith.constant 0 : index
    %c41_213 = arith.constant 41 : index
    %420 = vector.load %arg2[%c0_212, %c41_213] : memref<1x45xbf16, #tpu.memory_space<vmem>>, vector<1x1xbf16>
    %421 = vector.broadcast %420 : vector<1x1xbf16> to vector<16x196xbf16>
    %422 = arith.mulf %225, %421 : vector<16x196xbf16>
    %423 = arith.addf %419, %422 : vector<16x196xbf16>
    %c0_214 = arith.constant 0 : index
    %c42_215 = arith.constant 42 : index
    %424 = vector.load %arg2[%c0_214, %c42_215] : memref<1x45xbf16, #tpu.memory_space<vmem>>, vector<1x1xbf16>
    %425 = vector.broadcast %424 : vector<1x1xbf16> to vector<16x196xbf16>
    %426 = arith.mulf %226, %425 : vector<16x196xbf16>
    %427 = arith.addf %423, %426 : vector<16x196xbf16>
    %c0_216 = arith.constant 0 : index
    %c43_217 = arith.constant 43 : index
    %428 = vector.load %arg2[%c0_216, %c43_217] : memref<1x45xbf16, #tpu.memory_space<vmem>>, vector<1x1xbf16>
    %429 = vector.broadcast %428 : vector<1x1xbf16> to vector<16x196xbf16>
    %430 = arith.mulf %227, %429 : vector<16x196xbf16>
    %431 = arith.addf %427, %430 : vector<16x196xbf16>
    %c0_218 = arith.constant 0 : index
    %c44_219 = arith.constant 44 : index
    %432 = vector.load %arg2[%c0_218, %c44_219] : memref<1x45xbf16, #tpu.memory_space<vmem>>, vector<1x1xbf16>
    %433 = vector.broadcast %432 : vector<1x1xbf16> to vector<16x196xbf16>
    %434 = arith.mulf %228, %433 : vector<16x196xbf16>
    %435 = arith.addf %431, %434 : vector<16x196xbf16>
    %c0_220 = arith.constant 0 : index
    %c4_221 = arith.constant 4 : index
    %436 = vector.load %arg3[%c0_220, %c4_221] : memref<1x5xbf16, #tpu.memory_space<vmem>>, vector<1x1xbf16>
    %437 = vector.broadcast %436 : vector<1x1xbf16> to vector<16x196xbf16>
    %438 = arith.addf %435, %437 : vector<16x196xbf16>
    %cst_222 = arith.constant 0.000000e+00 : bf16
    %439 = vector.broadcast %cst_222 : bf16 to vector<16x196xbf16>
    %440 = arith.maximumf %438, %439 : vector<16x196xbf16>
    %c0_223 = arith.constant 0 : index
    %c1024_224 = arith.constant 1024 : index
    %441 = vector.load %arg7[%c0_223, %c1024_224] : memref<16x1280xbf16, #tpu.memory_space<vmem>>, vector<16x196xbf16>
    %442 = arith.maximumf %441, %440 : vector<16x196xbf16>
    %c0_225 = arith.constant 0 : index
    %c1024_226 = arith.constant 1024 : index
    %443 = vector.load %arg7[%c0_225, %c1024_226] : memref<16x1280xbf16, #tpu.memory_space<vmem>>, vector<16x196xbf16>
    tpu.vector_store %arg7[%c0_225, %c1024_226], %442 {strides = array<i32>} : memref<16x1280xbf16, #tpu.memory_space<vmem>>, vector<16x196xbf16>,
    %c0_227 = arith.constant 0 : index
    %c512_228 = arith.constant 512 : index
    %444 = vector.load %arg1[%c0_227, %c512_228] : memref<16x1024xbf16, #tpu.memory_space<vmem>>, vector<16x196xbf16>
    %c0_229 = arith.constant 0 : index
    %c768_230 = arith.constant 768 : index
    %445 = vector.load %arg1[%c0_229, %c768_230] : memref<16x1024xbf16, #tpu.memory_space<vmem>>, vector<16x196xbf16>
    %c0_231 = arith.constant 0 : index
    %c513_232 = arith.constant 513 : index
    %446 = vector.load %arg1[%c0_231, %c513_232] : memref<16x1024xbf16, #tpu.memory_space<vmem>>, vector<16x196xbf16>
    %c0_233 = arith.constant 0 : index
    %c14_234 = arith.constant 14 : index
    %447 = vector.load %arg1[%c0_233, %c14_234] : memref<16x1024xbf16, #tpu.memory_space<vmem>>, vector<16x196xbf16>
    %c0_235 = arith.constant 0 : index
    %c270_236 = arith.constant 270 : index
    %448 = vector.load %arg1[%c0_235, %c270_236] : memref<16x1024xbf16, #tpu.memory_space<vmem>>, vector<16x196xbf16>
    %c0_237 = arith.constant 0 : index
    %c15_238 = arith.constant 15 : index
    %449 = vector.load %arg1[%c0_237, %c15_238] : memref<16x1024xbf16, #tpu.memory_space<vmem>>, vector<16x196xbf16>
    %c0_239 = arith.constant 0 : index
    %c526 = arith.constant 526 : index
    %450 = vector.load %arg1[%c0_239, %c526] : memref<16x1024xbf16, #tpu.memory_space<vmem>>, vector<16x196xbf16>
    %c0_240 = arith.constant 0 : index
    %c782 = arith.constant 782 : index
    %451 = vector.load %arg1[%c0_240, %c782] : memref<16x1024xbf16, #tpu.memory_space<vmem>>, vector<16x196xbf16>
    %c0_241 = arith.constant 0 : index
    %c527 = arith.constant 527 : index
    %452 = vector.load %arg1[%c0_241, %c527] : memref<16x1024xbf16, #tpu.memory_space<vmem>>, vector<16x196xbf16>
    %c0_242 = arith.constant 0 : index
    %c0_243 = arith.constant 0 : index
    %453 = vector.load %arg2[%c0_242, %c0_243] : memref<1x45xbf16, #tpu.memory_space<vmem>>, vector<1x1xbf16>
    %454 = vector.broadcast %453 : vector<1x1xbf16> to vector<16x196xbf16>
    %455 = arith.mulf %444, %454 : vector<16x196xbf16>
    %c0_244 = arith.constant 0 : index
    %c1_245 = arith.constant 1 : index
    %456 = vector.load %arg2[%c0_244, %c1_245] : memref<1x45xbf16, #tpu.memory_space<vmem>>, vector<1x1xbf16>
    %457 = vector.broadcast %456 : vector<1x1xbf16> to vector<16x196xbf16>
    %458 = arith.mulf %445, %457 : vector<16x196xbf16>
    %459 = arith.addf %455, %458 : vector<16x196xbf16>
    %c0_246 = arith.constant 0 : index
    %c2_247 = arith.constant 2 : index
    %460 = vector.load %arg2[%c0_246, %c2_247] : memref<1x45xbf16, #tpu.memory_space<vmem>>, vector<1x1xbf16>
    %461 = vector.broadcast %460 : vector<1x1xbf16> to vector<16x196xbf16>
    %462 = arith.mulf %446, %461 : vector<16x196xbf16>
    %463 = arith.addf %459, %462 : vector<16x196xbf16>
    %c0_248 = arith.constant 0 : index
    %c3_249 = arith.constant 3 : index
    %464 = vector.load %arg2[%c0_248, %c3_249] : memref<1x45xbf16, #tpu.memory_space<vmem>>, vector<1x1xbf16>
    %465 = vector.broadcast %464 : vector<1x1xbf16> to vector<16x196xbf16>
    %466 = arith.mulf %447, %465 : vector<16x196xbf16>
    %467 = arith.addf %463, %466 : vector<16x196xbf16>
    %c0_250 = arith.constant 0 : index
    %c4_251 = arith.constant 4 : index
    %468 = vector.load %arg2[%c0_250, %c4_251] : memref<1x45xbf16, #tpu.memory_space<vmem>>, vector<1x1xbf16>
    %469 = vector.broadcast %468 : vector<1x1xbf16> to vector<16x196xbf16>
    %470 = arith.mulf %448, %469 : vector<16x196xbf16>
    %471 = arith.addf %467, %470 : vector<16x196xbf16>
    %c0_252 = arith.constant 0 : index
    %c5_253 = arith.constant 5 : index
    %472 = vector.load %arg2[%c0_252, %c5_253] : memref<1x45xbf16, #tpu.memory_space<vmem>>, vector<1x1xbf16>
    %473 = vector.broadcast %472 : vector<1x1xbf16> to vector<16x196xbf16>
    %474 = arith.mulf %449, %473 : vector<16x196xbf16>
    %475 = arith.addf %471, %474 : vector<16x196xbf16>
    %c0_254 = arith.constant 0 : index
    %c6_255 = arith.constant 6 : index
    %476 = vector.load %arg2[%c0_254, %c6_255] : memref<1x45xbf16, #tpu.memory_space<vmem>>, vector<1x1xbf16>
    %477 = vector.broadcast %476 : vector<1x1xbf16> to vector<16x196xbf16>
    %478 = arith.mulf %450, %477 : vector<16x196xbf16>
    %479 = arith.addf %475, %478 : vector<16x196xbf16>
    %c0_256 = arith.constant 0 : index
    %c7_257 = arith.constant 7 : index
    %480 = vector.load %arg2[%c0_256, %c7_257] : memref<1x45xbf16, #tpu.memory_space<vmem>>, vector<1x1xbf16>
    %481 = vector.broadcast %480 : vector<1x1xbf16> to vector<16x196xbf16>
    %482 = arith.mulf %451, %481 : vector<16x196xbf16>
    %483 = arith.addf %479, %482 : vector<16x196xbf16>
    %c0_258 = arith.constant 0 : index
    %c8_259 = arith.constant 8 : index
    %484 = vector.load %arg2[%c0_258, %c8_259] : memref<1x45xbf16, #tpu.memory_space<vmem>>, vector<1x1xbf16>
    %485 = vector.broadcast %484 : vector<1x1xbf16> to vector<16x196xbf16>
    %486 = arith.mulf %452, %485 : vector<16x196xbf16>
    %487 = arith.addf %483, %486 : vector<16x196xbf16>
    %c0_260 = arith.constant 0 : index
    %c0_261 = arith.constant 0 : index
    %488 = vector.load %arg3[%c0_260, %c0_261] : memref<1x5xbf16, #tpu.memory_space<vmem>>, vector<1x1xbf16>
    %489 = vector.broadcast %488 : vector<1x1xbf16> to vector<16x196xbf16>
    %490 = arith.addf %487, %489 : vector<16x196xbf16>
    %cst_262 = arith.constant 0.000000e+00 : bf16
    %491 = vector.broadcast %cst_262 : bf16 to vector<16x196xbf16>
    %492 = arith.maximumf %490, %491 : vector<16x196xbf16>
    %c0_263 = arith.constant 0 : index
    %c0_264 = arith.constant 0 : index
    %493 = vector.load %arg7[%c0_263, %c0_264] : memref<16x1280xbf16, #tpu.memory_space<vmem>>, vector<16x196xbf16>
    %494 = arith.maximumf %493, %492 : vector<16x196xbf16>
    %c0_265 = arith.constant 0 : index
    %c0_266 = arith.constant 0 : index
    %495 = vector.load %arg7[%c0_265, %c0_266] : memref<16x1280xbf16, #tpu.memory_space<vmem>>, vector<16x196xbf16>
    tpu.vector_store %arg7[%c0_265, %c0_266], %494 {strides = array<i32>} : memref<16x1280xbf16, #tpu.memory_space<vmem>>, vector<16x196xbf16>,
    %c0_267 = arith.constant 0 : index
    %c9_268 = arith.constant 9 : index
    %496 = vector.load %arg2[%c0_267, %c9_268] : memref<1x45xbf16, #tpu.memory_space<vmem>>, vector<1x1xbf16>
    %497 = vector.broadcast %496 : vector<1x1xbf16> to vector<16x196xbf16>
    %498 = arith.mulf %444, %497 : vector<16x196xbf16>
    %c0_269 = arith.constant 0 : index
    %c10_270 = arith.constant 10 : index
    %499 = vector.load %arg2[%c0_269, %c10_270] : memref<1x45xbf16, #tpu.memory_space<vmem>>, vector<1x1xbf16>
    %500 = vector.broadcast %499 : vector<1x1xbf16> to vector<16x196xbf16>
    %501 = arith.mulf %445, %500 : vector<16x196xbf16>
    %502 = arith.addf %498, %501 : vector<16x196xbf16>
    %c0_271 = arith.constant 0 : index
    %c11_272 = arith.constant 11 : index
    %503 = vector.load %arg2[%c0_271, %c11_272] : memref<1x45xbf16, #tpu.memory_space<vmem>>, vector<1x1xbf16>
    %504 = vector.broadcast %503 : vector<1x1xbf16> to vector<16x196xbf16>
    %505 = arith.mulf %446, %504 : vector<16x196xbf16>
    %506 = arith.addf %502, %505 : vector<16x196xbf16>
    %c0_273 = arith.constant 0 : index
    %c12_274 = arith.constant 12 : index
    %507 = vector.load %arg2[%c0_273, %c12_274] : memref<1x45xbf16, #tpu.memory_space<vmem>>, vector<1x1xbf16>
    %508 = vector.broadcast %507 : vector<1x1xbf16> to vector<16x196xbf16>
    %509 = arith.mulf %447, %508 : vector<16x196xbf16>
    %510 = arith.addf %506, %509 : vector<16x196xbf16>
    %c0_275 = arith.constant 0 : index
    %c13_276 = arith.constant 13 : index
    %511 = vector.load %arg2[%c0_275, %c13_276] : memref<1x45xbf16, #tpu.memory_space<vmem>>, vector<1x1xbf16>
    %512 = vector.broadcast %511 : vector<1x1xbf16> to vector<16x196xbf16>
    %513 = arith.mulf %448, %512 : vector<16x196xbf16>
    %514 = arith.addf %510, %513 : vector<16x196xbf16>
    %c0_277 = arith.constant 0 : index
    %c14_278 = arith.constant 14 : index
    %515 = vector.load %arg2[%c0_277, %c14_278] : memref<1x45xbf16, #tpu.memory_space<vmem>>, vector<1x1xbf16>
    %516 = vector.broadcast %515 : vector<1x1xbf16> to vector<16x196xbf16>
    %517 = arith.mulf %449, %516 : vector<16x196xbf16>
    %518 = arith.addf %514, %517 : vector<16x196xbf16>
    %c0_279 = arith.constant 0 : index
    %c15_280 = arith.constant 15 : index
    %519 = vector.load %arg2[%c0_279, %c15_280] : memref<1x45xbf16, #tpu.memory_space<vmem>>, vector<1x1xbf16>
    %520 = vector.broadcast %519 : vector<1x1xbf16> to vector<16x196xbf16>
    %521 = arith.mulf %450, %520 : vector<16x196xbf16>
    %522 = arith.addf %518, %521 : vector<16x196xbf16>
    %c0_281 = arith.constant 0 : index
    %c16_282 = arith.constant 16 : index
    %523 = vector.load %arg2[%c0_281, %c16_282] : memref<1x45xbf16, #tpu.memory_space<vmem>>, vector<1x1xbf16>
    %524 = vector.broadcast %523 : vector<1x1xbf16> to vector<16x196xbf16>
    %525 = arith.mulf %451, %524 : vector<16x196xbf16>
    %526 = arith.addf %522, %525 : vector<16x196xbf16>
    %c0_283 = arith.constant 0 : index
    %c17_284 = arith.constant 17 : index
    %527 = vector.load %arg2[%c0_283, %c17_284] : memref<1x45xbf16, #tpu.memory_space<vmem>>, vector<1x1xbf16>
    %528 = vector.broadcast %527 : vector<1x1xbf16> to vector<16x196xbf16>
    %529 = arith.mulf %452, %528 : vector<16x196xbf16>
    %530 = arith.addf %526, %529 : vector<16x196xbf16>
    %c0_285 = arith.constant 0 : index
    %c1_286 = arith.constant 1 : index
    %531 = vector.load %arg3[%c0_285, %c1_286] : memref<1x5xbf16, #tpu.memory_space<vmem>>, vector<1x1xbf16>
    %532 = vector.broadcast %531 : vector<1x1xbf16> to vector<16x196xbf16>
    %533 = arith.addf %530, %532 : vector<16x196xbf16>
    %cst_287 = arith.constant 0.000000e+00 : bf16
    %534 = vector.broadcast %cst_287 : bf16 to vector<16x196xbf16>
    %535 = arith.maximumf %533, %534 : vector<16x196xbf16>
    %c0_288 = arith.constant 0 : index
    %c256_289 = arith.constant 256 : index
    %536 = vector.load %arg7[%c0_288, %c256_289] : memref<16x1280xbf16, #tpu.memory_space<vmem>>, vector<16x196xbf16>
    %537 = arith.maximumf %536, %535 : vector<16x196xbf16>
    %c0_290 = arith.constant 0 : index
    %c256_291 = arith.constant 256 : index
    %538 = vector.load %arg7[%c0_290, %c256_291] : memref<16x1280xbf16, #tpu.memory_space<vmem>>, vector<16x196xbf16>
    tpu.vector_store %arg7[%c0_290, %c256_291], %537 {strides = array<i32>} : memref<16x1280xbf16, #tpu.memory_space<vmem>>, vector<16x196xbf16>,
    %c0_292 = arith.constant 0 : index
    %c18_293 = arith.constant 18 : index
    %539 = vector.load %arg2[%c0_292, %c18_293] : memref<1x45xbf16, #tpu.memory_space<vmem>>, vector<1x1xbf16>
    %540 = vector.broadcast %539 : vector<1x1xbf16> to vector<16x196xbf16>
    %541 = arith.mulf %444, %540 : vector<16x196xbf16>
    %c0_294 = arith.constant 0 : index
    %c19_295 = arith.constant 19 : index
    %542 = vector.load %arg2[%c0_294, %c19_295] : memref<1x45xbf16, #tpu.memory_space<vmem>>, vector<1x1xbf16>
    %543 = vector.broadcast %542 : vector<1x1xbf16> to vector<16x196xbf16>
    %544 = arith.mulf %445, %543 : vector<16x196xbf16>
    %545 = arith.addf %541, %544 : vector<16x196xbf16>
    %c0_296 = arith.constant 0 : index
    %c20_297 = arith.constant 20 : index
    %546 = vector.load %arg2[%c0_296, %c20_297] : memref<1x45xbf16, #tpu.memory_space<vmem>>, vector<1x1xbf16>
    %547 = vector.broadcast %546 : vector<1x1xbf16> to vector<16x196xbf16>
    %548 = arith.mulf %446, %547 : vector<16x196xbf16>
    %549 = arith.addf %545, %548 : vector<16x196xbf16>
    %c0_298 = arith.constant 0 : index
    %c21_299 = arith.constant 21 : index
    %550 = vector.load %arg2[%c0_298, %c21_299] : memref<1x45xbf16, #tpu.memory_space<vmem>>, vector<1x1xbf16>
    %551 = vector.broadcast %550 : vector<1x1xbf16> to vector<16x196xbf16>
    %552 = arith.mulf %447, %551 : vector<16x196xbf16>
    %553 = arith.addf %549, %552 : vector<16x196xbf16>
    %c0_300 = arith.constant 0 : index
    %c22_301 = arith.constant 22 : index
    %554 = vector.load %arg2[%c0_300, %c22_301] : memref<1x45xbf16, #tpu.memory_space<vmem>>, vector<1x1xbf16>
    %555 = vector.broadcast %554 : vector<1x1xbf16> to vector<16x196xbf16>
    %556 = arith.mulf %448, %555 : vector<16x196xbf16>
    %557 = arith.addf %553, %556 : vector<16x196xbf16>
    %c0_302 = arith.constant 0 : index
    %c23_303 = arith.constant 23 : index
    %558 = vector.load %arg2[%c0_302, %c23_303] : memref<1x45xbf16, #tpu.memory_space<vmem>>, vector<1x1xbf16>
    %559 = vector.broadcast %558 : vector<1x1xbf16> to vector<16x196xbf16>
    %560 = arith.mulf %449, %559 : vector<16x196xbf16>
    %561 = arith.addf %557, %560 : vector<16x196xbf16>
    %c0_304 = arith.constant 0 : index
    %c24_305 = arith.constant 24 : index
    %562 = vector.load %arg2[%c0_304, %c24_305] : memref<1x45xbf16, #tpu.memory_space<vmem>>, vector<1x1xbf16>
    %563 = vector.broadcast %562 : vector<1x1xbf16> to vector<16x196xbf16>
    %564 = arith.mulf %450, %563 : vector<16x196xbf16>
    %565 = arith.addf %561, %564 : vector<16x196xbf16>
    %c0_306 = arith.constant 0 : index
    %c25_307 = arith.constant 25 : index
    %566 = vector.load %arg2[%c0_306, %c25_307] : memref<1x45xbf16, #tpu.memory_space<vmem>>, vector<1x1xbf16>
    %567 = vector.broadcast %566 : vector<1x1xbf16> to vector<16x196xbf16>
    %568 = arith.mulf %451, %567 : vector<16x196xbf16>
    %569 = arith.addf %565, %568 : vector<16x196xbf16>
    %c0_308 = arith.constant 0 : index
    %c26_309 = arith.constant 26 : index
    %570 = vector.load %arg2[%c0_308, %c26_309] : memref<1x45xbf16, #tpu.memory_space<vmem>>, vector<1x1xbf16>
    %571 = vector.broadcast %570 : vector<1x1xbf16> to vector<16x196xbf16>
    %572 = arith.mulf %452, %571 : vector<16x196xbf16>
    %573 = arith.addf %569, %572 : vector<16x196xbf16>
    %c0_310 = arith.constant 0 : index
    %c2_311 = arith.constant 2 : index
    %574 = vector.load %arg3[%c0_310, %c2_311] : memref<1x5xbf16, #tpu.memory_space<vmem>>, vector<1x1xbf16>
    %575 = vector.broadcast %574 : vector<1x1xbf16> to vector<16x196xbf16>
    %576 = arith.addf %573, %575 : vector<16x196xbf16>
    %cst_312 = arith.constant 0.000000e+00 : bf16
    %577 = vector.broadcast %cst_312 : bf16 to vector<16x196xbf16>
    %578 = arith.maximumf %576, %577 : vector<16x196xbf16>
    %c0_313 = arith.constant 0 : index
    %c512_314 = arith.constant 512 : index
    %579 = vector.load %arg7[%c0_313, %c512_314] : memref<16x1280xbf16, #tpu.memory_space<vmem>>, vector<16x196xbf16>
    %580 = arith.maximumf %579, %578 : vector<16x196xbf16>
    %c0_315 = arith.constant 0 : index
    %c512_316 = arith.constant 512 : index
    %581 = vector.load %arg7[%c0_315, %c512_316] : memref<16x1280xbf16, #tpu.memory_space<vmem>>, vector<16x196xbf16>
    tpu.vector_store %arg7[%c0_315, %c512_316], %580 {strides = array<i32>} : memref<16x1280xbf16, #tpu.memory_space<vmem>>, vector<16x196xbf16>,
    %c0_317 = arith.constant 0 : index
    %c27_318 = arith.constant 27 : index
    %582 = vector.load %arg2[%c0_317, %c27_318] : memref<1x45xbf16, #tpu.memory_space<vmem>>, vector<1x1xbf16>
    %583 = vector.broadcast %582 : vector<1x1xbf16> to vector<16x196xbf16>
    %584 = arith.mulf %444, %583 : vector<16x196xbf16>
    %c0_319 = arith.constant 0 : index
    %c28_320 = arith.constant 28 : index
    %585 = vector.load %arg2[%c0_319, %c28_320] : memref<1x45xbf16, #tpu.memory_space<vmem>>, vector<1x1xbf16>
    %586 = vector.broadcast %585 : vector<1x1xbf16> to vector<16x196xbf16>
    %587 = arith.mulf %445, %586 : vector<16x196xbf16>
    %588 = arith.addf %584, %587 : vector<16x196xbf16>
    %c0_321 = arith.constant 0 : index
    %c29_322 = arith.constant 29 : index
    %589 = vector.load %arg2[%c0_321, %c29_322] : memref<1x45xbf16, #tpu.memory_space<vmem>>, vector<1x1xbf16>
    %590 = vector.broadcast %589 : vector<1x1xbf16> to vector<16x196xbf16>
    %591 = arith.mulf %446, %590 : vector<16x196xbf16>
    %592 = arith.addf %588, %591 : vector<16x196xbf16>
    %c0_323 = arith.constant 0 : index
    %c30_324 = arith.constant 30 : index
    %593 = vector.load %arg2[%c0_323, %c30_324] : memref<1x45xbf16, #tpu.memory_space<vmem>>, vector<1x1xbf16>
    %594 = vector.broadcast %593 : vector<1x1xbf16> to vector<16x196xbf16>
    %595 = arith.mulf %447, %594 : vector<16x196xbf16>
    %596 = arith.addf %592, %595 : vector<16x196xbf16>
    %c0_325 = arith.constant 0 : index
    %c31_326 = arith.constant 31 : index
    %597 = vector.load %arg2[%c0_325, %c31_326] : memref<1x45xbf16, #tpu.memory_space<vmem>>, vector<1x1xbf16>
    %598 = vector.broadcast %597 : vector<1x1xbf16> to vector<16x196xbf16>
    %599 = arith.mulf %448, %598 : vector<16x196xbf16>
    %600 = arith.addf %596, %599 : vector<16x196xbf16>
    %c0_327 = arith.constant 0 : index
    %c32_328 = arith.constant 32 : index
    %601 = vector.load %arg2[%c0_327, %c32_328] : memref<1x45xbf16, #tpu.memory_space<vmem>>, vector<1x1xbf16>
    %602 = vector.broadcast %601 : vector<1x1xbf16> to vector<16x196xbf16>
    %603 = arith.mulf %449, %602 : vector<16x196xbf16>
    %604 = arith.addf %600, %603 : vector<16x196xbf16>
    %c0_329 = arith.constant 0 : index
    %c33_330 = arith.constant 33 : index
    %605 = vector.load %arg2[%c0_329, %c33_330] : memref<1x45xbf16, #tpu.memory_space<vmem>>, vector<1x1xbf16>
    %606 = vector.broadcast %605 : vector<1x1xbf16> to vector<16x196xbf16>
    %607 = arith.mulf %450, %606 : vector<16x196xbf16>
    %608 = arith.addf %604, %607 : vector<16x196xbf16>
    %c0_331 = arith.constant 0 : index
    %c34_332 = arith.constant 34 : index
    %609 = vector.load %arg2[%c0_331, %c34_332] : memref<1x45xbf16, #tpu.memory_space<vmem>>, vector<1x1xbf16>
    %610 = vector.broadcast %609 : vector<1x1xbf16> to vector<16x196xbf16>
    %611 = arith.mulf %451, %610 : vector<16x196xbf16>
    %612 = arith.addf %608, %611 : vector<16x196xbf16>
    %c0_333 = arith.constant 0 : index
    %c35_334 = arith.constant 35 : index
    %613 = vector.load %arg2[%c0_333, %c35_334] : memref<1x45xbf16, #tpu.memory_space<vmem>>, vector<1x1xbf16>
    %614 = vector.broadcast %613 : vector<1x1xbf16> to vector<16x196xbf16>
    %615 = arith.mulf %452, %614 : vector<16x196xbf16>
    %616 = arith.addf %612, %615 : vector<16x196xbf16>
    %c0_335 = arith.constant 0 : index
    %c3_336 = arith.constant 3 : index
    %617 = vector.load %arg3[%c0_335, %c3_336] : memref<1x5xbf16, #tpu.memory_space<vmem>>, vector<1x1xbf16>
    %618 = vector.broadcast %617 : vector<1x1xbf16> to vector<16x196xbf16>
    %619 = arith.addf %616, %618 : vector<16x196xbf16>
    %cst_337 = arith.constant 0.000000e+00 : bf16
    %620 = vector.broadcast %cst_337 : bf16 to vector<16x196xbf16>
    %621 = arith.maximumf %619, %620 : vector<16x196xbf16>
    %c0_338 = arith.constant 0 : index
    %c768_339 = arith.constant 768 : index
    %622 = vector.load %arg7[%c0_338, %c768_339] : memref<16x1280xbf16, #tpu.memory_space<vmem>>, vector<16x196xbf16>
    %623 = arith.maximumf %622, %621 : vector<16x196xbf16>
    %c0_340 = arith.constant 0 : index
    %c768_341 = arith.constant 768 : index
    %624 = vector.load %arg7[%c0_340, %c768_341] : memref<16x1280xbf16, #tpu.memory_space<vmem>>, vector<16x196xbf16>
    tpu.vector_store %arg7[%c0_340, %c768_341], %623 {strides = array<i32>} : memref<16x1280xbf16, #tpu.memory_space<vmem>>, vector<16x196xbf16>,
    %c0_342 = arith.constant 0 : index
    %c36_343 = arith.constant 36 : index
    %625 = vector.load %arg2[%c0_342, %c36_343] : memref<1x45xbf16, #tpu.memory_space<vmem>>, vector<1x1xbf16>
    %626 = vector.broadcast %625 : vector<1x1xbf16> to vector<16x196xbf16>
    %627 = arith.mulf %444, %626 : vector<16x196xbf16>
    %c0_344 = arith.constant 0 : index
    %c37_345 = arith.constant 37 : index
    %628 = vector.load %arg2[%c0_344, %c37_345] : memref<1x45xbf16, #tpu.memory_space<vmem>>, vector<1x1xbf16>
    %629 = vector.broadcast %628 : vector<1x1xbf16> to vector<16x196xbf16>
    %630 = arith.mulf %445, %629 : vector<16x196xbf16>
    %631 = arith.addf %627, %630 : vector<16x196xbf16>
    %c0_346 = arith.constant 0 : index
    %c38_347 = arith.constant 38 : index
    %632 = vector.load %arg2[%c0_346, %c38_347] : memref<1x45xbf16, #tpu.memory_space<vmem>>, vector<1x1xbf16>
    %633 = vector.broadcast %632 : vector<1x1xbf16> to vector<16x196xbf16>
    %634 = arith.mulf %446, %633 : vector<16x196xbf16>
    %635 = arith.addf %631, %634 : vector<16x196xbf16>
    %c0_348 = arith.constant 0 : index
    %c39_349 = arith.constant 39 : index
    %636 = vector.load %arg2[%c0_348, %c39_349] : memref<1x45xbf16, #tpu.memory_space<vmem>>, vector<1x1xbf16>
    %637 = vector.broadcast %636 : vector<1x1xbf16> to vector<16x196xbf16>
    %638 = arith.mulf %447, %637 : vector<16x196xbf16>
    %639 = arith.addf %635, %638 : vector<16x196xbf16>
    %c0_350 = arith.constant 0 : index
    %c40_351 = arith.constant 40 : index
    %640 = vector.load %arg2[%c0_350, %c40_351] : memref<1x45xbf16, #tpu.memory_space<vmem>>, vector<1x1xbf16>
    %641 = vector.broadcast %640 : vector<1x1xbf16> to vector<16x196xbf16>
    %642 = arith.mulf %448, %641 : vector<16x196xbf16>
    %643 = arith.addf %639, %642 : vector<16x196xbf16>
    %c0_352 = arith.constant 0 : index
    %c41_353 = arith.constant 41 : index
    %644 = vector.load %arg2[%c0_352, %c41_353] : memref<1x45xbf16, #tpu.memory_space<vmem>>, vector<1x1xbf16>
    %645 = vector.broadcast %644 : vector<1x1xbf16> to vector<16x196xbf16>
    %646 = arith.mulf %449, %645 : vector<16x196xbf16>
    %647 = arith.addf %643, %646 : vector<16x196xbf16>
    %c0_354 = arith.constant 0 : index
    %c42_355 = arith.constant 42 : index
    %648 = vector.load %arg2[%c0_354, %c42_355] : memref<1x45xbf16, #tpu.memory_space<vmem>>, vector<1x1xbf16>
    %649 = vector.broadcast %648 : vector<1x1xbf16> to vector<16x196xbf16>
    %650 = arith.mulf %450, %649 : vector<16x196xbf16>
    %651 = arith.addf %647, %650 : vector<16x196xbf16>
    %c0_356 = arith.constant 0 : index
    %c43_357 = arith.constant 43 : index
    %652 = vector.load %arg2[%c0_356, %c43_357] : memref<1x45xbf16, #tpu.memory_space<vmem>>, vector<1x1xbf16>
    %653 = vector.broadcast %652 : vector<1x1xbf16> to vector<16x196xbf16>
    %654 = arith.mulf %451, %653 : vector<16x196xbf16>
    %655 = arith.addf %651, %654 : vector<16x196xbf16>
    %c0_358 = arith.constant 0 : index
    %c44_359 = arith.constant 44 : index
    %656 = vector.load %arg2[%c0_358, %c44_359] : memref<1x45xbf16, #tpu.memory_space<vmem>>, vector<1x1xbf16>
    %657 = vector.broadcast %656 : vector<1x1xbf16> to vector<16x196xbf16>
    %658 = arith.mulf %452, %657 : vector<16x196xbf16>
    %659 = arith.addf %655, %658 : vector<16x196xbf16>
    %c0_360 = arith.constant 0 : index
    %c4_361 = arith.constant 4 : index
    %660 = vector.load %arg3[%c0_360, %c4_361] : memref<1x5xbf16, #tpu.memory_space<vmem>>, vector<1x1xbf16>
    %661 = vector.broadcast %660 : vector<1x1xbf16> to vector<16x196xbf16>
    %662 = arith.addf %659, %661 : vector<16x196xbf16>
    %cst_362 = arith.constant 0.000000e+00 : bf16
    %663 = vector.broadcast %cst_362 : bf16 to vector<16x196xbf16>
    %664 = arith.maximumf %662, %663 : vector<16x196xbf16>
    %c0_363 = arith.constant 0 : index
    %c1024_364 = arith.constant 1024 : index
    %665 = vector.load %arg7[%c0_363, %c1024_364] : memref<16x1280xbf16, #tpu.memory_space<vmem>>, vector<16x196xbf16>
    %666 = arith.maximumf %665, %664 : vector<16x196xbf16>
    %c0_365 = arith.constant 0 : index
    %c1024_366 = arith.constant 1024 : index
    %667 = vector.load %arg7[%c0_365, %c1024_366] : memref<16x1280xbf16, #tpu.memory_space<vmem>>, vector<16x196xbf16>
    tpu.vector_store %arg7[%c0_365, %c1024_366], %666 {strides = array<i32>} : memref<16x1280xbf16, #tpu.memory_space<vmem>>, vector<16x196xbf16>,
    %c0_367 = arith.constant 0 : index
    %c768_368 = arith.constant 768 : index
    %668 = vector.load %arg1[%c0_367, %c768_368] : memref<16x1024xbf16, #tpu.memory_space<vmem>>, vector<16x196xbf16>
    %c0_369 = arith.constant 0 : index
    %c513_370 = arith.constant 513 : index
    %669 = vector.load %arg1[%c0_369, %c513_370] : memref<16x1024xbf16, #tpu.memory_space<vmem>>, vector<16x196xbf16>
    %c0_371 = arith.constant 0 : index
    %c769_372 = arith.constant 769 : index
    %670 = vector.load %arg1[%c0_371, %c769_372] : memref<16x1024xbf16, #tpu.memory_space<vmem>>, vector<16x196xbf16>
    %c0_373 = arith.constant 0 : index
    %c270_374 = arith.constant 270 : index
    %671 = vector.load %arg1[%c0_373, %c270_374] : memref<16x1024xbf16, #tpu.memory_space<vmem>>, vector<16x196xbf16>
    %c0_375 = arith.constant 0 : index
    %c15_376 = arith.constant 15 : index
    %672 = vector.load %arg1[%c0_375, %c15_376] : memref<16x1024xbf16, #tpu.memory_space<vmem>>, vector<16x196xbf16>
    %c0_377 = arith.constant 0 : index
    %c271_378 = arith.constant 271 : index
    %673 = vector.load %arg1[%c0_377, %c271_378] : memref<16x1024xbf16, #tpu.memory_space<vmem>>, vector<16x196xbf16>
    %c0_379 = arith.constant 0 : index
    %c782_380 = arith.constant 782 : index
    %674 = vector.load %arg1[%c0_379, %c782_380] : memref<16x1024xbf16, #tpu.memory_space<vmem>>, vector<16x196xbf16>
    %c0_381 = arith.constant 0 : index
    %c527_382 = arith.constant 527 : index
    %675 = vector.load %arg1[%c0_381, %c527_382] : memref<16x1024xbf16, #tpu.memory_space<vmem>>, vector<16x196xbf16>
    %c0_383 = arith.constant 0 : index
    %c783 = arith.constant 783 : index
    %676 = vector.load %arg1[%c0_383, %c783] : memref<16x1024xbf16, #tpu.memory_space<vmem>>, vector<16x196xbf16>
    %c0_384 = arith.constant 0 : index
    %c0_385 = arith.constant 0 : index
    %677 = vector.load %arg2[%c0_384, %c0_385] : memref<1x45xbf16, #tpu.memory_space<vmem>>, vector<1x1xbf16>
    %678 = vector.broadcast %677 : vector<1x1xbf16> to vector<16x196xbf16>
    %679 = arith.mulf %668, %678 : vector<16x196xbf16>
    %c0_386 = arith.constant 0 : index
    %c1_387 = arith.constant 1 : index
    %680 = vector.load %arg2[%c0_386, %c1_387] : memref<1x45xbf16, #tpu.memory_space<vmem>>, vector<1x1xbf16>
    %681 = vector.broadcast %680 : vector<1x1xbf16> to vector<16x196xbf16>
    %682 = arith.mulf %669, %681 : vector<16x196xbf16>
    %683 = arith.addf %679, %682 : vector<16x196xbf16>
    %c0_388 = arith.constant 0 : index
    %c2_389 = arith.constant 2 : index
    %684 = vector.load %arg2[%c0_388, %c2_389] : memref<1x45xbf16, #tpu.memory_space<vmem>>, vector<1x1xbf16>
    %685 = vector.broadcast %684 : vector<1x1xbf16> to vector<16x196xbf16>
    %686 = arith.mulf %670, %685 : vector<16x196xbf16>
    %687 = arith.addf %683, %686 : vector<16x196xbf16>
    %c0_390 = arith.constant 0 : index
    %c3_391 = arith.constant 3 : index
    %688 = vector.load %arg2[%c0_390, %c3_391] : memref<1x45xbf16, #tpu.memory_space<vmem>>, vector<1x1xbf16>
    %689 = vector.broadcast %688 : vector<1x1xbf16> to vector<16x196xbf16>
    %690 = arith.mulf %671, %689 : vector<16x196xbf16>
    %691 = arith.addf %687, %690 : vector<16x196xbf16>
    %c0_392 = arith.constant 0 : index
    %c4_393 = arith.constant 4 : index
    %692 = vector.load %arg2[%c0_392, %c4_393] : memref<1x45xbf16, #tpu.memory_space<vmem>>, vector<1x1xbf16>
    %693 = vector.broadcast %692 : vector<1x1xbf16> to vector<16x196xbf16>
    %694 = arith.mulf %672, %693 : vector<16x196xbf16>
    %695 = arith.addf %691, %694 : vector<16x196xbf16>
    %c0_394 = arith.constant 0 : index
    %c5_395 = arith.constant 5 : index
    %696 = vector.load %arg2[%c0_394, %c5_395] : memref<1x45xbf16, #tpu.memory_space<vmem>>, vector<1x1xbf16>
    %697 = vector.broadcast %696 : vector<1x1xbf16> to vector<16x196xbf16>
    %698 = arith.mulf %673, %697 : vector<16x196xbf16>
    %699 = arith.addf %695, %698 : vector<16x196xbf16>
    %c0_396 = arith.constant 0 : index
    %c6_397 = arith.constant 6 : index
    %700 = vector.load %arg2[%c0_396, %c6_397] : memref<1x45xbf16, #tpu.memory_space<vmem>>, vector<1x1xbf16>
    %701 = vector.broadcast %700 : vector<1x1xbf16> to vector<16x196xbf16>
    %702 = arith.mulf %674, %701 : vector<16x196xbf16>
    %703 = arith.addf %699, %702 : vector<16x196xbf16>
    %c0_398 = arith.constant 0 : index
    %c7_399 = arith.constant 7 : index
    %704 = vector.load %arg2[%c0_398, %c7_399] : memref<1x45xbf16, #tpu.memory_space<vmem>>, vector<1x1xbf16>
    %705 = vector.broadcast %704 : vector<1x1xbf16> to vector<16x196xbf16>
    %706 = arith.mulf %675, %705 : vector<16x196xbf16>
    %707 = arith.addf %703, %706 : vector<16x196xbf16>
    %c0_400 = arith.constant 0 : index
    %c8_401 = arith.constant 8 : index
    %708 = vector.load %arg2[%c0_400, %c8_401] : memref<1x45xbf16, #tpu.memory_space<vmem>>, vector<1x1xbf16>
    %709 = vector.broadcast %708 : vector<1x1xbf16> to vector<16x196xbf16>
    %710 = arith.mulf %676, %709 : vector<16x196xbf16>
    %711 = arith.addf %707, %710 : vector<16x196xbf16>
    %c0_402 = arith.constant 0 : index
    %c0_403 = arith.constant 0 : index
    %712 = vector.load %arg3[%c0_402, %c0_403] : memref<1x5xbf16, #tpu.memory_space<vmem>>, vector<1x1xbf16>
    %713 = vector.broadcast %712 : vector<1x1xbf16> to vector<16x196xbf16>
    %714 = arith.addf %711, %713 : vector<16x196xbf16>
    %cst_404 = arith.constant 0.000000e+00 : bf16
    %715 = vector.broadcast %cst_404 : bf16 to vector<16x196xbf16>
    %716 = arith.maximumf %714, %715 : vector<16x196xbf16>
    %c0_405 = arith.constant 0 : index
    %c0_406 = arith.constant 0 : index
    %717 = vector.load %arg7[%c0_405, %c0_406] : memref<16x1280xbf16, #tpu.memory_space<vmem>>, vector<16x196xbf16>
    %718 = arith.maximumf %717, %716 : vector<16x196xbf16>
    %c0_407 = arith.constant 0 : index
    %c0_408 = arith.constant 0 : index
    %719 = vector.load %arg7[%c0_407, %c0_408] : memref<16x1280xbf16, #tpu.memory_space<vmem>>, vector<16x196xbf16>
    tpu.vector_store %arg7[%c0_407, %c0_408], %718 {strides = array<i32>} : memref<16x1280xbf16, #tpu.memory_space<vmem>>, vector<16x196xbf16>,
    %c0_409 = arith.constant 0 : index
    %c9_410 = arith.constant 9 : index
    %720 = vector.load %arg2[%c0_409, %c9_410] : memref<1x45xbf16, #tpu.memory_space<vmem>>, vector<1x1xbf16>
    %721 = vector.broadcast %720 : vector<1x1xbf16> to vector<16x196xbf16>
    %722 = arith.mulf %668, %721 : vector<16x196xbf16>
    %c0_411 = arith.constant 0 : index
    %c10_412 = arith.constant 10 : index
    %723 = vector.load %arg2[%c0_411, %c10_412] : memref<1x45xbf16, #tpu.memory_space<vmem>>, vector<1x1xbf16>
    %724 = vector.broadcast %723 : vector<1x1xbf16> to vector<16x196xbf16>
    %725 = arith.mulf %669, %724 : vector<16x196xbf16>
    %726 = arith.addf %722, %725 : vector<16x196xbf16>
    %c0_413 = arith.constant 0 : index
    %c11_414 = arith.constant 11 : index
    %727 = vector.load %arg2[%c0_413, %c11_414] : memref<1x45xbf16, #tpu.memory_space<vmem>>, vector<1x1xbf16>
    %728 = vector.broadcast %727 : vector<1x1xbf16> to vector<16x196xbf16>
    %729 = arith.mulf %670, %728 : vector<16x196xbf16>
    %730 = arith.addf %726, %729 : vector<16x196xbf16>
    %c0_415 = arith.constant 0 : index
    %c12_416 = arith.constant 12 : index
    %731 = vector.load %arg2[%c0_415, %c12_416] : memref<1x45xbf16, #tpu.memory_space<vmem>>, vector<1x1xbf16>
    %732 = vector.broadcast %731 : vector<1x1xbf16> to vector<16x196xbf16>
    %733 = arith.mulf %671, %732 : vector<16x196xbf16>
    %734 = arith.addf %730, %733 : vector<16x196xbf16>
    %c0_417 = arith.constant 0 : index
    %c13_418 = arith.constant 13 : index
    %735 = vector.load %arg2[%c0_417, %c13_418] : memref<1x45xbf16, #tpu.memory_space<vmem>>, vector<1x1xbf16>
    %736 = vector.broadcast %735 : vector<1x1xbf16> to vector<16x196xbf16>
    %737 = arith.mulf %672, %736 : vector<16x196xbf16>
    %738 = arith.addf %734, %737 : vector<16x196xbf16>
    %c0_419 = arith.constant 0 : index
    %c14_420 = arith.constant 14 : index
    %739 = vector.load %arg2[%c0_419, %c14_420] : memref<1x45xbf16, #tpu.memory_space<vmem>>, vector<1x1xbf16>
    %740 = vector.broadcast %739 : vector<1x1xbf16> to vector<16x196xbf16>
    %741 = arith.mulf %673, %740 : vector<16x196xbf16>
    %742 = arith.addf %738, %741 : vector<16x196xbf16>
    %c0_421 = arith.constant 0 : index
    %c15_422 = arith.constant 15 : index
    %743 = vector.load %arg2[%c0_421, %c15_422] : memref<1x45xbf16, #tpu.memory_space<vmem>>, vector<1x1xbf16>
    %744 = vector.broadcast %743 : vector<1x1xbf16> to vector<16x196xbf16>
    %745 = arith.mulf %674, %744 : vector<16x196xbf16>
    %746 = arith.addf %742, %745 : vector<16x196xbf16>
    %c0_423 = arith.constant 0 : index
    %c16_424 = arith.constant 16 : index
    %747 = vector.load %arg2[%c0_423, %c16_424] : memref<1x45xbf16, #tpu.memory_space<vmem>>, vector<1x1xbf16>
    %748 = vector.broadcast %747 : vector<1x1xbf16> to vector<16x196xbf16>
    %749 = arith.mulf %675, %748 : vector<16x196xbf16>
    %750 = arith.addf %746, %749 : vector<16x196xbf16>
    %c0_425 = arith.constant 0 : index
    %c17_426 = arith.constant 17 : index
    %751 = vector.load %arg2[%c0_425, %c17_426] : memref<1x45xbf16, #tpu.memory_space<vmem>>, vector<1x1xbf16>
    %752 = vector.broadcast %751 : vector<1x1xbf16> to vector<16x196xbf16>
    %753 = arith.mulf %676, %752 : vector<16x196xbf16>
    %754 = arith.addf %750, %753 : vector<16x196xbf16>
    %c0_427 = arith.constant 0 : index
    %c1_428 = arith.constant 1 : index
    %755 = vector.load %arg3[%c0_427, %c1_428] : memref<1x5xbf16, #tpu.memory_space<vmem>>, vector<1x1xbf16>
    %756 = vector.broadcast %755 : vector<1x1xbf16> to vector<16x196xbf16>
    %757 = arith.addf %754, %756 : vector<16x196xbf16>
    %cst_429 = arith.constant 0.000000e+00 : bf16
    %758 = vector.broadcast %cst_429 : bf16 to vector<16x196xbf16>
    %759 = arith.maximumf %757, %758 : vector<16x196xbf16>
    %c0_430 = arith.constant 0 : index
    %c256_431 = arith.constant 256 : index
    %760 = vector.load %arg7[%c0_430, %c256_431] : memref<16x1280xbf16, #tpu.memory_space<vmem>>, vector<16x196xbf16>
    %761 = arith.maximumf %760, %759 : vector<16x196xbf16>
    %c0_432 = arith.constant 0 : index
    %c256_433 = arith.constant 256 : index
    %762 = vector.load %arg7[%c0_432, %c256_433] : memref<16x1280xbf16, #tpu.memory_space<vmem>>, vector<16x196xbf16>
    tpu.vector_store %arg7[%c0_432, %c256_433], %761 {strides = array<i32>} : memref<16x1280xbf16, #tpu.memory_space<vmem>>, vector<16x196xbf16>,
    %c0_434 = arith.constant 0 : index
    %c18_435 = arith.constant 18 : index
    %763 = vector.load %arg2[%c0_434, %c18_435] : memref<1x45xbf16, #tpu.memory_space<vmem>>, vector<1x1xbf16>
    %764 = vector.broadcast %763 : vector<1x1xbf16> to vector<16x196xbf16>
    %765 = arith.mulf %668, %764 : vector<16x196xbf16>
    %c0_436 = arith.constant 0 : index
    %c19_437 = arith.constant 19 : index
    %766 = vector.load %arg2[%c0_436, %c19_437] : memref<1x45xbf16, #tpu.memory_space<vmem>>, vector<1x1xbf16>
    %767 = vector.broadcast %766 : vector<1x1xbf16> to vector<16x196xbf16>
    %768 = arith.mulf %669, %767 : vector<16x196xbf16>
    %769 = arith.addf %765, %768 : vector<16x196xbf16>
    %c0_438 = arith.constant 0 : index
    %c20_439 = arith.constant 20 : index
    %770 = vector.load %arg2[%c0_438, %c20_439] : memref<1x45xbf16, #tpu.memory_space<vmem>>, vector<1x1xbf16>
    %771 = vector.broadcast %770 : vector<1x1xbf16> to vector<16x196xbf16>
    %772 = arith.mulf %670, %771 : vector<16x196xbf16>
    %773 = arith.addf %769, %772 : vector<16x196xbf16>
    %c0_440 = arith.constant 0 : index
    %c21_441 = arith.constant 21 : index
    %774 = vector.load %arg2[%c0_440, %c21_441] : memref<1x45xbf16, #tpu.memory_space<vmem>>, vector<1x1xbf16>
    %775 = vector.broadcast %774 : vector<1x1xbf16> to vector<16x196xbf16>
    %776 = arith.mulf %671, %775 : vector<16x196xbf16>
    %777 = arith.addf %773, %776 : vector<16x196xbf16>
    %c0_442 = arith.constant 0 : index
    %c22_443 = arith.constant 22 : index
    %778 = vector.load %arg2[%c0_442, %c22_443] : memref<1x45xbf16, #tpu.memory_space<vmem>>, vector<1x1xbf16>
    %779 = vector.broadcast %778 : vector<1x1xbf16> to vector<16x196xbf16>
    %780 = arith.mulf %672, %779 : vector<16x196xbf16>
    %781 = arith.addf %777, %780 : vector<16x196xbf16>
    %c0_444 = arith.constant 0 : index
    %c23_445 = arith.constant 23 : index
    %782 = vector.load %arg2[%c0_444, %c23_445] : memref<1x45xbf16, #tpu.memory_space<vmem>>, vector<1x1xbf16>
    %783 = vector.broadcast %782 : vector<1x1xbf16> to vector<16x196xbf16>
    %784 = arith.mulf %673, %783 : vector<16x196xbf16>
    %785 = arith.addf %781, %784 : vector<16x196xbf16>
    %c0_446 = arith.constant 0 : index
    %c24_447 = arith.constant 24 : index
    %786 = vector.load %arg2[%c0_446, %c24_447] : memref<1x45xbf16, #tpu.memory_space<vmem>>, vector<1x1xbf16>
    %787 = vector.broadcast %786 : vector<1x1xbf16> to vector<16x196xbf16>
    %788 = arith.mulf %674, %787 : vector<16x196xbf16>
    %789 = arith.addf %785, %788 : vector<16x196xbf16>
    %c0_448 = arith.constant 0 : index
    %c25_449 = arith.constant 25 : index
    %790 = vector.load %arg2[%c0_448, %c25_449] : memref<1x45xbf16, #tpu.memory_space<vmem>>, vector<1x1xbf16>
    %791 = vector.broadcast %790 : vector<1x1xbf16> to vector<16x196xbf16>
    %792 = arith.mulf %675, %791 : vector<16x196xbf16>
    %793 = arith.addf %789, %792 : vector<16x196xbf16>
    %c0_450 = arith.constant 0 : index
    %c26_451 = arith.constant 26 : index
    %794 = vector.load %arg2[%c0_450, %c26_451] : memref<1x45xbf16, #tpu.memory_space<vmem>>, vector<1x1xbf16>
    %795 = vector.broadcast %794 : vector<1x1xbf16> to vector<16x196xbf16>
    %796 = arith.mulf %676, %795 : vector<16x196xbf16>
    %797 = arith.addf %793, %796 : vector<16x196xbf16>
    %c0_452 = arith.constant 0 : index
    %c2_453 = arith.constant 2 : index
    %798 = vector.load %arg3[%c0_452, %c2_453] : memref<1x5xbf16, #tpu.memory_space<vmem>>, vector<1x1xbf16>
    %799 = vector.broadcast %798 : vector<1x1xbf16> to vector<16x196xbf16>
    %800 = arith.addf %797, %799 : vector<16x196xbf16>
    %cst_454 = arith.constant 0.000000e+00 : bf16
    %801 = vector.broadcast %cst_454 : bf16 to vector<16x196xbf16>
    %802 = arith.maximumf %800, %801 : vector<16x196xbf16>
    %c0_455 = arith.constant 0 : index
    %c512_456 = arith.constant 512 : index
    %803 = vector.load %arg7[%c0_455, %c512_456] : memref<16x1280xbf16, #tpu.memory_space<vmem>>, vector<16x196xbf16>
    %804 = arith.maximumf %803, %802 : vector<16x196xbf16>
    %c0_457 = arith.constant 0 : index
    %c512_458 = arith.constant 512 : index
    %805 = vector.load %arg7[%c0_457, %c512_458] : memref<16x1280xbf16, #tpu.memory_space<vmem>>, vector<16x196xbf16>
    tpu.vector_store %arg7[%c0_457, %c512_458], %804 {strides = array<i32>} : memref<16x1280xbf16, #tpu.memory_space<vmem>>, vector<16x196xbf16>,
    %c0_459 = arith.constant 0 : index
    %c27_460 = arith.constant 27 : index
    %806 = vector.load %arg2[%c0_459, %c27_460] : memref<1x45xbf16, #tpu.memory_space<vmem>>, vector<1x1xbf16>
    %807 = vector.broadcast %806 : vector<1x1xbf16> to vector<16x196xbf16>
    %808 = arith.mulf %668, %807 : vector<16x196xbf16>
    %c0_461 = arith.constant 0 : index
    %c28_462 = arith.constant 28 : index
    %809 = vector.load %arg2[%c0_461, %c28_462] : memref<1x45xbf16, #tpu.memory_space<vmem>>, vector<1x1xbf16>
    %810 = vector.broadcast %809 : vector<1x1xbf16> to vector<16x196xbf16>
    %811 = arith.mulf %669, %810 : vector<16x196xbf16>
    %812 = arith.addf %808, %811 : vector<16x196xbf16>
    %c0_463 = arith.constant 0 : index
    %c29_464 = arith.constant 29 : index
    %813 = vector.load %arg2[%c0_463, %c29_464] : memref<1x45xbf16, #tpu.memory_space<vmem>>, vector<1x1xbf16>
    %814 = vector.broadcast %813 : vector<1x1xbf16> to vector<16x196xbf16>
    %815 = arith.mulf %670, %814 : vector<16x196xbf16>
    %816 = arith.addf %812, %815 : vector<16x196xbf16>
    %c0_465 = arith.constant 0 : index
    %c30_466 = arith.constant 30 : index
    %817 = vector.load %arg2[%c0_465, %c30_466] : memref<1x45xbf16, #tpu.memory_space<vmem>>, vector<1x1xbf16>
    %818 = vector.broadcast %817 : vector<1x1xbf16> to vector<16x196xbf16>
    %819 = arith.mulf %671, %818 : vector<16x196xbf16>
    %820 = arith.addf %816, %819 : vector<16x196xbf16>
    %c0_467 = arith.constant 0 : index
    %c31_468 = arith.constant 31 : index
    %821 = vector.load %arg2[%c0_467, %c31_468] : memref<1x45xbf16, #tpu.memory_space<vmem>>, vector<1x1xbf16>
    %822 = vector.broadcast %821 : vector<1x1xbf16> to vector<16x196xbf16>
    %823 = arith.mulf %672, %822 : vector<16x196xbf16>
    %824 = arith.addf %820, %823 : vector<16x196xbf16>
    %c0_469 = arith.constant 0 : index
    %c32_470 = arith.constant 32 : index
    %825 = vector.load %arg2[%c0_469, %c32_470] : memref<1x45xbf16, #tpu.memory_space<vmem>>, vector<1x1xbf16>
    %826 = vector.broadcast %825 : vector<1x1xbf16> to vector<16x196xbf16>
    %827 = arith.mulf %673, %826 : vector<16x196xbf16>
    %828 = arith.addf %824, %827 : vector<16x196xbf16>
    %c0_471 = arith.constant 0 : index
    %c33_472 = arith.constant 33 : index
    %829 = vector.load %arg2[%c0_471, %c33_472] : memref<1x45xbf16, #tpu.memory_space<vmem>>, vector<1x1xbf16>
    %830 = vector.broadcast %829 : vector<1x1xbf16> to vector<16x196xbf16>
    %831 = arith.mulf %674, %830 : vector<16x196xbf16>
    %832 = arith.addf %828, %831 : vector<16x196xbf16>
    %c0_473 = arith.constant 0 : index
    %c34_474 = arith.constant 34 : index
    %833 = vector.load %arg2[%c0_473, %c34_474] : memref<1x45xbf16, #tpu.memory_space<vmem>>, vector<1x1xbf16>
    %834 = vector.broadcast %833 : vector<1x1xbf16> to vector<16x196xbf16>
    %835 = arith.mulf %675, %834 : vector<16x196xbf16>
    %836 = arith.addf %832, %835 : vector<16x196xbf16>
    %c0_475 = arith.constant 0 : index
    %c35_476 = arith.constant 35 : index
    %837 = vector.load %arg2[%c0_475, %c35_476] : memref<1x45xbf16, #tpu.memory_space<vmem>>, vector<1x1xbf16>
    %838 = vector.broadcast %837 : vector<1x1xbf16> to vector<16x196xbf16>
    %839 = arith.mulf %676, %838 : vector<16x196xbf16>
    %840 = arith.addf %836, %839 : vector<16x196xbf16>
    %c0_477 = arith.constant 0 : index
    %c3_478 = arith.constant 3 : index
    %841 = vector.load %arg3[%c0_477, %c3_478] : memref<1x5xbf16, #tpu.memory_space<vmem>>, vector<1x1xbf16>
    %842 = vector.broadcast %841 : vector<1x1xbf16> to vector<16x196xbf16>
    %843 = arith.addf %840, %842 : vector<16x196xbf16>
    %cst_479 = arith.constant 0.000000e+00 : bf16
    %844 = vector.broadcast %cst_479 : bf16 to vector<16x196xbf16>
    %845 = arith.maximumf %843, %844 : vector<16x196xbf16>
    %c0_480 = arith.constant 0 : index
    %c768_481 = arith.constant 768 : index
    %846 = vector.load %arg7[%c0_480, %c768_481] : memref<16x1280xbf16, #tpu.memory_space<vmem>>, vector<16x196xbf16>
    %847 = arith.maximumf %846, %845 : vector<16x196xbf16>
    %c0_482 = arith.constant 0 : index
    %c768_483 = arith.constant 768 : index
    %848 = vector.load %arg7[%c0_482, %c768_483] : memref<16x1280xbf16, #tpu.memory_space<vmem>>, vector<16x196xbf16>
    tpu.vector_store %arg7[%c0_482, %c768_483], %847 {strides = array<i32>} : memref<16x1280xbf16, #tpu.memory_space<vmem>>, vector<16x196xbf16>,
    %c0_484 = arith.constant 0 : index
    %c36_485 = arith.constant 36 : index
    %849 = vector.load %arg2[%c0_484, %c36_485] : memref<1x45xbf16, #tpu.memory_space<vmem>>, vector<1x1xbf16>
    %850 = vector.broadcast %849 : vector<1x1xbf16> to vector<16x196xbf16>
    %851 = arith.mulf %668, %850 : vector<16x196xbf16>
    %c0_486 = arith.constant 0 : index
    %c37_487 = arith.constant 37 : index
    %852 = vector.load %arg2[%c0_486, %c37_487] : memref<1x45xbf16, #tpu.memory_space<vmem>>, vector<1x1xbf16>
    %853 = vector.broadcast %852 : vector<1x1xbf16> to vector<16x196xbf16>
    %854 = arith.mulf %669, %853 : vector<16x196xbf16>
    %855 = arith.addf %851, %854 : vector<16x196xbf16>
    %c0_488 = arith.constant 0 : index
    %c38_489 = arith.constant 38 : index
    %856 = vector.load %arg2[%c0_488, %c38_489] : memref<1x45xbf16, #tpu.memory_space<vmem>>, vector<1x1xbf16>
    %857 = vector.broadcast %856 : vector<1x1xbf16> to vector<16x196xbf16>
    %858 = arith.mulf %670, %857 : vector<16x196xbf16>
    %859 = arith.addf %855, %858 : vector<16x196xbf16>
    %c0_490 = arith.constant 0 : index
    %c39_491 = arith.constant 39 : index
    %860 = vector.load %arg2[%c0_490, %c39_491] : memref<1x45xbf16, #tpu.memory_space<vmem>>, vector<1x1xbf16>
    %861 = vector.broadcast %860 : vector<1x1xbf16> to vector<16x196xbf16>
    %862 = arith.mulf %671, %861 : vector<16x196xbf16>
    %863 = arith.addf %859, %862 : vector<16x196xbf16>
    %c0_492 = arith.constant 0 : index
    %c40_493 = arith.constant 40 : index
    %864 = vector.load %arg2[%c0_492, %c40_493] : memref<1x45xbf16, #tpu.memory_space<vmem>>, vector<1x1xbf16>
    %865 = vector.broadcast %864 : vector<1x1xbf16> to vector<16x196xbf16>
    %866 = arith.mulf %672, %865 : vector<16x196xbf16>
    %867 = arith.addf %863, %866 : vector<16x196xbf16>
    %c0_494 = arith.constant 0 : index
    %c41_495 = arith.constant 41 : index
    %868 = vector.load %arg2[%c0_494, %c41_495] : memref<1x45xbf16, #tpu.memory_space<vmem>>, vector<1x1xbf16>
    %869 = vector.broadcast %868 : vector<1x1xbf16> to vector<16x196xbf16>
    %870 = arith.mulf %673, %869 : vector<16x196xbf16>
    %871 = arith.addf %867, %870 : vector<16x196xbf16>
    %c0_496 = arith.constant 0 : index
    %c42_497 = arith.constant 42 : index
    %872 = vector.load %arg2[%c0_496, %c42_497] : memref<1x45xbf16, #tpu.memory_space<vmem>>, vector<1x1xbf16>
    %873 = vector.broadcast %872 : vector<1x1xbf16> to vector<16x196xbf16>
    %874 = arith.mulf %674, %873 : vector<16x196xbf16>
    %875 = arith.addf %871, %874 : vector<16x196xbf16>
    %c0_498 = arith.constant 0 : index
    %c43_499 = arith.constant 43 : index
    %876 = vector.load %arg2[%c0_498, %c43_499] : memref<1x45xbf16, #tpu.memory_space<vmem>>, vector<1x1xbf16>
    %877 = vector.broadcast %876 : vector<1x1xbf16> to vector<16x196xbf16>
    %878 = arith.mulf %675, %877 : vector<16x196xbf16>
    %879 = arith.addf %875, %878 : vector<16x196xbf16>
    %c0_500 = arith.constant 0 : index
    %c44_501 = arith.constant 44 : index
    %880 = vector.load %arg2[%c0_500, %c44_501] : memref<1x45xbf16, #tpu.memory_space<vmem>>, vector<1x1xbf16>
    %881 = vector.broadcast %880 : vector<1x1xbf16> to vector<16x196xbf16>
    %882 = arith.mulf %676, %881 : vector<16x196xbf16>
    %883 = arith.addf %879, %882 : vector<16x196xbf16>
    %c0_502 = arith.constant 0 : index
    %c4_503 = arith.constant 4 : index
    %884 = vector.load %arg3[%c0_502, %c4_503] : memref<1x5xbf16, #tpu.memory_space<vmem>>, vector<1x1xbf16>
    %885 = vector.broadcast %884 : vector<1x1xbf16> to vector<16x196xbf16>
    %886 = arith.addf %883, %885 : vector<16x196xbf16>
    %cst_504 = arith.constant 0.000000e+00 : bf16
    %887 = vector.broadcast %cst_504 : bf16 to vector<16x196xbf16>
    %888 = arith.maximumf %886, %887 : vector<16x196xbf16>
    %c0_505 = arith.constant 0 : index
    %c1024_506 = arith.constant 1024 : index
    %889 = vector.load %arg7[%c0_505, %c1024_506] : memref<16x1280xbf16, #tpu.memory_space<vmem>>, vector<16x196xbf16>
    %890 = arith.maximumf %889, %888 : vector<16x196xbf16>
    %c0_507 = arith.constant 0 : index
    %c1024_508 = arith.constant 1024 : index
    %891 = vector.load %arg7[%c0_507, %c1024_508] : memref<16x1280xbf16, #tpu.memory_space<vmem>>, vector<16x196xbf16>
    tpu.vector_store %arg7[%c0_507, %c1024_508], %890 {strides = array<i32>} : memref<16x1280xbf16, #tpu.memory_space<vmem>>, vector<16x196xbf16>,
    %c0_509 = arith.constant 0 : index
    %c0_510 = arith.constant 0 : index
    %892 = vector.load %arg7[%c0_509, %c0_510] : memref<16x1280xbf16, #tpu.memory_space<vmem>>, vector<16x1280xbf16>
    %c0_511 = arith.constant 0 : index
    %c0_512 = arith.constant 0 : index
    %893 = vector.load %arg4[%c0_511, %c0_512] : memref<1280x10xbf16, #tpu.memory_space<vmem>>, vector<1280x10xbf16>
    %cst_513 = arith.constant dense<0.000000e+00> : vector<16x10xf32>
    %894 = tpu.matmul %892, %893, %cst_513 {dimension_numbers = #tpu.dot_dimension_numbers<[1], [0], [0], [1], [0, 0, 1, 1], [], []>} : vector<16x1280xbf16>, vector<1280x10xbf16>, vector<16x10xf32> -> vector<16x10xf32>
    %c0_514 = arith.constant 0 : index
    %c0_515 = arith.constant 0 : index
    %895 = vector.load %arg5[%c0_514, %c0_515] : memref<1x10xf32, #tpu.memory_space<vmem>>, vector<1x10xf32>
    %896 = vector.broadcast %895 : vector<1x10xf32> to vector<16x10xf32>
    %897 = arith.addf %894, %896 : vector<16x10xf32>
    %c0_516 = arith.constant 0 : index
    %c0_517 = arith.constant 0 : index
    %898 = vector.load %arg6[%c0_516, %c0_517] : memref<16x10xf32, #tpu.memory_space<vmem>>, vector<16x10xf32>
    tpu.vector_store %arg6[%c0_516, %c0_517], %897 {strides = array<i32>} : memref<16x10xf32, #tpu.memory_space<vmem>>, vector<16x10xf32>,
    return
  }
  func.func @transform_0(%arg0: i32) -> (i32, i32) {
    %c0_i32 = arith.constant 0 : i32
    %c0_i32_0 = arith.constant 0 : i32
    return %arg0, %c0_i32 : i32, i32
  }
  func.func @transform_1(%arg0: i32) -> (i32, i32) {
    %c0_i32 = arith.constant 0 : i32
    %c0_i32_0 = arith.constant 0 : i32
    %c0_i32_1 = arith.constant 0 : i32
    return %c0_i32, %c0_i32_0 : i32, i32
  }
  func.func @transform_2(%arg0: i32) -> (i32, i32) {
    %c0_i32 = arith.constant 0 : i32
    %c0_i32_0 = arith.constant 0 : i32
    %c0_i32_1 = arith.constant 0 : i32
    return %c0_i32, %c0_i32_0 : i32, i32
  }
  func.func @transform_3(%arg0: i32) -> (i32, i32) {
    %c0_i32 = arith.constant 0 : i32
    %c0_i32_0 = arith.constant 0 : i32
    %c0_i32_1 = arith.constant 0 : i32
    return %c0_i32, %c0_i32_0 : i32, i32
  }
  func.func @transform_4(%arg0: i32) -> (i32, i32) {
    %c0_i32 = arith.constant 0 : i32
    %c0_i32_0 = arith.constant 0 : i32
    %c0_i32_1 = arith.constant 0 : i32
    return %c0_i32, %c0_i32_0 : i32, i32
  }
  func.func @transform_5(%arg0: i32) -> (i32, i32) {
    %c0_i32 = arith.constant 0 : i32
    %c0_i32_0 = arith.constant 0 : i32
    return %arg0, %c0_i32 : i32, i32
  }
}

</mosaic_0001>

<llo_original>
// kernel: tpu_custom_call.1
$region0: #{tpu_custom_call.1}
  #allocation0 [shape = 'u32[]', space=smem, size = 0x4, offset = 0x4, fixed_abs, tag = 'smem constant byte address 0x4 - core index']
  #allocation1 [shape = 'u32[72,128]{1,0:T(1,128)}', space=vmem, size = 0x9000, scoped, tag = 'internal scratch']
  #allocation2 [shape = 'bf16[16,1280]{1,0:T(8,128)(2,1)}', space=vmem, size = 0xa000, scoped, tag = 'scratch operand']
  %s0 = inlined_call_operand.vmem [shape: bf16[16,1024], index: 0, kind: input, shape index: {}]
  %s1 = inlined_call_operand.vmem [shape: bf16[1,45], index: 1, kind: input, shape index: {}]
  %s2 = inlined_call_operand.vmem [shape: bf16[1,5], index: 2, kind: input, shape index: {}]
  %s3 = inlined_call_operand.vmem [shape: bf16[1280,10], index: 3, kind: input, shape index: {}]
  %s4 = inlined_call_operand.vmem [shape: f32[1,10], index: 4, kind: input, shape index: {}]
  %s5 = inlined_call_operand.hbm [shape: f32[16,10], index: 5, kind: output, shape index: {}]
  %s6 = sld [smem:[#allocation0]]
  $region30: #{tpu_custom_call.1} parent=0
    _
  %s8 = ssub.s32 1, %s6
  %s9 = scalar_select 0, %s8, %s6
  $region1: #{tpu_custom_call.1} parent=0
    #allocation3 [shape = 'u8[8192]{0}', space=vmem, size = 0x2000, scoped, tag = 'output window, operand 0, single buffered']
    #allocation4 [shape = 's32[1]{0}', space=sflag, size = 0x4, scoped, tag = 'scoped memory for tpu_custom_call.1']
    %10 = vsyncpa [#allocation4], 0
    // Predicated region
    $region2: #{tpu_custom_call.1} parent=1 // pred_check
      _
    $region3: #{tpu_custom_call.1} parent=1 // pred_check_branch
      %12 = sbr.rel (0) target = $region5
    $region4: #{tpu_custom_call.1} parent=1 // pred_region
      _
    $region5: #{tpu_custom_call.1} parent=1 // pred_fallthru
      _
    // Predicated region
    $region6: #{tpu_custom_call.1} parent=1 // pred_check
      _
    $region7: #{tpu_custom_call.1} parent=1 // pred_check_branch
      %14 = sbr.rel (0) target = $region9
    $region8: #{tpu_custom_call.1} parent=1 // pred_region
      _
    $region9: #{tpu_custom_call.1} parent=1 // pred_fallthru
      _
    // Predicated region
    $region10: #{tpu_custom_call.1} parent=1 // pred_check
      _
    $region11: #{tpu_custom_call.1} parent=1 // pred_check_branch
      %16 = sbr.rel (0) target = $region13
    $region12: #{tpu_custom_call.1} parent=1 // pred_region
      _
    $region13: #{tpu_custom_call.1} parent=1 // pred_fallthru
      _
    // Predicated region
    $region14: #{tpu_custom_call.1} parent=1 // pred_check
      _
    $region15: #{tpu_custom_call.1} parent=1 // pred_check_branch
      %18 = sbr.rel (0) target = $region17
    $region16: #{tpu_custom_call.1} parent=1 // pred_region
      _
    $region17: #{tpu_custom_call.1} parent=1 // pred_fallthru
      _
    // Predicated region
    $region18: #{tpu_custom_call.1} parent=1 // pred_check
      _
    $region19: #{tpu_custom_call.1} parent=1 // pred_check_branch
      %20 = sbr.rel (0) target = $region21
    $region20: #{tpu_custom_call.1} parent=1 // pred_region
      _
    $region21: #{tpu_custom_call.1} parent=1 // pred_fallthru
      _
    %v22 = vld [vmem:[%s0] sm:$0xff]
    %v23 = vld [vmem:[%s0 + $0x20] sm:$0xff]
    %v24 = vld [vmem:[%s0 + $0x8] sm:$0xff]
    %v25 = vld [vmem:[%s0 + $0x28] sm:$0xff]
    %v26 = vld [vmem:[%s0 + $0x10] sm:$0xff]
    %v27 = vld [vmem:[%s0 + $0x30] sm:$0xff]
    %v28 = vld [vmem:[%s0 + $0x18] sm:$0xff]
    %v29 = vld [vmem:[%s0 + $0x38] sm:$0xff]
    %v30 = vld [vmem:[%s1] sm:$0x1]
    %s32 = vtos %v30
    %v33 = vstv %s32
    %v34 = vpack.i.b16 %v33, %v33
    %v36 = vunpack.c.l.bf16 %v22
    %v37 = vunpack.c.h.bf16 %v22
    %v38 = vunpack.c.l.bf16 %v23
    %v39 = vunpack.c.h.bf16 %v23
    %v40 = vunpack.c.l.bf16 %v34
    %v41 = vmul.f32 %v36, %v40
    %v42 = vmul.f32 %v37, %v40
    %v43 = vmul.f32 %v38, %v40
    %v44 = vmul.f32 %v39, %v40
    %v45 = vpack.c.bf16 %v42, %v41
    %v46 = vpack.c.bf16 %v44, %v43
    %47 = vst [vmem:[#allocation1] ss:$9 sm:$0xff] %v30
    %v48 = vld [vmem:[#allocation1] sm:$0xff]
    %50 = vrot.lane.b32.xlu0 %v48, 127
    %v51 = vpop.permute.xlu0 %50
    %s53 = vtos %v51
    %v54 = vstv %s53
    %v55 = vpack.i.b16 %v54, %v54
    %v57 = vunpack.c.l.bf16 %v24
    %v58 = vunpack.c.h.bf16 %v24
    %v59 = vunpack.c.l.bf16 %v25
    %v60 = vunpack.c.h.bf16 %v25
    %v61 = vunpack.c.l.bf16 %v55
    %v62 = vmul.f32 %v57, %v61
    %v63 = vmul.f32 %v58, %v61
    %v64 = vmul.f32 %v59, %v61
    %v65 = vmul.f32 %v60, %v61
    %v66 = vpack.c.bf16 %v63, %v62
    %v67 = vpack.c.bf16 %v65, %v64
    %v68 = vunpack.c.l.bf16 %v45
    %v69 = vunpack.c.h.bf16 %v45
    %v70 = vunpack.c.l.bf16 %v46
    %v71 = vunpack.c.h.bf16 %v46
    %v72 = vunpack.c.l.bf16 %v66
    %v73 = vunpack.c.h.bf16 %v66
    %v74 = vunpack.c.l.bf16 %v67
    %v75 = vunpack.c.h.bf16 %v67
    %v76 = vadd.f32 %v68, %v72
    %v77 = vadd.f32 %v69, %v73
    %v78 = vadd.f32 %v70, %v74
    %v79 = vadd.f32 %v71, %v75
    %v80 = vpack.c.bf16 %v77, %v76
    %v81 = vpack.c.bf16 %v79, %v78
    %v82 = vld [vmem:[%s1] sm:$0x1]
    %84 = vst [vmem:[#allocation1] ss:$9 sm:$0xff] %v82
    %v85 = vld [vmem:[#allocation1] sm:$0xff]
    %87 = vrot.lane.b32.xlu0 %v85, 126
    %v88 = vpop.permute.xlu0 %87
    %s90 = vtos %v88
    %v91 = vstv %s90
    %v92 = vpack.i.b16 %v91, %v91
    %v94 = vunpack.c.l.bf16 %v92
    %v95 = vmul.f32 %v36, %v94
    %v96 = vmul.f32 %v37, %v94
    %v97 = vmul.f32 %v38, %v94
    %v98 = vmul.f32 %v39, %v94
    %v99 = vpack.c.bf16 %v96, %v95
    %v100 = vpack.c.bf16 %v98, %v97
    %v101 = vunpack.c.l.bf16 %v80
    %v102 = vunpack.c.h.bf16 %v80
    %v103 = vunpack.c.l.bf16 %v81
    %v104 = vunpack.c.h.bf16 %v81
    %v105 = vunpack.c.l.bf16 %v99
    %v106 = vunpack.c.h.bf16 %v99
    %v107 = vunpack.c.l.bf16 %v100
    %v108 = vunpack.c.h.bf16 %v100
    %113 = vrot.lane.b32.xlu0 %v105, 127
    %v114 = vpop.permute.xlu0 %113
    %115 = vrot.lane.b32.xlu0 %v106, 127
    %v116 = vpop.permute.xlu0 %115
    %117 = vrot.lane.b32.xlu0 %v107, 127
    %v118 = vpop.permute.xlu0 %117
    %119 = vrot.lane.b32.xlu0 %v108, 127
    %v120 = vpop.permute.xlu0 %119
    %vm121 = vcmask 1039360
    %v122 = vsel %vm121, %v114, %v116
    %v123 = vsel %vm121, %v118, %v120
    %v128 = vadd.f32 %v101, %v122
    %v129 = vadd.f32 %v102, %v116
    %v130 = vadd.f32 %v103, %v123
    %v131 = vadd.f32 %v104, %v120
    %v132 = vpack.c.bf16 %v129, %v128
    %v133 = vpack.c.bf16 %v131, %v130
    %v134 = vld [vmem:[%s1] sm:$0x1]
    %136 = vst [vmem:[#allocation1] ss:$9 sm:$0xff] %v134
    %v137 = vld [vmem:[#allocation1] sm:$0xff]
    %139 = vrot.lane.b32.xlu0 %v137, 125
    %v140 = vpop.permute.xlu0 %139
    %s142 = vtos %v140
    %v143 = vstv %s142
    %v144 = vpack.i.b16 %v143, %v143
    %v146 = vunpack.c.l.bf16 %v26
    %v147 = vunpack.c.h.bf16 %v26
    %v148 = vunpack.c.l.bf16 %v27
    %v149 = vunpack.c.h.bf16 %v27
    %v150 = vunpack.c.l.bf16 %v144
    %v151 = vmul.f32 %v146, %v150
    %v152 = vmul.f32 %v147, %v150
    %v153 = vmul.f32 %v148, %v150
    %v154 = vmul.f32 %v149, %v150
    %v155 = vpack.c.bf16 %v152, %v151
    %v156 = vpack.c.bf16 %v154, %v153
    %v157 = vunpack.c.l.bf16 %v132
    %v158 = vunpack.c.h.bf16 %v132
    %v159 = vunpack.c.l.bf16 %v133
    %v160 = vunpack.c.h.bf16 %v133
    %v161 = vunpack.c.l.bf16 %v155
    %v162 = vunpack.c.h.bf16 %v155
    %v163 = vunpack.c.l.bf16 %v156
    %v164 = vunpack.c.h.bf16 %v156
    %v165 = vadd.f32 %v157, %v161
    %v166 = vadd.f32 %v158, %v162
    %v167 = vadd.f32 %v159, %v163
    %v168 = vadd.f32 %v160, %v164
    %v169 = vpack.c.bf16 %v166, %v165
    %v170 = vpack.c.bf16 %v168, %v167
    %v171 = vld [vmem:[%s1] sm:$0x1]
    %173 = vst [vmem:[#allocation1] ss:$9 sm:$0xff] %v171
    %v174 = vld [vmem:[#allocation1] sm:$0xff]
    %176 = vrot.lane.b32.xlu0 %v174, 124
    %v177 = vpop.permute.xlu0 %176
    %s179 = vtos %v177
    %v180 = vstv %s179
    %v181 = vpack.i.b16 %v180, %v180
    %v183 = vunpack.c.l.bf16 %v28
    %v184 = vunpack.c.h.bf16 %v28
    %v185 = vunpack.c.l.bf16 %v29
    %v186 = vunpack.c.h.bf16 %v29
    %v187 = vunpack.c.l.bf16 %v181
    %v188 = vmul.f32 %v183, %v187
    %v189 = vmul.f32 %v184, %v187
    %v190 = vmul.f32 %v185, %v187
    %v191 = vmul.f32 %v186, %v187
    %v192 = vpack.c.bf16 %v189, %v188
    %v193 = vpack.c.bf16 %v191, %v190
    %v194 = vunpack.c.l.bf16 %v169
    %v195 = vunpack.c.h.bf16 %v169
    %v196 = vunpack.c.l.bf16 %v170
    %v197 = vunpack.c.h.bf16 %v170
    %v198 = vunpack.c.l.bf16 %v192
    %v199 = vunpack.c.h.bf16 %v192
    %v200 = vunpack.c.l.bf16 %v193
    %v201 = vunpack.c.h.bf16 %v193
    %v202 = vadd.f32 %v194, %v198
    %v203 = vadd.f32 %v195, %v199
    %v204 = vadd.f32 %v196, %v200
    %v205 = vadd.f32 %v197, %v201
    %v206 = vpack.c.bf16 %v203, %v202
    %v207 = vpack.c.bf16 %v205, %v204
    %v208 = vld [vmem:[%s1] sm:$0x1]
    %210 = vst [vmem:[#allocation1] ss:$9 sm:$0xff] %v208
    %v211 = vld [vmem:[#allocation1] sm:$0xff]
    %213 = vrot.lane.b32.xlu0 %v211, 123
    %v214 = vpop.permute.xlu0 %213
    %s216 = vtos %v214
    %v217 = vstv %s216
    %v218 = vpack.i.b16 %v217, %v217
    %v220 = vunpack.c.l.bf16 %v218
    %v221 = vmul.f32 %v146, %v220
    %v222 = vmul.f32 %v147, %v220
    %v223 = vmul.f32 %v148, %v220
    %v224 = vmul.f32 %v149, %v220
    %v225 = vpack.c.bf16 %v222, %v221
    %v226 = vpack.c.bf16 %v224, %v223
    %v227 = vunpack.c.l.bf16 %v206
    %v228 = vunpack.c.h.bf16 %v206
    %v229 = vunpack.c.l.bf16 %v207
    %v230 = vunpack.c.h.bf16 %v207
    %v231 = vunpack.c.l.bf16 %v225
    %v232 = vunpack.c.h.bf16 %v225
    %v233 = vunpack.c.l.bf16 %v226
    %v234 = vunpack.c.h.bf16 %v226
    %239 = vrot.lane.b32.xlu0 %v231, 127
    %v240 = vpop.permute.xlu0 %239
    %241 = vrot.lane.b32.xlu0 %v232, 127
    %v242 = vpop.permute.xlu0 %241
    %243 = vrot.lane.b32.xlu0 %v233, 127
    %v244 = vpop.permute.xlu0 %243
    %245 = vrot.lane.b32.xlu0 %v234, 127
    %v246 = vpop.permute.xlu0 %245
    %v247 = vsel %vm121, %v240, %v242
    %v248 = vsel %vm121, %v244, %v246
    %v253 = vadd.f32 %v227, %v247
    %v254 = vadd.f32 %v228, %v242
    %v255 = vadd.f32 %v229, %v248
    %v256 = vadd.f32 %v230, %v246
    %v257 = vpack.c.bf16 %v254, %v253
    %v258 = vpack.c.bf16 %v256, %v255
    %v259 = vld [vmem:[%s1] sm:$0x1]
    %261 = vst [vmem:[#allocation1] ss:$9 sm:$0xff] %v259
    %v262 = vld [vmem:[#allocation1] sm:$0xff]
    %264 = vrot.lane.b32.xlu0 %v262, 122
    %v265 = vpop.permute.xlu0 %264
    %s267 = vtos %v265
    %v268 = vstv %s267
    %v269 = vpack.i.b16 %v268, %v268
    %v271 = vunpack.c.l.bf16 %v269
    %v272 = vmul.f32 %v36, %v271
    %v273 = vmul.f32 %v37, %v271
    %v274 = vmul.f32 %v38, %v271
    %v275 = vmul.f32 %v39, %v271
    %v276 = vpack.c.bf16 %v273, %v272
    %v277 = vpack.c.bf16 %v275, %v274
    %v278 = vunpack.c.l.bf16 %v257
    %v279 = vunpack.c.h.bf16 %v257
    %v280 = vunpack.c.l.bf16 %v258
    %v281 = vunpack.c.h.bf16 %v258
    %v282 = vunpack.c.l.bf16 %v276
    %v283 = vunpack.c.h.bf16 %v276
    %v284 = vunpack.c.l.bf16 %v277
    %v285 = vunpack.c.h.bf16 %v277
    %290 = vrot.lane.b32.xlu0 %v282, 114
    %v291 = vpop.permute.xlu0 %290
    %292 = vrot.lane.b32.xlu0 %v283, 114
    %v293 = vpop.permute.xlu0 %292
    %294 = vrot.lane.b32.xlu0 %v284, 114
    %v295 = vpop.permute.xlu0 %294
    %296 = vrot.lane.b32.xlu0 %v285, 114
    %v297 = vpop.permute.xlu0 %296
    %vm298 = vcmask 932864
    %v299 = vsel %vm298, %v291, %v293
    %v300 = vsel %vm298, %v295, %v297
    %v305 = vadd.f32 %v278, %v299
    %v306 = vadd.f32 %v279, %v293
    %v307 = vadd.f32 %v280, %v300
    %v308 = vadd.f32 %v281, %v297
    %v309 = vpack.c.bf16 %v306, %v305
    %v310 = vpack.c.bf16 %v308, %v307
    %v311 = vld [vmem:[%s1] sm:$0x1]
    %313 = vst [vmem:[#allocation1] ss:$9 sm:$0xff] %v311
    %v314 = vld [vmem:[#allocation1] sm:$0xff]
    %316 = vrot.lane.b32.xlu0 %v314, 121
    %v317 = vpop.permute.xlu0 %316
    %s319 = vtos %v317
    %v320 = vstv %s319
    %v321 = vpack.i.b16 %v320, %v320
    %v323 = vunpack.c.l.bf16 %v321
    %v324 = vmul.f32 %v57, %v323
    %v325 = vmul.f32 %v58, %v323
    %v326 = vmul.f32 %v59, %v323
    %v327 = vmul.f32 %v60, %v323
    %v328 = vpack.c.bf16 %v325, %v324
    %v329 = vpack.c.bf16 %v327, %v326
    %v330 = vunpack.c.l.bf16 %v309
    %v331 = vunpack.c.h.bf16 %v309
    %v332 = vunpack.c.l.bf16 %v310
    %v333 = vunpack.c.h.bf16 %v310
    %v334 = vunpack.c.l.bf16 %v328
    %v335 = vunpack.c.h.bf16 %v328
    %v336 = vunpack.c.l.bf16 %v329
    %v337 = vunpack.c.h.bf16 %v329
    %342 = vrot.lane.b32.xlu0 %v334, 114
    %v343 = vpop.permute.xlu0 %342
    %344 = vrot.lane.b32.xlu0 %v335, 114
    %v345 = vpop.permute.xlu0 %344
    %346 = vrot.lane.b32.xlu0 %v336, 114
    %v347 = vpop.permute.xlu0 %346
    %348 = vrot.lane.b32.xlu0 %v337, 114
    %v349 = vpop.permute.xlu0 %348
    %v350 = vsel %vm298, %v343, %v345
    %v351 = vsel %vm298, %v347, %v349
    %v356 = vadd.f32 %v330, %v350
    %v357 = vadd.f32 %v331, %v345
    %v358 = vadd.f32 %v332, %v351
    %v359 = vadd.f32 %v333, %v349
    %v360 = vpack.c.bf16 %v357, %v356
    %v361 = vpack.c.bf16 %v359, %v358
    %v362 = vld [vmem:[%s1] sm:$0x1]
    %364 = vst [vmem:[#allocation1] ss:$9 sm:$0xff] %v362
    %v365 = vld [vmem:[#allocation1] sm:$0xff]
    %367 = vrot.lane.b32.xlu0 %v365, 120
    %v368 = vpop.permute.xlu0 %367
    %s370 = vtos %v368
    %v371 = vstv %s370
    %v372 = vpack.i.b16 %v371, %v371
    %v374 = vunpack.c.l.bf16 %v372
    %v375 = vmul.f32 %v36, %v374
    %v376 = vmul.f32 %v37, %v374
    %v377 = vmul.f32 %v38, %v374
    %v378 = vmul.f32 %v39, %v374
    %v379 = vpack.c.bf16 %v376, %v375
    %v380 = vpack.c.bf16 %v378, %v377
    %v381 = vunpack.c.l.bf16 %v360
    %v382 = vunpack.c.h.bf16 %v360
    %v383 = vunpack.c.l.bf16 %v361
    %v384 = vunpack.c.h.bf16 %v361
    %v385 = vunpack.c.l.bf16 %v379
    %v386 = vunpack.c.h.bf16 %v379
    %v387 = vunpack.c.l.bf16 %v380
    %v388 = vunpack.c.h.bf16 %v380
    %393 = vrot.lane.b32.xlu0 %v385, 113
    %v394 = vpop.permute.xlu0 %393
    %395 = vrot.lane.b32.xlu0 %v386, 113
    %v396 = vpop.permute.xlu0 %395
    %397 = vrot.lane.b32.xlu0 %v387, 113
    %v398 = vpop.permute.xlu0 %397
    %399 = vrot.lane.b32.xlu0 %v388, 113
    %v400 = vpop.permute.xlu0 %399
    %vm401 = vcmask 924672
    %v402 = vsel %vm401, %v394, %v396
    %v403 = vsel %vm401, %v398, %v400
    %v408 = vadd.f32 %v381, %v402
    %v409 = vadd.f32 %v382, %v396
    %v410 = vadd.f32 %v383, %v403
    %v411 = vadd.f32 %v384, %v400
    %v412 = vpack.c.bf16 %v409, %v408
    %v413 = vpack.c.bf16 %v411, %v410
    %v414 = vld [vmem:[%s2] sm:$0x1]
    %s416 = vtos %v414
    %v417 = vstv %s416
    %v418 = vpack.i.b16 %v417, %v417
    %v420 = vunpack.c.l.bf16 %v412
    %v421 = vunpack.c.h.bf16 %v412
    %v422 = vunpack.c.l.bf16 %v413
    %v423 = vunpack.c.h.bf16 %v413
    %v424 = vunpack.c.l.bf16 %v418
    %v425 = vadd.f32 %v420, %v424
    %v426 = vadd.f32 %v421, %v424
    %v427 = vadd.f32 %v422, %v424
    %v428 = vadd.f32 %v423, %v424
    %v429 = vpack.c.bf16 %v426, %v425
    %v430 = vpack.c.bf16 %v428, %v427
    %v431 = vunpack.c.l.bf16 %v429
    %v432 = vunpack.c.h.bf16 %v429
    %v433 = vunpack.c.l.bf16 %v430
    %v434 = vunpack.c.h.bf16 %v430
    %v435 = vmax.f32 %v431, 0.0
    %v436 = vmax.f32 %v432, 0.0
    %v437 = vmax.f32 %v433, 0.0
    %v438 = vmax.f32 %v434, 0.0
    %v439 = vpack.c.bf16 %v436, %v435
    %v440 = vpack.c.bf16 %v438, %v437
    %441 = vst [vmem:[#allocation2 + $0x4] sm:$0xf] 0
    %442 = vst [vmem:[#allocation2 + $0x2c] sm:$0xf] 0
    %vm443 = vcmask 1043456
    %vm444 = vcmask 556036
    %vm445 = vmor %vm444, %vm443
    %446 = vst.msk [vmem:[#allocation2] sm:$0xff] %vm445, %v439
    %447 = vst.msk [vmem:[#allocation2 + $0x28] sm:$0xff] %vm445, %v440
    %v448 = vld [vmem:[%s1] sm:$0x1]
    %450 = vst [vmem:[#allocation1] ss:$9 sm:$0xff] %v448
    %v451 = vld [vmem:[#allocation1] sm:$0xff]
    %453 = vrot.lane.b32.xlu0 %v451, 119
    %v454 = vpop.permute.xlu0 %453
    %s456 = vtos %v454
    %v457 = vstv %s456
    %v458 = vpack.i.b16 %v457, %v457
    %v460 = vunpack.c.l.bf16 %v458
    %v461 = vmul.f32 %v36, %v460
    %v462 = vmul.f32 %v37, %v460
    %v463 = vmul.f32 %v38, %v460
    %v464 = vmul.f32 %v39, %v460
    %v465 = vpack.c.bf16 %v462, %v461
    %v466 = vpack.c.bf16 %v464, %v463
    %v467 = vld [vmem:[%s1] sm:$0x1]
    %469 = vst [vmem:[#allocation1] ss:$9 sm:$0xff] %v467
    %v470 = vld [vmem:[#allocation1] sm:$0xff]
    %472 = vrot.lane.b32.xlu0 %v470, 118
    %v473 = vpop.permute.xlu0 %472
    %s475 = vtos %v473
    %v476 = vstv %s475
    %v477 = vpack.i.b16 %v476, %v476
    %v479 = vunpack.c.l.bf16 %v477
    %v480 = vmul.f32 %v57, %v479
    %v481 = vmul.f32 %v58, %v479
    %v482 = vmul.f32 %v59, %v479
    %v483 = vmul.f32 %v60, %v479
    %v484 = vpack.c.bf16 %v481, %v480
    %v485 = vpack.c.bf16 %v483, %v482
    %v486 = vunpack.c.l.bf16 %v465
    %v487 = vunpack.c.h.bf16 %v465
    %v488 = vunpack.c.l.bf16 %v466
    %v489 = vunpack.c.h.bf16 %v466
    %v490 = vunpack.c.l.bf16 %v484
    %v491 = vunpack.c.h.bf16 %v484
    %v492 = vunpack.c.l.bf16 %v485
    %v493 = vunpack.c.h.bf16 %v485
    %v494 = vadd.f32 %v486, %v490
    %v495 = vadd.f32 %v487, %v491
    %v496 = vadd.f32 %v488, %v492
    %v497 = vadd.f32 %v489, %v493
    %v498 = vpack.c.bf16 %v495, %v494
    %v499 = vpack.c.bf16 %v497, %v496
    %v500 = vld [vmem:[%s1] sm:$0x1]
    %502 = vst [vmem:[#allocation1] ss:$9 sm:$0xff] %v500
    %v503 = vld [vmem:[#allocation1] sm:$0xff]
    %505 = vrot.lane.b32.xlu0 %v503, 117
    %v506 = vpop.permute.xlu0 %505
    %s508 = vtos %v506
    %v509 = vstv %s508
    %v510 = vpack.i.b16 %v509, %v509
    %v512 = vunpack.c.l.bf16 %v510
    %v513 = vmul.f32 %v36, %v512
    %v514 = vmul.f32 %v37, %v512
    %v515 = vmul.f32 %v38, %v512
    %v516 = vmul.f32 %v39, %v512
    %v517 = vpack.c.bf16 %v514, %v513
    %v518 = vpack.c.bf16 %v516, %v515
    %v519 = vunpack.c.l.bf16 %v498
    %v520 = vunpack.c.h.bf16 %v498
    %v521 = vunpack.c.l.bf16 %v499
    %v522 = vunpack.c.h.bf16 %v499
    %v523 = vunpack.c.l.bf16 %v517
    %v524 = vunpack.c.h.bf16 %v517
    %v525 = vunpack.c.l.bf16 %v518
    %v526 = vunpack.c.h.bf16 %v518
    %531 = vrot.lane.b32.xlu0 %v523, 127
    %v532 = vpop.permute.xlu0 %531
    %533 = vrot.lane.b32.xlu0 %v524, 127
    %v534 = vpop.permute.xlu0 %533
    %535 = vrot.lane.b32.xlu0 %v525, 127
    %v536 = vpop.permute.xlu0 %535
    %537 = vrot.lane.b32.xlu0 %v526, 127
    %v538 = vpop.permute.xlu0 %537
    %v539 = vsel %vm121, %v532, %v534
    %v540 = vsel %vm121, %v536, %v538
    %v545 = vadd.f32 %v519, %v539
    %v546 = vadd.f32 %v520, %v534
    %v547 = vadd.f32 %v521, %v540
    %v548 = vadd.f32 %v522, %v538
    %v549 = vpack.c.bf16 %v546, %v545
    %v550 = vpack.c.bf16 %v548, %v547
    %v551 = vld [vmem:[%s1] sm:$0x1]
    %553 = vst [vmem:[#allocation1] ss:$9 sm:$0xff] %v551
    %v554 = vld [vmem:[#allocation1] sm:$0xff]
    %556 = vrot.lane.b32.xlu0 %v554, 116
    %v557 = vpop.permute.xlu0 %556
    %s559 = vtos %v557
    %v560 = vstv %s559
    %v561 = vpack.i.b16 %v560, %v560
    %v563 = vunpack.c.l.bf16 %v561
    %v564 = vmul.f32 %v146, %v563
    %v565 = vmul.f32 %v147, %v563
    %v566 = vmul.f32 %v148, %v563
    %v567 = vmul.f32 %v149, %v563
    %v568 = vpack.c.bf16 %v565, %v564
    %v569 = vpack.c.bf16 %v567, %v566
    %v570 = vunpack.c.l.bf16 %v549
    %v571 = vunpack.c.h.bf16 %v549
    %v572 = vunpack.c.l.bf16 %v550
    %v573 = vunpack.c.h.bf16 %v550
    %v574 = vunpack.c.l.bf16 %v568
    %v575 = vunpack.c.h.bf16 %v568
    %v576 = vunpack.c.l.bf16 %v569
    %v577 = vunpack.c.h.bf16 %v569
    %v578 = vadd.f32 %v570, %v574
    %v579 = vadd.f32 %v571, %v575
    %v580 = vadd.f32 %v572, %v576
    %v581 = vadd.f32 %v573, %v577
    %v582 = vpack.c.bf16 %v579, %v578
    %v583 = vpack.c.bf16 %v581, %v580
    %v584 = vld [vmem:[%s1] sm:$0x1]
    %586 = vst [vmem:[#allocation1] ss:$9 sm:$0xff] %v584
    %v587 = vld [vmem:[#allocation1] sm:$0xff]
    %589 = vrot.lane.b32.xlu0 %v587, 115
    %v590 = vpop.permute.xlu0 %589
    %s592 = vtos %v590
    %v593 = vstv %s592
    %v594 = vpack.i.b16 %v593, %v593
    %v596 = vunpack.c.l.bf16 %v594
    %v597 = vmul.f32 %v183, %v596
    %v598 = vmul.f32 %v184, %v596
    %v599 = vmul.f32 %v185, %v596
    %v600 = vmul.f32 %v186, %v596
    %v601 = vpack.c.bf16 %v598, %v597
    %v602 = vpack.c.bf16 %v600, %v599
    %v603 = vunpack.c.l.bf16 %v582
    %v604 = vunpack.c.h.bf16 %v582
    %v605 = vunpack.c.l.bf16 %v583
    %v606 = vunpack.c.h.bf16 %v583
    %v607 = vunpack.c.l.bf16 %v601
    %v608 = vunpack.c.h.bf16 %v601
    %v609 = vunpack.c.l.bf16 %v602
    %v610 = vunpack.c.h.bf16 %v602
    %v611 = vadd.f32 %v603, %v607
    %v612 = vadd.f32 %v604, %v608
    %v613 = vadd.f32 %v605, %v609
    %v614 = vadd.f32 %v606, %v610
    %v615 = vpack.c.bf16 %v612, %v611
    %v616 = vpack.c.bf16 %v614, %v613
    %v617 = vld [vmem:[%s1] sm:$0x1]
    %619 = vst [vmem:[#allocation1] ss:$9 sm:$0xff] %v617
    %v620 = vld [vmem:[#allocation1] sm:$0xff]
    %622 = vrot.lane.b32.xlu0 %v620, 114
    %v623 = vpop.permute.xlu0 %622
    %s625 = vtos %v623
    %v626 = vstv %s625
    %v627 = vpack.i.b16 %v626, %v626
    %v629 = vunpack.c.l.bf16 %v627
    %v630 = vmul.f32 %v146, %v629
    %v631 = vmul.f32 %v147, %v629
    %v632 = vmul.f32 %v148, %v629
    %v633 = vmul.f32 %v149, %v629
    %v634 = vpack.c.bf16 %v631, %v630
    %v635 = vpack.c.bf16 %v633, %v632
    %v636 = vunpack.c.l.bf16 %v615
    %v637 = vunpack.c.h.bf16 %v615
    %v638 = vunpack.c.l.bf16 %v616
    %v639 = vunpack.c.h.bf16 %v616
    %v640 = vunpack.c.l.bf16 %v634
    %v641 = vunpack.c.h.bf16 %v634
    %v642 = vunpack.c.l.bf16 %v635
    %v643 = vunpack.c.h.bf16 %v635
    %648 = vrot.lane.b32.xlu0 %v640, 127
    %v649 = vpop.permute.xlu0 %648
    %650 = vrot.lane.b32.xlu0 %v641, 127
    %v651 = vpop.permute.xlu0 %650
    %652 = vrot.lane.b32.xlu0 %v642, 127
    %v653 = vpop.permute.xlu0 %652
    %654 = vrot.lane.b32.xlu0 %v643, 127
    %v655 = vpop.permute.xlu0 %654
    %v656 = vsel %vm121, %v649, %v651
    %v657 = vsel %vm121, %v653, %v655
    %v662 = vadd.f32 %v636, %v656
    %v663 = vadd.f32 %v637, %v651
    %v664 = vadd.f32 %v638, %v657
    %v665 = vadd.f32 %v639, %v655
    %v666 = vpack.c.bf16 %v663, %v662
    %v667 = vpack.c.bf16 %v665, %v664
    %v668 = vld [vmem:[%s1] sm:$0x1]
    %670 = vst [vmem:[#allocation1] ss:$9 sm:$0xff] %v668
    %v671 = vld [vmem:[#allocation1] sm:$0xff]
    %673 = vrot.lane.b32.xlu0 %v671, 113
    %v674 = vpop.permute.xlu0 %673
    %s676 = vtos %v674
    %v677 = vstv %s676
    %v678 = vpack.i.b16 %v677, %v677
    %v680 = vunpack.c.l.bf16 %v678
    %v681 = vmul.f32 %v36, %v680
    %v682 = vmul.f32 %v37, %v680
    %v683 = vmul.f32 %v38, %v680
    %v684 = vmul.f32 %v39, %v680
    %v685 = vpack.c.bf16 %v682, %v681
    %v686 = vpack.c.bf16 %v684, %v683
    %v687 = vunpack.c.l.bf16 %v666
    %v688 = vunpack.c.h.bf16 %v666
    %v689 = vunpack.c.l.bf16 %v667
    %v690 = vunpack.c.h.bf16 %v667
    %v691 = vunpack.c.l.bf16 %v685
    %v692 = vunpack.c.h.bf16 %v685
    %v693 = vunpack.c.l.bf16 %v686
    %v694 = vunpack.c.h.bf16 %v686
    %699 = vrot.lane.b32.xlu0 %v691, 114
    %v700 = vpop.permute.xlu0 %699
    %701 = vrot.lane.b32.xlu0 %v692, 114
    %v702 = vpop.permute.xlu0 %701
    %703 = vrot.lane.b32.xlu0 %v693, 114
    %v704 = vpop.permute.xlu0 %703
    %705 = vrot.lane.b32.xlu0 %v694, 114
    %v706 = vpop.permute.xlu0 %705
    %v707 = vsel %vm298, %v700, %v702
    %v708 = vsel %vm298, %v704, %v706
    %v713 = vadd.f32 %v687, %v707
    %v714 = vadd.f32 %v688, %v702
    %v715 = vadd.f32 %v689, %v708
    %v716 = vadd.f32 %v690, %v706
    %v717 = vpack.c.bf16 %v714, %v713
    %v718 = vpack.c.bf16 %v716, %v715
    %v719 = vld [vmem:[%s1] sm:$0x1]
    %721 = vst [vmem:[#allocation1] ss:$9 sm:$0xff] %v719
    %v722 = vld [vmem:[#allocation1] sm:$0xff]
    %724 = vrot.lane.b32.xlu0 %v722, 112
    %v725 = vpop.permute.xlu0 %724
    %s727 = vtos %v725
    %v728 = vstv %s727
    %v729 = vpack.i.b16 %v728, %v728
    %v731 = vunpack.c.l.bf16 %v729
    %v732 = vmul.f32 %v57, %v731
    %v733 = vmul.f32 %v58, %v731
    %v734 = vmul.f32 %v59, %v731
    %v735 = vmul.f32 %v60, %v731
    %v736 = vpack.c.bf16 %v733, %v732
    %v737 = vpack.c.bf16 %v735, %v734
    %v738 = vunpack.c.l.bf16 %v717
    %v739 = vunpack.c.h.bf16 %v717
    %v740 = vunpack.c.l.bf16 %v718
    %v741 = vunpack.c.h.bf16 %v718
    %v742 = vunpack.c.l.bf16 %v736
    %v743 = vunpack.c.h.bf16 %v736
    %v744 = vunpack.c.l.bf16 %v737
    %v745 = vunpack.c.h.bf16 %v737
    %750 = vrot.lane.b32.xlu0 %v742, 114
    %v751 = vpop.permute.xlu0 %750
    %752 = vrot.lane.b32.xlu0 %v743, 114
    %v753 = vpop.permute.xlu0 %752
    %754 = vrot.lane.b32.xlu0 %v744, 114
    %v755 = vpop.permute.xlu0 %754
    %756 = vrot.lane.b32.xlu0 %v745, 114
    %v757 = vpop.permute.xlu0 %756
    %v758 = vsel %vm298, %v751, %v753
    %v759 = vsel %vm298, %v755, %v757
    %v764 = vadd.f32 %v738, %v758
    %v765 = vadd.f32 %v739, %v753
    %v766 = vadd.f32 %v740, %v759
    %v767 = vadd.f32 %v741, %v757
    %v768 = vpack.c.bf16 %v765, %v764
    %v769 = vpack.c.bf16 %v767, %v766
    %v770 = vld [vmem:[%s1] sm:$0x1]
    %772 = vst [vmem:[#allocation1] ss:$9 sm:$0xff] %v770
    %v773 = vld [vmem:[#allocation1] sm:$0xff]
    %775 = vrot.lane.b32.xlu0 %v773, 111
    %v776 = vpop.permute.xlu0 %775
    %s778 = vtos %v776
    %v779 = vstv %s778
    %v780 = vpack.i.b16 %v779, %v779
    %v782 = vunpack.c.l.bf16 %v780
    %v783 = vmul.f32 %v36, %v782
    %v784 = vmul.f32 %v37, %v782
    %v785 = vmul.f32 %v38, %v782
    %v786 = vmul.f32 %v39, %v782
    %v787 = vpack.c.bf16 %v784, %v783
    %v788 = vpack.c.bf16 %v786, %v785
    %v789 = vunpack.c.l.bf16 %v768
    %v790 = vunpack.c.h.bf16 %v768
    %v791 = vunpack.c.l.bf16 %v769
    %v792 = vunpack.c.h.bf16 %v769
    %v793 = vunpack.c.l.bf16 %v787
    %v794 = vunpack.c.h.bf16 %v787
    %v795 = vunpack.c.l.bf16 %v788
    %v796 = vunpack.c.h.bf16 %v788
    %801 = vrot.lane.b32.xlu0 %v793, 113
    %v802 = vpop.permute.xlu0 %801
    %803 = vrot.lane.b32.xlu0 %v794, 113
    %v804 = vpop.permute.xlu0 %803
    %805 = vrot.lane.b32.xlu0 %v795, 113
    %v806 = vpop.permute.xlu0 %805
    %807 = vrot.lane.b32.xlu0 %v796, 113
    %v808 = vpop.permute.xlu0 %807
    %v809 = vsel %vm401, %v802, %v804
    %v810 = vsel %vm401, %v806, %v808
    %v815 = vadd.f32 %v789, %v809
    %v816 = vadd.f32 %v790, %v804
    %v817 = vadd.f32 %v791, %v810
    %v818 = vadd.f32 %v792, %v808
    %v819 = vpack.c.bf16 %v816, %v815
    %v820 = vpack.c.bf16 %v818, %v817
    %v821 = vld [vmem:[%s2] sm:$0x1]
    %823 = vst [vmem:[#allocation1] ss:$9 sm:$0xff] %v821
    %v824 = vld [vmem:[#allocation1] sm:$0xff]
    %826 = vrot.lane.b32.xlu0 %v824, 127
    %v827 = vpop.permute.xlu0 %826
    %s829 = vtos %v827
    %v830 = vstv %s829
    %v831 = vpack.i.b16 %v830, %v830
    %v833 = vunpack.c.l.bf16 %v819
    %v834 = vunpack.c.h.bf16 %v819
    %v835 = vunpack.c.l.bf16 %v820
    %v836 = vunpack.c.h.bf16 %v820
    %v837 = vunpack.c.l.bf16 %v831
    %v838 = vadd.f32 %v833, %v837
    %v839 = vadd.f32 %v834, %v837
    %v840 = vadd.f32 %v835, %v837
    %v841 = vadd.f32 %v836, %v837
    %v842 = vpack.c.bf16 %v839, %v838
    %v843 = vpack.c.bf16 %v841, %v840
    %v844 = vunpack.c.l.bf16 %v842
    %v845 = vunpack.c.h.bf16 %v842
    %v846 = vunpack.c.l.bf16 %v843
    %v847 = vunpack.c.h.bf16 %v843
    %v848 = vmax.f32 %v844, 0.0
    %v849 = vmax.f32 %v845, 0.0
    %v850 = vmax.f32 %v846, 0.0
    %v851 = vmax.f32 %v847, 0.0
    %v852 = vpack.c.bf16 %v849, %v848
    %v853 = vpack.c.bf16 %v851, %v850
    %854 = vst [vmem:[#allocation2 + $0xc] sm:$0xf] 0
    %855 = vst [vmem:[#allocation2 + $0x34] sm:$0xf] 0
    %856 = vst.msk [vmem:[#allocation2 + $0x8] sm:$0xff] %vm445, %v852
    %857 = vst.msk [vmem:[#allocation2 + $0x30] sm:$0xff] %vm445, %v853
    %v858 = vld [vmem:[%s1] sm:$0x1]
    %860 = vst [vmem:[#allocation1] ss:$9 sm:$0xff] %v858
    %v861 = vld [vmem:[#allocation1] sm:$0xff]
    %863 = vrot.lane.b32.xlu0 %v861, 110
    %v864 = vpop.permute.xlu0 %863
    %s866 = vtos %v864
    %v867 = vstv %s866
    %v868 = vpack.i.b16 %v867, %v867
    %v870 = vunpack.c.l.bf16 %v868
    %v871 = vmul.f32 %v36, %v870
    %v872 = vmul.f32 %v37, %v870
    %v873 = vmul.f32 %v38, %v870
    %v874 = vmul.f32 %v39, %v870
    %v875 = vpack.c.bf16 %v872, %v871
    %v876 = vpack.c.bf16 %v874, %v873
    %v877 = vld [vmem:[%s1] sm:$0x1]
    %879 = vst [vmem:[#allocation1] ss:$9 sm:$0xff] %v877
    %v880 = vld [vmem:[#allocation1] sm:$0xff]
    %882 = vrot.lane.b32.xlu0 %v880, 109
    %v883 = vpop.permute.xlu0 %882
    %s885 = vtos %v883
    %v886 = vstv %s885
    %v887 = vpack.i.b16 %v886, %v886
    %v889 = vunpack.c.l.bf16 %v887
    %v890 = vmul.f32 %v57, %v889
    %v891 = vmul.f32 %v58, %v889
    %v892 = vmul.f32 %v59, %v889
    %v893 = vmul.f32 %v60, %v889
    %v894 = vpack.c.bf16 %v891, %v890
    %v895 = vpack.c.bf16 %v893, %v892
    %v896 = vunpack.c.l.bf16 %v875
    %v897 = vunpack.c.h.bf16 %v875
    %v898 = vunpack.c.l.bf16 %v876
    %v899 = vunpack.c.h.bf16 %v876
    %v900 = vunpack.c.l.bf16 %v894
    %v901 = vunpack.c.h.bf16 %v894
    %v902 = vunpack.c.l.bf16 %v895
    %v903 = vunpack.c.h.bf16 %v895
    %v904 = vadd.f32 %v896, %v900
    %v905 = vadd.f32 %v897, %v901
    %v906 = vadd.f32 %v898, %v902
    %v907 = vadd.f32 %v899, %v903
    %v908 = vpack.c.bf16 %v905, %v904
    %v909 = vpack.c.bf16 %v907, %v906
    %v910 = vld [vmem:[%s1] sm:$0x1]
    %912 = vst [vmem:[#allocation1] ss:$9 sm:$0xff] %v910
    %v913 = vld [vmem:[#allocation1] sm:$0xff]
    %915 = vrot.lane.b32.xlu0 %v913, 108
    %v916 = vpop.permute.xlu0 %915
    %s918 = vtos %v916
    %v919 = vstv %s918
    %v920 = vpack.i.b16 %v919, %v919
    %v922 = vunpack.c.l.bf16 %v920
    %v923 = vmul.f32 %v36, %v922
    %v924 = vmul.f32 %v37, %v922
    %v925 = vmul.f32 %v38, %v922
    %v926 = vmul.f32 %v39, %v922
    %v927 = vpack.c.bf16 %v924, %v923
    %v928 = vpack.c.bf16 %v926, %v925
    %v929 = vunpack.c.l.bf16 %v908
    %v930 = vunpack.c.h.bf16 %v908
    %v931 = vunpack.c.l.bf16 %v909
    %v932 = vunpack.c.h.bf16 %v909
    %v933 = vunpack.c.l.bf16 %v927
    %v934 = vunpack.c.h.bf16 %v927
    %v935 = vunpack.c.l.bf16 %v928
    %v936 = vunpack.c.h.bf16 %v928
    %941 = vrot.lane.b32.xlu0 %v933, 127
    %v942 = vpop.permute.xlu0 %941
    %943 = vrot.lane.b32.xlu0 %v934, 127
    %v944 = vpop.permute.xlu0 %943
    %945 = vrot.lane.b32.xlu0 %v935, 127
    %v946 = vpop.permute.xlu0 %945
    %947 = vrot.lane.b32.xlu0 %v936, 127
    %v948 = vpop.permute.xlu0 %947
    %v949 = vsel %vm121, %v942, %v944
    %v950 = vsel %vm121, %v946, %v948
    %v955 = vadd.f32 %v929, %v949
    %v956 = vadd.f32 %v930, %v944
    %v957 = vadd.f32 %v931, %v950
    %v958 = vadd.f32 %v932, %v948
    %v959 = vpack.c.bf16 %v956, %v955
    %v960 = vpack.c.bf16 %v958, %v957
    %v961 = vld [vmem:[%s1] sm:$0x1]
    %963 = vst [vmem:[#allocation1] ss:$9 sm:$0xff] %v961
    %v964 = vld [vmem:[#allocation1] sm:$0xff]
    %966 = vrot.lane.b32.xlu0 %v964, 107
    %v967 = vpop.permute.xlu0 %966
    %s969 = vtos %v967
    %v970 = vstv %s969
    %v971 = vpack.i.b16 %v970, %v970
    %v973 = vunpack.c.l.bf16 %v971
    %v974 = vmul.f32 %v146, %v973
    %v975 = vmul.f32 %v147, %v973
    %v976 = vmul.f32 %v148, %v973
    %v977 = vmul.f32 %v149, %v973
    %v978 = vpack.c.bf16 %v975, %v974
    %v979 = vpack.c.bf16 %v977, %v976
    %v980 = vunpack.c.l.bf16 %v959
    %v981 = vunpack.c.h.bf16 %v959
    %v982 = vunpack.c.l.bf16 %v960
    %v983 = vunpack.c.h.bf16 %v960
    %v984 = vunpack.c.l.bf16 %v978
    %v985 = vunpack.c.h.bf16 %v978
    %v986 = vunpack.c.l.bf16 %v979
    %v987 = vunpack.c.h.bf16 %v979
    %v988 = vadd.f32 %v980, %v984
    %v989 = vadd.f32 %v981, %v985
    %v990 = vadd.f32 %v982, %v986
    %v991 = vadd.f32 %v983, %v987
    %v992 = vpack.c.bf16 %v989, %v988
    %v993 = vpack.c.bf16 %v991, %v990
    %v994 = vld [vmem:[%s1] sm:$0x1]
    %996 = vst [vmem:[#allocation1] ss:$9 sm:$0xff] %v994
    %v997 = vld [vmem:[#allocation1] sm:$0xff]
    %999 = vrot.lane.b32.xlu0 %v997, 106
    %v1000 = vpop.permute.xlu0 %999
    %s1002 = vtos %v1000
    %v1003 = vstv %s1002
    %v1004 = vpack.i.b16 %v1003, %v1003
    %v1006 = vunpack.c.l.bf16 %v1004
    %v1007 = vmul.f32 %v183, %v1006
    %v1008 = vmul.f32 %v184, %v1006
    %v1009 = vmul.f32 %v185, %v1006
    %v1010 = vmul.f32 %v186, %v1006
    %v1011 = vpack.c.bf16 %v1008, %v1007
    %v1012 = vpack.c.bf16 %v1010, %v1009
    %v1013 = vunpack.c.l.bf16 %v992
    %v1014 = vunpack.c.h.bf16 %v992
    %v1015 = vunpack.c.l.bf16 %v993
    %v1016 = vunpack.c.h.bf16 %v993
    %v1017 = vunpack.c.l.bf16 %v1011
    %v1018 = vunpack.c.h.bf16 %v1011
    %v1019 = vunpack.c.l.bf16 %v1012
    %v1020 = vunpack.c.h.bf16 %v1012
    %v1021 = vadd.f32 %v1013, %v1017
    %v1022 = vadd.f32 %v1014, %v1018
    %v1023 = vadd.f32 %v1015, %v1019
    %v1024 = vadd.f32 %v1016, %v1020
    %v1025 = vpack.c.bf16 %v1022, %v1021
    %v1026 = vpack.c.bf16 %v1024, %v1023
    %v1027 = vld [vmem:[%s1] sm:$0x1]
    %1029 = vst [vmem:[#allocation1] ss:$9 sm:$0xff] %v1027
    %v1030 = vld [vmem:[#allocation1] sm:$0xff]
    %1032 = vrot.lane.b32.xlu0 %v1030, 105
    %v1033 = vpop.permute.xlu0 %1032
    %s1035 = vtos %v1033
    %v1036 = vstv %s1035
    %v1037 = vpack.i.b16 %v1036, %v1036
    %v1039 = vunpack.c.l.bf16 %v1037
    %v1040 = vmul.f32 %v146, %v1039
    %v1041 = vmul.f32 %v147, %v1039
    %v1042 = vmul.f32 %v148, %v1039
    %v1043 = vmul.f32 %v149, %v1039
    %v1044 = vpack.c.bf16 %v1041, %v1040
    %v1045 = vpack.c.bf16 %v1043, %v1042
    %v1046 = vunpack.c.l.bf16 %v1025
    %v1047 = vunpack.c.h.bf16 %v1025
    %v1048 = vunpack.c.l.bf16 %v1026
    %v1049 = vunpack.c.h.bf16 %v1026
    %v1050 = vunpack.c.l.bf16 %v1044
    %v1051 = vunpack.c.h.bf16 %v1044
    %v1052 = vunpack.c.l.bf16 %v1045
    %v1053 = vunpack.c.h.bf16 %v1045
    %1058 = vrot.lane.b32.xlu0 %v1050, 127
    %v1059 = vpop.permute.xlu0 %1058
    %1060 = vrot.lane.b32.xlu0 %v1051, 127
    %v1061 = vpop.permute.xlu0 %1060
    %1062 = vrot.lane.b32.xlu0 %v1052, 127
    %v1063 = vpop.permute.xlu0 %1062
    %1064 = vrot.lane.b32.xlu0 %v1053, 127
    %v1065 = vpop.permute.xlu0 %1064
    %v1066 = vsel %vm121, %v1059, %v1061
    %v1067 = vsel %vm121, %v1063, %v1065
    %v1072 = vadd.f32 %v1046, %v1066
    %v1073 = vadd.f32 %v1047, %v1061
    %v1074 = vadd.f32 %v1048, %v1067
    %v1075 = vadd.f32 %v1049, %v1065
    %v1076 = vpack.c.bf16 %v1073, %v1072
    %v1077 = vpack.c.bf16 %v1075, %v1074
    %v1078 = vld [vmem:[%s1] sm:$0x1]
    %1080 = vst [vmem:[#allocation1] ss:$9 sm:$0xff] %v1078
    %v1081 = vld [vmem:[#allocation1] sm:$0xff]
    %1083 = vrot.lane.b32.xlu0 %v1081, 104
    %v1084 = vpop.permute.xlu0 %1083
    %s1086 = vtos %v1084
    %v1087 = vstv %s1086
    %v1088 = vpack.i.b16 %v1087, %v1087
    %v1090 = vunpack.c.l.bf16 %v1088
    %v1091 = vmul.f32 %v36, %v1090
    %v1092 = vmul.f32 %v37, %v1090
    %v1093 = vmul.f32 %v38, %v1090
    %v1094 = vmul.f32 %v39, %v1090
    %v1095 = vpack.c.bf16 %v1092, %v1091
    %v1096 = vpack.c.bf16 %v1094, %v1093
    %v1097 = vunpack.c.l.bf16 %v1076
    %v1098 = vunpack.c.h.bf16 %v1076
    %v1099 = vunpack.c.l.bf16 %v1077
    %v1100 = vunpack.c.h.bf16 %v1077
    %v1101 = vunpack.c.l.bf16 %v1095
    %v1102 = vunpack.c.h.bf16 %v1095
    %v1103 = vunpack.c.l.bf16 %v1096
    %v1104 = vunpack.c.h.bf16 %v1096
    %1109 = vrot.lane.b32.xlu0 %v1101, 114
    %v1110 = vpop.permute.xlu0 %1109
    %1111 = vrot.lane.b32.xlu0 %v1102, 114
    %v1112 = vpop.permute.xlu0 %1111
    %1113 = vrot.lane.b32.xlu0 %v1103, 114
    %v1114 = vpop.permute.xlu0 %1113
    %1115 = vrot.lane.b32.xlu0 %v1104, 114
    %v1116 = vpop.permute.xlu0 %1115
    %v1117 = vsel %vm298, %v1110, %v1112
    %v1118 = vsel %vm298, %v1114, %v1116
    %v1123 = vadd.f32 %v1097, %v1117
    %v1124 = vadd.f32 %v1098, %v1112
    %v1125 = vadd.f32 %v1099, %v1118
    %v1126 = vadd.f32 %v1100, %v1116
    %v1127 = vpack.c.bf16 %v1124, %v1123
    %v1128 = vpack.c.bf16 %v1126, %v1125
    %v1129 = vld [vmem:[%s1] sm:$0x1]
    %1131 = vst [vmem:[#allocation1] ss:$9 sm:$0xff] %v1129
    %v1132 = vld [vmem:[#allocation1] sm:$0xff]
    %1134 = vrot.lane.b32.xlu0 %v1132, 103
    %v1135 = vpop.permute.xlu0 %1134
    %s1137 = vtos %v1135
    %v1138 = vstv %s1137
    %v1139 = vpack.i.b16 %v1138, %v1138
    %v1141 = vunpack.c.l.bf16 %v1139
    %v1142 = vmul.f32 %v57, %v1141
    %v1143 = vmul.f32 %v58, %v1141
    %v1144 = vmul.f32 %v59, %v1141
    %v1145 = vmul.f32 %v60, %v1141
    %v1146 = vpack.c.bf16 %v1143, %v1142
    %v1147 = vpack.c.bf16 %v1145, %v1144
    %v1148 = vunpack.c.l.bf16 %v1127
    %v1149 = vunpack.c.h.bf16 %v1127
    %v1150 = vunpack.c.l.bf16 %v1128
    %v1151 = vunpack.c.h.bf16 %v1128
    %v1152 = vunpack.c.l.bf16 %v1146
    %v1153 = vunpack.c.h.bf16 %v1146
    %v1154 = vunpack.c.l.bf16 %v1147
    %v1155 = vunpack.c.h.bf16 %v1147
    %1160 = vrot.lane.b32.xlu0 %v1152, 114
    %v1161 = vpop.permute.xlu0 %1160
    %1162 = vrot.lane.b32.xlu0 %v1153, 114
    %v1163 = vpop.permute.xlu0 %1162
    %1164 = vrot.lane.b32.xlu0 %v1154, 114
    %v1165 = vpop.permute.xlu0 %1164
    %1166 = vrot.lane.b32.xlu0 %v1155, 114
    %v1167 = vpop.permute.xlu0 %1166
    %v1168 = vsel %vm298, %v1161, %v1163
    %v1169 = vsel %vm298, %v1165, %v1167
    %v1174 = vadd.f32 %v1148, %v1168
    %v1175 = vadd.f32 %v1149, %v1163
    %v1176 = vadd.f32 %v1150, %v1169
    %v1177 = vadd.f32 %v1151, %v1167
    %v1178 = vpack.c.bf16 %v1175, %v1174
    %v1179 = vpack.c.bf16 %v1177, %v1176
    %v1180 = vld [vmem:[%s1] sm:$0x1]
    %1182 = vst [vmem:[#allocation1] ss:$9 sm:$0xff] %v1180
    %v1183 = vld [vmem:[#allocation1] sm:$0xff]
    %1185 = vrot.lane.b32.xlu0 %v1183, 102
    %v1186 = vpop.permute.xlu0 %1185
    %s1188 = vtos %v1186
    %v1189 = vstv %s1188
    %v1190 = vpack.i.b16 %v1189, %v1189
    %v1192 = vunpack.c.l.bf16 %v1190
    %v1193 = vmul.f32 %v36, %v1192
    %v1194 = vmul.f32 %v37, %v1192
    %v1195 = vmul.f32 %v38, %v1192
    %v1196 = vmul.f32 %v39, %v1192
    %v1197 = vpack.c.bf16 %v1194, %v1193
    %v1198 = vpack.c.bf16 %v1196, %v1195
    %v1199 = vunpack.c.l.bf16 %v1178
    %v1200 = vunpack.c.h.bf16 %v1178
    %v1201 = vunpack.c.l.bf16 %v1179
    %v1202 = vunpack.c.h.bf16 %v1179
    %v1203 = vunpack.c.l.bf16 %v1197
    %v1204 = vunpack.c.h.bf16 %v1197
    %v1205 = vunpack.c.l.bf16 %v1198
    %v1206 = vunpack.c.h.bf16 %v1198
    %1211 = vrot.lane.b32.xlu0 %v1203, 113
    %v1212 = vpop.permute.xlu0 %1211
    %1213 = vrot.lane.b32.xlu0 %v1204, 113
    %v1214 = vpop.permute.xlu0 %1213
    %1215 = vrot.lane.b32.xlu0 %v1205, 113
    %v1216 = vpop.permute.xlu0 %1215
    %1217 = vrot.lane.b32.xlu0 %v1206, 113
    %v1218 = vpop.permute.xlu0 %1217
    %v1219 = vsel %vm401, %v1212, %v1214
    %v1220 = vsel %vm401, %v1216, %v1218
    %v1225 = vadd.f32 %v1199, %v1219
    %v1226 = vadd.f32 %v1200, %v1214
    %v1227 = vadd.f32 %v1201, %v1220
    %v1228 = vadd.f32 %v1202, %v1218
    %v1229 = vpack.c.bf16 %v1226, %v1225
    %v1230 = vpack.c.bf16 %v1228, %v1227
    %v1231 = vld [vmem:[%s2] sm:$0x1]
    %1233 = vst [vmem:[#allocation1] ss:$9 sm:$0xff] %v1231
    %v1234 = vld [vmem:[#allocation1] sm:$0xff]
    %1236 = vrot.lane.b32.xlu0 %v1234, 126
    %v1237 = vpop.permute.xlu0 %1236
    %s1239 = vtos %v1237
    %v1240 = vstv %s1239
    %v1241 = vpack.i.b16 %v1240, %v1240
    %v1243 = vunpack.c.l.bf16 %v1229
    %v1244 = vunpack.c.h.bf16 %v1229
    %v1245 = vunpack.c.l.bf16 %v1230
    %v1246 = vunpack.c.h.bf16 %v1230
    %v1247 = vunpack.c.l.bf16 %v1241
    %v1248 = vadd.f32 %v1243, %v1247
    %v1249 = vadd.f32 %v1244, %v1247
    %v1250 = vadd.f32 %v1245, %v1247
    %v1251 = vadd.f32 %v1246, %v1247
    %v1252 = vpack.c.bf16 %v1249, %v1248
    %v1253 = vpack.c.bf16 %v1251, %v1250
    %v1254 = vunpack.c.l.bf16 %v1252
    %v1255 = vunpack.c.h.bf16 %v1252
    %v1256 = vunpack.c.l.bf16 %v1253
    %v1257 = vunpack.c.h.bf16 %v1253
    %v1258 = vmax.f32 %v1254, 0.0
    %v1259 = vmax.f32 %v1255, 0.0
    %v1260 = vmax.f32 %v1256, 0.0
    %v1261 = vmax.f32 %v1257, 0.0
    %v1262 = vpack.c.bf16 %v1259, %v1258
    %v1263 = vpack.c.bf16 %v1261, %v1260
    %1264 = vst [vmem:[#allocation2 + $0x14] sm:$0xf] 0
    %1265 = vst [vmem:[#allocation2 + $0x3c] sm:$0xf] 0
    %1266 = vst.msk [vmem:[#allocation2 + $0x10] sm:$0xff] %vm445, %v1262
    %1267 = vst.msk [vmem:[#allocation2 + $0x38] sm:$0xff] %vm445, %v1263
    %v1268 = vld [vmem:[%s1] sm:$0x1]
    %1270 = vst [vmem:[#allocation1] ss:$9 sm:$0xff] %v1268
    %v1271 = vld [vmem:[#allocation1] sm:$0xff]
    %1273 = vrot.lane.b32.xlu0 %v1271, 101
    %v1274 = vpop.permute.xlu0 %1273
    %s1276 = vtos %v1274
    %v1277 = vstv %s1276
    %v1278 = vpack.i.b16 %v1277, %v1277
    %v1280 = vunpack.c.l.bf16 %v1278
    %v1281 = vmul.f32 %v36, %v1280
    %v1282 = vmul.f32 %v37, %v1280
    %v1283 = vmul.f32 %v38, %v1280
    %v1284 = vmul.f32 %v39, %v1280
    %v1285 = vpack.c.bf16 %v1282, %v1281
    %v1286 = vpack.c.bf16 %v1284, %v1283
    %v1287 = vld [vmem:[%s1] sm:$0x1]
    %1289 = vst [vmem:[#allocation1] ss:$9 sm:$0xff] %v1287
    %v1290 = vld [vmem:[#allocation1] sm:$0xff]
    %1292 = vrot.lane.b32.xlu0 %v1290, 100
    %v1293 = vpop.permute.xlu0 %1292
    %s1295 = vtos %v1293
    %v1296 = vstv %s1295
    %v1297 = vpack.i.b16 %v1296, %v1296
    %v1299 = vunpack.c.l.bf16 %v1297
    %v1300 = vmul.f32 %v57, %v1299
    %v1301 = vmul.f32 %v58, %v1299
    %v1302 = vmul.f32 %v59, %v1299
    %v1303 = vmul.f32 %v60, %v1299
    %v1304 = vpack.c.bf16 %v1301, %v1300
    %v1305 = vpack.c.bf16 %v1303, %v1302
    %v1306 = vunpack.c.l.bf16 %v1285
    %v1307 = vunpack.c.h.bf16 %v1285
    %v1308 = vunpack.c.l.bf16 %v1286
    %v1309 = vunpack.c.h.bf16 %v1286
    %v1310 = vunpack.c.l.bf16 %v1304
    %v1311 = vunpack.c.h.bf16 %v1304
    %v1312 = vunpack.c.l.bf16 %v1305
    %v1313 = vunpack.c.h.bf16 %v1305
    %v1314 = vadd.f32 %v1306, %v1310
    %v1315 = vadd.f32 %v1307, %v1311
    %v1316 = vadd.f32 %v1308, %v1312
    %v1317 = vadd.f32 %v1309, %v1313
    %v1318 = vpack.c.bf16 %v1315, %v1314
    %v1319 = vpack.c.bf16 %v1317, %v1316
    %v1320 = vld [vmem:[%s1] sm:$0x1]
    %1322 = vst [vmem:[#allocation1] ss:$9 sm:$0xff] %v1320
    %v1323 = vld [vmem:[#allocation1] sm:$0xff]
    %1325 = vrot.lane.b32.xlu0 %v1323, 99
    %v1326 = vpop.permute.xlu0 %1325
    %s1328 = vtos %v1326
    %v1329 = vstv %s1328
    %v1330 = vpack.i.b16 %v1329, %v1329
    %v1332 = vunpack.c.l.bf16 %v1330
    %v1333 = vmul.f32 %v36, %v1332
    %v1334 = vmul.f32 %v37, %v1332
    %v1335 = vmul.f32 %v38, %v1332
    %v1336 = vmul.f32 %v39, %v1332
    %v1337 = vpack.c.bf16 %v1334, %v1333
    %v1338 = vpack.c.bf16 %v1336, %v1335
    %v1339 = vunpack.c.l.bf16 %v1318
    %v1340 = vunpack.c.h.bf16 %v1318
    %v1341 = vunpack.c.l.bf16 %v1319
    %v1342 = vunpack.c.h.bf16 %v1319
    %v1343 = vunpack.c.l.bf16 %v1337
    %v1344 = vunpack.c.h.bf16 %v1337
    %v1345 = vunpack.c.l.bf16 %v1338
    %v1346 = vunpack.c.h.bf16 %v1338
    %1351 = vrot.lane.b32.xlu0 %v1343, 127
    %v1352 = vpop.permute.xlu0 %1351
    %1353 = vrot.lane.b32.xlu0 %v1344, 127
    %v1354 = vpop.permute.xlu0 %1353
    %1355 = vrot.lane.b32.xlu0 %v1345, 127
    %v1356 = vpop.permute.xlu0 %1355
    %1357 = vrot.lane.b32.xlu0 %v1346, 127
    %v1358 = vpop.permute.xlu0 %1357
    %v1359 = vsel %vm121, %v1352, %v1354
    %v1360 = vsel %vm121, %v1356, %v1358
    %v1365 = vadd.f32 %v1339, %v1359
    %v1366 = vadd.f32 %v1340, %v1354
    %v1367 = vadd.f32 %v1341, %v1360
    %v1368 = vadd.f32 %v1342, %v1358
    %v1369 = vpack.c.bf16 %v1366, %v1365
    %v1370 = vpack.c.bf16 %v1368, %v1367
    %v1371 = vld [vmem:[%s1] sm:$0x1]
    %1373 = vst [vmem:[#allocation1] ss:$9 sm:$0xff] %v1371
    %v1374 = vld [vmem:[#allocation1] sm:$0xff]
    %1376 = vrot.lane.b32.xlu0 %v1374, 98
    %v1377 = vpop.permute.xlu0 %1376
    %s1379 = vtos %v1377
    %v1380 = vstv %s1379
    %v1381 = vpack.i.b16 %v1380, %v1380
    %v1383 = vunpack.c.l.bf16 %v1381
    %v1384 = vmul.f32 %v146, %v1383
    %v1385 = vmul.f32 %v147, %v1383
    %v1386 = vmul.f32 %v148, %v1383
    %v1387 = vmul.f32 %v149, %v1383
    %v1388 = vpack.c.bf16 %v1385, %v1384
    %v1389 = vpack.c.bf16 %v1387, %v1386
    %v1390 = vunpack.c.l.bf16 %v1369
    %v1391 = vunpack.c.h.bf16 %v1369
    %v1392 = vunpack.c.l.bf16 %v1370
    %v1393 = vunpack.c.h.bf16 %v1370
    %v1394 = vunpack.c.l.bf16 %v1388
    %v1395 = vunpack.c.h.bf16 %v1388
    %v1396 = vunpack.c.l.bf16 %v1389
    %v1397 = vunpack.c.h.bf16 %v1389
    %v1398 = vadd.f32 %v1390, %v1394
    %v1399 = vadd.f32 %v1391, %v1395
    %v1400 = vadd.f32 %v1392, %v1396
    %v1401 = vadd.f32 %v1393, %v1397
    %v1402 = vpack.c.bf16 %v1399, %v1398
    %v1403 = vpack.c.bf16 %v1401, %v1400
    %v1404 = vld [vmem:[%s1] sm:$0x1]
    %1406 = vst [vmem:[#allocation1] ss:$9 sm:$0xff] %v1404
    %v1407 = vld [vmem:[#allocation1] sm:$0xff]
    %1409 = vrot.lane.b32.xlu0 %v1407, 97
    %v1410 = vpop.permute.xlu0 %1409
    %s1412 = vtos %v1410
    %v1413 = vstv %s1412
    %v1414 = vpack.i.b16 %v1413, %v1413
    %v1416 = vunpack.c.l.bf16 %v1414
    %v1417 = vmul.f32 %v183, %v1416
    %v1418 = vmul.f32 %v184, %v1416
    %v1419 = vmul.f32 %v185, %v1416
    %v1420 = vmul.f32 %v186, %v1416
    %v1421 = vpack.c.bf16 %v1418, %v1417
    %v1422 = vpack.c.bf16 %v1420, %v1419
    %v1423 = vunpack.c.l.bf16 %v1402
    %v1424 = vunpack.c.h.bf16 %v1402
    %v1425 = vunpack.c.l.bf16 %v1403
    %v1426 = vunpack.c.h.bf16 %v1403
    %v1427 = vunpack.c.l.bf16 %v1421
    %v1428 = vunpack.c.h.bf16 %v1421
    %v1429 = vunpack.c.l.bf16 %v1422
    %v1430 = vunpack.c.h.bf16 %v1422
    %v1431 = vadd.f32 %v1423, %v1427
    %v1432 = vadd.f32 %v1424, %v1428
    %v1433 = vadd.f32 %v1425, %v1429
    %v1434 = vadd.f32 %v1426, %v1430
    %v1435 = vpack.c.bf16 %v1432, %v1431
    %v1436 = vpack.c.bf16 %v1434, %v1433
    %v1437 = vld [vmem:[%s1] sm:$0x1]
    %1439 = vst [vmem:[#allocation1] ss:$9 sm:$0xff] %v1437
    %v1440 = vld [vmem:[#allocation1] sm:$0xff]
    %1442 = vrot.lane.b32.xlu0 %v1440, 96
    %v1443 = vpop.permute.xlu0 %1442
    %s1445 = vtos %v1443
    %v1446 = vstv %s1445
    %v1447 = vpack.i.b16 %v1446, %v1446
    %v1449 = vunpack.c.l.bf16 %v1447
    %v1450 = vmul.f32 %v146, %v1449
    %v1451 = vmul.f32 %v147, %v1449
    %v1452 = vmul.f32 %v148, %v1449
    %v1453 = vmul.f32 %v149, %v1449
    %v1454 = vpack.c.bf16 %v1451, %v1450
    %v1455 = vpack.c.bf16 %v1453, %v1452
    %v1456 = vunpack.c.l.bf16 %v1435
    %v1457 = vunpack.c.h.bf16 %v1435
    %v1458 = vunpack.c.l.bf16 %v1436
    %v1459 = vunpack.c.h.bf16 %v1436
    %v1460 = vunpack.c.l.bf16 %v1454
    %v1461 = vunpack.c.h.bf16 %v1454
    %v1462 = vunpack.c.l.bf16 %v1455
    %v1463 = vunpack.c.h.bf16 %v1455
    %1468 = vrot.lane.b32.xlu0 %v1460, 127
    %v1469 = vpop.permute.xlu0 %1468
    %1470 = vrot.lane.b32.xlu0 %v1461, 127
    %v1471 = vpop.permute.xlu0 %1470
    %1472 = vrot.lane.b32.xlu0 %v1462, 127
    %v1473 = vpop.permute.xlu0 %1472
    %1474 = vrot.lane.b32.xlu0 %v1463, 127
    %v1475 = vpop.permute.xlu0 %1474
    %v1476 = vsel %vm121, %v1469, %v1471
    %v1477 = vsel %vm121, %v1473, %v1475
    %v1482 = vadd.f32 %v1456, %v1476
    %v1483 = vadd.f32 %v1457, %v1471
    %v1484 = vadd.f32 %v1458, %v1477
    %v1485 = vadd.f32 %v1459, %v1475
    %v1486 = vpack.c.bf16 %v1483, %v1482
    %v1487 = vpack.c.bf16 %v1485, %v1484
    %v1488 = vld [vmem:[%s1] sm:$0x1]
    %1490 = vst [vmem:[#allocation1] ss:$9 sm:$0xff] %v1488
    %v1491 = vld [vmem:[#allocation1] sm:$0xff]
    %1493 = vrot.lane.b32.xlu0 %v1491, 95
    %v1494 = vpop.permute.xlu0 %1493
    %s1496 = vtos %v1494
    %v1497 = vstv %s1496
    %v1498 = vpack.i.b16 %v1497, %v1497
    %v1500 = vunpack.c.l.bf16 %v1498
    %v1501 = vmul.f32 %v36, %v1500
    %v1502 = vmul.f32 %v37, %v1500
    %v1503 = vmul.f32 %v38, %v1500
    %v1504 = vmul.f32 %v39, %v1500
    %v1505 = vpack.c.bf16 %v1502, %v1501
    %v1506 = vpack.c.bf16 %v1504, %v1503
    %v1507 = vunpack.c.l.bf16 %v1486
    %v1508 = vunpack.c.h.bf16 %v1486
    %v1509 = vunpack.c.l.bf16 %v1487
    %v1510 = vunpack.c.h.bf16 %v1487
    %v1511 = vunpack.c.l.bf16 %v1505
    %v1512 = vunpack.c.h.bf16 %v1505
    %v1513 = vunpack.c.l.bf16 %v1506
    %v1514 = vunpack.c.h.bf16 %v1506
    %1519 = vrot.lane.b32.xlu0 %v1511, 114
    %v1520 = vpop.permute.xlu0 %1519
    %1521 = vrot.lane.b32.xlu0 %v1512, 114
    %v1522 = vpop.permute.xlu0 %1521
    %1523 = vrot.lane.b32.xlu0 %v1513, 114
    %v1524 = vpop.permute.xlu0 %1523
    %1525 = vrot.lane.b32.xlu0 %v1514, 114
    %v1526 = vpop.permute.xlu0 %1525
    %v1527 = vsel %vm298, %v1520, %v1522
    %v1528 = vsel %vm298, %v1524, %v1526
    %v1533 = vadd.f32 %v1507, %v1527
    %v1534 = vadd.f32 %v1508, %v1522
    %v1535 = vadd.f32 %v1509, %v1528
    %v1536 = vadd.f32 %v1510, %v1526
    %v1537 = vpack.c.bf16 %v1534, %v1533
    %v1538 = vpack.c.bf16 %v1536, %v1535
    %v1539 = vld [vmem:[%s1] sm:$0x1]
    %1541 = vst [vmem:[#allocation1] ss:$9 sm:$0xff] %v1539
    %v1542 = vld [vmem:[#allocation1] sm:$0xff]
    %1544 = vrot.lane.b32.xlu0 %v1542, 94
    %v1545 = vpop.permute.xlu0 %1544
    %s1547 = vtos %v1545
    %v1548 = vstv %s1547
    %v1549 = vpack.i.b16 %v1548, %v1548
    %v1551 = vunpack.c.l.bf16 %v1549
    %v1552 = vmul.f32 %v57, %v1551
    %v1553 = vmul.f32 %v58, %v1551
    %v1554 = vmul.f32 %v59, %v1551
    %v1555 = vmul.f32 %v60, %v1551
    %v1556 = vpack.c.bf16 %v1553, %v1552
    %v1557 = vpack.c.bf16 %v1555, %v1554
    %v1558 = vunpack.c.l.bf16 %v1537
    %v1559 = vunpack.c.h.bf16 %v1537
    %v1560 = vunpack.c.l.bf16 %v1538
    %v1561 = vunpack.c.h.bf16 %v1538
    %v1562 = vunpack.c.l.bf16 %v1556
    %v1563 = vunpack.c.h.bf16 %v1556
    %v1564 = vunpack.c.l.bf16 %v1557
    %v1565 = vunpack.c.h.bf16 %v1557
    %1570 = vrot.lane.b32.xlu0 %v1562, 114
    %v1571 = vpop.permute.xlu0 %1570
    %1572 = vrot.lane.b32.xlu0 %v1563, 114
    %v1573 = vpop.permute.xlu0 %1572
    %1574 = vrot.lane.b32.xlu0 %v1564, 114
    %v1575 = vpop.permute.xlu0 %1574
    %1576 = vrot.lane.b32.xlu0 %v1565, 114
    %v1577 = vpop.permute.xlu0 %1576
    %v1578 = vsel %vm298, %v1571, %v1573
    %v1579 = vsel %vm298, %v1575, %v1577
    %v1584 = vadd.f32 %v1558, %v1578
    %v1585 = vadd.f32 %v1559, %v1573
    %v1586 = vadd.f32 %v1560, %v1579
    %v1587 = vadd.f32 %v1561, %v1577
    %v1588 = vpack.c.bf16 %v1585, %v1584
    %v1589 = vpack.c.bf16 %v1587, %v1586
    %v1590 = vld [vmem:[%s1] sm:$0x1]
    %1592 = vst [vmem:[#allocation1] ss:$9 sm:$0xff] %v1590
    %v1593 = vld [vmem:[#allocation1] sm:$0xff]
    %1595 = vrot.lane.b32.xlu0 %v1593, 93
    %v1596 = vpop.permute.xlu0 %1595
    %s1598 = vtos %v1596
    %v1599 = vstv %s1598
    %v1600 = vpack.i.b16 %v1599, %v1599
    %v1602 = vunpack.c.l.bf16 %v1600
    %v1603 = vmul.f32 %v36, %v1602
    %v1604 = vmul.f32 %v37, %v1602
    %v1605 = vmul.f32 %v38, %v1602
    %v1606 = vmul.f32 %v39, %v1602
    %v1607 = vpack.c.bf16 %v1604, %v1603
    %v1608 = vpack.c.bf16 %v1606, %v1605
    %v1609 = vunpack.c.l.bf16 %v1588
    %v1610 = vunpack.c.h.bf16 %v1588
    %v1611 = vunpack.c.l.bf16 %v1589
    %v1612 = vunpack.c.h.bf16 %v1589
    %v1613 = vunpack.c.l.bf16 %v1607
    %v1614 = vunpack.c.h.bf16 %v1607
    %v1615 = vunpack.c.l.bf16 %v1608
    %v1616 = vunpack.c.h.bf16 %v1608
    %1621 = vrot.lane.b32.xlu0 %v1613, 113
    %v1622 = vpop.permute.xlu0 %1621
    %1623 = vrot.lane.b32.xlu0 %v1614, 113
    %v1624 = vpop.permute.xlu0 %1623
    %1625 = vrot.lane.b32.xlu0 %v1615, 113
    %v1626 = vpop.permute.xlu0 %1625
    %1627 = vrot.lane.b32.xlu0 %v1616, 113
    %v1628 = vpop.permute.xlu0 %1627
    %v1629 = vsel %vm401, %v1622, %v1624
    %v1630 = vsel %vm401, %v1626, %v1628
    %v1635 = vadd.f32 %v1609, %v1629
    %v1636 = vadd.f32 %v1610, %v1624
    %v1637 = vadd.f32 %v1611, %v1630
    %v1638 = vadd.f32 %v1612, %v1628
    %v1639 = vpack.c.bf16 %v1636, %v1635
    %v1640 = vpack.c.bf16 %v1638, %v1637
    %v1641 = vld [vmem:[%s2] sm:$0x1]
    %1643 = vst [vmem:[#allocation1] ss:$9 sm:$0xff] %v1641
    %v1644 = vld [vmem:[#allocation1] sm:$0xff]
    %1646 = vrot.lane.b32.xlu0 %v1644, 125
    %v1647 = vpop.permute.xlu0 %1646
    %s1649 = vtos %v1647
    %v1650 = vstv %s1649
    %v1651 = vpack.i.b16 %v1650, %v1650
    %v1653 = vunpack.c.l.bf16 %v1639
    %v1654 = vunpack.c.h.bf16 %v1639
    %v1655 = vunpack.c.l.bf16 %v1640
    %v1656 = vunpack.c.h.bf16 %v1640
    %v1657 = vunpack.c.l.bf16 %v1651
    %v1658 = vadd.f32 %v1653, %v1657
    %v1659 = vadd.f32 %v1654, %v1657
    %v1660 = vadd.f32 %v1655, %v1657
    %v1661 = vadd.f32 %v1656, %v1657
    %v1662 = vpack.c.bf16 %v1659, %v1658
    %v1663 = vpack.c.bf16 %v1661, %v1660
    %v1664 = vunpack.c.l.bf16 %v1662
    %v1665 = vunpack.c.h.bf16 %v1662
    %v1666 = vunpack.c.l.bf16 %v1663
    %v1667 = vunpack.c.h.bf16 %v1663
    %v1668 = vmax.f32 %v1664, 0.0
    %v1669 = vmax.f32 %v1665, 0.0
    %v1670 = vmax.f32 %v1666, 0.0
    %v1671 = vmax.f32 %v1667, 0.0
    %v1672 = vpack.c.bf16 %v1669, %v1668
    %v1673 = vpack.c.bf16 %v1671, %v1670
    %1674 = vst [vmem:[#allocation2 + $0x1c] sm:$0xf] 0
    %1675 = vst [vmem:[#allocation2 + $0x44] sm:$0xf] 0
    %1676 = vst.msk [vmem:[#allocation2 + $0x18] sm:$0xff] %vm445, %v1672
    %1677 = vst.msk [vmem:[#allocation2 + $0x40] sm:$0xff] %vm445, %v1673
    %v1678 = vld [vmem:[%s1] sm:$0x1]
    %1680 = vst [vmem:[#allocation1] ss:$9 sm:$0xff] %v1678
    %v1681 = vld [vmem:[#allocation1] sm:$0xff]
    %1683 = vrot.lane.b32.xlu0 %v1681, 92
    %v1684 = vpop.permute.xlu0 %1683
    %s1686 = vtos %v1684
    %v1687 = vstv %s1686
    %v1688 = vpack.i.b16 %v1687, %v1687
    %v1690 = vunpack.c.l.bf16 %v1688
    %v1691 = vmul.f32 %v36, %v1690
    %v1692 = vmul.f32 %v37, %v1690
    %v1693 = vmul.f32 %v38, %v1690
    %v1694 = vmul.f32 %v39, %v1690
    %v1695 = vpack.c.bf16 %v1692, %v1691
    %v1696 = vpack.c.bf16 %v1694, %v1693
    %v1697 = vld [vmem:[%s1] sm:$0x1]
    %1699 = vst [vmem:[#allocation1] ss:$9 sm:$0xff] %v1697
    %v1700 = vld [vmem:[#allocation1] sm:$0xff]
    %1702 = vrot.lane.b32.xlu0 %v1700, 91
    %v1703 = vpop.permute.xlu0 %1702
    %s1705 = vtos %v1703
    %v1706 = vstv %s1705
    %v1707 = vpack.i.b16 %v1706, %v1706
    %v1709 = vunpack.c.l.bf16 %v1707
    %v1710 = vmul.f32 %v57, %v1709
    %v1711 = vmul.f32 %v58, %v1709
    %v1712 = vmul.f32 %v59, %v1709
    %v1713 = vmul.f32 %v60, %v1709
    %v1714 = vpack.c.bf16 %v1711, %v1710
    %v1715 = vpack.c.bf16 %v1713, %v1712
    %v1716 = vunpack.c.l.bf16 %v1695
    %v1717 = vunpack.c.h.bf16 %v1695
    %v1718 = vunpack.c.l.bf16 %v1696
    %v1719 = vunpack.c.h.bf16 %v1696
    %v1720 = vunpack.c.l.bf16 %v1714
    %v1721 = vunpack.c.h.bf16 %v1714
    %v1722 = vunpack.c.l.bf16 %v1715
    %v1723 = vunpack.c.h.bf16 %v1715
    %v1724 = vadd.f32 %v1716, %v1720
    %v1725 = vadd.f32 %v1717, %v1721
    %v1726 = vadd.f32 %v1718, %v1722
    %v1727 = vadd.f32 %v1719, %v1723
    %v1728 = vpack.c.bf16 %v1725, %v1724
    %v1729 = vpack.c.bf16 %v1727, %v1726
    %v1730 = vld [vmem:[%s1] sm:$0x1]
    %1732 = vst [vmem:[#allocation1] ss:$9 sm:$0xff] %v1730
    %v1733 = vld [vmem:[#allocation1] sm:$0xff]
    %1735 = vrot.lane.b32.xlu0 %v1733, 90
    %v1736 = vpop.permute.xlu0 %1735
    %s1738 = vtos %v1736
    %v1739 = vstv %s1738
    %v1740 = vpack.i.b16 %v1739, %v1739
    %v1742 = vunpack.c.l.bf16 %v1740
    %v1743 = vmul.f32 %v36, %v1742
    %v1744 = vmul.f32 %v37, %v1742
    %v1745 = vmul.f32 %v38, %v1742
    %v1746 = vmul.f32 %v39, %v1742
    %v1747 = vpack.c.bf16 %v1744, %v1743
    %v1748 = vpack.c.bf16 %v1746, %v1745
    %v1749 = vunpack.c.l.bf16 %v1728
    %v1750 = vunpack.c.h.bf16 %v1728
    %v1751 = vunpack.c.l.bf16 %v1729
    %v1752 = vunpack.c.h.bf16 %v1729
    %v1753 = vunpack.c.l.bf16 %v1747
    %v1754 = vunpack.c.h.bf16 %v1747
    %v1755 = vunpack.c.l.bf16 %v1748
    %v1756 = vunpack.c.h.bf16 %v1748
    %1761 = vrot.lane.b32.xlu0 %v1753, 127
    %v1762 = vpop.permute.xlu0 %1761
    %1763 = vrot.lane.b32.xlu0 %v1754, 127
    %v1764 = vpop.permute.xlu0 %1763
    %1765 = vrot.lane.b32.xlu0 %v1755, 127
    %v1766 = vpop.permute.xlu0 %1765
    %1767 = vrot.lane.b32.xlu0 %v1756, 127
    %v1768 = vpop.permute.xlu0 %1767
    %v1769 = vsel %vm121, %v1762, %v1764
    %v1770 = vsel %vm121, %v1766, %v1768
    %v1775 = vadd.f32 %v1749, %v1769
    %v1776 = vadd.f32 %v1750, %v1764
    %v1777 = vadd.f32 %v1751, %v1770
    %v1778 = vadd.f32 %v1752, %v1768
    %v1779 = vpack.c.bf16 %v1776, %v1775
    %v1780 = vpack.c.bf16 %v1778, %v1777
    %v1781 = vld [vmem:[%s1] sm:$0x1]
    %1783 = vst [vmem:[#allocation1] ss:$9 sm:$0xff] %v1781
    %v1784 = vld [vmem:[#allocation1] sm:$0xff]
    %1786 = vrot.lane.b32.xlu0 %v1784, 89
    %v1787 = vpop.permute.xlu0 %1786
    %s1789 = vtos %v1787
    %v1790 = vstv %s1789
    %v1791 = vpack.i.b16 %v1790, %v1790
    %v1793 = vunpack.c.l.bf16 %v1791
    %v1794 = vmul.f32 %v146, %v1793
    %v1795 = vmul.f32 %v147, %v1793
    %v1796 = vmul.f32 %v148, %v1793
    %v1797 = vmul.f32 %v149, %v1793
    %v1798 = vpack.c.bf16 %v1795, %v1794
    %v1799 = vpack.c.bf16 %v1797, %v1796
    %v1800 = vunpack.c.l.bf16 %v1779
    %v1801 = vunpack.c.h.bf16 %v1779
    %v1802 = vunpack.c.l.bf16 %v1780
    %v1803 = vunpack.c.h.bf16 %v1780
    %v1804 = vunpack.c.l.bf16 %v1798
    %v1805 = vunpack.c.h.bf16 %v1798
    %v1806 = vunpack.c.l.bf16 %v1799
    %v1807 = vunpack.c.h.bf16 %v1799
    %v1808 = vadd.f32 %v1800, %v1804
    %v1809 = vadd.f32 %v1801, %v1805
    %v1810 = vadd.f32 %v1802, %v1806
    %v1811 = vadd.f32 %v1803, %v1807
    %v1812 = vpack.c.bf16 %v1809, %v1808
    %v1813 = vpack.c.bf16 %v1811, %v1810
    %v1814 = vld [vmem:[%s1] sm:$0x1]
    %1816 = vst [vmem:[#allocation1] ss:$9 sm:$0xff] %v1814
    %v1817 = vld [vmem:[#allocation1] sm:$0xff]
    %1819 = vrot.lane.b32.xlu0 %v1817, 88
    %v1820 = vpop.permute.xlu0 %1819
    %s1822 = vtos %v1820
    %v1823 = vstv %s1822
    %v1824 = vpack.i.b16 %v1823, %v1823
    %v1826 = vunpack.c.l.bf16 %v1824
    %v1827 = vmul.f32 %v183, %v1826
    %v1828 = vmul.f32 %v184, %v1826
    %v1829 = vmul.f32 %v185, %v1826
    %v1830 = vmul.f32 %v186, %v1826
    %v1831 = vpack.c.bf16 %v1828, %v1827
    %v1832 = vpack.c.bf16 %v1830, %v1829
    %v1833 = vunpack.c.l.bf16 %v1812
    %v1834 = vunpack.c.h.bf16 %v1812
    %v1835 = vunpack.c.l.bf16 %v1813
    %v1836 = vunpack.c.h.bf16 %v1813
    %v1837 = vunpack.c.l.bf16 %v1831
    %v1838 = vunpack.c.h.bf16 %v1831
    %v1839 = vunpack.c.l.bf16 %v1832
    %v1840 = vunpack.c.h.bf16 %v1832
    %v1841 = vadd.f32 %v1833, %v1837
    %v1842 = vadd.f32 %v1834, %v1838
    %v1843 = vadd.f32 %v1835, %v1839
    %v1844 = vadd.f32 %v1836, %v1840
    %v1845 = vpack.c.bf16 %v1842, %v1841
    %v1846 = vpack.c.bf16 %v1844, %v1843
    %v1847 = vld [vmem:[%s1] sm:$0x1]
    %1849 = vst [vmem:[#allocation1] ss:$9 sm:$0xff] %v1847
    %v1850 = vld [vmem:[#allocation1] sm:$0xff]
    %1852 = vrot.lane.b32.xlu0 %v1850, 87
    %v1853 = vpop.permute.xlu0 %1852
    %s1855 = vtos %v1853
    %v1856 = vstv %s1855
    %v1857 = vpack.i.b16 %v1856, %v1856
    %v1859 = vunpack.c.l.bf16 %v1857
    %v1860 = vmul.f32 %v146, %v1859
    %v1861 = vmul.f32 %v147, %v1859
    %v1862 = vmul.f32 %v148, %v1859
    %v1863 = vmul.f32 %v149, %v1859
    %v1864 = vpack.c.bf16 %v1861, %v1860
    %v1865 = vpack.c.bf16 %v1863, %v1862
    %v1866 = vunpack.c.l.bf16 %v1845
    %v1867 = vunpack.c.h.bf16 %v1845
    %v1868 = vunpack.c.l.bf16 %v1846
    %v1869 = vunpack.c.h.bf16 %v1846
    %v1870 = vunpack.c.l.bf16 %v1864
    %v1871 = vunpack.c.h.bf16 %v1864
    %v1872 = vunpack.c.l.bf16 %v1865
    %v1873 = vunpack.c.h.bf16 %v1865
    %1878 = vrot.lane.b32.xlu0 %v1870, 127
    %v1879 = vpop.permute.xlu0 %1878
    %1880 = vrot.lane.b32.xlu0 %v1871, 127
    %v1881 = vpop.permute.xlu0 %1880
    %1882 = vrot.lane.b32.xlu0 %v1872, 127
    %v1883 = vpop.permute.xlu0 %1882
    %1884 = vrot.lane.b32.xlu0 %v1873, 127
    %v1885 = vpop.permute.xlu0 %1884
    %v1886 = vsel %vm121, %v1879, %v1881
    %v1887 = vsel %vm121, %v1883, %v1885
    %v1892 = vadd.f32 %v1866, %v1886
    %v1893 = vadd.f32 %v1867, %v1881
    %v1894 = vadd.f32 %v1868, %v1887
    %v1895 = vadd.f32 %v1869, %v1885
    %v1896 = vpack.c.bf16 %v1893, %v1892
    %v1897 = vpack.c.bf16 %v1895, %v1894
    %v1898 = vld [vmem:[%s1] sm:$0x1]
    %1900 = vst [vmem:[#allocation1] ss:$9 sm:$0xff] %v1898
    %v1901 = vld [vmem:[#allocation1] sm:$0xff]
    %1903 = vrot.lane.b32.xlu0 %v1901, 86
    %v1904 = vpop.permute.xlu0 %1903
    %s1906 = vtos %v1904
    %v1907 = vstv %s1906
    %v1908 = vpack.i.b16 %v1907, %v1907
    %v1910 = vunpack.c.l.bf16 %v1908
    %v1911 = vmul.f32 %v36, %v1910
    %v1912 = vmul.f32 %v37, %v1910
    %v1913 = vmul.f32 %v38, %v1910
    %v1914 = vmul.f32 %v39, %v1910
    %v1915 = vpack.c.bf16 %v1912, %v1911
    %v1916 = vpack.c.bf16 %v1914, %v1913
    %v1917 = vunpack.c.l.bf16 %v1896
    %v1918 = vunpack.c.h.bf16 %v1896
    %v1919 = vunpack.c.l.bf16 %v1897
    %v1920 = vunpack.c.h.bf16 %v1897
    %v1921 = vunpack.c.l.bf16 %v1915
    %v1922 = vunpack.c.h.bf16 %v1915
    %v1923 = vunpack.c.l.bf16 %v1916
    %v1924 = vunpack.c.h.bf16 %v1916
    %1929 = vrot.lane.b32.xlu0 %v1921, 114
    %v1930 = vpop.permute.xlu0 %1929
    %1931 = vrot.lane.b32.xlu0 %v1922, 114
    %v1932 = vpop.permute.xlu0 %1931
    %1933 = vrot.lane.b32.xlu0 %v1923, 114
    %v1934 = vpop.permute.xlu0 %1933
    %1935 = vrot.lane.b32.xlu0 %v1924, 114
    %v1936 = vpop.permute.xlu0 %1935
    %v1937 = vsel %vm298, %v1930, %v1932
    %v1938 = vsel %vm298, %v1934, %v1936
    %v1943 = vadd.f32 %v1917, %v1937
    %v1944 = vadd.f32 %v1918, %v1932
    %v1945 = vadd.f32 %v1919, %v1938
    %v1946 = vadd.f32 %v1920, %v1936
    %v1947 = vpack.c.bf16 %v1944, %v1943
    %v1948 = vpack.c.bf16 %v1946, %v1945
    %v1949 = vld [vmem:[%s1] sm:$0x1]
    %1951 = vst [vmem:[#allocation1] ss:$9 sm:$0xff] %v1949
    %v1952 = vld [vmem:[#allocation1] sm:$0xff]
    %1954 = vrot.lane.b32.xlu0 %v1952, 85
    %v1955 = vpop.permute.xlu0 %1954
    %s1957 = vtos %v1955
    %v1958 = vstv %s1957
    %v1959 = vpack.i.b16 %v1958, %v1958
    %v1961 = vunpack.c.l.bf16 %v1959
    %v1962 = vmul.f32 %v57, %v1961
    %v1963 = vmul.f32 %v58, %v1961
    %v1964 = vmul.f32 %v59, %v1961
    %v1965 = vmul.f32 %v60, %v1961
    %v1966 = vpack.c.bf16 %v1963, %v1962
    %v1967 = vpack.c.bf16 %v1965, %v1964
    %v1968 = vunpack.c.l.bf16 %v1947
    %v1969 = vunpack.c.h.bf16 %v1947
    %v1970 = vunpack.c.l.bf16 %v1948
    %v1971 = vunpack.c.h.bf16 %v1948
    %v1972 = vunpack.c.l.bf16 %v1966
    %v1973 = vunpack.c.h.bf16 %v1966
    %v1974 = vunpack.c.l.bf16 %v1967
    %v1975 = vunpack.c.h.bf16 %v1967
    %1980 = vrot.lane.b32.xlu0 %v1972, 114
    %v1981 = vpop.permute.xlu0 %1980
    %1982 = vrot.lane.b32.xlu0 %v1973, 114
    %v1983 = vpop.permute.xlu0 %1982
    %1984 = vrot.lane.b32.xlu0 %v1974, 114
    %v1985 = vpop.permute.xlu0 %1984
    %1986 = vrot.lane.b32.xlu0 %v1975, 114
    %v1987 = vpop.permute.xlu0 %1986
    %v1988 = vsel %vm298, %v1981, %v1983
    %v1989 = vsel %vm298, %v1985, %v1987
    %v1994 = vadd.f32 %v1968, %v1988
    %v1995 = vadd.f32 %v1969, %v1983
    %v1996 = vadd.f32 %v1970, %v1989
    %v1997 = vadd.f32 %v1971, %v1987
    %v1998 = vpack.c.bf16 %v1995, %v1994
    %v1999 = vpack.c.bf16 %v1997, %v1996
    %v2000 = vld [vmem:[%s1] sm:$0x1]
    %2002 = vst [vmem:[#allocation1] ss:$9 sm:$0xff] %v2000
    %v2003 = vld [vmem:[#allocation1] sm:$0xff]
    %2005 = vrot.lane.b32.xlu0 %v2003, 84
    %v2006 = vpop.permute.xlu0 %2005
    %s2008 = vtos %v2006
    %v2009 = vstv %s2008
    %v2010 = vpack.i.b16 %v2009, %v2009
    %v2012 = vunpack.c.l.bf16 %v2010
    %v2013 = vmul.f32 %v36, %v2012
    %v2014 = vmul.f32 %v37, %v2012
    %v2015 = vmul.f32 %v38, %v2012
    %v2016 = vmul.f32 %v39, %v2012
    %v2017 = vpack.c.bf16 %v2014, %v2013
    %v2018 = vpack.c.bf16 %v2016, %v2015
    %v2019 = vunpack.c.l.bf16 %v1998
    %v2020 = vunpack.c.h.bf16 %v1998
    %v2021 = vunpack.c.l.bf16 %v1999
    %v2022 = vunpack.c.h.bf16 %v1999
    %v2023 = vunpack.c.l.bf16 %v2017
    %v2024 = vunpack.c.h.bf16 %v2017
    %v2025 = vunpack.c.l.bf16 %v2018
    %v2026 = vunpack.c.h.bf16 %v2018
    %2031 = vrot.lane.b32.xlu0 %v2023, 113
    %v2032 = vpop.permute.xlu0 %2031
    %2033 = vrot.lane.b32.xlu0 %v2024, 113
    %v2034 = vpop.permute.xlu0 %2033
    %2035 = vrot.lane.b32.xlu0 %v2025, 113
    %v2036 = vpop.permute.xlu0 %2035
    %2037 = vrot.lane.b32.xlu0 %v2026, 113
    %v2038 = vpop.permute.xlu0 %2037
    %v2039 = vsel %vm401, %v2032, %v2034
    %v2040 = vsel %vm401, %v2036, %v2038
    %v2045 = vadd.f32 %v2019, %v2039
    %v2046 = vadd.f32 %v2020, %v2034
    %v2047 = vadd.f32 %v2021, %v2040
    %v2048 = vadd.f32 %v2022, %v2038
    %v2049 = vpack.c.bf16 %v2046, %v2045
    %v2050 = vpack.c.bf16 %v2048, %v2047
    %v2051 = vld [vmem:[%s2] sm:$0x1]
    %2053 = vst [vmem:[#allocation1] ss:$9 sm:$0xff] %v2051
    %v2054 = vld [vmem:[#allocation1] sm:$0xff]
    %2056 = vrot.lane.b32.xlu0 %v2054, 124
    %v2057 = vpop.permute.xlu0 %2056
    %s2059 = vtos %v2057
    %v2060 = vstv %s2059
    %v2061 = vpack.i.b16 %v2060, %v2060
    %v2063 = vunpack.c.l.bf16 %v2049
    %v2064 = vunpack.c.h.bf16 %v2049
    %v2065 = vunpack.c.l.bf16 %v2050
    %v2066 = vunpack.c.h.bf16 %v2050
    %v2067 = vunpack.c.l.bf16 %v2061
    %v2068 = vadd.f32 %v2063, %v2067
    %v2069 = vadd.f32 %v2064, %v2067
    %v2070 = vadd.f32 %v2065, %v2067
    %v2071 = vadd.f32 %v2066, %v2067
    %v2072 = vpack.c.bf16 %v2069, %v2068
    %v2073 = vpack.c.bf16 %v2071, %v2070
    %v2074 = vunpack.c.l.bf16 %v2072
    %v2075 = vunpack.c.h.bf16 %v2072
    %v2076 = vunpack.c.l.bf16 %v2073
    %v2077 = vunpack.c.h.bf16 %v2073
    %v2078 = vmax.f32 %v2074, 0.0
    %v2079 = vmax.f32 %v2075, 0.0
    %v2080 = vmax.f32 %v2076, 0.0
    %v2081 = vmax.f32 %v2077, 0.0
    %v2082 = vpack.c.bf16 %v2079, %v2078
    %v2083 = vpack.c.bf16 %v2081, %v2080
    %2084 = vst [vmem:[#allocation2 + $0x24] sm:$0xf] 0
    %2085 = vst [vmem:[#allocation2 + $0x4c] sm:$0xf] 0
    %2086 = vst.msk [vmem:[#allocation2 + $0x20] sm:$0xff] %vm445, %v2082
    %2087 = vst.msk [vmem:[#allocation2 + $0x48] sm:$0xff] %vm445, %v2083
    %v2088 = vld [vmem:[%s0 + $0x8] sm:$0xff]
    %v2089 = vld [vmem:[%s0 + $0x28] sm:$0xff]
    %v2090 = vld [vmem:[%s0] sm:$0xff]
    %v2091 = vld [vmem:[%s0 + $0x20] sm:$0xff]
    %v2092 = vld [vmem:[%s0 + $0x18] sm:$0xff]
    %v2093 = vld [vmem:[%s0 + $0x38] sm:$0xff]
    %v2094 = vld [vmem:[%s0 + $0x10] sm:$0xff]
    %v2095 = vld [vmem:[%s0 + $0x30] sm:$0xff]
    %v2096 = vld [vmem:[%s1] sm:$0x1]
    %s2098 = vtos %v2096
    %v2099 = vstv %s2098
    %v2100 = vpack.i.b16 %v2099, %v2099
    %v2102 = vunpack.c.l.bf16 %v2088
    %v2103 = vunpack.c.h.bf16 %v2088
    %v2104 = vunpack.c.l.bf16 %v2089
    %v2105 = vunpack.c.h.bf16 %v2089
    %v2106 = vunpack.c.l.bf16 %v2100
    %v2107 = vmul.f32 %v2102, %v2106
    %v2108 = vmul.f32 %v2103, %v2106
    %v2109 = vmul.f32 %v2104, %v2106
    %v2110 = vmul.f32 %v2105, %v2106
    %v2111 = vpack.c.bf16 %v2108, %v2107
    %v2112 = vpack.c.bf16 %v2110, %v2109
    %2113 = vst [vmem:[#allocation1] ss:$9 sm:$0xff] %v2096
    %v2114 = vld [vmem:[#allocation1] sm:$0xff]
    %2116 = vrot.lane.b32.xlu0 %v2114, 127
    %v2117 = vpop.permute.xlu0 %2116
    %s2119 = vtos %v2117
    %v2120 = vstv %s2119
    %v2121 = vpack.i.b16 %v2120, %v2120
    %v2123 = vunpack.c.l.bf16 %v2090
    %v2124 = vunpack.c.h.bf16 %v2090
    %v2125 = vunpack.c.l.bf16 %v2091
    %v2126 = vunpack.c.h.bf16 %v2091
    %v2127 = vunpack.c.l.bf16 %v2121
    %v2128 = vmul.f32 %v2123, %v2127
    %v2129 = vmul.f32 %v2124, %v2127
    %v2130 = vmul.f32 %v2125, %v2127
    %v2131 = vmul.f32 %v2126, %v2127
    %v2132 = vpack.c.bf16 %v2129, %v2128
    %v2133 = vpack.c.bf16 %v2131, %v2130
    %v2134 = vunpack.c.l.bf16 %v2111
    %v2135 = vunpack.c.h.bf16 %v2111
    %v2136 = vunpack.c.l.bf16 %v2112
    %v2137 = vunpack.c.h.bf16 %v2112
    %v2138 = vunpack.c.l.bf16 %v2132
    %v2139 = vunpack.c.h.bf16 %v2132
    %v2140 = vunpack.c.l.bf16 %v2133
    %v2141 = vunpack.c.h.bf16 %v2133
    %2146 = vrot.lane.b32.xlu0 %v2138, 127
    %v2147 = vpop.permute.xlu0 %2146
    %2148 = vrot.lane.b32.xlu0 %v2139, 127
    %v2149 = vpop.permute.xlu0 %2148
    %2150 = vrot.lane.b32.xlu0 %v2140, 127
    %v2151 = vpop.permute.xlu0 %2150
    %2152 = vrot.lane.b32.xlu0 %v2141, 127
    %v2153 = vpop.permute.xlu0 %2152
    %v2154 = vsel %vm121, %v2147, %v2149
    %v2155 = vsel %vm121, %v2151, %v2153
    %v2160 = vadd.f32 %v2134, %v2154
    %v2161 = vadd.f32 %v2135, %v2149
    %v2162 = vadd.f32 %v2136, %v2155
    %v2163 = vadd.f32 %v2137, %v2153
    %v2164 = vpack.c.bf16 %v2161, %v2160
    %v2165 = vpack.c.bf16 %v2163, %v2162
    %v2166 = vld [vmem:[%s1] sm:$0x1]
    %2168 = vst [vmem:[#allocation1] ss:$9 sm:$0xff] %v2166
    %v2169 = vld [vmem:[#allocation1] sm:$0xff]
    %2171 = vrot.lane.b32.xlu0 %v2169, 126
    %v2172 = vpop.permute.xlu0 %2171
    %s2174 = vtos %v2172
    %v2175 = vstv %s2174
    %v2176 = vpack.i.b16 %v2175, %v2175
    %v2178 = vunpack.c.l.bf16 %v2176
    %v2179 = vmul.f32 %v2102, %v2178
    %v2180 = vmul.f32 %v2103, %v2178
    %v2181 = vmul.f32 %v2104, %v2178
    %v2182 = vmul.f32 %v2105, %v2178
    %v2183 = vpack.c.bf16 %v2180, %v2179
    %v2184 = vpack.c.bf16 %v2182, %v2181
    %v2185 = vunpack.c.l.bf16 %v2164
    %v2186 = vunpack.c.h.bf16 %v2164
    %v2187 = vunpack.c.l.bf16 %v2165
    %v2188 = vunpack.c.h.bf16 %v2165
    %v2189 = vunpack.c.l.bf16 %v2183
    %v2190 = vunpack.c.h.bf16 %v2183
    %v2191 = vunpack.c.l.bf16 %v2184
    %v2192 = vunpack.c.h.bf16 %v2184
    %2197 = vrot.lane.b32.xlu0 %v2189, 127
    %v2198 = vpop.permute.xlu0 %2197
    %2199 = vrot.lane.b32.xlu0 %v2190, 127
    %v2200 = vpop.permute.xlu0 %2199
    %2201 = vrot.lane.b32.xlu0 %v2191, 127
    %v2202 = vpop.permute.xlu0 %2201
    %2203 = vrot.lane.b32.xlu0 %v2192, 127
    %v2204 = vpop.permute.xlu0 %2203
    %v2205 = vsel %vm121, %v2198, %v2200
    %v2206 = vsel %vm121, %v2202, %v2204
    %v2211 = vadd.f32 %v2185, %v2205
    %v2212 = vadd.f32 %v2186, %v2200
    %v2213 = vadd.f32 %v2187, %v2206
    %v2214 = vadd.f32 %v2188, %v2204
    %v2215 = vpack.c.bf16 %v2212, %v2211
    %v2216 = vpack.c.bf16 %v2214, %v2213
    %v2217 = vld [vmem:[%s1] sm:$0x1]
    %2219 = vst [vmem:[#allocation1] ss:$9 sm:$0xff] %v2217
    %v2220 = vld [vmem:[#allocation1] sm:$0xff]
    %2222 = vrot.lane.b32.xlu0 %v2220, 125
    %v2223 = vpop.permute.xlu0 %2222
    %s2225 = vtos %v2223
    %v2226 = vstv %s2225
    %v2227 = vpack.i.b16 %v2226, %v2226
    %v2229 = vunpack.c.l.bf16 %v2092
    %v2230 = vunpack.c.h.bf16 %v2092
    %v2231 = vunpack.c.l.bf16 %v2093
    %v2232 = vunpack.c.h.bf16 %v2093
    %v2233 = vunpack.c.l.bf16 %v2227
    %v2234 = vmul.f32 %v2229, %v2233
    %v2235 = vmul.f32 %v2230, %v2233
    %v2236 = vmul.f32 %v2231, %v2233
    %v2237 = vmul.f32 %v2232, %v2233
    %v2238 = vpack.c.bf16 %v2235, %v2234
    %v2239 = vpack.c.bf16 %v2237, %v2236
    %v2240 = vunpack.c.l.bf16 %v2215
    %v2241 = vunpack.c.h.bf16 %v2215
    %v2242 = vunpack.c.l.bf16 %v2216
    %v2243 = vunpack.c.h.bf16 %v2216
    %v2244 = vunpack.c.l.bf16 %v2238
    %v2245 = vunpack.c.h.bf16 %v2238
    %v2246 = vunpack.c.l.bf16 %v2239
    %v2247 = vunpack.c.h.bf16 %v2239
    %v2248 = vadd.f32 %v2240, %v2244
    %v2249 = vadd.f32 %v2241, %v2245
    %v2250 = vadd.f32 %v2242, %v2246
    %v2251 = vadd.f32 %v2243, %v2247
    %v2252 = vpack.c.bf16 %v2249, %v2248
    %v2253 = vpack.c.bf16 %v2251, %v2250
    %v2254 = vld [vmem:[%s1] sm:$0x1]
    %2256 = vst [vmem:[#allocation1] ss:$9 sm:$0xff] %v2254
    %v2257 = vld [vmem:[#allocation1] sm:$0xff]
    %2259 = vrot.lane.b32.xlu0 %v2257, 124
    %v2260 = vpop.permute.xlu0 %2259
    %s2262 = vtos %v2260
    %v2263 = vstv %s2262
    %v2264 = vpack.i.b16 %v2263, %v2263
    %v2266 = vunpack.c.l.bf16 %v2094
    %v2267 = vunpack.c.h.bf16 %v2094
    %v2268 = vunpack.c.l.bf16 %v2095
    %v2269 = vunpack.c.h.bf16 %v2095
    %v2270 = vunpack.c.l.bf16 %v2264
    %v2271 = vmul.f32 %v2266, %v2270
    %v2272 = vmul.f32 %v2267, %v2270
    %v2273 = vmul.f32 %v2268, %v2270
    %v2274 = vmul.f32 %v2269, %v2270
    %v2275 = vpack.c.bf16 %v2272, %v2271
    %v2276 = vpack.c.bf16 %v2274, %v2273
    %v2277 = vunpack.c.l.bf16 %v2252
    %v2278 = vunpack.c.h.bf16 %v2252
    %v2279 = vunpack.c.l.bf16 %v2253
    %v2280 = vunpack.c.h.bf16 %v2253
    %v2281 = vunpack.c.l.bf16 %v2275
    %v2282 = vunpack.c.h.bf16 %v2275
    %v2283 = vunpack.c.l.bf16 %v2276
    %v2284 = vunpack.c.h.bf16 %v2276
    %2289 = vrot.lane.b32.xlu0 %v2281, 127
    %v2290 = vpop.permute.xlu0 %2289
    %2291 = vrot.lane.b32.xlu0 %v2282, 127
    %v2292 = vpop.permute.xlu0 %2291
    %2293 = vrot.lane.b32.xlu0 %v2283, 127
    %v2294 = vpop.permute.xlu0 %2293
    %2295 = vrot.lane.b32.xlu0 %v2284, 127
    %v2296 = vpop.permute.xlu0 %2295
    %v2297 = vsel %vm121, %v2290, %v2292
    %v2298 = vsel %vm121, %v2294, %v2296
    %v2303 = vadd.f32 %v2277, %v2297
    %v2304 = vadd.f32 %v2278, %v2292
    %v2305 = vadd.f32 %v2279, %v2298
    %v2306 = vadd.f32 %v2280, %v2296
    %v2307 = vpack.c.bf16 %v2304, %v2303
    %v2308 = vpack.c.bf16 %v2306, %v2305
    %v2309 = vld [vmem:[%s1] sm:$0x1]
    %2311 = vst [vmem:[#allocation1] ss:$9 sm:$0xff] %v2309
    %v2312 = vld [vmem:[#allocation1] sm:$0xff]
    %2314 = vrot.lane.b32.xlu0 %v2312, 123
    %v2315 = vpop.permute.xlu0 %2314
    %s2317 = vtos %v2315
    %v2318 = vstv %s2317
    %v2319 = vpack.i.b16 %v2318, %v2318
    %v2321 = vunpack.c.l.bf16 %v2319
    %v2322 = vmul.f32 %v2229, %v2321
    %v2323 = vmul.f32 %v2230, %v2321
    %v2324 = vmul.f32 %v2231, %v2321
    %v2325 = vmul.f32 %v2232, %v2321
    %v2326 = vpack.c.bf16 %v2323, %v2322
    %v2327 = vpack.c.bf16 %v2325, %v2324
    %v2328 = vunpack.c.l.bf16 %v2307
    %v2329 = vunpack.c.h.bf16 %v2307
    %v2330 = vunpack.c.l.bf16 %v2308
    %v2331 = vunpack.c.h.bf16 %v2308
    %v2332 = vunpack.c.l.bf16 %v2326
    %v2333 = vunpack.c.h.bf16 %v2326
    %v2334 = vunpack.c.l.bf16 %v2327
    %v2335 = vunpack.c.h.bf16 %v2327
    %2340 = vrot.lane.b32.xlu0 %v2332, 127
    %v2341 = vpop.permute.xlu0 %2340
    %2342 = vrot.lane.b32.xlu0 %v2333, 127
    %v2343 = vpop.permute.xlu0 %2342
    %2344 = vrot.lane.b32.xlu0 %v2334, 127
    %v2345 = vpop.permute.xlu0 %2344
    %2346 = vrot.lane.b32.xlu0 %v2335, 127
    %v2347 = vpop.permute.xlu0 %2346
    %v2348 = vsel %vm121, %v2341, %v2343
    %v2349 = vsel %vm121, %v2345, %v2347
    %v2354 = vadd.f32 %v2328, %v2348
    %v2355 = vadd.f32 %v2329, %v2343
    %v2356 = vadd.f32 %v2330, %v2349
    %v2357 = vadd.f32 %v2331, %v2347
    %v2358 = vpack.c.bf16 %v2355, %v2354
    %v2359 = vpack.c.bf16 %v2357, %v2356
    %v2360 = vld [vmem:[%s1] sm:$0x1]
    %2362 = vst [vmem:[#allocation1] ss:$9 sm:$0xff] %v2360
    %v2363 = vld [vmem:[#allocation1] sm:$0xff]
    %2365 = vrot.lane.b32.xlu0 %v2363, 122
    %v2366 = vpop.permute.xlu0 %2365
    %s2368 = vtos %v2366
    %v2369 = vstv %s2368
    %v2370 = vpack.i.b16 %v2369, %v2369
    %v2372 = vunpack.c.l.bf16 %v2370
    %v2373 = vmul.f32 %v2102, %v2372
    %v2374 = vmul.f32 %v2103, %v2372
    %v2375 = vmul.f32 %v2104, %v2372
    %v2376 = vmul.f32 %v2105, %v2372
    %v2377 = vpack.c.bf16 %v2374, %v2373
    %v2378 = vpack.c.bf16 %v2376, %v2375
    %v2379 = vunpack.c.l.bf16 %v2358
    %v2380 = vunpack.c.h.bf16 %v2358
    %v2381 = vunpack.c.l.bf16 %v2359
    %v2382 = vunpack.c.h.bf16 %v2359
    %v2383 = vunpack.c.l.bf16 %v2377
    %v2384 = vunpack.c.h.bf16 %v2377
    %v2385 = vunpack.c.l.bf16 %v2378
    %v2386 = vunpack.c.h.bf16 %v2378
    %2391 = vrot.lane.b32.xlu0 %v2383, 114
    %v2392 = vpop.permute.xlu0 %2391
    %2393 = vrot.lane.b32.xlu0 %v2384, 114
    %v2394 = vpop.permute.xlu0 %2393
    %2395 = vrot.lane.b32.xlu0 %v2385, 114
    %v2396 = vpop.permute.xlu0 %2395
    %2397 = vrot.lane.b32.xlu0 %v2386, 114
    %v2398 = vpop.permute.xlu0 %2397
    %v2399 = vsel %vm298, %v2392, %v2394
    %v2400 = vsel %vm298, %v2396, %v2398
    %v2405 = vadd.f32 %v2379, %v2399
    %v2406 = vadd.f32 %v2380, %v2394
    %v2407 = vadd.f32 %v2381, %v2400
    %v2408 = vadd.f32 %v2382, %v2398
    %v2409 = vpack.c.bf16 %v2406, %v2405
    %v2410 = vpack.c.bf16 %v2408, %v2407
    %v2411 = vld [vmem:[%s1] sm:$0x1]
    %2413 = vst [vmem:[#allocation1] ss:$9 sm:$0xff] %v2411
    %v2414 = vld [vmem:[#allocation1] sm:$0xff]
    %2416 = vrot.lane.b32.xlu0 %v2414, 121
    %v2417 = vpop.permute.xlu0 %2416
    %s2419 = vtos %v2417
    %v2420 = vstv %s2419
    %v2421 = vpack.i.b16 %v2420, %v2420
    %v2423 = vunpack.c.l.bf16 %v2421
    %v2424 = vmul.f32 %v2123, %v2423
    %v2425 = vmul.f32 %v2124, %v2423
    %v2426 = vmul.f32 %v2125, %v2423
    %v2427 = vmul.f32 %v2126, %v2423
    %v2428 = vpack.c.bf16 %v2425, %v2424
    %v2429 = vpack.c.bf16 %v2427, %v2426
    %v2430 = vunpack.c.l.bf16 %v2409
    %v2431 = vunpack.c.h.bf16 %v2409
    %v2432 = vunpack.c.l.bf16 %v2410
    %v2433 = vunpack.c.h.bf16 %v2410
    %v2434 = vunpack.c.l.bf16 %v2428
    %v2435 = vunpack.c.h.bf16 %v2428
    %v2436 = vunpack.c.l.bf16 %v2429
    %v2437 = vunpack.c.h.bf16 %v2429
    %2442 = vrot.lane.b32.xlu0 %v2434, 113
    %v2443 = vpop.permute.xlu0 %2442
    %2444 = vrot.lane.b32.xlu0 %v2435, 113
    %v2445 = vpop.permute.xlu0 %2444
    %2446 = vrot.lane.b32.xlu0 %v2436, 113
    %v2447 = vpop.permute.xlu0 %2446
    %2448 = vrot.lane.b32.xlu0 %v2437, 113
    %v2449 = vpop.permute.xlu0 %2448
    %v2450 = vsel %vm401, %v2443, %v2445
    %v2451 = vsel %vm401, %v2447, %v2449
    %v2456 = vadd.f32 %v2430, %v2450
    %v2457 = vadd.f32 %v2431, %v2445
    %v2458 = vadd.f32 %v2432, %v2451
    %v2459 = vadd.f32 %v2433, %v2449
    %v2460 = vpack.c.bf16 %v2457, %v2456
    %v2461 = vpack.c.bf16 %v2459, %v2458
    %v2462 = vld [vmem:[%s1] sm:$0x1]
    %2464 = vst [vmem:[#allocation1] ss:$9 sm:$0xff] %v2462
    %v2465 = vld [vmem:[#allocation1] sm:$0xff]
    %2467 = vrot.lane.b32.xlu0 %v2465, 120
    %v2468 = vpop.permute.xlu0 %2467
    %s2470 = vtos %v2468
    %v2471 = vstv %s2470
    %v2472 = vpack.i.b16 %v2471, %v2471
    %v2474 = vunpack.c.l.bf16 %v2472
    %v2475 = vmul.f32 %v2102, %v2474
    %v2476 = vmul.f32 %v2103, %v2474
    %v2477 = vmul.f32 %v2104, %v2474
    %v2478 = vmul.f32 %v2105, %v2474
    %v2479 = vpack.c.bf16 %v2476, %v2475
    %v2480 = vpack.c.bf16 %v2478, %v2477
    %v2481 = vunpack.c.l.bf16 %v2460
    %v2482 = vunpack.c.h.bf16 %v2460
    %v2483 = vunpack.c.l.bf16 %v2461
    %v2484 = vunpack.c.h.bf16 %v2461
    %v2485 = vunpack.c.l.bf16 %v2479
    %v2486 = vunpack.c.h.bf16 %v2479
    %v2487 = vunpack.c.l.bf16 %v2480
    %v2488 = vunpack.c.h.bf16 %v2480
    %2493 = vrot.lane.b32.xlu0 %v2485, 113
    %v2494 = vpop.permute.xlu0 %2493
    %2495 = vrot.lane.b32.xlu0 %v2486, 113
    %v2496 = vpop.permute.xlu0 %2495
    %2497 = vrot.lane.b32.xlu0 %v2487, 113
    %v2498 = vpop.permute.xlu0 %2497
    %2499 = vrot.lane.b32.xlu0 %v2488, 113
    %v2500 = vpop.permute.xlu0 %2499
    %v2501 = vsel %vm401, %v2494, %v2496
    %v2502 = vsel %vm401, %v2498, %v2500
    %v2507 = vadd.f32 %v2481, %v2501
    %v2508 = vadd.f32 %v2482, %v2496
    %v2509 = vadd.f32 %v2483, %v2502
    %v2510 = vadd.f32 %v2484, %v2500
    %v2511 = vpack.c.bf16 %v2508, %v2507
    %v2512 = vpack.c.bf16 %v2510, %v2509
    %v2513 = vld [vmem:[%s2] sm:$0x1]
    %s2515 = vtos %v2513
    %v2516 = vstv %s2515
    %v2517 = vpack.i.b16 %v2516, %v2516
    %v2519 = vunpack.c.l.bf16 %v2511
    %v2520 = vunpack.c.h.bf16 %v2511
    %v2521 = vunpack.c.l.bf16 %v2512
    %v2522 = vunpack.c.h.bf16 %v2512
    %v2523 = vunpack.c.l.bf16 %v2517
    %v2524 = vadd.f32 %v2519, %v2523
    %v2525 = vadd.f32 %v2520, %v2523
    %v2526 = vadd.f32 %v2521, %v2523
    %v2527 = vadd.f32 %v2522, %v2523
    %v2528 = vpack.c.bf16 %v2525, %v2524
    %v2529 = vpack.c.bf16 %v2527, %v2526
    %v2530 = vunpack.c.l.bf16 %v2528
    %v2531 = vunpack.c.h.bf16 %v2528
    %v2532 = vunpack.c.l.bf16 %v2529
    %v2533 = vunpack.c.h.bf16 %v2529
    %v2534 = vmax.f32 %v2530, 0.0
    %v2535 = vmax.f32 %v2531, 0.0
    %v2536 = vmax.f32 %v2532, 0.0
    %v2537 = vmax.f32 %v2533, 0.0
    %v2538 = vpack.c.bf16 %v2535, %v2534
    %v2539 = vpack.c.bf16 %v2537, %v2536
    %v2540 = vld [vmem:[#allocation2] sm:$0xff]
    %v2541 = vld [vmem:[#allocation2 + $0x28] sm:$0xff]
    %v2542 = vunpack.c.l.bf16 %v2540
    %v2543 = vunpack.c.h.bf16 %v2540
    %v2544 = vunpack.c.l.bf16 %v2541
    %v2545 = vunpack.c.h.bf16 %v2541
    %v2546 = vunpack.c.l.bf16 %v2538
    %v2547 = vunpack.c.h.bf16 %v2538
    %v2548 = vunpack.c.l.bf16 %v2539
    %v2549 = vunpack.c.h.bf16 %v2539
    %v2550 = vmax.f32 %v2542, %v2546
    %v2551 = vmax.f32 %v2543, %v2547
    %v2552 = vmax.f32 %v2544, %v2548
    %v2553 = vmax.f32 %v2545, %v2549
    %v2554 = vpack.c.bf16 %v2551, %v2550
    %v2555 = vpack.c.bf16 %v2553, %v2552
    %2556 = vst.msk [vmem:[#allocation2] sm:$0xff] %vm445, %v2554
    %2557 = vst.msk [vmem:[#allocation2 + $0x28] sm:$0xff] %vm445, %v2555
    %v2558 = vld [vmem:[%s1] sm:$0x1]
    %2560 = vst [vmem:[#allocation1] ss:$9 sm:$0xff] %v2558
    %v2561 = vld [vmem:[#allocation1] sm:$0xff]
    %2563 = vrot.lane.b32.xlu0 %v2561, 119
    %v2564 = vpop.permute.xlu0 %2563
    %s2566 = vtos %v2564
    %v2567 = vstv %s2566
    %v2568 = vpack.i.b16 %v2567, %v2567
    %v2570 = vunpack.c.l.bf16 %v2568
    %v2571 = vmul.f32 %v2102, %v2570
    %v2572 = vmul.f32 %v2103, %v2570
    %v2573 = vmul.f32 %v2104, %v2570
    %v2574 = vmul.f32 %v2105, %v2570
    %v2575 = vpack.c.bf16 %v2572, %v2571
    %v2576 = vpack.c.bf16 %v2574, %v2573
    %v2577 = vld [vmem:[%s1] sm:$0x1]
    %2579 = vst [vmem:[#allocation1] ss:$9 sm:$0xff] %v2577
    %v2580 = vld [vmem:[#allocation1] sm:$0xff]
    %2582 = vrot.lane.b32.xlu0 %v2580, 118
    %v2583 = vpop.permute.xlu0 %2582
    %s2585 = vtos %v2583
    %v2586 = vstv %s2585
    %v2587 = vpack.i.b16 %v2586, %v2586
    %v2589 = vunpack.c.l.bf16 %v2587
    %v2590 = vmul.f32 %v2123, %v2589
    %v2591 = vmul.f32 %v2124, %v2589
    %v2592 = vmul.f32 %v2125, %v2589
    %v2593 = vmul.f32 %v2126, %v2589
    %v2594 = vpack.c.bf16 %v2591, %v2590
    %v2595 = vpack.c.bf16 %v2593, %v2592
    %v2596 = vunpack.c.l.bf16 %v2575
    %v2597 = vunpack.c.h.bf16 %v2575
    %v2598 = vunpack.c.l.bf16 %v2576
    %v2599 = vunpack.c.h.bf16 %v2576
    %v2600 = vunpack.c.l.bf16 %v2594
    %v2601 = vunpack.c.h.bf16 %v2594
    %v2602 = vunpack.c.l.bf16 %v2595
    %v2603 = vunpack.c.h.bf16 %v2595
    %2608 = vrot.lane.b32.xlu0 %v2600, 127
    %v2609 = vpop.permute.xlu0 %2608
    %2610 = vrot.lane.b32.xlu0 %v2601, 127
    %v2611 = vpop.permute.xlu0 %2610
    %2612 = vrot.lane.b32.xlu0 %v2602, 127
    %v2613 = vpop.permute.xlu0 %2612
    %2614 = vrot.lane.b32.xlu0 %v2603, 127
    %v2615 = vpop.permute.xlu0 %2614
    %v2616 = vsel %vm121, %v2609, %v2611
    %v2617 = vsel %vm121, %v2613, %v2615
    %v2622 = vadd.f32 %v2596, %v2616
    %v2623 = vadd.f32 %v2597, %v2611
    %v2624 = vadd.f32 %v2598, %v2617
    %v2625 = vadd.f32 %v2599, %v2615
    %v2626 = vpack.c.bf16 %v2623, %v2622
    %v2627 = vpack.c.bf16 %v2625, %v2624
    %v2628 = vld [vmem:[%s1] sm:$0x1]
    %2630 = vst [vmem:[#allocation1] ss:$9 sm:$0xff] %v2628
    %v2631 = vld [vmem:[#allocation1] sm:$0xff]
    %2633 = vrot.lane.b32.xlu0 %v2631, 117
    %v2634 = vpop.permute.xlu0 %2633
    %s2636 = vtos %v2634
    %v2637 = vstv %s2636
    %v2638 = vpack.i.b16 %v2637, %v2637
    %v2640 = vunpack.c.l.bf16 %v2638
    %v2641 = vmul.f32 %v2102, %v2640
    %v2642 = vmul.f32 %v2103, %v2640
    %v2643 = vmul.f32 %v2104, %v2640
    %v2644 = vmul.f32 %v2105, %v2640
    %v2645 = vpack.c.bf16 %v2642, %v2641
    %v2646 = vpack.c.bf16 %v2644, %v2643
    %v2647 = vunpack.c.l.bf16 %v2626
    %v2648 = vunpack.c.h.bf16 %v2626
    %v2649 = vunpack.c.l.bf16 %v2627
    %v2650 = vunpack.c.h.bf16 %v2627
    %v2651 = vunpack.c.l.bf16 %v2645
    %v2652 = vunpack.c.h.bf16 %v2645
    %v2653 = vunpack.c.l.bf16 %v2646
    %v2654 = vunpack.c.h.bf16 %v2646
    %2659 = vrot.lane.b32.xlu0 %v2651, 127
    %v2660 = vpop.permute.xlu0 %2659
    %2661 = vrot.lane.b32.xlu0 %v2652, 127
    %v2662 = vpop.permute.xlu0 %2661
    %2663 = vrot.lane.b32.xlu0 %v2653, 127
    %v2664 = vpop.permute.xlu0 %2663
    %2665 = vrot.lane.b32.xlu0 %v2654, 127
    %v2666 = vpop.permute.xlu0 %2665
    %v2667 = vsel %vm121, %v2660, %v2662
    %v2668 = vsel %vm121, %v2664, %v2666
    %v2673 = vadd.f32 %v2647, %v2667
    %v2674 = vadd.f32 %v2648, %v2662
    %v2675 = vadd.f32 %v2649, %v2668
    %v2676 = vadd.f32 %v2650, %v2666
    %v2677 = vpack.c.bf16 %v2674, %v2673
    %v2678 = vpack.c.bf16 %v2676, %v2675
    %v2679 = vld [vmem:[%s1] sm:$0x1]
    %2681 = vst [vmem:[#allocation1] ss:$9 sm:$0xff] %v2679
    %v2682 = vld [vmem:[#allocation1] sm:$0xff]
    %2684 = vrot.lane.b32.xlu0 %v2682, 116
    %v2685 = vpop.permute.xlu0 %2684
    %s2687 = vtos %v2685
    %v2688 = vstv %s2687
    %v2689 = vpack.i.b16 %v2688, %v2688
    %v2691 = vunpack.c.l.bf16 %v2689
    %v2692 = vmul.f32 %v2229, %v2691
    %v2693 = vmul.f32 %v2230, %v2691
    %v2694 = vmul.f32 %v2231, %v2691
    %v2695 = vmul.f32 %v2232, %v2691
    %v2696 = vpack.c.bf16 %v2693, %v2692
    %v2697 = vpack.c.bf16 %v2695, %v2694
    %v2698 = vunpack.c.l.bf16 %v2677
    %v2699 = vunpack.c.h.bf16 %v2677
    %v2700 = vunpack.c.l.bf16 %v2678
    %v2701 = vunpack.c.h.bf16 %v2678
    %v2702 = vunpack.c.l.bf16 %v2696
    %v2703 = vunpack.c.h.bf16 %v2696
    %v2704 = vunpack.c.l.bf16 %v2697
    %v2705 = vunpack.c.h.bf16 %v2697
    %v2706 = vadd.f32 %v2698, %v2702
    %v2707 = vadd.f32 %v2699, %v2703
    %v2708 = vadd.f32 %v2700, %v2704
    %v2709 = vadd.f32 %v2701, %v2705
    %v2710 = vpack.c.bf16 %v2707, %v2706
    %v2711 = vpack.c.bf16 %v2709, %v2708
    %v2712 = vld [vmem:[%s1] sm:$0x1]
    %2714 = vst [vmem:[#allocation1] ss:$9 sm:$0xff] %v2712
    %v2715 = vld [vmem:[#allocation1] sm:$0xff]
    %2717 = vrot.lane.b32.xlu0 %v2715, 115
    %v2718 = vpop.permute.xlu0 %2717
    %s2720 = vtos %v2718
    %v2721 = vstv %s2720
    %v2722 = vpack.i.b16 %v2721, %v2721
    %v2724 = vunpack.c.l.bf16 %v2722
    %v2725 = vmul.f32 %v2266, %v2724
    %v2726 = vmul.f32 %v2267, %v2724
    %v2727 = vmul.f32 %v2268, %v2724
    %v2728 = vmul.f32 %v2269, %v2724
    %v2729 = vpack.c.bf16 %v2726, %v2725
    %v2730 = vpack.c.bf16 %v2728, %v2727
    %v2731 = vunpack.c.l.bf16 %v2710
    %v2732 = vunpack.c.h.bf16 %v2710
    %v2733 = vunpack.c.l.bf16 %v2711
    %v2734 = vunpack.c.h.bf16 %v2711
    %v2735 = vunpack.c.l.bf16 %v2729
    %v2736 = vunpack.c.h.bf16 %v2729
    %v2737 = vunpack.c.l.bf16 %v2730
    %v2738 = vunpack.c.h.bf16 %v2730
    %2743 = vrot.lane.b32.xlu0 %v2735, 127
    %v2744 = vpop.permute.xlu0 %2743
    %2745 = vrot.lane.b32.xlu0 %v2736, 127
    %v2746 = vpop.permute.xlu0 %2745
    %2747 = vrot.lane.b32.xlu0 %v2737, 127
    %v2748 = vpop.permute.xlu0 %2747
    %2749 = vrot.lane.b32.xlu0 %v2738, 127
    %v2750 = vpop.permute.xlu0 %2749
    %v2751 = vsel %vm121, %v2744, %v2746
    %v2752 = vsel %vm121, %v2748, %v2750
    %v2757 = vadd.f32 %v2731, %v2751
    %v2758 = vadd.f32 %v2732, %v2746
    %v2759 = vadd.f32 %v2733, %v2752
    %v2760 = vadd.f32 %v2734, %v2750
    %v2761 = vpack.c.bf16 %v2758, %v2757
    %v2762 = vpack.c.bf16 %v2760, %v2759
    %v2763 = vld [vmem:[%s1] sm:$0x1]
    %2765 = vst [vmem:[#allocation1] ss:$9 sm:$0xff] %v2763
    %v2766 = vld [vmem:[#allocation1] sm:$0xff]
    %2768 = vrot.lane.b32.xlu0 %v2766, 114
    %v2769 = vpop.permute.xlu0 %2768
    %s2771 = vtos %v2769
    %v2772 = vstv %s2771
    %v2773 = vpack.i.b16 %v2772, %v2772
    %v2775 = vunpack.c.l.bf16 %v2773
    %v2776 = vmul.f32 %v2229, %v2775
    %v2777 = vmul.f32 %v2230, %v2775
    %v2778 = vmul.f32 %v2231, %v2775
    %v2779 = vmul.f32 %v2232, %v2775
    %v2780 = vpack.c.bf16 %v2777, %v2776
    %v2781 = vpack.c.bf16 %v2779, %v2778
    %v2782 = vunpack.c.l.bf16 %v2761
    %v2783 = vunpack.c.h.bf16 %v2761
    %v2784 = vunpack.c.l.bf16 %v2762
    %v2785 = vunpack.c.h.bf16 %v2762
    %v2786 = vunpack.c.l.bf16 %v2780
    %v2787 = vunpack.c.h.bf16 %v2780
    %v2788 = vunpack.c.l.bf16 %v2781
    %v2789 = vunpack.c.h.bf16 %v2781
    %2794 = vrot.lane.b32.xlu0 %v2786, 127
    %v2795 = vpop.permute.xlu0 %2794
    %2796 = vrot.lane.b32.xlu0 %v2787, 127
    %v2797 = vpop.permute.xlu0 %2796
    %2798 = vrot.lane.b32.xlu0 %v2788, 127
    %v2799 = vpop.permute.xlu0 %2798
    %2800 = vrot.lane.b32.xlu0 %v2789, 127
    %v2801 = vpop.permute.xlu0 %2800
    %v2802 = vsel %vm121, %v2795, %v2797
    %v2803 = vsel %vm121, %v2799, %v2801
    %v2808 = vadd.f32 %v2782, %v2802
    %v2809 = vadd.f32 %v2783, %v2797
    %v2810 = vadd.f32 %v2784, %v2803
    %v2811 = vadd.f32 %v2785, %v2801
    %v2812 = vpack.c.bf16 %v2809, %v2808
    %v2813 = vpack.c.bf16 %v2811, %v2810
    %v2814 = vld [vmem:[%s1] sm:$0x1]
    %2816 = vst [vmem:[#allocation1] ss:$9 sm:$0xff] %v2814
    %v2817 = vld [vmem:[#allocation1] sm:$0xff]
    %2819 = vrot.lane.b32.xlu0 %v2817, 113
    %v2820 = vpop.permute.xlu0 %2819
    %s2822 = vtos %v2820
    %v2823 = vstv %s2822
    %v2824 = vpack.i.b16 %v2823, %v2823
    %v2826 = vunpack.c.l.bf16 %v2824
    %v2827 = vmul.f32 %v2102, %v2826
    %v2828 = vmul.f32 %v2103, %v2826
    %v2829 = vmul.f32 %v2104, %v2826
    %v2830 = vmul.f32 %v2105, %v2826
    %v2831 = vpack.c.bf16 %v2828, %v2827
    %v2832 = vpack.c.bf16 %v2830, %v2829
    %v2833 = vunpack.c.l.bf16 %v2812
    %v2834 = vunpack.c.h.bf16 %v2812
    %v2835 = vunpack.c.l.bf16 %v2813
    %v2836 = vunpack.c.h.bf16 %v2813
    %v2837 = vunpack.c.l.bf16 %v2831
    %v2838 = vunpack.c.h.bf16 %v2831
    %v2839 = vunpack.c.l.bf16 %v2832
    %v2840 = vunpack.c.h.bf16 %v2832
    %2845 = vrot.lane.b32.xlu0 %v2837, 114
    %v2846 = vpop.permute.xlu0 %2845
    %2847 = vrot.lane.b32.xlu0 %v2838, 114
    %v2848 = vpop.permute.xlu0 %2847
    %2849 = vrot.lane.b32.xlu0 %v2839, 114
    %v2850 = vpop.permute.xlu0 %2849
    %2851 = vrot.lane.b32.xlu0 %v2840, 114
    %v2852 = vpop.permute.xlu0 %2851
    %v2853 = vsel %vm298, %v2846, %v2848
    %v2854 = vsel %vm298, %v2850, %v2852
    %v2859 = vadd.f32 %v2833, %v2853
    %v2860 = vadd.f32 %v2834, %v2848
    %v2861 = vadd.f32 %v2835, %v2854
    %v2862 = vadd.f32 %v2836, %v2852
    %v2863 = vpack.c.bf16 %v2860, %v2859
    %v2864 = vpack.c.bf16 %v2862, %v2861
    %v2865 = vld [vmem:[%s1] sm:$0x1]
    %2867 = vst [vmem:[#allocation1] ss:$9 sm:$0xff] %v2865
    %v2868 = vld [vmem:[#allocation1] sm:$0xff]
    %2870 = vrot.lane.b32.xlu0 %v2868, 112
    %v2871 = vpop.permute.xlu0 %2870
    %s2873 = vtos %v2871
    %v2874 = vstv %s2873
    %v2875 = vpack.i.b16 %v2874, %v2874
    %v2877 = vunpack.c.l.bf16 %v2875
    %v2878 = vmul.f32 %v2123, %v2877
    %v2879 = vmul.f32 %v2124, %v2877
    %v2880 = vmul.f32 %v2125, %v2877
    %v2881 = vmul.f32 %v2126, %v2877
    %v2882 = vpack.c.bf16 %v2879, %v2878
    %v2883 = vpack.c.bf16 %v2881, %v2880
    %v2884 = vunpack.c.l.bf16 %v2863
    %v2885 = vunpack.c.h.bf16 %v2863
    %v2886 = vunpack.c.l.bf16 %v2864
    %v2887 = vunpack.c.h.bf16 %v2864
    %v2888 = vunpack.c.l.bf16 %v2882
    %v2889 = vunpack.c.h.bf16 %v2882
    %v2890 = vunpack.c.l.bf16 %v2883
    %v2891 = vunpack.c.h.bf16 %v2883
    %2896 = vrot.lane.b32.xlu0 %v2888, 113
    %v2897 = vpop.permute.xlu0 %2896
    %2898 = vrot.lane.b32.xlu0 %v2889, 113
    %v2899 = vpop.permute.xlu0 %2898
    %2900 = vrot.lane.b32.xlu0 %v2890, 113
    %v2901 = vpop.permute.xlu0 %2900
    %2902 = vrot.lane.b32.xlu0 %v2891, 113
    %v2903 = vpop.permute.xlu0 %2902
    %v2904 = vsel %vm401, %v2897, %v2899
    %v2905 = vsel %vm401, %v2901, %v2903
    %v2910 = vadd.f32 %v2884, %v2904
    %v2911 = vadd.f32 %v2885, %v2899
    %v2912 = vadd.f32 %v2886, %v2905
    %v2913 = vadd.f32 %v2887, %v2903
    %v2914 = vpack.c.bf16 %v2911, %v2910
    %v2915 = vpack.c.bf16 %v2913, %v2912
    %v2916 = vld [vmem:[%s1] sm:$0x1]
    %2918 = vst [vmem:[#allocation1] ss:$9 sm:$0xff] %v2916
    %v2919 = vld [vmem:[#allocation1] sm:$0xff]
    %2921 = vrot.lane.b32.xlu0 %v2919, 111
    %v2922 = vpop.permute.xlu0 %2921
    %s2924 = vtos %v2922
    %v2925 = vstv %s2924
    %v2926 = vpack.i.b16 %v2925, %v2925
    %v2928 = vunpack.c.l.bf16 %v2926
    %v2929 = vmul.f32 %v2102, %v2928
    %v2930 = vmul.f32 %v2103, %v2928
    %v2931 = vmul.f32 %v2104, %v2928
    %v2932 = vmul.f32 %v2105, %v2928
    %v2933 = vpack.c.bf16 %v2930, %v2929
    %v2934 = vpack.c.bf16 %v2932, %v2931
    %v2935 = vunpack.c.l.bf16 %v2914
    %v2936 = vunpack.c.h.bf16 %v2914
    %v2937 = vunpack.c.l.bf16 %v2915
    %v2938 = vunpack.c.h.bf16 %v2915
    %v2939 = vunpack.c.l.bf16 %v2933
    %v2940 = vunpack.c.h.bf16 %v2933
    %v2941 = vunpack.c.l.bf16 %v2934
    %v2942 = vunpack.c.h.bf16 %v2934
    %2947 = vrot.lane.b32.xlu0 %v2939, 113
    %v2948 = vpop.permute.xlu0 %2947
    %2949 = vrot.lane.b32.xlu0 %v2940, 113
    %v2950 = vpop.permute.xlu0 %2949
    %2951 = vrot.lane.b32.xlu0 %v2941, 113
    %v2952 = vpop.permute.xlu0 %2951
    %2953 = vrot.lane.b32.xlu0 %v2942, 113
    %v2954 = vpop.permute.xlu0 %2953
    %v2955 = vsel %vm401, %v2948, %v2950
    %v2956 = vsel %vm401, %v2952, %v2954
    %v2961 = vadd.f32 %v2935, %v2955
    %v2962 = vadd.f32 %v2936, %v2950
    %v2963 = vadd.f32 %v2937, %v2956
    %v2964 = vadd.f32 %v2938, %v2954
    %v2965 = vpack.c.bf16 %v2962, %v2961
    %v2966 = vpack.c.bf16 %v2964, %v2963
    %v2967 = vld [vmem:[%s2] sm:$0x1]
    %2969 = vst [vmem:[#allocation1] ss:$9 sm:$0xff] %v2967
    %v2970 = vld [vmem:[#allocation1] sm:$0xff]
    %2972 = vrot.lane.b32.xlu0 %v2970, 127
    %v2973 = vpop.permute.xlu0 %2972
    %s2975 = vtos %v2973
    %v2976 = vstv %s2975
    %v2977 = vpack.i.b16 %v2976, %v2976
    %v2979 = vunpack.c.l.bf16 %v2965
    %v2980 = vunpack.c.h.bf16 %v2965
    %v2981 = vunpack.c.l.bf16 %v2966
    %v2982 = vunpack.c.h.bf16 %v2966
    %v2983 = vunpack.c.l.bf16 %v2977
    %v2984 = vadd.f32 %v2979, %v2983
    %v2985 = vadd.f32 %v2980, %v2983
    %v2986 = vadd.f32 %v2981, %v2983
    %v2987 = vadd.f32 %v2982, %v2983
    %v2988 = vpack.c.bf16 %v2985, %v2984
    %v2989 = vpack.c.bf16 %v2987, %v2986
    %v2990 = vunpack.c.l.bf16 %v2988
    %v2991 = vunpack.c.h.bf16 %v2988
    %v2992 = vunpack.c.l.bf16 %v2989
    %v2993 = vunpack.c.h.bf16 %v2989
    %v2994 = vmax.f32 %v2990, 0.0
    %v2995 = vmax.f32 %v2991, 0.0
    %v2996 = vmax.f32 %v2992, 0.0
    %v2997 = vmax.f32 %v2993, 0.0
    %v2998 = vpack.c.bf16 %v2995, %v2994
    %v2999 = vpack.c.bf16 %v2997, %v2996
    %v3000 = vld [vmem:[#allocation2 + $0x8] sm:$0xff]
    %v3001 = vld [vmem:[#allocation2 + $0x30] sm:$0xff]
    %v3002 = vunpack.c.l.bf16 %v3000
    %v3003 = vunpack.c.h.bf16 %v3000
    %v3004 = vunpack.c.l.bf16 %v3001
    %v3005 = vunpack.c.h.bf16 %v3001
    %v3006 = vunpack.c.l.bf16 %v2998
    %v3007 = vunpack.c.h.bf16 %v2998
    %v3008 = vunpack.c.l.bf16 %v2999
    %v3009 = vunpack.c.h.bf16 %v2999
    %v3010 = vmax.f32 %v3002, %v3006
    %v3011 = vmax.f32 %v3003, %v3007
    %v3012 = vmax.f32 %v3004, %v3008
    %v3013 = vmax.f32 %v3005, %v3009
    %v3014 = vpack.c.bf16 %v3011, %v3010
    %v3015 = vpack.c.bf16 %v3013, %v3012
    %3016 = vst.msk [vmem:[#allocation2 + $0x8] sm:$0xff] %vm445, %v3014
    %3017 = vst.msk [vmem:[#allocation2 + $0x30] sm:$0xff] %vm445, %v3015
    %v3018 = vld [vmem:[%s1] sm:$0x1]
    %3020 = vst [vmem:[#allocation1] ss:$9 sm:$0xff] %v3018
    %v3021 = vld [vmem:[#allocation1] sm:$0xff]
    %3023 = vrot.lane.b32.xlu0 %v3021, 110
    %v3024 = vpop.permute.xlu0 %3023
    %s3026 = vtos %v3024
    %v3027 = vstv %s3026
    %v3028 = vpack.i.b16 %v3027, %v3027
    %v3030 = vunpack.c.l.bf16 %v3028
    %v3031 = vmul.f32 %v2102, %v3030
    %v3032 = vmul.f32 %v2103, %v3030
    %v3033 = vmul.f32 %v2104, %v3030
    %v3034 = vmul.f32 %v2105, %v3030
    %v3035 = vpack.c.bf16 %v3032, %v3031
    %v3036 = vpack.c.bf16 %v3034, %v3033
    %v3037 = vld [vmem:[%s1] sm:$0x1]
    %3039 = vst [vmem:[#allocation1] ss:$9 sm:$0xff] %v3037
    %v3040 = vld [vmem:[#allocation1] sm:$0xff]
    %3042 = vrot.lane.b32.xlu0 %v3040, 109
    %v3043 = vpop.permute.xlu0 %3042
    %s3045 = vtos %v3043
    %v3046 = vstv %s3045
    %v3047 = vpack.i.b16 %v3046, %v3046
    %v3049 = vunpack.c.l.bf16 %v3047
    %v3050 = vmul.f32 %v2123, %v3049
    %v3051 = vmul.f32 %v2124, %v3049
    %v3052 = vmul.f32 %v2125, %v3049
    %v3053 = vmul.f32 %v2126, %v3049
    %v3054 = vpack.c.bf16 %v3051, %v3050
    %v3055 = vpack.c.bf16 %v3053, %v3052
    %v3056 = vunpack.c.l.bf16 %v3035
    %v3057 = vunpack.c.h.bf16 %v3035
    %v3058 = vunpack.c.l.bf16 %v3036
    %v3059 = vunpack.c.h.bf16 %v3036
    %v3060 = vunpack.c.l.bf16 %v3054
    %v3061 = vunpack.c.h.bf16 %v3054
    %v3062 = vunpack.c.l.bf16 %v3055
    %v3063 = vunpack.c.h.bf16 %v3055
    %3068 = vrot.lane.b32.xlu0 %v3060, 127
    %v3069 = vpop.permute.xlu0 %3068
    %3070 = vrot.lane.b32.xlu0 %v3061, 127
    %v3071 = vpop.permute.xlu0 %3070
    %3072 = vrot.lane.b32.xlu0 %v3062, 127
    %v3073 = vpop.permute.xlu0 %3072
    %3074 = vrot.lane.b32.xlu0 %v3063, 127
    %v3075 = vpop.permute.xlu0 %3074
    %v3076 = vsel %vm121, %v3069, %v3071
    %v3077 = vsel %vm121, %v3073, %v3075
    %v3082 = vadd.f32 %v3056, %v3076
    %v3083 = vadd.f32 %v3057, %v3071
    %v3084 = vadd.f32 %v3058, %v3077
    %v3085 = vadd.f32 %v3059, %v3075
    %v3086 = vpack.c.bf16 %v3083, %v3082
    %v3087 = vpack.c.bf16 %v3085, %v3084
    %v3088 = vld [vmem:[%s1] sm:$0x1]
    %3090 = vst [vmem:[#allocation1] ss:$9 sm:$0xff] %v3088
    %v3091 = vld [vmem:[#allocation1] sm:$0xff]
    %3093 = vrot.lane.b32.xlu0 %v3091, 108
    %v3094 = vpop.permute.xlu0 %3093
    %s3096 = vtos %v3094
    %v3097 = vstv %s3096
    %v3098 = vpack.i.b16 %v3097, %v3097
    %v3100 = vunpack.c.l.bf16 %v3098
    %v3101 = vmul.f32 %v2102, %v3100
    %v3102 = vmul.f32 %v2103, %v3100
    %v3103 = vmul.f32 %v2104, %v3100
    %v3104 = vmul.f32 %v2105, %v3100
    %v3105 = vpack.c.bf16 %v3102, %v3101
    %v3106 = vpack.c.bf16 %v3104, %v3103
    %v3107 = vunpack.c.l.bf16 %v3086
    %v3108 = vunpack.c.h.bf16 %v3086
    %v3109 = vunpack.c.l.bf16 %v3087
    %v3110 = vunpack.c.h.bf16 %v3087
    %v3111 = vunpack.c.l.bf16 %v3105
    %v3112 = vunpack.c.h.bf16 %v3105
    %v3113 = vunpack.c.l.bf16 %v3106
    %v3114 = vunpack.c.h.bf16 %v3106
    %3119 = vrot.lane.b32.xlu0 %v3111, 127
    %v3120 = vpop.permute.xlu0 %3119
    %3121 = vrot.lane.b32.xlu0 %v3112, 127
    %v3122 = vpop.permute.xlu0 %3121
    %3123 = vrot.lane.b32.xlu0 %v3113, 127
    %v3124 = vpop.permute.xlu0 %3123
    %3125 = vrot.lane.b32.xlu0 %v3114, 127
    %v3126 = vpop.permute.xlu0 %3125
    %v3127 = vsel %vm121, %v3120, %v3122
    %v3128 = vsel %vm121, %v3124, %v3126
    %v3133 = vadd.f32 %v3107, %v3127
    %v3134 = vadd.f32 %v3108, %v3122
    %v3135 = vadd.f32 %v3109, %v3128
    %v3136 = vadd.f32 %v3110, %v3126
    %v3137 = vpack.c.bf16 %v3134, %v3133
    %v3138 = vpack.c.bf16 %v3136, %v3135
    %v3139 = vld [vmem:[%s1] sm:$0x1]
    %3141 = vst [vmem:[#allocation1] ss:$9 sm:$0xff] %v3139
    %v3142 = vld [vmem:[#allocation1] sm:$0xff]
    %3144 = vrot.lane.b32.xlu0 %v3142, 107
    %v3145 = vpop.permute.xlu0 %3144
    %s3147 = vtos %v3145
    %v3148 = vstv %s3147
    %v3149 = vpack.i.b16 %v3148, %v3148
    %v3151 = vunpack.c.l.bf16 %v3149
    %v3152 = vmul.f32 %v2229, %v3151
    %v3153 = vmul.f32 %v2230, %v3151
    %v3154 = vmul.f32 %v2231, %v3151
    %v3155 = vmul.f32 %v2232, %v3151
    %v3156 = vpack.c.bf16 %v3153, %v3152
    %v3157 = vpack.c.bf16 %v3155, %v3154
    %v3158 = vunpack.c.l.bf16 %v3137
    %v3159 = vunpack.c.h.bf16 %v3137
    %v3160 = vunpack.c.l.bf16 %v3138
    %v3161 = vunpack.c.h.bf16 %v3138
    %v3162 = vunpack.c.l.bf16 %v3156
    %v3163 = vunpack.c.h.bf16 %v3156
    %v3164 = vunpack.c.l.bf16 %v3157
    %v3165 = vunpack.c.h.bf16 %v3157
    %v3166 = vadd.f32 %v3158, %v3162
    %v3167 = vadd.f32 %v3159, %v3163
    %v3168 = vadd.f32 %v3160, %v3164
    %v3169 = vadd.f32 %v3161, %v3165
    %v3170 = vpack.c.bf16 %v3167, %v3166
    %v3171 = vpack.c.bf16 %v3169, %v3168
    %v3172 = vld [vmem:[%s1] sm:$0x1]
    %3174 = vst [vmem:[#allocation1] ss:$9 sm:$0xff] %v3172
    %v3175 = vld [vmem:[#allocation1] sm:$0xff]
    %3177 = vrot.lane.b32.xlu0 %v3175, 106
    %v3178 = vpop.permute.xlu0 %3177
    %s3180 = vtos %v3178
    %v3181 = vstv %s3180
    %v3182 = vpack.i.b16 %v3181, %v3181
    %v3184 = vunpack.c.l.bf16 %v3182
    %v3185 = vmul.f32 %v2266, %v3184
    %v3186 = vmul.f32 %v2267, %v3184
    %v3187 = vmul.f32 %v2268, %v3184
    %v3188 = vmul.f32 %v2269, %v3184
    %v3189 = vpack.c.bf16 %v3186, %v3185
    %v3190 = vpack.c.bf16 %v3188, %v3187
    %v3191 = vunpack.c.l.bf16 %v3170
    %v3192 = vunpack.c.h.bf16 %v3170
    %v3193 = vunpack.c.l.bf16 %v3171
    %v3194 = vunpack.c.h.bf16 %v3171
    %v3195 = vunpack.c.l.bf16 %v3189
    %v3196 = vunpack.c.h.bf16 %v3189
    %v3197 = vunpack.c.l.bf16 %v3190
    %v3198 = vunpack.c.h.bf16 %v3190
    %3203 = vrot.lane.b32.xlu0 %v3195, 127
    %v3204 = vpop.permute.xlu0 %3203
    %3205 = vrot.lane.b32.xlu0 %v3196, 127
    %v3206 = vpop.permute.xlu0 %3205
    %3207 = vrot.lane.b32.xlu0 %v3197, 127
    %v3208 = vpop.permute.xlu0 %3207
    %3209 = vrot.lane.b32.xlu0 %v3198, 127
    %v3210 = vpop.permute.xlu0 %3209
    %v3211 = vsel %vm121, %v3204, %v3206
    %v3212 = vsel %vm121, %v3208, %v3210
    %v3217 = vadd.f32 %v3191, %v3211
    %v3218 = vadd.f32 %v3192, %v3206
    %v3219 = vadd.f32 %v3193, %v3212
    %v3220 = vadd.f32 %v3194, %v3210
    %v3221 = vpack.c.bf16 %v3218, %v3217
    %v3222 = vpack.c.bf16 %v3220, %v3219
    %v3223 = vld [vmem:[%s1] sm:$0x1]
    %3225 = vst [vmem:[#allocation1] ss:$9 sm:$0xff] %v3223
    %v3226 = vld [vmem:[#allocation1] sm:$0xff]
    %3228 = vrot.lane.b32.xlu0 %v3226, 105
    %v3229 = vpop.permute.xlu0 %3228
    %s3231 = vtos %v3229
    %v3232 = vstv %s3231
    %v3233 = vpack.i.b16 %v3232, %v3232
    %v3235 = vunpack.c.l.bf16 %v3233
    %v3236 = vmul.f32 %v2229, %v3235
    %v3237 = vmul.f32 %v2230, %v3235
    %v3238 = vmul.f32 %v2231, %v3235
    %v3239 = vmul.f32 %v2232, %v3235
    %v3240 = vpack.c.bf16 %v3237, %v3236
    %v3241 = vpack.c.bf16 %v3239, %v3238
    %v3242 = vunpack.c.l.bf16 %v3221
    %v3243 = vunpack.c.h.bf16 %v3221
    %v3244 = vunpack.c.l.bf16 %v3222
    %v3245 = vunpack.c.h.bf16 %v3222
    %v3246 = vunpack.c.l.bf16 %v3240
    %v3247 = vunpack.c.h.bf16 %v3240
    %v3248 = vunpack.c.l.bf16 %v3241
    %v3249 = vunpack.c.h.bf16 %v3241
    %3254 = vrot.lane.b32.xlu0 %v3246, 127
    %v3255 = vpop.permute.xlu0 %3254
    %3256 = vrot.lane.b32.xlu0 %v3247, 127
    %v3257 = vpop.permute.xlu0 %3256
    %3258 = vrot.lane.b32.xlu0 %v3248, 127
    %v3259 = vpop.permute.xlu0 %3258
    %3260 = vrot.lane.b32.xlu0 %v3249, 127
    %v3261 = vpop.permute.xlu0 %3260
    %v3262 = vsel %vm121, %v3255, %v3257
    %v3263 = vsel %vm121, %v3259, %v3261
    %v3268 = vadd.f32 %v3242, %v3262
    %v3269 = vadd.f32 %v3243, %v3257
    %v3270 = vadd.f32 %v3244, %v3263
    %v3271 = vadd.f32 %v3245, %v3261
    %v3272 = vpack.c.bf16 %v3269, %v3268
    %v3273 = vpack.c.bf16 %v3271, %v3270
    %v3274 = vld [vmem:[%s1] sm:$0x1]
    %3276 = vst [vmem:[#allocation1] ss:$9 sm:$0xff] %v3274
    %v3277 = vld [vmem:[#allocation1] sm:$0xff]
    %3279 = vrot.lane.b32.xlu0 %v3277, 104
    %v3280 = vpop.permute.xlu0 %3279
    %s3282 = vtos %v3280
    %v3283 = vstv %s3282
    %v3284 = vpack.i.b16 %v3283, %v3283
    %v3286 = vunpack.c.l.bf16 %v3284
    %v3287 = vmul.f32 %v2102, %v3286
    %v3288 = vmul.f32 %v2103, %v3286
    %v3289 = vmul.f32 %v2104, %v3286
    %v3290 = vmul.f32 %v2105, %v3286
    %v3291 = vpack.c.bf16 %v3288, %v3287
    %v3292 = vpack.c.bf16 %v3290, %v3289
    %v3293 = vunpack.c.l.bf16 %v3272
    %v3294 = vunpack.c.h.bf16 %v3272
    %v3295 = vunpack.c.l.bf16 %v3273
    %v3296 = vunpack.c.h.bf16 %v3273
    %v3297 = vunpack.c.l.bf16 %v3291
    %v3298 = vunpack.c.h.bf16 %v3291
    %v3299 = vunpack.c.l.bf16 %v3292
    %v3300 = vunpack.c.h.bf16 %v3292
    %3305 = vrot.lane.b32.xlu0 %v3297, 114
    %v3306 = vpop.permute.xlu0 %3305
    %3307 = vrot.lane.b32.xlu0 %v3298, 114
    %v3308 = vpop.permute.xlu0 %3307
    %3309 = vrot.lane.b32.xlu0 %v3299, 114
    %v3310 = vpop.permute.xlu0 %3309
    %3311 = vrot.lane.b32.xlu0 %v3300, 114
    %v3312 = vpop.permute.xlu0 %3311
    %v3313 = vsel %vm298, %v3306, %v3308
    %v3314 = vsel %vm298, %v3310, %v3312
    %v3319 = vadd.f32 %v3293, %v3313
    %v3320 = vadd.f32 %v3294, %v3308
    %v3321 = vadd.f32 %v3295, %v3314
    %v3322 = vadd.f32 %v3296, %v3312
    %v3323 = vpack.c.bf16 %v3320, %v3319
    %v3324 = vpack.c.bf16 %v3322, %v3321
    %v3325 = vld [vmem:[%s1] sm:$0x1]
    %3327 = vst [vmem:[#allocation1] ss:$9 sm:$0xff] %v3325
    %v3328 = vld [vmem:[#allocation1] sm:$0xff]
    %3330 = vrot.lane.b32.xlu0 %v3328, 103
    %v3331 = vpop.permute.xlu0 %3330
    %s3333 = vtos %v3331
    %v3334 = vstv %s3333
    %v3335 = vpack.i.b16 %v3334, %v3334
    %v3337 = vunpack.c.l.bf16 %v3335
    %v3338 = vmul.f32 %v2123, %v3337
    %v3339 = vmul.f32 %v2124, %v3337
    %v3340 = vmul.f32 %v2125, %v3337
    %v3341 = vmul.f32 %v2126, %v3337
    %v3342 = vpack.c.bf16 %v3339, %v3338
    %v3343 = vpack.c.bf16 %v3341, %v3340
    %v3344 = vunpack.c.l.bf16 %v3323
    %v3345 = vunpack.c.h.bf16 %v3323
    %v3346 = vunpack.c.l.bf16 %v3324
    %v3347 = vunpack.c.h.bf16 %v3324
    %v3348 = vunpack.c.l.bf16 %v3342
    %v3349 = vunpack.c.h.bf16 %v3342
    %v3350 = vunpack.c.l.bf16 %v3343
    %v3351 = vunpack.c.h.bf16 %v3343
    %3356 = vrot.lane.b32.xlu0 %v3348, 113
    %v3357 = vpop.permute.xlu0 %3356
    %3358 = vrot.lane.b32.xlu0 %v3349, 113
    %v3359 = vpop.permute.xlu0 %3358
    %3360 = vrot.lane.b32.xlu0 %v3350, 113
    %v3361 = vpop.permute.xlu0 %3360
    %3362 = vrot.lane.b32.xlu0 %v3351, 113
    %v3363 = vpop.permute.xlu0 %3362
    %v3364 = vsel %vm401, %v3357, %v3359
    %v3365 = vsel %vm401, %v3361, %v3363
    %v3370 = vadd.f32 %v3344, %v3364
    %v3371 = vadd.f32 %v3345, %v3359
    %v3372 = vadd.f32 %v3346, %v3365
    %v3373 = vadd.f32 %v3347, %v3363
    %v3374 = vpack.c.bf16 %v3371, %v3370
    %v3375 = vpack.c.bf16 %v3373, %v3372
    %v3376 = vld [vmem:[%s1] sm:$0x1]
    %3378 = vst [vmem:[#allocation1] ss:$9 sm:$0xff] %v3376
    %v3379 = vld [vmem:[#allocation1] sm:$0xff]
    %3381 = vrot.lane.b32.xlu0 %v3379, 102
    %v3382 = vpop.permute.xlu0 %3381
    %s3384 = vtos %v3382
    %v3385 = vstv %s3384
    %v3386 = vpack.i.b16 %v3385, %v3385
    %v3388 = vunpack.c.l.bf16 %v3386
    %v3389 = vmul.f32 %v2102, %v3388
    %v3390 = vmul.f32 %v2103, %v3388
    %v3391 = vmul.f32 %v2104, %v3388
    %v3392 = vmul.f32 %v2105, %v3388
    %v3393 = vpack.c.bf16 %v3390, %v3389
    %v3394 = vpack.c.bf16 %v3392, %v3391
    %v3395 = vunpack.c.l.bf16 %v3374
    %v3396 = vunpack.c.h.bf16 %v3374
    %v3397 = vunpack.c.l.bf16 %v3375
    %v3398 = vunpack.c.h.bf16 %v3375
    %v3399 = vunpack.c.l.bf16 %v3393
    %v3400 = vunpack.c.h.bf16 %v3393
    %v3401 = vunpack.c.l.bf16 %v3394
    %v3402 = vunpack.c.h.bf16 %v3394
    %3407 = vrot.lane.b32.xlu0 %v3399, 113
    %v3408 = vpop.permute.xlu0 %3407
    %3409 = vrot.lane.b32.xlu0 %v3400, 113
    %v3410 = vpop.permute.xlu0 %3409
    %3411 = vrot.lane.b32.xlu0 %v3401, 113
    %v3412 = vpop.permute.xlu0 %3411
    %3413 = vrot.lane.b32.xlu0 %v3402, 113
    %v3414 = vpop.permute.xlu0 %3413
    %v3415 = vsel %vm401, %v3408, %v3410
    %v3416 = vsel %vm401, %v3412, %v3414
    %v3421 = vadd.f32 %v3395, %v3415
    %v3422 = vadd.f32 %v3396, %v3410
    %v3423 = vadd.f32 %v3397, %v3416
    %v3424 = vadd.f32 %v3398, %v3414
    %v3425 = vpack.c.bf16 %v3422, %v3421
    %v3426 = vpack.c.bf16 %v3424, %v3423
    %v3427 = vld [vmem:[%s2] sm:$0x1]
    %3429 = vst [vmem:[#allocation1] ss:$9 sm:$0xff] %v3427
    %v3430 = vld [vmem:[#allocation1] sm:$0xff]
    %3432 = vrot.lane.b32.xlu0 %v3430, 126
    %v3433 = vpop.permute.xlu0 %3432
    %s3435 = vtos %v3433
    %v3436 = vstv %s3435
    %v3437 = vpack.i.b16 %v3436, %v3436
    %v3439 = vunpack.c.l.bf16 %v3425
    %v3440 = vunpack.c.h.bf16 %v3425
    %v3441 = vunpack.c.l.bf16 %v3426
    %v3442 = vunpack.c.h.bf16 %v3426
    %v3443 = vunpack.c.l.bf16 %v3437
    %v3444 = vadd.f32 %v3439, %v3443
    %v3445 = vadd.f32 %v3440, %v3443
    %v3446 = vadd.f32 %v3441, %v3443
    %v3447 = vadd.f32 %v3442, %v3443
    %v3448 = vpack.c.bf16 %v3445, %v3444
    %v3449 = vpack.c.bf16 %v3447, %v3446
    %v3450 = vunpack.c.l.bf16 %v3448
    %v3451 = vunpack.c.h.bf16 %v3448
    %v3452 = vunpack.c.l.bf16 %v3449
    %v3453 = vunpack.c.h.bf16 %v3449
    %v3454 = vmax.f32 %v3450, 0.0
    %v3455 = vmax.f32 %v3451, 0.0
    %v3456 = vmax.f32 %v3452, 0.0
    %v3457 = vmax.f32 %v3453, 0.0
    %v3458 = vpack.c.bf16 %v3455, %v3454
    %v3459 = vpack.c.bf16 %v3457, %v3456
    %v3460 = vld [vmem:[#allocation2 + $0x10] sm:$0xff]
    %v3461 = vld [vmem:[#allocation2 + $0x38] sm:$0xff]
    %v3462 = vunpack.c.l.bf16 %v3460
    %v3463 = vunpack.c.h.bf16 %v3460
    %v3464 = vunpack.c.l.bf16 %v3461
    %v3465 = vunpack.c.h.bf16 %v3461
    %v3466 = vunpack.c.l.bf16 %v3458
    %v3467 = vunpack.c.h.bf16 %v3458
    %v3468 = vunpack.c.l.bf16 %v3459
    %v3469 = vunpack.c.h.bf16 %v3459
    %v3470 = vmax.f32 %v3462, %v3466
    %v3471 = vmax.f32 %v3463, %v3467
    %v3472 = vmax.f32 %v3464, %v3468
    %v3473 = vmax.f32 %v3465, %v3469
    %v3474 = vpack.c.bf16 %v3471, %v3470
    %v3475 = vpack.c.bf16 %v3473, %v3472
    %3476 = vst.msk [vmem:[#allocation2 + $0x10] sm:$0xff] %vm445, %v3474
    %3477 = vst.msk [vmem:[#allocation2 + $0x38] sm:$0xff] %vm445, %v3475
    %v3478 = vld [vmem:[%s1] sm:$0x1]
    %3480 = vst [vmem:[#allocation1] ss:$9 sm:$0xff] %v3478
    %v3481 = vld [vmem:[#allocation1] sm:$0xff]
    %3483 = vrot.lane.b32.xlu0 %v3481, 101
    %v3484 = vpop.permute.xlu0 %3483
    %s3486 = vtos %v3484
    %v3487 = vstv %s3486
    %v3488 = vpack.i.b16 %v3487, %v3487
    %v3490 = vunpack.c.l.bf16 %v3488
    %v3491 = vmul.f32 %v2102, %v3490
    %v3492 = vmul.f32 %v2103, %v3490
    %v3493 = vmul.f32 %v2104, %v3490
    %v3494 = vmul.f32 %v2105, %v3490
    %v3495 = vpack.c.bf16 %v3492, %v3491
    %v3496 = vpack.c.bf16 %v3494, %v3493
    %v3497 = vld [vmem:[%s1] sm:$0x1]
    %3499 = vst [vmem:[#allocation1] ss:$9 sm:$0xff] %v3497
    %v3500 = vld [vmem:[#allocation1] sm:$0xff]
    %3502 = vrot.lane.b32.xlu0 %v3500, 100
    %v3503 = vpop.permute.xlu0 %3502
    %s3505 = vtos %v3503
    %v3506 = vstv %s3505
    %v3507 = vpack.i.b16 %v3506, %v3506
    %v3509 = vunpack.c.l.bf16 %v3507
    %v3510 = vmul.f32 %v2123, %v3509
    %v3511 = vmul.f32 %v2124, %v3509
    %v3512 = vmul.f32 %v2125, %v3509
    %v3513 = vmul.f32 %v2126, %v3509
    %v3514 = vpack.c.bf16 %v3511, %v3510
    %v3515 = vpack.c.bf16 %v3513, %v3512
    %v3516 = vunpack.c.l.bf16 %v3495
    %v3517 = vunpack.c.h.bf16 %v3495
    %v3518 = vunpack.c.l.bf16 %v3496
    %v3519 = vunpack.c.h.bf16 %v3496
    %v3520 = vunpack.c.l.bf16 %v3514
    %v3521 = vunpack.c.h.bf16 %v3514
    %v3522 = vunpack.c.l.bf16 %v3515
    %v3523 = vunpack.c.h.bf16 %v3515
    %3528 = vrot.lane.b32.xlu0 %v3520, 127
    %v3529 = vpop.permute.xlu0 %3528
    %3530 = vrot.lane.b32.xlu0 %v3521, 127
    %v3531 = vpop.permute.xlu0 %3530
    %3532 = vrot.lane.b32.xlu0 %v3522, 127
    %v3533 = vpop.permute.xlu0 %3532
    %3534 = vrot.lane.b32.xlu0 %v3523, 127
    %v3535 = vpop.permute.xlu0 %3534
    %v3536 = vsel %vm121, %v3529, %v3531
    %v3537 = vsel %vm121, %v3533, %v3535
    %v3542 = vadd.f32 %v3516, %v3536
    %v3543 = vadd.f32 %v3517, %v3531
    %v3544 = vadd.f32 %v3518, %v3537
    %v3545 = vadd.f32 %v3519, %v3535
    %v3546 = vpack.c.bf16 %v3543, %v3542
    %v3547 = vpack.c.bf16 %v3545, %v3544
    %v3548 = vld [vmem:[%s1] sm:$0x1]
    %3550 = vst [vmem:[#allocation1] ss:$9 sm:$0xff] %v3548
    %v3551 = vld [vmem:[#allocation1] sm:$0xff]
    %3553 = vrot.lane.b32.xlu0 %v3551, 99
    %v3554 = vpop.permute.xlu0 %3553
    %s3556 = vtos %v3554
    %v3557 = vstv %s3556
    %v3558 = vpack.i.b16 %v3557, %v3557
    %v3560 = vunpack.c.l.bf16 %v3558
    %v3561 = vmul.f32 %v2102, %v3560
    %v3562 = vmul.f32 %v2103, %v3560
    %v3563 = vmul.f32 %v2104, %v3560
    %v3564 = vmul.f32 %v2105, %v3560
    %v3565 = vpack.c.bf16 %v3562, %v3561
    %v3566 = vpack.c.bf16 %v3564, %v3563
    %v3567 = vunpack.c.l.bf16 %v3546
    %v3568 = vunpack.c.h.bf16 %v3546
    %v3569 = vunpack.c.l.bf16 %v3547
    %v3570 = vunpack.c.h.bf16 %v3547
    %v3571 = vunpack.c.l.bf16 %v3565
    %v3572 = vunpack.c.h.bf16 %v3565
    %v3573 = vunpack.c.l.bf16 %v3566
    %v3574 = vunpack.c.h.bf16 %v3566
    %3579 = vrot.lane.b32.xlu0 %v3571, 127
    %v3580 = vpop.permute.xlu0 %3579
    %3581 = vrot.lane.b32.xlu0 %v3572, 127
    %v3582 = vpop.permute.xlu0 %3581
    %3583 = vrot.lane.b32.xlu0 %v3573, 127
    %v3584 = vpop.permute.xlu0 %3583
    %3585 = vrot.lane.b32.xlu0 %v3574, 127
    %v3586 = vpop.permute.xlu0 %3585
    %v3587 = vsel %vm121, %v3580, %v3582
    %v3588 = vsel %vm121, %v3584, %v3586
    %v3593 = vadd.f32 %v3567, %v3587
    %v3594 = vadd.f32 %v3568, %v3582
    %v3595 = vadd.f32 %v3569, %v3588
    %v3596 = vadd.f32 %v3570, %v3586
    %v3597 = vpack.c.bf16 %v3594, %v3593
    %v3598 = vpack.c.bf16 %v3596, %v3595
    %v3599 = vld [vmem:[%s1] sm:$0x1]
    %3601 = vst [vmem:[#allocation1] ss:$9 sm:$0xff] %v3599
    %v3602 = vld [vmem:[#allocation1] sm:$0xff]
    %3604 = vrot.lane.b32.xlu0 %v3602, 98
    %v3605 = vpop.permute.xlu0 %3604
    %s3607 = vtos %v3605
    %v3608 = vstv %s3607
    %v3609 = vpack.i.b16 %v3608, %v3608
    %v3611 = vunpack.c.l.bf16 %v3609
    %v3612 = vmul.f32 %v2229, %v3611
    %v3613 = vmul.f32 %v2230, %v3611
    %v3614 = vmul.f32 %v2231, %v3611
    %v3615 = vmul.f32 %v2232, %v3611
    %v3616 = vpack.c.bf16 %v3613, %v3612
    %v3617 = vpack.c.bf16 %v3615, %v3614
    %v3618 = vunpack.c.l.bf16 %v3597
    %v3619 = vunpack.c.h.bf16 %v3597
    %v3620 = vunpack.c.l.bf16 %v3598
    %v3621 = vunpack.c.h.bf16 %v3598
    %v3622 = vunpack.c.l.bf16 %v3616
    %v3623 = vunpack.c.h.bf16 %v3616
    %v3624 = vunpack.c.l.bf16 %v3617
    %v3625 = vunpack.c.h.bf16 %v3617
    %v3626 = vadd.f32 %v3618, %v3622
    %v3627 = vadd.f32 %v3619, %v3623
    %v3628 = vadd.f32 %v3620, %v3624
    %v3629 = vadd.f32 %v3621, %v3625
    %v3630 = vpack.c.bf16 %v3627, %v3626
    %v3631 = vpack.c.bf16 %v3629, %v3628
    %v3632 = vld [vmem:[%s1] sm:$0x1]
    %3634 = vst [vmem:[#allocation1] ss:$9 sm:$0xff] %v3632
    %v3635 = vld [vmem:[#allocation1] sm:$0xff]
    %3637 = vrot.lane.b32.xlu0 %v3635, 97
    %v3638 = vpop.permute.xlu0 %3637
    %s3640 = vtos %v3638
    %v3641 = vstv %s3640
    %v3642 = vpack.i.b16 %v3641, %v3641
    %v3644 = vunpack.c.l.bf16 %v3642
    %v3645 = vmul.f32 %v2266, %v3644
    %v3646 = vmul.f32 %v2267, %v3644
    %v3647 = vmul.f32 %v2268, %v3644
    %v3648 = vmul.f32 %v2269, %v3644
    %v3649 = vpack.c.bf16 %v3646, %v3645
    %v3650 = vpack.c.bf16 %v3648, %v3647
    %v3651 = vunpack.c.l.bf16 %v3630
    %v3652 = vunpack.c.h.bf16 %v3630
    %v3653 = vunpack.c.l.bf16 %v3631
    %v3654 = vunpack.c.h.bf16 %v3631
    %v3655 = vunpack.c.l.bf16 %v3649
    %v3656 = vunpack.c.h.bf16 %v3649
    %v3657 = vunpack.c.l.bf16 %v3650
    %v3658 = vunpack.c.h.bf16 %v3650
    %3663 = vrot.lane.b32.xlu0 %v3655, 127
    %v3664 = vpop.permute.xlu0 %3663
    %3665 = vrot.lane.b32.xlu0 %v3656, 127
    %v3666 = vpop.permute.xlu0 %3665
    %3667 = vrot.lane.b32.xlu0 %v3657, 127
    %v3668 = vpop.permute.xlu0 %3667
    %3669 = vrot.lane.b32.xlu0 %v3658, 127
    %v3670 = vpop.permute.xlu0 %3669
    %v3671 = vsel %vm121, %v3664, %v3666
    %v3672 = vsel %vm121, %v3668, %v3670
    %v3677 = vadd.f32 %v3651, %v3671
    %v3678 = vadd.f32 %v3652, %v3666
    %v3679 = vadd.f32 %v3653, %v3672
    %v3680 = vadd.f32 %v3654, %v3670
    %v3681 = vpack.c.bf16 %v3678, %v3677
    %v3682 = vpack.c.bf16 %v3680, %v3679
    %v3683 = vld [vmem:[%s1] sm:$0x1]
    %3685 = vst [vmem:[#allocation1] ss:$9 sm:$0xff] %v3683
    %v3686 = vld [vmem:[#allocation1] sm:$0xff]
    %3688 = vrot.lane.b32.xlu0 %v3686, 96
    %v3689 = vpop.permute.xlu0 %3688
    %s3691 = vtos %v3689
    %v3692 = vstv %s3691
    %v3693 = vpack.i.b16 %v3692, %v3692
    %v3695 = vunpack.c.l.bf16 %v3693
    %v3696 = vmul.f32 %v2229, %v3695
    %v3697 = vmul.f32 %v2230, %v3695
    %v3698 = vmul.f32 %v2231, %v3695
    %v3699 = vmul.f32 %v2232, %v3695
    %v3700 = vpack.c.bf16 %v3697, %v3696
    %v3701 = vpack.c.bf16 %v3699, %v3698
    %v3702 = vunpack.c.l.bf16 %v3681
    %v3703 = vunpack.c.h.bf16 %v3681
    %v3704 = vunpack.c.l.bf16 %v3682
    %v3705 = vunpack.c.h.bf16 %v3682
    %v3706 = vunpack.c.l.bf16 %v3700
    %v3707 = vunpack.c.h.bf16 %v3700
    %v3708 = vunpack.c.l.bf16 %v3701
    %v3709 = vunpack.c.h.bf16 %v3701
    %3714 = vrot.lane.b32.xlu0 %v3706, 127
    %v3715 = vpop.permute.xlu0 %3714
    %3716 = vrot.lane.b32.xlu0 %v3707, 127
    %v3717 = vpop.permute.xlu0 %3716
    %3718 = vrot.lane.b32.xlu0 %v3708, 127
    %v3719 = vpop.permute.xlu0 %3718
    %3720 = vrot.lane.b32.xlu0 %v3709, 127
    %v3721 = vpop.permute.xlu0 %3720
    %v3722 = vsel %vm121, %v3715, %v3717
    %v3723 = vsel %vm121, %v3719, %v3721
    %v3728 = vadd.f32 %v3702, %v3722
    %v3729 = vadd.f32 %v3703, %v3717
    %v3730 = vadd.f32 %v3704, %v3723
    %v3731 = vadd.f32 %v3705, %v3721
    %v3732 = vpack.c.bf16 %v3729, %v3728
    %v3733 = vpack.c.bf16 %v3731, %v3730
    %v3734 = vld [vmem:[%s1] sm:$0x1]
    %3736 = vst [vmem:[#allocation1] ss:$9 sm:$0xff] %v3734
    %v3737 = vld [vmem:[#allocation1] sm:$0xff]
    %3739 = vrot.lane.b32.xlu0 %v3737, 95
    %v3740 = vpop.permute.xlu0 %3739
    %s3742 = vtos %v3740
    %v3743 = vstv %s3742
    %v3744 = vpack.i.b16 %v3743, %v3743
    %v3746 = vunpack.c.l.bf16 %v3744
    %v3747 = vmul.f32 %v2102, %v3746
    %v3748 = vmul.f32 %v2103, %v3746
    %v3749 = vmul.f32 %v2104, %v3746
    %v3750 = vmul.f32 %v2105, %v3746
    %v3751 = vpack.c.bf16 %v3748, %v3747
    %v3752 = vpack.c.bf16 %v3750, %v3749
    %v3753 = vunpack.c.l.bf16 %v3732
    %v3754 = vunpack.c.h.bf16 %v3732
    %v3755 = vunpack.c.l.bf16 %v3733
    %v3756 = vunpack.c.h.bf16 %v3733
    %v3757 = vunpack.c.l.bf16 %v3751
    %v3758 = vunpack.c.h.bf16 %v3751
    %v3759 = vunpack.c.l.bf16 %v3752
    %v3760 = vunpack.c.h.bf16 %v3752
    %3765 = vrot.lane.b32.xlu0 %v3757, 114
    %v3766 = vpop.permute.xlu0 %3765
    %3767 = vrot.lane.b32.xlu0 %v3758, 114
    %v3768 = vpop.permute.xlu0 %3767
    %3769 = vrot.lane.b32.xlu0 %v3759, 114
    %v3770 = vpop.permute.xlu0 %3769
    %3771 = vrot.lane.b32.xlu0 %v3760, 114
    %v3772 = vpop.permute.xlu0 %3771
    %v3773 = vsel %vm298, %v3766, %v3768
    %v3774 = vsel %vm298, %v3770, %v3772
    %v3779 = vadd.f32 %v3753, %v3773
    %v3780 = vadd.f32 %v3754, %v3768
    %v3781 = vadd.f32 %v3755, %v3774
    %v3782 = vadd.f32 %v3756, %v3772
    %v3783 = vpack.c.bf16 %v3780, %v3779
    %v3784 = vpack.c.bf16 %v3782, %v3781
    %v3785 = vld [vmem:[%s1] sm:$0x1]
    %3787 = vst [vmem:[#allocation1] ss:$9 sm:$0xff] %v3785
    %v3788 = vld [vmem:[#allocation1] sm:$0xff]
    %3790 = vrot.lane.b32.xlu0 %v3788, 94
    %v3791 = vpop.permute.xlu0 %3790
    %s3793 = vtos %v3791
    %v3794 = vstv %s3793
    %v3795 = vpack.i.b16 %v3794, %v3794
    %v3797 = vunpack.c.l.bf16 %v3795
    %v3798 = vmul.f32 %v2123, %v3797
    %v3799 = vmul.f32 %v2124, %v3797
    %v3800 = vmul.f32 %v2125, %v3797
    %v3801 = vmul.f32 %v2126, %v3797
    %v3802 = vpack.c.bf16 %v3799, %v3798
    %v3803 = vpack.c.bf16 %v3801, %v3800
    %v3804 = vunpack.c.l.bf16 %v3783
    %v3805 = vunpack.c.h.bf16 %v3783
    %v3806 = vunpack.c.l.bf16 %v3784
    %v3807 = vunpack.c.h.bf16 %v3784
    %v3808 = vunpack.c.l.bf16 %v3802
    %v3809 = vunpack.c.h.bf16 %v3802
    %v3810 = vunpack.c.l.bf16 %v3803
    %v3811 = vunpack.c.h.bf16 %v3803
    %3816 = vrot.lane.b32.xlu0 %v3808, 113
    %v3817 = vpop.permute.xlu0 %3816
    %3818 = vrot.lane.b32.xlu0 %v3809, 113
    %v3819 = vpop.permute.xlu0 %3818
    %3820 = vrot.lane.b32.xlu0 %v3810, 113
    %v3821 = vpop.permute.xlu0 %3820
    %3822 = vrot.lane.b32.xlu0 %v3811, 113
    %v3823 = vpop.permute.xlu0 %3822
    %v3824 = vsel %vm401, %v3817, %v3819
    %v3825 = vsel %vm401, %v3821, %v3823
    %v3830 = vadd.f32 %v3804, %v3824
    %v3831 = vadd.f32 %v3805, %v3819
    %v3832 = vadd.f32 %v3806, %v3825
    %v3833 = vadd.f32 %v3807, %v3823
    %v3834 = vpack.c.bf16 %v3831, %v3830
    %v3835 = vpack.c.bf16 %v3833, %v3832
    %v3836 = vld [vmem:[%s1] sm:$0x1]
    %3838 = vst [vmem:[#allocation1] ss:$9 sm:$0xff] %v3836
    %v3839 = vld [vmem:[#allocation1] sm:$0xff]
    %3841 = vrot.lane.b32.xlu0 %v3839, 93
    %v3842 = vpop.permute.xlu0 %3841
    %s3844 = vtos %v3842
    %v3845 = vstv %s3844
    %v3846 = vpack.i.b16 %v3845, %v3845
    %v3848 = vunpack.c.l.bf16 %v3846
    %v3849 = vmul.f32 %v2102, %v3848
    %v3850 = vmul.f32 %v2103, %v3848
    %v3851 = vmul.f32 %v2104, %v3848
    %v3852 = vmul.f32 %v2105, %v3848
    %v3853 = vpack.c.bf16 %v3850, %v3849
    %v3854 = vpack.c.bf16 %v3852, %v3851
    %v3855 = vunpack.c.l.bf16 %v3834
    %v3856 = vunpack.c.h.bf16 %v3834
    %v3857 = vunpack.c.l.bf16 %v3835
    %v3858 = vunpack.c.h.bf16 %v3835
    %v3859 = vunpack.c.l.bf16 %v3853
    %v3860 = vunpack.c.h.bf16 %v3853
    %v3861 = vunpack.c.l.bf16 %v3854
    %v3862 = vunpack.c.h.bf16 %v3854
    %3867 = vrot.lane.b32.xlu0 %v3859, 113
    %v3868 = vpop.permute.xlu0 %3867
    %3869 = vrot.lane.b32.xlu0 %v3860, 113
    %v3870 = vpop.permute.xlu0 %3869
    %3871 = vrot.lane.b32.xlu0 %v3861, 113
    %v3872 = vpop.permute.xlu0 %3871
    %3873 = vrot.lane.b32.xlu0 %v3862, 113
    %v3874 = vpop.permute.xlu0 %3873
    %v3875 = vsel %vm401, %v3868, %v3870
    %v3876 = vsel %vm401, %v3872, %v3874
    %v3881 = vadd.f32 %v3855, %v3875
    %v3882 = vadd.f32 %v3856, %v3870
    %v3883 = vadd.f32 %v3857, %v3876
    %v3884 = vadd.f32 %v3858, %v3874
    %v3885 = vpack.c.bf16 %v3882, %v3881
    %v3886 = vpack.c.bf16 %v3884, %v3883
    %v3887 = vld [vmem:[%s2] sm:$0x1]
    %3889 = vst [vmem:[#allocation1] ss:$9 sm:$0xff] %v3887
    %v3890 = vld [vmem:[#allocation1] sm:$0xff]
    %3892 = vrot.lane.b32.xlu0 %v3890, 125
    %v3893 = vpop.permute.xlu0 %3892
    %s3895 = vtos %v3893
    %v3896 = vstv %s3895
    %v3897 = vpack.i.b16 %v3896, %v3896
    %v3899 = vunpack.c.l.bf16 %v3885
    %v3900 = vunpack.c.h.bf16 %v3885
    %v3901 = vunpack.c.l.bf16 %v3886
    %v3902 = vunpack.c.h.bf16 %v3886
    %v3903 = vunpack.c.l.bf16 %v3897
    %v3904 = vadd.f32 %v3899, %v3903
    %v3905 = vadd.f32 %v3900, %v3903
    %v3906 = vadd.f32 %v3901, %v3903
    %v3907 = vadd.f32 %v3902, %v3903
    %v3908 = vpack.c.bf16 %v3905, %v3904
    %v3909 = vpack.c.bf16 %v3907, %v3906
    %v3910 = vunpack.c.l.bf16 %v3908
    %v3911 = vunpack.c.h.bf16 %v3908
    %v3912 = vunpack.c.l.bf16 %v3909
    %v3913 = vunpack.c.h.bf16 %v3909
    %v3914 = vmax.f32 %v3910, 0.0
    %v3915 = vmax.f32 %v3911, 0.0
    %v3916 = vmax.f32 %v3912, 0.0
    %v3917 = vmax.f32 %v3913, 0.0
    %v3918 = vpack.c.bf16 %v3915, %v3914
    %v3919 = vpack.c.bf16 %v3917, %v3916
    %v3920 = vld [vmem:[#allocation2 + $0x18] sm:$0xff]
    %v3921 = vld [vmem:[#allocation2 + $0x40] sm:$0xff]
    %v3922 = vunpack.c.l.bf16 %v3920
    %v3923 = vunpack.c.h.bf16 %v3920
    %v3924 = vunpack.c.l.bf16 %v3921
    %v3925 = vunpack.c.h.bf16 %v3921
    %v3926 = vunpack.c.l.bf16 %v3918
    %v3927 = vunpack.c.h.bf16 %v3918
    %v3928 = vunpack.c.l.bf16 %v3919
    %v3929 = vunpack.c.h.bf16 %v3919
    %v3930 = vmax.f32 %v3922, %v3926
    %v3931 = vmax.f32 %v3923, %v3927
    %v3932 = vmax.f32 %v3924, %v3928
    %v3933 = vmax.f32 %v3925, %v3929
    %v3934 = vpack.c.bf16 %v3931, %v3930
    %v3935 = vpack.c.bf16 %v3933, %v3932
    %3936 = vst.msk [vmem:[#allocation2 + $0x18] sm:$0xff] %vm445, %v3934
    %3937 = vst.msk [vmem:[#allocation2 + $0x40] sm:$0xff] %vm445, %v3935
    %v3938 = vld [vmem:[%s1] sm:$0x1]
    %3940 = vst [vmem:[#allocation1] ss:$9 sm:$0xff] %v3938
    %v3941 = vld [vmem:[#allocation1] sm:$0xff]
    %3943 = vrot.lane.b32.xlu0 %v3941, 92
    %v3944 = vpop.permute.xlu0 %3943
    %s3946 = vtos %v3944
    %v3947 = vstv %s3946
    %v3948 = vpack.i.b16 %v3947, %v3947
    %v3950 = vunpack.c.l.bf16 %v3948
    %v3951 = vmul.f32 %v2102, %v3950
    %v3952 = vmul.f32 %v2103, %v3950
    %v3953 = vmul.f32 %v2104, %v3950
    %v3954 = vmul.f32 %v2105, %v3950
    %v3955 = vpack.c.bf16 %v3952, %v3951
    %v3956 = vpack.c.bf16 %v3954, %v3953
    %v3957 = vld [vmem:[%s1] sm:$0x1]
    %3959 = vst [vmem:[#allocation1] ss:$9 sm:$0xff] %v3957
    %v3960 = vld [vmem:[#allocation1] sm:$0xff]
    %3962 = vrot.lane.b32.xlu0 %v3960, 91
    %v3963 = vpop.permute.xlu0 %3962
    %s3965 = vtos %v3963
    %v3966 = vstv %s3965
    %v3967 = vpack.i.b16 %v3966, %v3966
    %v3969 = vunpack.c.l.bf16 %v3967
    %v3970 = vmul.f32 %v2123, %v3969
    %v3971 = vmul.f32 %v2124, %v3969
    %v3972 = vmul.f32 %v2125, %v3969
    %v3973 = vmul.f32 %v2126, %v3969
    %v3974 = vpack.c.bf16 %v3971, %v3970
    %v3975 = vpack.c.bf16 %v3973, %v3972
    %v3976 = vunpack.c.l.bf16 %v3955
    %v3977 = vunpack.c.h.bf16 %v3955
    %v3978 = vunpack.c.l.bf16 %v3956
    %v3979 = vunpack.c.h.bf16 %v3956
    %v3980 = vunpack.c.l.bf16 %v3974
    %v3981 = vunpack.c.h.bf16 %v3974
    %v3982 = vunpack.c.l.bf16 %v3975
    %v3983 = vunpack.c.h.bf16 %v3975
    %3988 = vrot.lane.b32.xlu0 %v3980, 127
    %v3989 = vpop.permute.xlu0 %3988
    %3990 = vrot.lane.b32.xlu0 %v3981, 127
    %v3991 = vpop.permute.xlu0 %3990
    %3992 = vrot.lane.b32.xlu0 %v3982, 127
    %v3993 = vpop.permute.xlu0 %3992
    %3994 = vrot.lane.b32.xlu0 %v3983, 127
    %v3995 = vpop.permute.xlu0 %3994
    %v3996 = vsel %vm121, %v3989, %v3991
    %v3997 = vsel %vm121, %v3993, %v3995
    %v4002 = vadd.f32 %v3976, %v3996
    %v4003 = vadd.f32 %v3977, %v3991
    %v4004 = vadd.f32 %v3978, %v3997
    %v4005 = vadd.f32 %v3979, %v3995
    %v4006 = vpack.c.bf16 %v4003, %v4002
    %v4007 = vpack.c.bf16 %v4005, %v4004
    %v4008 = vld [vmem:[%s1] sm:$0x1]
    %4010 = vst [vmem:[#allocation1] ss:$9 sm:$0xff] %v4008
    %v4011 = vld [vmem:[#allocation1] sm:$0xff]
    %4013 = vrot.lane.b32.xlu0 %v4011, 90
    %v4014 = vpop.permute.xlu0 %4013
    %s4016 = vtos %v4014
    %v4017 = vstv %s4016
    %v4018 = vpack.i.b16 %v4017, %v4017
    %v4020 = vunpack.c.l.bf16 %v4018
    %v4021 = vmul.f32 %v2102, %v4020
    %v4022 = vmul.f32 %v2103, %v4020
    %v4023 = vmul.f32 %v2104, %v4020
    %v4024 = vmul.f32 %v2105, %v4020
    %v4025 = vpack.c.bf16 %v4022, %v4021
    %v4026 = vpack.c.bf16 %v4024, %v4023
    %v4027 = vunpack.c.l.bf16 %v4006
    %v4028 = vunpack.c.h.bf16 %v4006
    %v4029 = vunpack.c.l.bf16 %v4007
    %v4030 = vunpack.c.h.bf16 %v4007
    %v4031 = vunpack.c.l.bf16 %v4025
    %v4032 = vunpack.c.h.bf16 %v4025
    %v4033 = vunpack.c.l.bf16 %v4026
    %v4034 = vunpack.c.h.bf16 %v4026
    %4039 = vrot.lane.b32.xlu0 %v4031, 127
    %v4040 = vpop.permute.xlu0 %4039
    %4041 = vrot.lane.b32.xlu0 %v4032, 127
    %v4042 = vpop.permute.xlu0 %4041
    %4043 = vrot.lane.b32.xlu0 %v4033, 127
    %v4044 = vpop.permute.xlu0 %4043
    %4045 = vrot.lane.b32.xlu0 %v4034, 127
    %v4046 = vpop.permute.xlu0 %4045
    %v4047 = vsel %vm121, %v4040, %v4042
    %v4048 = vsel %vm121, %v4044, %v4046
    %v4053 = vadd.f32 %v4027, %v4047
    %v4054 = vadd.f32 %v4028, %v4042
    %v4055 = vadd.f32 %v4029, %v4048
    %v4056 = vadd.f32 %v4030, %v4046
    %v4057 = vpack.c.bf16 %v4054, %v4053
    %v4058 = vpack.c.bf16 %v4056, %v4055
    %v4059 = vld [vmem:[%s1] sm:$0x1]
    %4061 = vst [vmem:[#allocation1] ss:$9 sm:$0xff] %v4059
    %v4062 = vld [vmem:[#allocation1] sm:$0xff]
    %4064 = vrot.lane.b32.xlu0 %v4062, 89
    %v4065 = vpop.permute.xlu0 %4064
    %s4067 = vtos %v4065
    %v4068 = vstv %s4067
    %v4069 = vpack.i.b16 %v4068, %v4068
    %v4071 = vunpack.c.l.bf16 %v4069
    %v4072 = vmul.f32 %v2229, %v4071
    %v4073 = vmul.f32 %v2230, %v4071
    %v4074 = vmul.f32 %v2231, %v4071
    %v4075 = vmul.f32 %v2232, %v4071
    %v4076 = vpack.c.bf16 %v4073, %v4072
    %v4077 = vpack.c.bf16 %v4075, %v4074
    %v4078 = vunpack.c.l.bf16 %v4057
    %v4079 = vunpack.c.h.bf16 %v4057
    %v4080 = vunpack.c.l.bf16 %v4058
    %v4081 = vunpack.c.h.bf16 %v4058
    %v4082 = vunpack.c.l.bf16 %v4076
    %v4083 = vunpack.c.h.bf16 %v4076
    %v4084 = vunpack.c.l.bf16 %v4077
    %v4085 = vunpack.c.h.bf16 %v4077
    %v4086 = vadd.f32 %v4078, %v4082
    %v4087 = vadd.f32 %v4079, %v4083
    %v4088 = vadd.f32 %v4080, %v4084
    %v4089 = vadd.f32 %v4081, %v4085
    %v4090 = vpack.c.bf16 %v4087, %v4086
    %v4091 = vpack.c.bf16 %v4089, %v4088
    %v4092 = vld [vmem:[%s1] sm:$0x1]
    %4094 = vst [vmem:[#allocation1] ss:$9 sm:$0xff] %v4092
    %v4095 = vld [vmem:[#allocation1] sm:$0xff]
    %4097 = vrot.lane.b32.xlu0 %v4095, 88
    %v4098 = vpop.permute.xlu0 %4097
    %s4100 = vtos %v4098
    %v4101 = vstv %s4100
    %v4102 = vpack.i.b16 %v4101, %v4101
    %v4104 = vunpack.c.l.bf16 %v4102
    %v4105 = vmul.f32 %v2266, %v4104
    %v4106 = vmul.f32 %v2267, %v4104
    %v4107 = vmul.f32 %v2268, %v4104
    %v4108 = vmul.f32 %v2269, %v4104
    %v4109 = vpack.c.bf16 %v4106, %v4105
    %v4110 = vpack.c.bf16 %v4108, %v4107
    %v4111 = vunpack.c.l.bf16 %v4090
    %v4112 = vunpack.c.h.bf16 %v4090
    %v4113 = vunpack.c.l.bf16 %v4091
    %v4114 = vunpack.c.h.bf16 %v4091
    %v4115 = vunpack.c.l.bf16 %v4109
    %v4116 = vunpack.c.h.bf16 %v4109
    %v4117 = vunpack.c.l.bf16 %v4110
    %v4118 = vunpack.c.h.bf16 %v4110
    %4123 = vrot.lane.b32.xlu0 %v4115, 127
    %v4124 = vpop.permute.xlu0 %4123
    %4125 = vrot.lane.b32.xlu0 %v4116, 127
    %v4126 = vpop.permute.xlu0 %4125
    %4127 = vrot.lane.b32.xlu0 %v4117, 127
    %v4128 = vpop.permute.xlu0 %4127
    %4129 = vrot.lane.b32.xlu0 %v4118, 127
    %v4130 = vpop.permute.xlu0 %4129
    %v4131 = vsel %vm121, %v4124, %v4126
    %v4132 = vsel %vm121, %v4128, %v4130
    %v4137 = vadd.f32 %v4111, %v4131
    %v4138 = vadd.f32 %v4112, %v4126
    %v4139 = vadd.f32 %v4113, %v4132
    %v4140 = vadd.f32 %v4114, %v4130
    %v4141 = vpack.c.bf16 %v4138, %v4137
    %v4142 = vpack.c.bf16 %v4140, %v4139
    %v4143 = vld [vmem:[%s1] sm:$0x1]
    %4145 = vst [vmem:[#allocation1] ss:$9 sm:$0xff] %v4143
    %v4146 = vld [vmem:[#allocation1] sm:$0xff]
    %4148 = vrot.lane.b32.xlu0 %v4146, 87
    %v4149 = vpop.permute.xlu0 %4148
    %s4151 = vtos %v4149
    %v4152 = vstv %s4151
    %v4153 = vpack.i.b16 %v4152, %v4152
    %v4155 = vunpack.c.l.bf16 %v4153
    %v4156 = vmul.f32 %v2229, %v4155
    %v4157 = vmul.f32 %v2230, %v4155
    %v4158 = vmul.f32 %v2231, %v4155
    %v4159 = vmul.f32 %v2232, %v4155
    %v4160 = vpack.c.bf16 %v4157, %v4156
    %v4161 = vpack.c.bf16 %v4159, %v4158
    %v4162 = vunpack.c.l.bf16 %v4141
    %v4163 = vunpack.c.h.bf16 %v4141
    %v4164 = vunpack.c.l.bf16 %v4142
    %v4165 = vunpack.c.h.bf16 %v4142
    %v4166 = vunpack.c.l.bf16 %v4160
    %v4167 = vunpack.c.h.bf16 %v4160
    %v4168 = vunpack.c.l.bf16 %v4161
    %v4169 = vunpack.c.h.bf16 %v4161
    %4174 = vrot.lane.b32.xlu0 %v4166, 127
    %v4175 = vpop.permute.xlu0 %4174
    %4176 = vrot.lane.b32.xlu0 %v4167, 127
    %v4177 = vpop.permute.xlu0 %4176
    %4178 = vrot.lane.b32.xlu0 %v4168, 127
    %v4179 = vpop.permute.xlu0 %4178
    %4180 = vrot.lane.b32.xlu0 %v4169, 127
    %v4181 = vpop.permute.xlu0 %4180
    %v4182 = vsel %vm121, %v4175, %v4177
    %v4183 = vsel %vm121, %v4179, %v4181
    %v4188 = vadd.f32 %v4162, %v4182
    %v4189 = vadd.f32 %v4163, %v4177
    %v4190 = vadd.f32 %v4164, %v4183
    %v4191 = vadd.f32 %v4165, %v4181
    %v4192 = vpack.c.bf16 %v4189, %v4188
    %v4193 = vpack.c.bf16 %v4191, %v4190
    %v4194 = vld [vmem:[%s1] sm:$0x1]
    %4196 = vst [vmem:[#allocation1] ss:$9 sm:$0xff] %v4194
    %v4197 = vld [vmem:[#allocation1] sm:$0xff]
    %4199 = vrot.lane.b32.xlu0 %v4197, 86
    %v4200 = vpop.permute.xlu0 %4199
    %s4202 = vtos %v4200
    %v4203 = vstv %s4202
    %v4204 = vpack.i.b16 %v4203, %v4203
    %v4206 = vunpack.c.l.bf16 %v4204
    %v4207 = vmul.f32 %v2102, %v4206
    %v4208 = vmul.f32 %v2103, %v4206
    %v4209 = vmul.f32 %v2104, %v4206
    %v4210 = vmul.f32 %v2105, %v4206
    %v4211 = vpack.c.bf16 %v4208, %v4207
    %v4212 = vpack.c.bf16 %v4210, %v4209
    %v4213 = vunpack.c.l.bf16 %v4192
    %v4214 = vunpack.c.h.bf16 %v4192
    %v4215 = vunpack.c.l.bf16 %v4193
    %v4216 = vunpack.c.h.bf16 %v4193
    %v4217 = vunpack.c.l.bf16 %v4211
    %v4218 = vunpack.c.h.bf16 %v4211
    %v4219 = vunpack.c.l.bf16 %v4212
    %v4220 = vunpack.c.h.bf16 %v4212
    %4225 = vrot.lane.b32.xlu0 %v4217, 114
    %v4226 = vpop.permute.xlu0 %4225
    %4227 = vrot.lane.b32.xlu0 %v4218, 114
    %v4228 = vpop.permute.xlu0 %4227
    %4229 = vrot.lane.b32.xlu0 %v4219, 114
    %v4230 = vpop.permute.xlu0 %4229
    %4231 = vrot.lane.b32.xlu0 %v4220, 114
    %v4232 = vpop.permute.xlu0 %4231
    %v4233 = vsel %vm298, %v4226, %v4228
    %v4234 = vsel %vm298, %v4230, %v4232
    %v4239 = vadd.f32 %v4213, %v4233
    %v4240 = vadd.f32 %v4214, %v4228
    %v4241 = vadd.f32 %v4215, %v4234
    %v4242 = vadd.f32 %v4216, %v4232
    %v4243 = vpack.c.bf16 %v4240, %v4239
    %v4244 = vpack.c.bf16 %v4242, %v4241
    %v4245 = vld [vmem:[%s1] sm:$0x1]
    %4247 = vst [vmem:[#allocation1] ss:$9 sm:$0xff] %v4245
    %v4248 = vld [vmem:[#allocation1] sm:$0xff]
    %4250 = vrot.lane.b32.xlu0 %v4248, 85
    %v4251 = vpop.permute.xlu0 %4250
    %s4253 = vtos %v4251
    %v4254 = vstv %s4253
    %v4255 = vpack.i.b16 %v4254, %v4254
    %v4257 = vunpack.c.l.bf16 %v4255
    %v4258 = vmul.f32 %v2123, %v4257
    %v4259 = vmul.f32 %v2124, %v4257
    %v4260 = vmul.f32 %v2125, %v4257
    %v4261 = vmul.f32 %v2126, %v4257
    %v4262 = vpack.c.bf16 %v4259, %v4258
    %v4263 = vpack.c.bf16 %v4261, %v4260
    %v4264 = vunpack.c.l.bf16 %v4243
    %v4265 = vunpack.c.h.bf16 %v4243
    %v4266 = vunpack.c.l.bf16 %v4244
    %v4267 = vunpack.c.h.bf16 %v4244
    %v4268 = vunpack.c.l.bf16 %v4262
    %v4269 = vunpack.c.h.bf16 %v4262
    %v4270 = vunpack.c.l.bf16 %v4263
    %v4271 = vunpack.c.h.bf16 %v4263
    %4276 = vrot.lane.b32.xlu0 %v4268, 113
    %v4277 = vpop.permute.xlu0 %4276
    %4278 = vrot.lane.b32.xlu0 %v4269, 113
    %v4279 = vpop.permute.xlu0 %4278
    %4280 = vrot.lane.b32.xlu0 %v4270, 113
    %v4281 = vpop.permute.xlu0 %4280
    %4282 = vrot.lane.b32.xlu0 %v4271, 113
    %v4283 = vpop.permute.xlu0 %4282
    %v4284 = vsel %vm401, %v4277, %v4279
    %v4285 = vsel %vm401, %v4281, %v4283
    %v4290 = vadd.f32 %v4264, %v4284
    %v4291 = vadd.f32 %v4265, %v4279
    %v4292 = vadd.f32 %v4266, %v4285
    %v4293 = vadd.f32 %v4267, %v4283
    %v4294 = vpack.c.bf16 %v4291, %v4290
    %v4295 = vpack.c.bf16 %v4293, %v4292
    %v4296 = vld [vmem:[%s1] sm:$0x1]
    %4298 = vst [vmem:[#allocation1] ss:$9 sm:$0xff] %v4296
    %v4299 = vld [vmem:[#allocation1] sm:$0xff]
    %4301 = vrot.lane.b32.xlu0 %v4299, 84
    %v4302 = vpop.permute.xlu0 %4301
    %s4304 = vtos %v4302
    %v4305 = vstv %s4304
    %v4306 = vpack.i.b16 %v4305, %v4305
    %v4308 = vunpack.c.l.bf16 %v4306
    %v4309 = vmul.f32 %v2102, %v4308
    %v4310 = vmul.f32 %v2103, %v4308
    %v4311 = vmul.f32 %v2104, %v4308
    %v4312 = vmul.f32 %v2105, %v4308
    %v4313 = vpack.c.bf16 %v4310, %v4309
    %v4314 = vpack.c.bf16 %v4312, %v4311
    %v4315 = vunpack.c.l.bf16 %v4294
    %v4316 = vunpack.c.h.bf16 %v4294
    %v4317 = vunpack.c.l.bf16 %v4295
    %v4318 = vunpack.c.h.bf16 %v4295
    %v4319 = vunpack.c.l.bf16 %v4313
    %v4320 = vunpack.c.h.bf16 %v4313
    %v4321 = vunpack.c.l.bf16 %v4314
    %v4322 = vunpack.c.h.bf16 %v4314
    %4327 = vrot.lane.b32.xlu0 %v4319, 113
    %v4328 = vpop.permute.xlu0 %4327
    %4329 = vrot.lane.b32.xlu0 %v4320, 113
    %v4330 = vpop.permute.xlu0 %4329
    %4331 = vrot.lane.b32.xlu0 %v4321, 113
    %v4332 = vpop.permute.xlu0 %4331
    %4333 = vrot.lane.b32.xlu0 %v4322, 113
    %v4334 = vpop.permute.xlu0 %4333
    %v4335 = vsel %vm401, %v4328, %v4330
    %v4336 = vsel %vm401, %v4332, %v4334
    %v4341 = vadd.f32 %v4315, %v4335
    %v4342 = vadd.f32 %v4316, %v4330
    %v4343 = vadd.f32 %v4317, %v4336
    %v4344 = vadd.f32 %v4318, %v4334
    %v4345 = vpack.c.bf16 %v4342, %v4341
    %v4346 = vpack.c.bf16 %v4344, %v4343
    %v4347 = vld [vmem:[%s2] sm:$0x1]
    %4349 = vst [vmem:[#allocation1] ss:$9 sm:$0xff] %v4347
    %v4350 = vld [vmem:[#allocation1] sm:$0xff]
    %4352 = vrot.lane.b32.xlu0 %v4350, 124
    %v4353 = vpop.permute.xlu0 %4352
    %s4355 = vtos %v4353
    %v4356 = vstv %s4355
    %v4357 = vpack.i.b16 %v4356, %v4356
    %v4359 = vunpack.c.l.bf16 %v4345
    %v4360 = vunpack.c.h.bf16 %v4345
    %v4361 = vunpack.c.l.bf16 %v4346
    %v4362 = vunpack.c.h.bf16 %v4346
    %v4363 = vunpack.c.l.bf16 %v4357
    %v4364 = vadd.f32 %v4359, %v4363
    %v4365 = vadd.f32 %v4360, %v4363
    %v4366 = vadd.f32 %v4361, %v4363
    %v4367 = vadd.f32 %v4362, %v4363
    %v4368 = vpack.c.bf16 %v4365, %v4364
    %v4369 = vpack.c.bf16 %v4367, %v4366
    %v4370 = vunpack.c.l.bf16 %v4368
    %v4371 = vunpack.c.h.bf16 %v4368
    %v4372 = vunpack.c.l.bf16 %v4369
    %v4373 = vunpack.c.h.bf16 %v4369
    %v4374 = vmax.f32 %v4370, 0.0
    %v4375 = vmax.f32 %v4371, 0.0
    %v4376 = vmax.f32 %v4372, 0.0
    %v4377 = vmax.f32 %v4373, 0.0
    %v4378 = vpack.c.bf16 %v4375, %v4374
    %v4379 = vpack.c.bf16 %v4377, %v4376
    %v4380 = vld [vmem:[#allocation2 + $0x20] sm:$0xff]
    %v4381 = vld [vmem:[#allocation2 + $0x48] sm:$0xff]
    %v4382 = vunpack.c.l.bf16 %v4380
    %v4383 = vunpack.c.h.bf16 %v4380
    %v4384 = vunpack.c.l.bf16 %v4381
    %v4385 = vunpack.c.h.bf16 %v4381
    %v4386 = vunpack.c.l.bf16 %v4378
    %v4387 = vunpack.c.h.bf16 %v4378
    %v4388 = vunpack.c.l.bf16 %v4379
    %v4389 = vunpack.c.h.bf16 %v4379
    %v4390 = vmax.f32 %v4382, %v4386
    %v4391 = vmax.f32 %v4383, %v4387
    %v4392 = vmax.f32 %v4384, %v4388
    %v4393 = vmax.f32 %v4385, %v4389
    %v4394 = vpack.c.bf16 %v4391, %v4390
    %v4395 = vpack.c.bf16 %v4393, %v4392
    %4396 = vst.msk [vmem:[#allocation2 + $0x20] sm:$0xff] %vm445, %v4394
    %4397 = vst.msk [vmem:[#allocation2 + $0x48] sm:$0xff] %vm445, %v4395
    %v4398 = vld [vmem:[%s0 + $0x10] sm:$0xff]
    %v4399 = vld [vmem:[%s0 + $0x30] sm:$0xff]
    %v4400 = vld [vmem:[%s0 + $0x18] sm:$0xff]
    %v4401 = vld [vmem:[%s0 + $0x38] sm:$0xff]
    %v4402 = vld [vmem:[%s0] sm:$0xff]
    %v4403 = vld [vmem:[%s0 + $0x20] sm:$0xff]
    %v4404 = vld [vmem:[%s0 + $0x8] sm:$0xff]
    %v4405 = vld [vmem:[%s0 + $0x28] sm:$0xff]
    %v4406 = vld [vmem:[%s1] sm:$0x1]
    %s4408 = vtos %v4406
    %v4409 = vstv %s4408
    %v4410 = vpack.i.b16 %v4409, %v4409
    %v4412 = vunpack.c.l.bf16 %v4398
    %v4413 = vunpack.c.h.bf16 %v4398
    %v4414 = vunpack.c.l.bf16 %v4399
    %v4415 = vunpack.c.h.bf16 %v4399
    %v4416 = vunpack.c.l.bf16 %v4410
    %v4417 = vmul.f32 %v4412, %v4416
    %v4418 = vmul.f32 %v4413, %v4416
    %v4419 = vmul.f32 %v4414, %v4416
    %v4420 = vmul.f32 %v4415, %v4416
    %v4421 = vpack.c.bf16 %v4418, %v4417
    %v4422 = vpack.c.bf16 %v4420, %v4419
    %4423 = vst [vmem:[#allocation1] ss:$9 sm:$0xff] %v4406
    %v4424 = vld [vmem:[#allocation1] sm:$0xff]
    %4426 = vrot.lane.b32.xlu0 %v4424, 127
    %v4427 = vpop.permute.xlu0 %4426
    %s4429 = vtos %v4427
    %v4430 = vstv %s4429
    %v4431 = vpack.i.b16 %v4430, %v4430
    %v4433 = vunpack.c.l.bf16 %v4400
    %v4434 = vunpack.c.h.bf16 %v4400
    %v4435 = vunpack.c.l.bf16 %v4401
    %v4436 = vunpack.c.h.bf16 %v4401
    %v4437 = vunpack.c.l.bf16 %v4431
    %v4438 = vmul.f32 %v4433, %v4437
    %v4439 = vmul.f32 %v4434, %v4437
    %v4440 = vmul.f32 %v4435, %v4437
    %v4441 = vmul.f32 %v4436, %v4437
    %v4442 = vpack.c.bf16 %v4439, %v4438
    %v4443 = vpack.c.bf16 %v4441, %v4440
    %v4444 = vunpack.c.l.bf16 %v4421
    %v4445 = vunpack.c.h.bf16 %v4421
    %v4446 = vunpack.c.l.bf16 %v4422
    %v4447 = vunpack.c.h.bf16 %v4422
    %v4448 = vunpack.c.l.bf16 %v4442
    %v4449 = vunpack.c.h.bf16 %v4442
    %v4450 = vunpack.c.l.bf16 %v4443
    %v4451 = vunpack.c.h.bf16 %v4443
    %v4452 = vadd.f32 %v4444, %v4448
    %v4453 = vadd.f32 %v4445, %v4449
    %v4454 = vadd.f32 %v4446, %v4450
    %v4455 = vadd.f32 %v4447, %v4451
    %v4456 = vpack.c.bf16 %v4453, %v4452
    %v4457 = vpack.c.bf16 %v4455, %v4454
    %v4458 = vld [vmem:[%s1] sm:$0x1]
    %4460 = vst [vmem:[#allocation1] ss:$9 sm:$0xff] %v4458
    %v4461 = vld [vmem:[#allocation1] sm:$0xff]
    %4463 = vrot.lane.b32.xlu0 %v4461, 126
    %v4464 = vpop.permute.xlu0 %4463
    %s4466 = vtos %v4464
    %v4467 = vstv %s4466
    %v4468 = vpack.i.b16 %v4467, %v4467
    %v4470 = vunpack.c.l.bf16 %v4468
    %v4471 = vmul.f32 %v4412, %v4470
    %v4472 = vmul.f32 %v4413, %v4470
    %v4473 = vmul.f32 %v4414, %v4470
    %v4474 = vmul.f32 %v4415, %v4470
    %v4475 = vpack.c.bf16 %v4472, %v4471
    %v4476 = vpack.c.bf16 %v4474, %v4473
    %v4477 = vunpack.c.l.bf16 %v4456
    %v4478 = vunpack.c.h.bf16 %v4456
    %v4479 = vunpack.c.l.bf16 %v4457
    %v4480 = vunpack.c.h.bf16 %v4457
    %v4481 = vunpack.c.l.bf16 %v4475
    %v4482 = vunpack.c.h.bf16 %v4475
    %v4483 = vunpack.c.l.bf16 %v4476
    %v4484 = vunpack.c.h.bf16 %v4476
    %4489 = vrot.lane.b32.xlu0 %v4481, 127
    %v4490 = vpop.permute.xlu0 %4489
    %4491 = vrot.lane.b32.xlu0 %v4482, 127
    %v4492 = vpop.permute.xlu0 %4491
    %4493 = vrot.lane.b32.xlu0 %v4483, 127
    %v4494 = vpop.permute.xlu0 %4493
    %4495 = vrot.lane.b32.xlu0 %v4484, 127
    %v4496 = vpop.permute.xlu0 %4495
    %v4497 = vsel %vm121, %v4490, %v4492
    %v4498 = vsel %vm121, %v4494, %v4496
    %v4503 = vadd.f32 %v4477, %v4497
    %v4504 = vadd.f32 %v4478, %v4492
    %v4505 = vadd.f32 %v4479, %v4498
    %v4506 = vadd.f32 %v4480, %v4496
    %v4507 = vpack.c.bf16 %v4504, %v4503
    %v4508 = vpack.c.bf16 %v4506, %v4505
    %v4509 = vld [vmem:[%s1] sm:$0x1]
    %4511 = vst [vmem:[#allocation1] ss:$9 sm:$0xff] %v4509
    %v4512 = vld [vmem:[#allocation1] sm:$0xff]
    %4514 = vrot.lane.b32.xlu0 %v4512, 125
    %v4515 = vpop.permute.xlu0 %4514
    %s4517 = vtos %v4515
    %v4518 = vstv %s4517
    %v4519 = vpack.i.b16 %v4518, %v4518
    %v4521 = vunpack.c.l.bf16 %v4402
    %v4522 = vunpack.c.h.bf16 %v4402
    %v4523 = vunpack.c.l.bf16 %v4403
    %v4524 = vunpack.c.h.bf16 %v4403
    %v4525 = vunpack.c.l.bf16 %v4519
    %v4526 = vmul.f32 %v4521, %v4525
    %v4527 = vmul.f32 %v4522, %v4525
    %v4528 = vmul.f32 %v4523, %v4525
    %v4529 = vmul.f32 %v4524, %v4525
    %v4530 = vpack.c.bf16 %v4527, %v4526
    %v4531 = vpack.c.bf16 %v4529, %v4528
    %v4532 = vunpack.c.l.bf16 %v4507
    %v4533 = vunpack.c.h.bf16 %v4507
    %v4534 = vunpack.c.l.bf16 %v4508
    %v4535 = vunpack.c.h.bf16 %v4508
    %v4536 = vunpack.c.l.bf16 %v4530
    %v4537 = vunpack.c.h.bf16 %v4530
    %v4538 = vunpack.c.l.bf16 %v4531
    %v4539 = vunpack.c.h.bf16 %v4531
    %4544 = vrot.lane.b32.xlu0 %v4536, 114
    %v4545 = vpop.permute.xlu0 %4544
    %4546 = vrot.lane.b32.xlu0 %v4537, 114
    %v4547 = vpop.permute.xlu0 %4546
    %4548 = vrot.lane.b32.xlu0 %v4538, 114
    %v4549 = vpop.permute.xlu0 %4548
    %4550 = vrot.lane.b32.xlu0 %v4539, 114
    %v4551 = vpop.permute.xlu0 %4550
    %v4552 = vsel %vm298, %v4545, %v4547
    %v4553 = vsel %vm298, %v4549, %v4551
    %v4558 = vadd.f32 %v4532, %v4552
    %v4559 = vadd.f32 %v4533, %v4547
    %v4560 = vadd.f32 %v4534, %v4553
    %v4561 = vadd.f32 %v4535, %v4551
    %v4562 = vpack.c.bf16 %v4559, %v4558
    %v4563 = vpack.c.bf16 %v4561, %v4560
    %v4564 = vld [vmem:[%s1] sm:$0x1]
    %4566 = vst [vmem:[#allocation1] ss:$9 sm:$0xff] %v4564
    %v4567 = vld [vmem:[#allocation1] sm:$0xff]
    %4569 = vrot.lane.b32.xlu0 %v4567, 124
    %v4570 = vpop.permute.xlu0 %4569
    %s4572 = vtos %v4570
    %v4573 = vstv %s4572
    %v4574 = vpack.i.b16 %v4573, %v4573
    %v4576 = vunpack.c.l.bf16 %v4404
    %v4577 = vunpack.c.h.bf16 %v4404
    %v4578 = vunpack.c.l.bf16 %v4405
    %v4579 = vunpack.c.h.bf16 %v4405
    %v4580 = vunpack.c.l.bf16 %v4574
    %v4581 = vmul.f32 %v4576, %v4580
    %v4582 = vmul.f32 %v4577, %v4580
    %v4583 = vmul.f32 %v4578, %v4580
    %v4584 = vmul.f32 %v4579, %v4580
    %v4585 = vpack.c.bf16 %v4582, %v4581
    %v4586 = vpack.c.bf16 %v4584, %v4583
    %v4587 = vunpack.c.l.bf16 %v4562
    %v4588 = vunpack.c.h.bf16 %v4562
    %v4589 = vunpack.c.l.bf16 %v4563
    %v4590 = vunpack.c.h.bf16 %v4563
    %v4591 = vunpack.c.l.bf16 %v4585
    %v4592 = vunpack.c.h.bf16 %v4585
    %v4593 = vunpack.c.l.bf16 %v4586
    %v4594 = vunpack.c.h.bf16 %v4586
    %4599 = vrot.lane.b32.xlu0 %v4591, 114
    %v4600 = vpop.permute.xlu0 %4599
    %4601 = vrot.lane.b32.xlu0 %v4592, 114
    %v4602 = vpop.permute.xlu0 %4601
    %4603 = vrot.lane.b32.xlu0 %v4593, 114
    %v4604 = vpop.permute.xlu0 %4603
    %4605 = vrot.lane.b32.xlu0 %v4594, 114
    %v4606 = vpop.permute.xlu0 %4605
    %v4607 = vsel %vm298, %v4600, %v4602
    %v4608 = vsel %vm298, %v4604, %v4606
    %v4613 = vadd.f32 %v4587, %v4607
    %v4614 = vadd.f32 %v4588, %v4602
    %v4615 = vadd.f32 %v4589, %v4608
    %v4616 = vadd.f32 %v4590, %v4606
    %v4617 = vpack.c.bf16 %v4614, %v4613
    %v4618 = vpack.c.bf16 %v4616, %v4615
    %v4619 = vld [vmem:[%s1] sm:$0x1]
    %4621 = vst [vmem:[#allocation1] ss:$9 sm:$0xff] %v4619
    %v4622 = vld [vmem:[#allocation1] sm:$0xff]
    %4624 = vrot.lane.b32.xlu0 %v4622, 123
    %v4625 = vpop.permute.xlu0 %4624
    %s4627 = vtos %v4625
    %v4628 = vstv %s4627
    %v4629 = vpack.i.b16 %v4628, %v4628
    %v4631 = vunpack.c.l.bf16 %v4629
    %v4632 = vmul.f32 %v4521, %v4631
    %v4633 = vmul.f32 %v4522, %v4631
    %v4634 = vmul.f32 %v4523, %v4631
    %v4635 = vmul.f32 %v4524, %v4631
    %v4636 = vpack.c.bf16 %v4633, %v4632
    %v4637 = vpack.c.bf16 %v4635, %v4634
    %v4638 = vunpack.c.l.bf16 %v4617
    %v4639 = vunpack.c.h.bf16 %v4617
    %v4640 = vunpack.c.l.bf16 %v4618
    %v4641 = vunpack.c.h.bf16 %v4618
    %v4642 = vunpack.c.l.bf16 %v4636
    %v4643 = vunpack.c.h.bf16 %v4636
    %v4644 = vunpack.c.l.bf16 %v4637
    %v4645 = vunpack.c.h.bf16 %v4637
    %4650 = vrot.lane.b32.xlu0 %v4642, 113
    %v4651 = vpop.permute.xlu0 %4650
    %4652 = vrot.lane.b32.xlu0 %v4643, 113
    %v4653 = vpop.permute.xlu0 %4652
    %4654 = vrot.lane.b32.xlu0 %v4644, 113
    %v4655 = vpop.permute.xlu0 %4654
    %4656 = vrot.lane.b32.xlu0 %v4645, 113
    %v4657 = vpop.permute.xlu0 %4656
    %v4658 = vsel %vm401, %v4651, %v4653
    %v4659 = vsel %vm401, %v4655, %v4657
    %v4664 = vadd.f32 %v4638, %v4658
    %v4665 = vadd.f32 %v4639, %v4653
    %v4666 = vadd.f32 %v4640, %v4659
    %v4667 = vadd.f32 %v4641, %v4657
    %v4668 = vpack.c.bf16 %v4665, %v4664
    %v4669 = vpack.c.bf16 %v4667, %v4666
    %v4670 = vld [vmem:[%s1] sm:$0x1]
    %4672 = vst [vmem:[#allocation1] ss:$9 sm:$0xff] %v4670
    %v4673 = vld [vmem:[#allocation1] sm:$0xff]
    %4675 = vrot.lane.b32.xlu0 %v4673, 122
    %v4676 = vpop.permute.xlu0 %4675
    %s4678 = vtos %v4676
    %v4679 = vstv %s4678
    %v4680 = vpack.i.b16 %v4679, %v4679
    %v4682 = vunpack.c.l.bf16 %v4680
    %v4683 = vmul.f32 %v4412, %v4682
    %v4684 = vmul.f32 %v4413, %v4682
    %v4685 = vmul.f32 %v4414, %v4682
    %v4686 = vmul.f32 %v4415, %v4682
    %v4687 = vpack.c.bf16 %v4684, %v4683
    %v4688 = vpack.c.bf16 %v4686, %v4685
    %v4689 = vunpack.c.l.bf16 %v4668
    %v4690 = vunpack.c.h.bf16 %v4668
    %v4691 = vunpack.c.l.bf16 %v4669
    %v4692 = vunpack.c.h.bf16 %v4669
    %v4693 = vunpack.c.l.bf16 %v4687
    %v4694 = vunpack.c.h.bf16 %v4687
    %v4695 = vunpack.c.l.bf16 %v4688
    %v4696 = vunpack.c.h.bf16 %v4688
    %4701 = vrot.lane.b32.xlu0 %v4693, 114
    %v4702 = vpop.permute.xlu0 %4701
    %4703 = vrot.lane.b32.xlu0 %v4694, 114
    %v4704 = vpop.permute.xlu0 %4703
    %4705 = vrot.lane.b32.xlu0 %v4695, 114
    %v4706 = vpop.permute.xlu0 %4705
    %4707 = vrot.lane.b32.xlu0 %v4696, 114
    %v4708 = vpop.permute.xlu0 %4707
    %v4709 = vsel %vm298, %v4702, %v4704
    %v4710 = vsel %vm298, %v4706, %v4708
    %v4715 = vadd.f32 %v4689, %v4709
    %v4716 = vadd.f32 %v4690, %v4704
    %v4717 = vadd.f32 %v4691, %v4710
    %v4718 = vadd.f32 %v4692, %v4708
    %v4719 = vpack.c.bf16 %v4716, %v4715
    %v4720 = vpack.c.bf16 %v4718, %v4717
    %v4721 = vld [vmem:[%s1] sm:$0x1]
    %4723 = vst [vmem:[#allocation1] ss:$9 sm:$0xff] %v4721
    %v4724 = vld [vmem:[#allocation1] sm:$0xff]
    %4726 = vrot.lane.b32.xlu0 %v4724, 121
    %v4727 = vpop.permute.xlu0 %4726
    %s4729 = vtos %v4727
    %v4730 = vstv %s4729
    %v4731 = vpack.i.b16 %v4730, %v4730
    %v4733 = vunpack.c.l.bf16 %v4731
    %v4734 = vmul.f32 %v4433, %v4733
    %v4735 = vmul.f32 %v4434, %v4733
    %v4736 = vmul.f32 %v4435, %v4733
    %v4737 = vmul.f32 %v4436, %v4733
    %v4738 = vpack.c.bf16 %v4735, %v4734
    %v4739 = vpack.c.bf16 %v4737, %v4736
    %v4740 = vunpack.c.l.bf16 %v4719
    %v4741 = vunpack.c.h.bf16 %v4719
    %v4742 = vunpack.c.l.bf16 %v4720
    %v4743 = vunpack.c.h.bf16 %v4720
    %v4744 = vunpack.c.l.bf16 %v4738
    %v4745 = vunpack.c.h.bf16 %v4738
    %v4746 = vunpack.c.l.bf16 %v4739
    %v4747 = vunpack.c.h.bf16 %v4739
    %4752 = vrot.lane.b32.xlu0 %v4744, 114
    %v4753 = vpop.permute.xlu0 %4752
    %4754 = vrot.lane.b32.xlu0 %v4745, 114
    %v4755 = vpop.permute.xlu0 %4754
    %4756 = vrot.lane.b32.xlu0 %v4746, 114
    %v4757 = vpop.permute.xlu0 %4756
    %4758 = vrot.lane.b32.xlu0 %v4747, 114
    %v4759 = vpop.permute.xlu0 %4758
    %v4760 = vsel %vm298, %v4753, %v4755
    %v4761 = vsel %vm298, %v4757, %v4759
    %v4766 = vadd.f32 %v4740, %v4760
    %v4767 = vadd.f32 %v4741, %v4755
    %v4768 = vadd.f32 %v4742, %v4761
    %v4769 = vadd.f32 %v4743, %v4759
    %v4770 = vpack.c.bf16 %v4767, %v4766
    %v4771 = vpack.c.bf16 %v4769, %v4768
    %v4772 = vld [vmem:[%s1] sm:$0x1]
    %4774 = vst [vmem:[#allocation1] ss:$9 sm:$0xff] %v4772
    %v4775 = vld [vmem:[#allocation1] sm:$0xff]
    %4777 = vrot.lane.b32.xlu0 %v4775, 120
    %v4778 = vpop.permute.xlu0 %4777
    %s4780 = vtos %v4778
    %v4781 = vstv %s4780
    %v4782 = vpack.i.b16 %v4781, %v4781
    %v4784 = vunpack.c.l.bf16 %v4782
    %v4785 = vmul.f32 %v4412, %v4784
    %v4786 = vmul.f32 %v4413, %v4784
    %v4787 = vmul.f32 %v4414, %v4784
    %v4788 = vmul.f32 %v4415, %v4784
    %v4789 = vpack.c.bf16 %v4786, %v4785
    %v4790 = vpack.c.bf16 %v4788, %v4787
    %v4791 = vunpack.c.l.bf16 %v4770
    %v4792 = vunpack.c.h.bf16 %v4770
    %v4793 = vunpack.c.l.bf16 %v4771
    %v4794 = vunpack.c.h.bf16 %v4771
    %v4795 = vunpack.c.l.bf16 %v4789
    %v4796 = vunpack.c.h.bf16 %v4789
    %v4797 = vunpack.c.l.bf16 %v4790
    %v4798 = vunpack.c.h.bf16 %v4790
    %4803 = vrot.lane.b32.xlu0 %v4795, 113
    %v4804 = vpop.permute.xlu0 %4803
    %4805 = vrot.lane.b32.xlu0 %v4796, 113
    %v4806 = vpop.permute.xlu0 %4805
    %4807 = vrot.lane.b32.xlu0 %v4797, 113
    %v4808 = vpop.permute.xlu0 %4807
    %4809 = vrot.lane.b32.xlu0 %v4798, 113
    %v4810 = vpop.permute.xlu0 %4809
    %v4811 = vsel %vm401, %v4804, %v4806
    %v4812 = vsel %vm401, %v4808, %v4810
    %v4817 = vadd.f32 %v4791, %v4811
    %v4818 = vadd.f32 %v4792, %v4806
    %v4819 = vadd.f32 %v4793, %v4812
    %v4820 = vadd.f32 %v4794, %v4810
    %v4821 = vpack.c.bf16 %v4818, %v4817
    %v4822 = vpack.c.bf16 %v4820, %v4819
    %v4823 = vld [vmem:[%s2] sm:$0x1]
    %s4825 = vtos %v4823
    %v4826 = vstv %s4825
    %v4827 = vpack.i.b16 %v4826, %v4826
    %v4829 = vunpack.c.l.bf16 %v4821
    %v4830 = vunpack.c.h.bf16 %v4821
    %v4831 = vunpack.c.l.bf16 %v4822
    %v4832 = vunpack.c.h.bf16 %v4822
    %v4833 = vunpack.c.l.bf16 %v4827
    %v4834 = vadd.f32 %v4829, %v4833
    %v4835 = vadd.f32 %v4830, %v4833
    %v4836 = vadd.f32 %v4831, %v4833
    %v4837 = vadd.f32 %v4832, %v4833
    %v4838 = vpack.c.bf16 %v4835, %v4834
    %v4839 = vpack.c.bf16 %v4837, %v4836
    %v4840 = vunpack.c.l.bf16 %v4838
    %v4841 = vunpack.c.h.bf16 %v4838
    %v4842 = vunpack.c.l.bf16 %v4839
    %v4843 = vunpack.c.h.bf16 %v4839
    %v4844 = vmax.f32 %v4840, 0.0
    %v4845 = vmax.f32 %v4841, 0.0
    %v4846 = vmax.f32 %v4842, 0.0
    %v4847 = vmax.f32 %v4843, 0.0
    %v4848 = vpack.c.bf16 %v4845, %v4844
    %v4849 = vpack.c.bf16 %v4847, %v4846
    %v4850 = vld [vmem:[#allocation2] sm:$0xff]
    %v4851 = vld [vmem:[#allocation2 + $0x28] sm:$0xff]
    %v4852 = vunpack.c.l.bf16 %v4850
    %v4853 = vunpack.c.h.bf16 %v4850
    %v4854 = vunpack.c.l.bf16 %v4851
    %v4855 = vunpack.c.h.bf16 %v4851
    %v4856 = vunpack.c.l.bf16 %v4848
    %v4857 = vunpack.c.h.bf16 %v4848
    %v4858 = vunpack.c.l.bf16 %v4849
    %v4859 = vunpack.c.h.bf16 %v4849
    %v4860 = vmax.f32 %v4852, %v4856
    %v4861 = vmax.f32 %v4853, %v4857
    %v4862 = vmax.f32 %v4854, %v4858
    %v4863 = vmax.f32 %v4855, %v4859
    %v4864 = vpack.c.bf16 %v4861, %v4860
    %v4865 = vpack.c.bf16 %v4863, %v4862
    %4866 = vst.msk [vmem:[#allocation2] sm:$0xff] %vm445, %v4864
    %4867 = vst.msk [vmem:[#allocation2 + $0x28] sm:$0xff] %vm445, %v4865
    %v4868 = vld [vmem:[%s1] sm:$0x1]
    %4870 = vst [vmem:[#allocation1] ss:$9 sm:$0xff] %v4868
    %v4871 = vld [vmem:[#allocation1] sm:$0xff]
    %4873 = vrot.lane.b32.xlu0 %v4871, 119
    %v4874 = vpop.permute.xlu0 %4873
    %s4876 = vtos %v4874
    %v4877 = vstv %s4876
    %v4878 = vpack.i.b16 %v4877, %v4877
    %v4880 = vunpack.c.l.bf16 %v4878
    %v4881 = vmul.f32 %v4412, %v4880
    %v4882 = vmul.f32 %v4413, %v4880
    %v4883 = vmul.f32 %v4414, %v4880
    %v4884 = vmul.f32 %v4415, %v4880
    %v4885 = vpack.c.bf16 %v4882, %v4881
    %v4886 = vpack.c.bf16 %v4884, %v4883
    %v4887 = vld [vmem:[%s1] sm:$0x1]
    %4889 = vst [vmem:[#allocation1] ss:$9 sm:$0xff] %v4887
    %v4890 = vld [vmem:[#allocation1] sm:$0xff]
    %4892 = vrot.lane.b32.xlu0 %v4890, 118
    %v4893 = vpop.permute.xlu0 %4892
    %s4895 = vtos %v4893
    %v4896 = vstv %s4895
    %v4897 = vpack.i.b16 %v4896, %v4896
    %v4899 = vunpack.c.l.bf16 %v4897
    %v4900 = vmul.f32 %v4433, %v4899
    %v4901 = vmul.f32 %v4434, %v4899
    %v4902 = vmul.f32 %v4435, %v4899
    %v4903 = vmul.f32 %v4436, %v4899
    %v4904 = vpack.c.bf16 %v4901, %v4900
    %v4905 = vpack.c.bf16 %v4903, %v4902
    %v4906 = vunpack.c.l.bf16 %v4885
    %v4907 = vunpack.c.h.bf16 %v4885
    %v4908 = vunpack.c.l.bf16 %v4886
    %v4909 = vunpack.c.h.bf16 %v4886
    %v4910 = vunpack.c.l.bf16 %v4904
    %v4911 = vunpack.c.h.bf16 %v4904
    %v4912 = vunpack.c.l.bf16 %v4905
    %v4913 = vunpack.c.h.bf16 %v4905
    %v4914 = vadd.f32 %v4906, %v4910
    %v4915 = vadd.f32 %v4907, %v4911
    %v4916 = vadd.f32 %v4908, %v4912
    %v4917 = vadd.f32 %v4909, %v4913
    %v4918 = vpack.c.bf16 %v4915, %v4914
    %v4919 = vpack.c.bf16 %v4917, %v4916
    %v4920 = vld [vmem:[%s1] sm:$0x1]
    %4922 = vst [vmem:[#allocation1] ss:$9 sm:$0xff] %v4920
    %v4923 = vld [vmem:[#allocation1] sm:$0xff]
    %4925 = vrot.lane.b32.xlu0 %v4923, 117
    %v4926 = vpop.permute.xlu0 %4925
    %s4928 = vtos %v4926
    %v4929 = vstv %s4928
    %v4930 = vpack.i.b16 %v4929, %v4929
    %v4932 = vunpack.c.l.bf16 %v4930
    %v4933 = vmul.f32 %v4412, %v4932
    %v4934 = vmul.f32 %v4413, %v4932
    %v4935 = vmul.f32 %v4414, %v4932
    %v4936 = vmul.f32 %v4415, %v4932
    %v4937 = vpack.c.bf16 %v4934, %v4933
    %v4938 = vpack.c.bf16 %v4936, %v4935
    %v4939 = vunpack.c.l.bf16 %v4918
    %v4940 = vunpack.c.h.bf16 %v4918
    %v4941 = vunpack.c.l.bf16 %v4919
    %v4942 = vunpack.c.h.bf16 %v4919
    %v4943 = vunpack.c.l.bf16 %v4937
    %v4944 = vunpack.c.h.bf16 %v4937
    %v4945 = vunpack.c.l.bf16 %v4938
    %v4946 = vunpack.c.h.bf16 %v4938
    %4951 = vrot.lane.b32.xlu0 %v4943, 127
    %v4952 = vpop.permute.xlu0 %4951
    %4953 = vrot.lane.b32.xlu0 %v4944, 127
    %v4954 = vpop.permute.xlu0 %4953
    %4955 = vrot.lane.b32.xlu0 %v4945, 127
    %v4956 = vpop.permute.xlu0 %4955
    %4957 = vrot.lane.b32.xlu0 %v4946, 127
    %v4958 = vpop.permute.xlu0 %4957
    %v4959 = vsel %vm121, %v4952, %v4954
    %v4960 = vsel %vm121, %v4956, %v4958
    %v4965 = vadd.f32 %v4939, %v4959
    %v4966 = vadd.f32 %v4940, %v4954
    %v4967 = vadd.f32 %v4941, %v4960
    %v4968 = vadd.f32 %v4942, %v4958
    %v4969 = vpack.c.bf16 %v4966, %v4965
    %v4970 = vpack.c.bf16 %v4968, %v4967
    %v4971 = vld [vmem:[%s1] sm:$0x1]
    %4973 = vst [vmem:[#allocation1] ss:$9 sm:$0xff] %v4971
    %v4974 = vld [vmem:[#allocation1] sm:$0xff]
    %4976 = vrot.lane.b32.xlu0 %v4974, 116
    %v4977 = vpop.permute.xlu0 %4976
    %s4979 = vtos %v4977
    %v4980 = vstv %s4979
    %v4981 = vpack.i.b16 %v4980, %v4980
    %v4983 = vunpack.c.l.bf16 %v4981
    %v4984 = vmul.f32 %v4521, %v4983
    %v4985 = vmul.f32 %v4522, %v4983
    %v4986 = vmul.f32 %v4523, %v4983
    %v4987 = vmul.f32 %v4524, %v4983
    %v4988 = vpack.c.bf16 %v4985, %v4984
    %v4989 = vpack.c.bf16 %v4987, %v4986
    %v4990 = vunpack.c.l.bf16 %v4969
    %v4991 = vunpack.c.h.bf16 %v4969
    %v4992 = vunpack.c.l.bf16 %v4970
    %v4993 = vunpack.c.h.bf16 %v4970
    %v4994 = vunpack.c.l.bf16 %v4988
    %v4995 = vunpack.c.h.bf16 %v4988
    %v4996 = vunpack.c.l.bf16 %v4989
    %v4997 = vunpack.c.h.bf16 %v4989
    %5002 = vrot.lane.b32.xlu0 %v4994, 114
    %v5003 = vpop.permute.xlu0 %5002
    %5004 = vrot.lane.b32.xlu0 %v4995, 114
    %v5005 = vpop.permute.xlu0 %5004
    %5006 = vrot.lane.b32.xlu0 %v4996, 114
    %v5007 = vpop.permute.xlu0 %5006
    %5008 = vrot.lane.b32.xlu0 %v4997, 114
    %v5009 = vpop.permute.xlu0 %5008
    %v5010 = vsel %vm298, %v5003, %v5005
    %v5011 = vsel %vm298, %v5007, %v5009
    %v5016 = vadd.f32 %v4990, %v5010
    %v5017 = vadd.f32 %v4991, %v5005
    %v5018 = vadd.f32 %v4992, %v5011
    %v5019 = vadd.f32 %v4993, %v5009
    %v5020 = vpack.c.bf16 %v5017, %v5016
    %v5021 = vpack.c.bf16 %v5019, %v5018
    %v5022 = vld [vmem:[%s1] sm:$0x1]
    %5024 = vst [vmem:[#allocation1] ss:$9 sm:$0xff] %v5022
    %v5025 = vld [vmem:[#allocation1] sm:$0xff]
    %5027 = vrot.lane.b32.xlu0 %v5025, 115
    %v5028 = vpop.permute.xlu0 %5027
    %s5030 = vtos %v5028
    %v5031 = vstv %s5030
    %v5032 = vpack.i.b16 %v5031, %v5031
    %v5034 = vunpack.c.l.bf16 %v5032
    %v5035 = vmul.f32 %v4576, %v5034
    %v5036 = vmul.f32 %v4577, %v5034
    %v5037 = vmul.f32 %v4578, %v5034
    %v5038 = vmul.f32 %v4579, %v5034
    %v5039 = vpack.c.bf16 %v5036, %v5035
    %v5040 = vpack.c.bf16 %v5038, %v5037
    %v5041 = vunpack.c.l.bf16 %v5020
    %v5042 = vunpack.c.h.bf16 %v5020
    %v5043 = vunpack.c.l.bf16 %v5021
    %v5044 = vunpack.c.h.bf16 %v5021
    %v5045 = vunpack.c.l.bf16 %v5039
    %v5046 = vunpack.c.h.bf16 %v5039
    %v5047 = vunpack.c.l.bf16 %v5040
    %v5048 = vunpack.c.h.bf16 %v5040
    %5053 = vrot.lane.b32.xlu0 %v5045, 114
    %v5054 = vpop.permute.xlu0 %5053
    %5055 = vrot.lane.b32.xlu0 %v5046, 114
    %v5056 = vpop.permute.xlu0 %5055
    %5057 = vrot.lane.b32.xlu0 %v5047, 114
    %v5058 = vpop.permute.xlu0 %5057
    %5059 = vrot.lane.b32.xlu0 %v5048, 114
    %v5060 = vpop.permute.xlu0 %5059
    %v5061 = vsel %vm298, %v5054, %v5056
    %v5062 = vsel %vm298, %v5058, %v5060
    %v5067 = vadd.f32 %v5041, %v5061
    %v5068 = vadd.f32 %v5042, %v5056
    %v5069 = vadd.f32 %v5043, %v5062
    %v5070 = vadd.f32 %v5044, %v5060
    %v5071 = vpack.c.bf16 %v5068, %v5067
    %v5072 = vpack.c.bf16 %v5070, %v5069
    %v5073 = vld [vmem:[%s1] sm:$0x1]
    %5075 = vst [vmem:[#allocation1] ss:$9 sm:$0xff] %v5073
    %v5076 = vld [vmem:[#allocation1] sm:$0xff]
    %5078 = vrot.lane.b32.xlu0 %v5076, 114
    %v5079 = vpop.permute.xlu0 %5078
    %s5081 = vtos %v5079
    %v5082 = vstv %s5081
    %v5083 = vpack.i.b16 %v5082, %v5082
    %v5085 = vunpack.c.l.bf16 %v5083
    %v5086 = vmul.f32 %v4521, %v5085
    %v5087 = vmul.f32 %v4522, %v5085
    %v5088 = vmul.f32 %v4523, %v5085
    %v5089 = vmul.f32 %v4524, %v5085
    %v5090 = vpack.c.bf16 %v5087, %v5086
    %v5091 = vpack.c.bf16 %v5089, %v5088
    %v5092 = vunpack.c.l.bf16 %v5071
    %v5093 = vunpack.c.h.bf16 %v5071
    %v5094 = vunpack.c.l.bf16 %v5072
    %v5095 = vunpack.c.h.bf16 %v5072
    %v5096 = vunpack.c.l.bf16 %v5090
    %v5097 = vunpack.c.h.bf16 %v5090
    %v5098 = vunpack.c.l.bf16 %v5091
    %v5099 = vunpack.c.h.bf16 %v5091
    %5104 = vrot.lane.b32.xlu0 %v5096, 113
    %v5105 = vpop.permute.xlu0 %5104
    %5106 = vrot.lane.b32.xlu0 %v5097, 113
    %v5107 = vpop.permute.xlu0 %5106
    %5108 = vrot.lane.b32.xlu0 %v5098, 113
    %v5109 = vpop.permute.xlu0 %5108
    %5110 = vrot.lane.b32.xlu0 %v5099, 113
    %v5111 = vpop.permute.xlu0 %5110
    %v5112 = vsel %vm401, %v5105, %v5107
    %v5113 = vsel %vm401, %v5109, %v5111
    %v5118 = vadd.f32 %v5092, %v5112
    %v5119 = vadd.f32 %v5093, %v5107
    %v5120 = vadd.f32 %v5094, %v5113
    %v5121 = vadd.f32 %v5095, %v5111
    %v5122 = vpack.c.bf16 %v5119, %v5118
    %v5123 = vpack.c.bf16 %v5121, %v5120
    %v5124 = vld [vmem:[%s1] sm:$0x1]
    %5126 = vst [vmem:[#allocation1] ss:$9 sm:$0xff] %v5124
    %v5127 = vld [vmem:[#allocation1] sm:$0xff]
    %5129 = vrot.lane.b32.xlu0 %v5127, 113
    %v5130 = vpop.permute.xlu0 %5129
    %s5132 = vtos %v5130
    %v5133 = vstv %s5132
    %v5134 = vpack.i.b16 %v5133, %v5133
    %v5136 = vunpack.c.l.bf16 %v5134
    %v5137 = vmul.f32 %v4412, %v5136
    %v5138 = vmul.f32 %v4413, %v5136
    %v5139 = vmul.f32 %v4414, %v5136
    %v5140 = vmul.f32 %v4415, %v5136
    %v5141 = vpack.c.bf16 %v5138, %v5137
    %v5142 = vpack.c.bf16 %v5140, %v5139
    %v5143 = vunpack.c.l.bf16 %v5122
    %v5144 = vunpack.c.h.bf16 %v5122
    %v5145 = vunpack.c.l.bf16 %v5123
    %v5146 = vunpack.c.h.bf16 %v5123
    %v5147 = vunpack.c.l.bf16 %v5141
    %v5148 = vunpack.c.h.bf16 %v5141
    %v5149 = vunpack.c.l.bf16 %v5142
    %v5150 = vunpack.c.h.bf16 %v5142
    %5155 = vrot.lane.b32.xlu0 %v5147, 114
    %v5156 = vpop.permute.xlu0 %5155
    %5157 = vrot.lane.b32.xlu0 %v5148, 114
    %v5158 = vpop.permute.xlu0 %5157
    %5159 = vrot.lane.b32.xlu0 %v5149, 114
    %v5160 = vpop.permute.xlu0 %5159
    %5161 = vrot.lane.b32.xlu0 %v5150, 114
    %v5162 = vpop.permute.xlu0 %5161
    %v5163 = vsel %vm298, %v5156, %v5158
    %v5164 = vsel %vm298, %v5160, %v5162
    %v5169 = vadd.f32 %v5143, %v5163
    %v5170 = vadd.f32 %v5144, %v5158
    %v5171 = vadd.f32 %v5145, %v5164
    %v5172 = vadd.f32 %v5146, %v5162
    %v5173 = vpack.c.bf16 %v5170, %v5169
    %v5174 = vpack.c.bf16 %v5172, %v5171
    %v5175 = vld [vmem:[%s1] sm:$0x1]
    %5177 = vst [vmem:[#allocation1] ss:$9 sm:$0xff] %v5175
    %v5178 = vld [vmem:[#allocation1] sm:$0xff]
    %5180 = vrot.lane.b32.xlu0 %v5178, 112
    %v5181 = vpop.permute.xlu0 %5180
    %s5183 = vtos %v5181
    %v5184 = vstv %s5183
    %v5185 = vpack.i.b16 %v5184, %v5184
    %v5187 = vunpack.c.l.bf16 %v5185
    %v5188 = vmul.f32 %v4433, %v5187
    %v5189 = vmul.f32 %v4434, %v5187
    %v5190 = vmul.f32 %v4435, %v5187
    %v5191 = vmul.f32 %v4436, %v5187
    %v5192 = vpack.c.bf16 %v5189, %v5188
    %v5193 = vpack.c.bf16 %v5191, %v5190
    %v5194 = vunpack.c.l.bf16 %v5173
    %v5195 = vunpack.c.h.bf16 %v5173
    %v5196 = vunpack.c.l.bf16 %v5174
    %v5197 = vunpack.c.h.bf16 %v5174
    %v5198 = vunpack.c.l.bf16 %v5192
    %v5199 = vunpack.c.h.bf16 %v5192
    %v5200 = vunpack.c.l.bf16 %v5193
    %v5201 = vunpack.c.h.bf16 %v5193
    %5206 = vrot.lane.b32.xlu0 %v5198, 114
    %v5207 = vpop.permute.xlu0 %5206
    %5208 = vrot.lane.b32.xlu0 %v5199, 114
    %v5209 = vpop.permute.xlu0 %5208
    %5210 = vrot.lane.b32.xlu0 %v5200, 114
    %v5211 = vpop.permute.xlu0 %5210
    %5212 = vrot.lane.b32.xlu0 %v5201, 114
    %v5213 = vpop.permute.xlu0 %5212
    %v5214 = vsel %vm298, %v5207, %v5209
    %v5215 = vsel %vm298, %v5211, %v5213
    %v5220 = vadd.f32 %v5194, %v5214
    %v5221 = vadd.f32 %v5195, %v5209
    %v5222 = vadd.f32 %v5196, %v5215
    %v5223 = vadd.f32 %v5197, %v5213
    %v5224 = vpack.c.bf16 %v5221, %v5220
    %v5225 = vpack.c.bf16 %v5223, %v5222
    %v5226 = vld [vmem:[%s1] sm:$0x1]
    %5228 = vst [vmem:[#allocation1] ss:$9 sm:$0xff] %v5226
    %v5229 = vld [vmem:[#allocation1] sm:$0xff]
    %5231 = vrot.lane.b32.xlu0 %v5229, 111
    %v5232 = vpop.permute.xlu0 %5231
    %s5234 = vtos %v5232
    %v5235 = vstv %s5234
    %v5236 = vpack.i.b16 %v5235, %v5235
    %v5238 = vunpack.c.l.bf16 %v5236
    %v5239 = vmul.f32 %v4412, %v5238
    %v5240 = vmul.f32 %v4413, %v5238
    %v5241 = vmul.f32 %v4414, %v5238
    %v5242 = vmul.f32 %v4415, %v5238
    %v5243 = vpack.c.bf16 %v5240, %v5239
    %v5244 = vpack.c.bf16 %v5242, %v5241
    %v5245 = vunpack.c.l.bf16 %v5224
    %v5246 = vunpack.c.h.bf16 %v5224
    %v5247 = vunpack.c.l.bf16 %v5225
    %v5248 = vunpack.c.h.bf16 %v5225
    %v5249 = vunpack.c.l.bf16 %v5243
    %v5250 = vunpack.c.h.bf16 %v5243
    %v5251 = vunpack.c.l.bf16 %v5244
    %v5252 = vunpack.c.h.bf16 %v5244
    %5257 = vrot.lane.b32.xlu0 %v5249, 113
    %v5258 = vpop.permute.xlu0 %5257
    %5259 = vrot.lane.b32.xlu0 %v5250, 113
    %v5260 = vpop.permute.xlu0 %5259
    %5261 = vrot.lane.b32.xlu0 %v5251, 113
    %v5262 = vpop.permute.xlu0 %5261
    %5263 = vrot.lane.b32.xlu0 %v5252, 113
    %v5264 = vpop.permute.xlu0 %5263
    %v5265 = vsel %vm401, %v5258, %v5260
    %v5266 = vsel %vm401, %v5262, %v5264
    %v5271 = vadd.f32 %v5245, %v5265
    %v5272 = vadd.f32 %v5246, %v5260
    %v5273 = vadd.f32 %v5247, %v5266
    %v5274 = vadd.f32 %v5248, %v5264
    %v5275 = vpack.c.bf16 %v5272, %v5271
    %v5276 = vpack.c.bf16 %v5274, %v5273
    %v5277 = vld [vmem:[%s2] sm:$0x1]
    %5279 = vst [vmem:[#allocation1] ss:$9 sm:$0xff] %v5277
    %v5280 = vld [vmem:[#allocation1] sm:$0xff]
    %5282 = vrot.lane.b32.xlu0 %v5280, 127
    %v5283 = vpop.permute.xlu0 %5282
    %s5285 = vtos %v5283
    %v5286 = vstv %s5285
    %v5287 = vpack.i.b16 %v5286, %v5286
    %v5289 = vunpack.c.l.bf16 %v5275
    %v5290 = vunpack.c.h.bf16 %v5275
    %v5291 = vunpack.c.l.bf16 %v5276
    %v5292 = vunpack.c.h.bf16 %v5276
    %v5293 = vunpack.c.l.bf16 %v5287
    %v5294 = vadd.f32 %v5289, %v5293
    %v5295 = vadd.f32 %v5290, %v5293
    %v5296 = vadd.f32 %v5291, %v5293
    %v5297 = vadd.f32 %v5292, %v5293
    %v5298 = vpack.c.bf16 %v5295, %v5294
    %v5299 = vpack.c.bf16 %v5297, %v5296
    %v5300 = vunpack.c.l.bf16 %v5298
    %v5301 = vunpack.c.h.bf16 %v5298
    %v5302 = vunpack.c.l.bf16 %v5299
    %v5303 = vunpack.c.h.bf16 %v5299
    %v5304 = vmax.f32 %v5300, 0.0
    %v5305 = vmax.f32 %v5301, 0.0
    %v5306 = vmax.f32 %v5302, 0.0
    %v5307 = vmax.f32 %v5303, 0.0
    %v5308 = vpack.c.bf16 %v5305, %v5304
    %v5309 = vpack.c.bf16 %v5307, %v5306
    %v5310 = vld [vmem:[#allocation2 + $0x8] sm:$0xff]
    %v5311 = vld [vmem:[#allocation2 + $0x30] sm:$0xff]
    %v5312 = vunpack.c.l.bf16 %v5310
    %v5313 = vunpack.c.h.bf16 %v5310
    %v5314 = vunpack.c.l.bf16 %v5311
    %v5315 = vunpack.c.h.bf16 %v5311
    %v5316 = vunpack.c.l.bf16 %v5308
    %v5317 = vunpack.c.h.bf16 %v5308
    %v5318 = vunpack.c.l.bf16 %v5309
    %v5319 = vunpack.c.h.bf16 %v5309
    %v5320 = vmax.f32 %v5312, %v5316
    %v5321 = vmax.f32 %v5313, %v5317
    %v5322 = vmax.f32 %v5314, %v5318
    %v5323 = vmax.f32 %v5315, %v5319
    %v5324 = vpack.c.bf16 %v5321, %v5320
    %v5325 = vpack.c.bf16 %v5323, %v5322
    %5326 = vst.msk [vmem:[#allocation2 + $0x8] sm:$0xff] %vm445, %v5324
    %5327 = vst.msk [vmem:[#allocation2 + $0x30] sm:$0xff] %vm445, %v5325
    %v5328 = vld [vmem:[%s1] sm:$0x1]
    %5330 = vst [vmem:[#allocation1] ss:$9 sm:$0xff] %v5328
    %v5331 = vld [vmem:[#allocation1] sm:$0xff]
    %5333 = vrot.lane.b32.xlu0 %v5331, 110
    %v5334 = vpop.permute.xlu0 %5333
    %s5336 = vtos %v5334
    %v5337 = vstv %s5336
    %v5338 = vpack.i.b16 %v5337, %v5337
    %v5340 = vunpack.c.l.bf16 %v5338
    %v5341 = vmul.f32 %v4412, %v5340
    %v5342 = vmul.f32 %v4413, %v5340
    %v5343 = vmul.f32 %v4414, %v5340
    %v5344 = vmul.f32 %v4415, %v5340
    %v5345 = vpack.c.bf16 %v5342, %v5341
    %v5346 = vpack.c.bf16 %v5344, %v5343
    %v5347 = vld [vmem:[%s1] sm:$0x1]
    %5349 = vst [vmem:[#allocation1] ss:$9 sm:$0xff] %v5347
    %v5350 = vld [vmem:[#allocation1] sm:$0xff]
    %5352 = vrot.lane.b32.xlu0 %v5350, 109
    %v5353 = vpop.permute.xlu0 %5352
    %s5355 = vtos %v5353
    %v5356 = vstv %s5355
    %v5357 = vpack.i.b16 %v5356, %v5356
    %v5359 = vunpack.c.l.bf16 %v5357
    %v5360 = vmul.f32 %v4433, %v5359
    %v5361 = vmul.f32 %v4434, %v5359
    %v5362 = vmul.f32 %v4435, %v5359
    %v5363 = vmul.f32 %v4436, %v5359
    %v5364 = vpack.c.bf16 %v5361, %v5360
    %v5365 = vpack.c.bf16 %v5363, %v5362
    %v5366 = vunpack.c.l.bf16 %v5345
    %v5367 = vunpack.c.h.bf16 %v5345
    %v5368 = vunpack.c.l.bf16 %v5346
    %v5369 = vunpack.c.h.bf16 %v5346
    %v5370 = vunpack.c.l.bf16 %v5364
    %v5371 = vunpack.c.h.bf16 %v5364
    %v5372 = vunpack.c.l.bf16 %v5365
    %v5373 = vunpack.c.h.bf16 %v5365
    %v5374 = vadd.f32 %v5366, %v5370
    %v5375 = vadd.f32 %v5367, %v5371
    %v5376 = vadd.f32 %v5368, %v5372
    %v5377 = vadd.f32 %v5369, %v5373
    %v5378 = vpack.c.bf16 %v5375, %v5374
    %v5379 = vpack.c.bf16 %v5377, %v5376
    %v5380 = vld [vmem:[%s1] sm:$0x1]
    %5382 = vst [vmem:[#allocation1] ss:$9 sm:$0xff] %v5380
    %v5383 = vld [vmem:[#allocation1] sm:$0xff]
    %5385 = vrot.lane.b32.xlu0 %v5383, 108
    %v5386 = vpop.permute.xlu0 %5385
    %s5388 = vtos %v5386
    %v5389 = vstv %s5388
    %v5390 = vpack.i.b16 %v5389, %v5389
    %v5392 = vunpack.c.l.bf16 %v5390
    %v5393 = vmul.f32 %v4412, %v5392
    %v5394 = vmul.f32 %v4413, %v5392
    %v5395 = vmul.f32 %v4414, %v5392
    %v5396 = vmul.f32 %v4415, %v5392
    %v5397 = vpack.c.bf16 %v5394, %v5393
    %v5398 = vpack.c.bf16 %v5396, %v5395
    %v5399 = vunpack.c.l.bf16 %v5378
    %v5400 = vunpack.c.h.bf16 %v5378
    %v5401 = vunpack.c.l.bf16 %v5379
    %v5402 = vunpack.c.h.bf16 %v5379
    %v5403 = vunpack.c.l.bf16 %v5397
    %v5404 = vunpack.c.h.bf16 %v5397
    %v5405 = vunpack.c.l.bf16 %v5398
    %v5406 = vunpack.c.h.bf16 %v5398
    %5411 = vrot.lane.b32.xlu0 %v5403, 127
    %v5412 = vpop.permute.xlu0 %5411
    %5413 = vrot.lane.b32.xlu0 %v5404, 127
    %v5414 = vpop.permute.xlu0 %5413
    %5415 = vrot.lane.b32.xlu0 %v5405, 127
    %v5416 = vpop.permute.xlu0 %5415
    %5417 = vrot.lane.b32.xlu0 %v5406, 127
    %v5418 = vpop.permute.xlu0 %5417
    %v5419 = vsel %vm121, %v5412, %v5414
    %v5420 = vsel %vm121, %v5416, %v5418
    %v5425 = vadd.f32 %v5399, %v5419
    %v5426 = vadd.f32 %v5400, %v5414
    %v5427 = vadd.f32 %v5401, %v5420
    %v5428 = vadd.f32 %v5402, %v5418
    %v5429 = vpack.c.bf16 %v5426, %v5425
    %v5430 = vpack.c.bf16 %v5428, %v5427
    %v5431 = vld [vmem:[%s1] sm:$0x1]
    %5433 = vst [vmem:[#allocation1] ss:$9 sm:$0xff] %v5431
    %v5434 = vld [vmem:[#allocation1] sm:$0xff]
    %5436 = vrot.lane.b32.xlu0 %v5434, 107
    %v5437 = vpop.permute.xlu0 %5436
    %s5439 = vtos %v5437
    %v5440 = vstv %s5439
    %v5441 = vpack.i.b16 %v5440, %v5440
    %v5443 = vunpack.c.l.bf16 %v5441
    %v5444 = vmul.f32 %v4521, %v5443
    %v5445 = vmul.f32 %v4522, %v5443
    %v5446 = vmul.f32 %v4523, %v5443
    %v5447 = vmul.f32 %v4524, %v5443
    %v5448 = vpack.c.bf16 %v5445, %v5444
    %v5449 = vpack.c.bf16 %v5447, %v5446
    %v5450 = vunpack.c.l.bf16 %v5429
    %v5451 = vunpack.c.h.bf16 %v5429
    %v5452 = vunpack.c.l.bf16 %v5430
    %v5453 = vunpack.c.h.bf16 %v5430
    %v5454 = vunpack.c.l.bf16 %v5448
    %v5455 = vunpack.c.h.bf16 %v5448
    %v5456 = vunpack.c.l.bf16 %v5449
    %v5457 = vunpack.c.h.bf16 %v5449
    %5462 = vrot.lane.b32.xlu0 %v5454, 114
    %v5463 = vpop.permute.xlu0 %5462
    %5464 = vrot.lane.b32.xlu0 %v5455, 114
    %v5465 = vpop.permute.xlu0 %5464
    %5466 = vrot.lane.b32.xlu0 %v5456, 114
    %v5467 = vpop.permute.xlu0 %5466
    %5468 = vrot.lane.b32.xlu0 %v5457, 114
    %v5469 = vpop.permute.xlu0 %5468
    %v5470 = vsel %vm298, %v5463, %v5465
    %v5471 = vsel %vm298, %v5467, %v5469
    %v5476 = vadd.f32 %v5450, %v5470
    %v5477 = vadd.f32 %v5451, %v5465
    %v5478 = vadd.f32 %v5452, %v5471
    %v5479 = vadd.f32 %v5453, %v5469
    %v5480 = vpack.c.bf16 %v5477, %v5476
    %v5481 = vpack.c.bf16 %v5479, %v5478
    %v5482 = vld [vmem:[%s1] sm:$0x1]
    %5484 = vst [vmem:[#allocation1] ss:$9 sm:$0xff] %v5482
    %v5485 = vld [vmem:[#allocation1] sm:$0xff]
    %5487 = vrot.lane.b32.xlu0 %v5485, 106
    %v5488 = vpop.permute.xlu0 %5487
    %s5490 = vtos %v5488
    %v5491 = vstv %s5490
    %v5492 = vpack.i.b16 %v5491, %v5491
    %v5494 = vunpack.c.l.bf16 %v5492
    %v5495 = vmul.f32 %v4576, %v5494
    %v5496 = vmul.f32 %v4577, %v5494
    %v5497 = vmul.f32 %v4578, %v5494
    %v5498 = vmul.f32 %v4579, %v5494
    %v5499 = vpack.c.bf16 %v5496, %v5495
    %v5500 = vpack.c.bf16 %v5498, %v5497
    %v5501 = vunpack.c.l.bf16 %v5480
    %v5502 = vunpack.c.h.bf16 %v5480
    %v5503 = vunpack.c.l.bf16 %v5481
    %v5504 = vunpack.c.h.bf16 %v5481
    %v5505 = vunpack.c.l.bf16 %v5499
    %v5506 = vunpack.c.h.bf16 %v5499
    %v5507 = vunpack.c.l.bf16 %v5500
    %v5508 = vunpack.c.h.bf16 %v5500
    %5513 = vrot.lane.b32.xlu0 %v5505, 114
    %v5514 = vpop.permute.xlu0 %5513
    %5515 = vrot.lane.b32.xlu0 %v5506, 114
    %v5516 = vpop.permute.xlu0 %5515
    %5517 = vrot.lane.b32.xlu0 %v5507, 114
    %v5518 = vpop.permute.xlu0 %5517
    %5519 = vrot.lane.b32.xlu0 %v5508, 114
    %v5520 = vpop.permute.xlu0 %5519
    %v5521 = vsel %vm298, %v5514, %v5516
    %v5522 = vsel %vm298, %v5518, %v5520
    %v5527 = vadd.f32 %v5501, %v5521
    %v5528 = vadd.f32 %v5502, %v5516
    %v5529 = vadd.f32 %v5503, %v5522
    %v5530 = vadd.f32 %v5504, %v5520
    %v5531 = vpack.c.bf16 %v5528, %v5527
    %v5532 = vpack.c.bf16 %v5530, %v5529
    %v5533 = vld [vmem:[%s1] sm:$0x1]
    %5535 = vst [vmem:[#allocation1] ss:$9 sm:$0xff] %v5533
    %v5536 = vld [vmem:[#allocation1] sm:$0xff]
    %5538 = vrot.lane.b32.xlu0 %v5536, 105
    %v5539 = vpop.permute.xlu0 %5538
    %s5541 = vtos %v5539
    %v5542 = vstv %s5541
    %v5543 = vpack.i.b16 %v5542, %v5542
    %v5545 = vunpack.c.l.bf16 %v5543
    %v5546 = vmul.f32 %v4521, %v5545
    %v5547 = vmul.f32 %v4522, %v5545
    %v5548 = vmul.f32 %v4523, %v5545
    %v5549 = vmul.f32 %v4524, %v5545
    %v5550 = vpack.c.bf16 %v5547, %v5546
    %v5551 = vpack.c.bf16 %v5549, %v5548
    %v5552 = vunpack.c.l.bf16 %v5531
    %v5553 = vunpack.c.h.bf16 %v5531
    %v5554 = vunpack.c.l.bf16 %v5532
    %v5555 = vunpack.c.h.bf16 %v5532
    %v5556 = vunpack.c.l.bf16 %v5550
    %v5557 = vunpack.c.h.bf16 %v5550
    %v5558 = vunpack.c.l.bf16 %v5551
    %v5559 = vunpack.c.h.bf16 %v5551
    %5564 = vrot.lane.b32.xlu0 %v5556, 113
    %v5565 = vpop.permute.xlu0 %5564
    %5566 = vrot.lane.b32.xlu0 %v5557, 113
    %v5567 = vpop.permute.xlu0 %5566
    %5568 = vrot.lane.b32.xlu0 %v5558, 113
    %v5569 = vpop.permute.xlu0 %5568
    %5570 = vrot.lane.b32.xlu0 %v5559, 113
    %v5571 = vpop.permute.xlu0 %5570
    %v5572 = vsel %vm401, %v5565, %v5567
    %v5573 = vsel %vm401, %v5569, %v5571
    %v5578 = vadd.f32 %v5552, %v5572
    %v5579 = vadd.f32 %v5553, %v5567
    %v5580 = vadd.f32 %v5554, %v5573
    %v5581 = vadd.f32 %v5555, %v5571
    %v5582 = vpack.c.bf16 %v5579, %v5578
    %v5583 = vpack.c.bf16 %v5581, %v5580
    %v5584 = vld [vmem:[%s1] sm:$0x1]
    %5586 = vst [vmem:[#allocation1] ss:$9 sm:$0xff] %v5584
    %v5587 = vld [vmem:[#allocation1] sm:$0xff]
    %5589 = vrot.lane.b32.xlu0 %v5587, 104
    %v5590 = vpop.permute.xlu0 %5589
    %s5592 = vtos %v5590
    %v5593 = vstv %s5592
    %v5594 = vpack.i.b16 %v5593, %v5593
    %v5596 = vunpack.c.l.bf16 %v5594
    %v5597 = vmul.f32 %v4412, %v5596
    %v5598 = vmul.f32 %v4413, %v5596
    %v5599 = vmul.f32 %v4414, %v5596
    %v5600 = vmul.f32 %v4415, %v5596
    %v5601 = vpack.c.bf16 %v5598, %v5597
    %v5602 = vpack.c.bf16 %v5600, %v5599
    %v5603 = vunpack.c.l.bf16 %v5582
    %v5604 = vunpack.c.h.bf16 %v5582
    %v5605 = vunpack.c.l.bf16 %v5583
    %v5606 = vunpack.c.h.bf16 %v5583
    %v5607 = vunpack.c.l.bf16 %v5601
    %v5608 = vunpack.c.h.bf16 %v5601
    %v5609 = vunpack.c.l.bf16 %v5602
    %v5610 = vunpack.c.h.bf16 %v5602
    %5615 = vrot.lane.b32.xlu0 %v5607, 114
    %v5616 = vpop.permute.xlu0 %5615
    %5617 = vrot.lane.b32.xlu0 %v5608, 114
    %v5618 = vpop.permute.xlu0 %5617
    %5619 = vrot.lane.b32.xlu0 %v5609, 114
    %v5620 = vpop.permute.xlu0 %5619
    %5621 = vrot.lane.b32.xlu0 %v5610, 114
    %v5622 = vpop.permute.xlu0 %5621
    %v5623 = vsel %vm298, %v5616, %v5618
    %v5624 = vsel %vm298, %v5620, %v5622
    %v5629 = vadd.f32 %v5603, %v5623
    %v5630 = vadd.f32 %v5604, %v5618
    %v5631 = vadd.f32 %v5605, %v5624
    %v5632 = vadd.f32 %v5606, %v5622
    %v5633 = vpack.c.bf16 %v5630, %v5629
    %v5634 = vpack.c.bf16 %v5632, %v5631
    %v5635 = vld [vmem:[%s1] sm:$0x1]
    %5637 = vst [vmem:[#allocation1] ss:$9 sm:$0xff] %v5635
    %v5638 = vld [vmem:[#allocation1] sm:$0xff]
    %5640 = vrot.lane.b32.xlu0 %v5638, 103
    %v5641 = vpop.permute.xlu0 %5640
    %s5643 = vtos %v5641
    %v5644 = vstv %s5643
    %v5645 = vpack.i.b16 %v5644, %v5644
    %v5647 = vunpack.c.l.bf16 %v5645
    %v5648 = vmul.f32 %v4433, %v5647
    %v5649 = vmul.f32 %v4434, %v5647
    %v5650 = vmul.f32 %v4435, %v5647
    %v5651 = vmul.f32 %v4436, %v5647
    %v5652 = vpack.c.bf16 %v5649, %v5648
    %v5653 = vpack.c.bf16 %v5651, %v5650
    %v5654 = vunpack.c.l.bf16 %v5633
    %v5655 = vunpack.c.h.bf16 %v5633
    %v5656 = vunpack.c.l.bf16 %v5634
    %v5657 = vunpack.c.h.bf16 %v5634
    %v5658 = vunpack.c.l.bf16 %v5652
    %v5659 = vunpack.c.h.bf16 %v5652
    %v5660 = vunpack.c.l.bf16 %v5653
    %v5661 = vunpack.c.h.bf16 %v5653
    %5666 = vrot.lane.b32.xlu0 %v5658, 114
    %v5667 = vpop.permute.xlu0 %5666
    %5668 = vrot.lane.b32.xlu0 %v5659, 114
    %v5669 = vpop.permute.xlu0 %5668
    %5670 = vrot.lane.b32.xlu0 %v5660, 114
    %v5671 = vpop.permute.xlu0 %5670
    %5672 = vrot.lane.b32.xlu0 %v5661, 114
    %v5673 = vpop.permute.xlu0 %5672
    %v5674 = vsel %vm298, %v5667, %v5669
    %v5675 = vsel %vm298, %v5671, %v5673
    %v5680 = vadd.f32 %v5654, %v5674
    %v5681 = vadd.f32 %v5655, %v5669
    %v5682 = vadd.f32 %v5656, %v5675
    %v5683 = vadd.f32 %v5657, %v5673
    %v5684 = vpack.c.bf16 %v5681, %v5680
    %v5685 = vpack.c.bf16 %v5683, %v5682
    %v5686 = vld [vmem:[%s1] sm:$0x1]
    %5688 = vst [vmem:[#allocation1] ss:$9 sm:$0xff] %v5686
    %v5689 = vld [vmem:[#allocation1] sm:$0xff]
    %5691 = vrot.lane.b32.xlu0 %v5689, 102
    %v5692 = vpop.permute.xlu0 %5691
    %s5694 = vtos %v5692
    %v5695 = vstv %s5694
    %v5696 = vpack.i.b16 %v5695, %v5695
    %v5698 = vunpack.c.l.bf16 %v5696
    %v5699 = vmul.f32 %v4412, %v5698
    %v5700 = vmul.f32 %v4413, %v5698
    %v5701 = vmul.f32 %v4414, %v5698
    %v5702 = vmul.f32 %v4415, %v5698
    %v5703 = vpack.c.bf16 %v5700, %v5699
    %v5704 = vpack.c.bf16 %v5702, %v5701
    %v5705 = vunpack.c.l.bf16 %v5684
    %v5706 = vunpack.c.h.bf16 %v5684
    %v5707 = vunpack.c.l.bf16 %v5685
    %v5708 = vunpack.c.h.bf16 %v5685
    %v5709 = vunpack.c.l.bf16 %v5703
    %v5710 = vunpack.c.h.bf16 %v5703
    %v5711 = vunpack.c.l.bf16 %v5704
    %v5712 = vunpack.c.h.bf16 %v5704
    %5717 = vrot.lane.b32.xlu0 %v5709, 113
    %v5718 = vpop.permute.xlu0 %5717
    %5719 = vrot.lane.b32.xlu0 %v5710, 113
    %v5720 = vpop.permute.xlu0 %5719
    %5721 = vrot.lane.b32.xlu0 %v5711, 113
    %v5722 = vpop.permute.xlu0 %5721
    %5723 = vrot.lane.b32.xlu0 %v5712, 113
    %v5724 = vpop.permute.xlu0 %5723
    %v5725 = vsel %vm401, %v5718, %v5720
    %v5726 = vsel %vm401, %v5722, %v5724
    %v5731 = vadd.f32 %v5705, %v5725
    %v5732 = vadd.f32 %v5706, %v5720
    %v5733 = vadd.f32 %v5707, %v5726
    %v5734 = vadd.f32 %v5708, %v5724
    %v5735 = vpack.c.bf16 %v5732, %v5731
    %v5736 = vpack.c.bf16 %v5734, %v5733
    %v5737 = vld [vmem:[%s2] sm:$0x1]
    %5739 = vst [vmem:[#allocation1] ss:$9 sm:$0xff] %v5737
    %v5740 = vld [vmem:[#allocation1] sm:$0xff]
    %5742 = vrot.lane.b32.xlu0 %v5740, 126
    %v5743 = vpop.permute.xlu0 %5742
    %s5745 = vtos %v5743
    %v5746 = vstv %s5745
    %v5747 = vpack.i.b16 %v5746, %v5746
    %v5749 = vunpack.c.l.bf16 %v5735
    %v5750 = vunpack.c.h.bf16 %v5735
    %v5751 = vunpack.c.l.bf16 %v5736
    %v5752 = vunpack.c.h.bf16 %v5736
    %v5753 = vunpack.c.l.bf16 %v5747
    %v5754 = vadd.f32 %v5749, %v5753
    %v5755 = vadd.f32 %v5750, %v5753
    %v5756 = vadd.f32 %v5751, %v5753
    %v5757 = vadd.f32 %v5752, %v5753
    %v5758 = vpack.c.bf16 %v5755, %v5754
    %v5759 = vpack.c.bf16 %v5757, %v5756
    %v5760 = vunpack.c.l.bf16 %v5758
    %v5761 = vunpack.c.h.bf16 %v5758
    %v5762 = vunpack.c.l.bf16 %v5759
    %v5763 = vunpack.c.h.bf16 %v5759
    %v5764 = vmax.f32 %v5760, 0.0
    %v5765 = vmax.f32 %v5761, 0.0
    %v5766 = vmax.f32 %v5762, 0.0
    %v5767 = vmax.f32 %v5763, 0.0
    %v5768 = vpack.c.bf16 %v5765, %v5764
    %v5769 = vpack.c.bf16 %v5767, %v5766
    %v5770 = vld [vmem:[#allocation2 + $0x10] sm:$0xff]
    %v5771 = vld [vmem:[#allocation2 + $0x38] sm:$0xff]
    %v5772 = vunpack.c.l.bf16 %v5770
    %v5773 = vunpack.c.h.bf16 %v5770
    %v5774 = vunpack.c.l.bf16 %v5771
    %v5775 = vunpack.c.h.bf16 %v5771
    %v5776 = vunpack.c.l.bf16 %v5768
    %v5777 = vunpack.c.h.bf16 %v5768
    %v5778 = vunpack.c.l.bf16 %v5769
    %v5779 = vunpack.c.h.bf16 %v5769
    %v5780 = vmax.f32 %v5772, %v5776
    %v5781 = vmax.f32 %v5773, %v5777
    %v5782 = vmax.f32 %v5774, %v5778
    %v5783 = vmax.f32 %v5775, %v5779
    %v5784 = vpack.c.bf16 %v5781, %v5780
    %v5785 = vpack.c.bf16 %v5783, %v5782
    %5786 = vst.msk [vmem:[#allocation2 + $0x10] sm:$0xff] %vm445, %v5784
    %5787 = vst.msk [vmem:[#allocation2 + $0x38] sm:$0xff] %vm445, %v5785
    %v5788 = vld [vmem:[%s1] sm:$0x1]
    %5790 = vst [vmem:[#allocation1] ss:$9 sm:$0xff] %v5788
    %v5791 = vld [vmem:[#allocation1] sm:$0xff]
    %5793 = vrot.lane.b32.xlu0 %v5791, 101
    %v5794 = vpop.permute.xlu0 %5793
    %s5796 = vtos %v5794
    %v5797 = vstv %s5796
    %v5798 = vpack.i.b16 %v5797, %v5797
    %v5800 = vunpack.c.l.bf16 %v5798
    %v5801 = vmul.f32 %v4412, %v5800
    %v5802 = vmul.f32 %v4413, %v5800
    %v5803 = vmul.f32 %v4414, %v5800
    %v5804 = vmul.f32 %v4415, %v5800
    %v5805 = vpack.c.bf16 %v5802, %v5801
    %v5806 = vpack.c.bf16 %v5804, %v5803
    %v5807 = vld [vmem:[%s1] sm:$0x1]
    %5809 = vst [vmem:[#allocation1] ss:$9 sm:$0xff] %v5807
    %v5810 = vld [vmem:[#allocation1] sm:$0xff]
    %5812 = vrot.lane.b32.xlu0 %v5810, 100
    %v5813 = vpop.permute.xlu0 %5812
    %s5815 = vtos %v5813
    %v5816 = vstv %s5815
    %v5817 = vpack.i.b16 %v5816, %v5816
    %v5819 = vunpack.c.l.bf16 %v5817
    %v5820 = vmul.f32 %v4433, %v5819
    %v5821 = vmul.f32 %v4434, %v5819
    %v5822 = vmul.f32 %v4435, %v5819
    %v5823 = vmul.f32 %v4436, %v5819
    %v5824 = vpack.c.bf16 %v5821, %v5820
    %v5825 = vpack.c.bf16 %v5823, %v5822
    %v5826 = vunpack.c.l.bf16 %v5805
    %v5827 = vunpack.c.h.bf16 %v5805
    %v5828 = vunpack.c.l.bf16 %v5806
    %v5829 = vunpack.c.h.bf16 %v5806
    %v5830 = vunpack.c.l.bf16 %v5824
    %v5831 = vunpack.c.h.bf16 %v5824
    %v5832 = vunpack.c.l.bf16 %v5825
    %v5833 = vunpack.c.h.bf16 %v5825
    %v5834 = vadd.f32 %v5826, %v5830
    %v5835 = vadd.f32 %v5827, %v5831
    %v5836 = vadd.f32 %v5828, %v5832
    %v5837 = vadd.f32 %v5829, %v5833
    %v5838 = vpack.c.bf16 %v5835, %v5834
    %v5839 = vpack.c.bf16 %v5837, %v5836
    %v5840 = vld [vmem:[%s1] sm:$0x1]
    %5842 = vst [vmem:[#allocation1] ss:$9 sm:$0xff] %v5840
    %v5843 = vld [vmem:[#allocation1] sm:$0xff]
    %5845 = vrot.lane.b32.xlu0 %v5843, 99
    %v5846 = vpop.permute.xlu0 %5845
    %s5848 = vtos %v5846
    %v5849 = vstv %s5848
    %v5850 = vpack.i.b16 %v5849, %v5849
    %v5852 = vunpack.c.l.bf16 %v5850
    %v5853 = vmul.f32 %v4412, %v5852
    %v5854 = vmul.f32 %v4413, %v5852
    %v5855 = vmul.f32 %v4414, %v5852
    %v5856 = vmul.f32 %v4415, %v5852
    %v5857 = vpack.c.bf16 %v5854, %v5853
    %v5858 = vpack.c.bf16 %v5856, %v5855
    %v5859 = vunpack.c.l.bf16 %v5838
    %v5860 = vunpack.c.h.bf16 %v5838
    %v5861 = vunpack.c.l.bf16 %v5839
    %v5862 = vunpack.c.h.bf16 %v5839
    %v5863 = vunpack.c.l.bf16 %v5857
    %v5864 = vunpack.c.h.bf16 %v5857
    %v5865 = vunpack.c.l.bf16 %v5858
    %v5866 = vunpack.c.h.bf16 %v5858
    %5871 = vrot.lane.b32.xlu0 %v5863, 127
    %v5872 = vpop.permute.xlu0 %5871
    %5873 = vrot.lane.b32.xlu0 %v5864, 127
    %v5874 = vpop.permute.xlu0 %5873
    %5875 = vrot.lane.b32.xlu0 %v5865, 127
    %v5876 = vpop.permute.xlu0 %5875
    %5877 = vrot.lane.b32.xlu0 %v5866, 127
    %v5878 = vpop.permute.xlu0 %5877
    %v5879 = vsel %vm121, %v5872, %v5874
    %v5880 = vsel %vm121, %v5876, %v5878
    %v5885 = vadd.f32 %v5859, %v5879
    %v5886 = vadd.f32 %v5860, %v5874
    %v5887 = vadd.f32 %v5861, %v5880
    %v5888 = vadd.f32 %v5862, %v5878
    %v5889 = vpack.c.bf16 %v5886, %v5885
    %v5890 = vpack.c.bf16 %v5888, %v5887
    %v5891 = vld [vmem:[%s1] sm:$0x1]
    %5893 = vst [vmem:[#allocation1] ss:$9 sm:$0xff] %v5891
    %v5894 = vld [vmem:[#allocation1] sm:$0xff]
    %5896 = vrot.lane.b32.xlu0 %v5894, 98
    %v5897 = vpop.permute.xlu0 %5896
    %s5899 = vtos %v5897
    %v5900 = vstv %s5899
    %v5901 = vpack.i.b16 %v5900, %v5900
    %v5903 = vunpack.c.l.bf16 %v5901
    %v5904 = vmul.f32 %v4521, %v5903
    %v5905 = vmul.f32 %v4522, %v5903
    %v5906 = vmul.f32 %v4523, %v5903
    %v5907 = vmul.f32 %v4524, %v5903
    %v5908 = vpack.c.bf16 %v5905, %v5904
    %v5909 = vpack.c.bf16 %v5907, %v5906
    %v5910 = vunpack.c.l.bf16 %v5889
    %v5911 = vunpack.c.h.bf16 %v5889
    %v5912 = vunpack.c.l.bf16 %v5890
    %v5913 = vunpack.c.h.bf16 %v5890
    %v5914 = vunpack.c.l.bf16 %v5908
    %v5915 = vunpack.c.h.bf16 %v5908
    %v5916 = vunpack.c.l.bf16 %v5909
    %v5917 = vunpack.c.h.bf16 %v5909
    %5922 = vrot.lane.b32.xlu0 %v5914, 114
    %v5923 = vpop.permute.xlu0 %5922
    %5924 = vrot.lane.b32.xlu0 %v5915, 114
    %v5925 = vpop.permute.xlu0 %5924
    %5926 = vrot.lane.b32.xlu0 %v5916, 114
    %v5927 = vpop.permute.xlu0 %5926
    %5928 = vrot.lane.b32.xlu0 %v5917, 114
    %v5929 = vpop.permute.xlu0 %5928
    %v5930 = vsel %vm298, %v5923, %v5925
    %v5931 = vsel %vm298, %v5927, %v5929
    %v5936 = vadd.f32 %v5910, %v5930
    %v5937 = vadd.f32 %v5911, %v5925
    %v5938 = vadd.f32 %v5912, %v5931
    %v5939 = vadd.f32 %v5913, %v5929
    %v5940 = vpack.c.bf16 %v5937, %v5936
    %v5941 = vpack.c.bf16 %v5939, %v5938
    %v5942 = vld [vmem:[%s1] sm:$0x1]
    %5944 = vst [vmem:[#allocation1] ss:$9 sm:$0xff] %v5942
    %v5945 = vld [vmem:[#allocation1] sm:$0xff]
    %5947 = vrot.lane.b32.xlu0 %v5945, 97
    %v5948 = vpop.permute.xlu0 %5947
    %s5950 = vtos %v5948
    %v5951 = vstv %s5950
    %v5952 = vpack.i.b16 %v5951, %v5951
    %v5954 = vunpack.c.l.bf16 %v5952
    %v5955 = vmul.f32 %v4576, %v5954
    %v5956 = vmul.f32 %v4577, %v5954
    %v5957 = vmul.f32 %v4578, %v5954
    %v5958 = vmul.f32 %v4579, %v5954
    %v5959 = vpack.c.bf16 %v5956, %v5955
    %v5960 = vpack.c.bf16 %v5958, %v5957
    %v5961 = vunpack.c.l.bf16 %v5940
    %v5962 = vunpack.c.h.bf16 %v5940
    %v5963 = vunpack.c.l.bf16 %v5941
    %v5964 = vunpack.c.h.bf16 %v5941
    %v5965 = vunpack.c.l.bf16 %v5959
    %v5966 = vunpack.c.h.bf16 %v5959
    %v5967 = vunpack.c.l.bf16 %v5960
    %v5968 = vunpack.c.h.bf16 %v5960
    %5973 = vrot.lane.b32.xlu0 %v5965, 114
    %v5974 = vpop.permute.xlu0 %5973
    %5975 = vrot.lane.b32.xlu0 %v5966, 114
    %v5976 = vpop.permute.xlu0 %5975
    %5977 = vrot.lane.b32.xlu0 %v5967, 114
    %v5978 = vpop.permute.xlu0 %5977
    %5979 = vrot.lane.b32.xlu0 %v5968, 114
    %v5980 = vpop.permute.xlu0 %5979
    %v5981 = vsel %vm298, %v5974, %v5976
    %v5982 = vsel %vm298, %v5978, %v5980
    %v5987 = vadd.f32 %v5961, %v5981
    %v5988 = vadd.f32 %v5962, %v5976
    %v5989 = vadd.f32 %v5963, %v5982
    %v5990 = vadd.f32 %v5964, %v5980
    %v5991 = vpack.c.bf16 %v5988, %v5987
    %v5992 = vpack.c.bf16 %v5990, %v5989
    %v5993 = vld [vmem:[%s1] sm:$0x1]
    %5995 = vst [vmem:[#allocation1] ss:$9 sm:$0xff] %v5993
    %v5996 = vld [vmem:[#allocation1] sm:$0xff]
    %5998 = vrot.lane.b32.xlu0 %v5996, 96
    %v5999 = vpop.permute.xlu0 %5998
    %s6001 = vtos %v5999
    %v6002 = vstv %s6001
    %v6003 = vpack.i.b16 %v6002, %v6002
    %v6005 = vunpack.c.l.bf16 %v6003
    %v6006 = vmul.f32 %v4521, %v6005
    %v6007 = vmul.f32 %v4522, %v6005
    %v6008 = vmul.f32 %v4523, %v6005
    %v6009 = vmul.f32 %v4524, %v6005
    %v6010 = vpack.c.bf16 %v6007, %v6006
    %v6011 = vpack.c.bf16 %v6009, %v6008
    %v6012 = vunpack.c.l.bf16 %v5991
    %v6013 = vunpack.c.h.bf16 %v5991
    %v6014 = vunpack.c.l.bf16 %v5992
    %v6015 = vunpack.c.h.bf16 %v5992
    %v6016 = vunpack.c.l.bf16 %v6010
    %v6017 = vunpack.c.h.bf16 %v6010
    %v6018 = vunpack.c.l.bf16 %v6011
    %v6019 = vunpack.c.h.bf16 %v6011
    %6024 = vrot.lane.b32.xlu0 %v6016, 113
    %v6025 = vpop.permute.xlu0 %6024
    %6026 = vrot.lane.b32.xlu0 %v6017, 113
    %v6027 = vpop.permute.xlu0 %6026
    %6028 = vrot.lane.b32.xlu0 %v6018, 113
    %v6029 = vpop.permute.xlu0 %6028
    %6030 = vrot.lane.b32.xlu0 %v6019, 113
    %v6031 = vpop.permute.xlu0 %6030
    %v6032 = vsel %vm401, %v6025, %v6027
    %v6033 = vsel %vm401, %v6029, %v6031
    %v6038 = vadd.f32 %v6012, %v6032
    %v6039 = vadd.f32 %v6013, %v6027
    %v6040 = vadd.f32 %v6014, %v6033
    %v6041 = vadd.f32 %v6015, %v6031
    %v6042 = vpack.c.bf16 %v6039, %v6038
    %v6043 = vpack.c.bf16 %v6041, %v6040
    %v6044 = vld [vmem:[%s1] sm:$0x1]
    %6046 = vst [vmem:[#allocation1] ss:$9 sm:$0xff] %v6044
    %v6047 = vld [vmem:[#allocation1] sm:$0xff]
    %6049 = vrot.lane.b32.xlu0 %v6047, 95
    %v6050 = vpop.permute.xlu0 %6049
    %s6052 = vtos %v6050
    %v6053 = vstv %s6052
    %v6054 = vpack.i.b16 %v6053, %v6053
    %v6056 = vunpack.c.l.bf16 %v6054
    %v6057 = vmul.f32 %v4412, %v6056
    %v6058 = vmul.f32 %v4413, %v6056
    %v6059 = vmul.f32 %v4414, %v6056
    %v6060 = vmul.f32 %v4415, %v6056
    %v6061 = vpack.c.bf16 %v6058, %v6057
    %v6062 = vpack.c.bf16 %v6060, %v6059
    %v6063 = vunpack.c.l.bf16 %v6042
    %v6064 = vunpack.c.h.bf16 %v6042
    %v6065 = vunpack.c.l.bf16 %v6043
    %v6066 = vunpack.c.h.bf16 %v6043
    %v6067 = vunpack.c.l.bf16 %v6061
    %v6068 = vunpack.c.h.bf16 %v6061
    %v6069 = vunpack.c.l.bf16 %v6062
    %v6070 = vunpack.c.h.bf16 %v6062
    %6075 = vrot.lane.b32.xlu0 %v6067, 114
    %v6076 = vpop.permute.xlu0 %6075
    %6077 = vrot.lane.b32.xlu0 %v6068, 114
    %v6078 = vpop.permute.xlu0 %6077
    %6079 = vrot.lane.b32.xlu0 %v6069, 114
    %v6080 = vpop.permute.xlu0 %6079
    %6081 = vrot.lane.b32.xlu0 %v6070, 114
    %v6082 = vpop.permute.xlu0 %6081
    %v6083 = vsel %vm298, %v6076, %v6078
    %v6084 = vsel %vm298, %v6080, %v6082
    %v6089 = vadd.f32 %v6063, %v6083
    %v6090 = vadd.f32 %v6064, %v6078
    %v6091 = vadd.f32 %v6065, %v6084
    %v6092 = vadd.f32 %v6066, %v6082
    %v6093 = vpack.c.bf16 %v6090, %v6089
    %v6094 = vpack.c.bf16 %v6092, %v6091
    %v6095 = vld [vmem:[%s1] sm:$0x1]
    %6097 = vst [vmem:[#allocation1] ss:$9 sm:$0xff] %v6095
    %v6098 = vld [vmem:[#allocation1] sm:$0xff]
    %6100 = vrot.lane.b32.xlu0 %v6098, 94
    %v6101 = vpop.permute.xlu0 %6100
    %s6103 = vtos %v6101
    %v6104 = vstv %s6103
    %v6105 = vpack.i.b16 %v6104, %v6104
    %v6107 = vunpack.c.l.bf16 %v6105
    %v6108 = vmul.f32 %v4433, %v6107
    %v6109 = vmul.f32 %v4434, %v6107
    %v6110 = vmul.f32 %v4435, %v6107
    %v6111 = vmul.f32 %v4436, %v6107
    %v6112 = vpack.c.bf16 %v6109, %v6108
    %v6113 = vpack.c.bf16 %v6111, %v6110
    %v6114 = vunpack.c.l.bf16 %v6093
    %v6115 = vunpack.c.h.bf16 %v6093
    %v6116 = vunpack.c.l.bf16 %v6094
    %v6117 = vunpack.c.h.bf16 %v6094
    %v6118 = vunpack.c.l.bf16 %v6112
    %v6119 = vunpack.c.h.bf16 %v6112
    %v6120 = vunpack.c.l.bf16 %v6113
    %v6121 = vunpack.c.h.bf16 %v6113
    %6126 = vrot.lane.b32.xlu0 %v6118, 114
    %v6127 = vpop.permute.xlu0 %6126
    %6128 = vrot.lane.b32.xlu0 %v6119, 114
    %v6129 = vpop.permute.xlu0 %6128
    %6130 = vrot.lane.b32.xlu0 %v6120, 114
    %v6131 = vpop.permute.xlu0 %6130
    %6132 = vrot.lane.b32.xlu0 %v6121, 114
    %v6133 = vpop.permute.xlu0 %6132
    %v6134 = vsel %vm298, %v6127, %v6129
    %v6135 = vsel %vm298, %v6131, %v6133
    %v6140 = vadd.f32 %v6114, %v6134
    %v6141 = vadd.f32 %v6115, %v6129
    %v6142 = vadd.f32 %v6116, %v6135
    %v6143 = vadd.f32 %v6117, %v6133
    %v6144 = vpack.c.bf16 %v6141, %v6140
    %v6145 = vpack.c.bf16 %v6143, %v6142
    %v6146 = vld [vmem:[%s1] sm:$0x1]
    %6148 = vst [vmem:[#allocation1] ss:$9 sm:$0xff] %v6146
    %v6149 = vld [vmem:[#allocation1] sm:$0xff]
    %6151 = vrot.lane.b32.xlu0 %v6149, 93
    %v6152 = vpop.permute.xlu0 %6151
    %s6154 = vtos %v6152
    %v6155 = vstv %s6154
    %v6156 = vpack.i.b16 %v6155, %v6155
    %v6158 = vunpack.c.l.bf16 %v6156
    %v6159 = vmul.f32 %v4412, %v6158
    %v6160 = vmul.f32 %v4413, %v6158
    %v6161 = vmul.f32 %v4414, %v6158
    %v6162 = vmul.f32 %v4415, %v6158
    %v6163 = vpack.c.bf16 %v6160, %v6159
    %v6164 = vpack.c.bf16 %v6162, %v6161
    %v6165 = vunpack.c.l.bf16 %v6144
    %v6166 = vunpack.c.h.bf16 %v6144
    %v6167 = vunpack.c.l.bf16 %v6145
    %v6168 = vunpack.c.h.bf16 %v6145
    %v6169 = vunpack.c.l.bf16 %v6163
    %v6170 = vunpack.c.h.bf16 %v6163
    %v6171 = vunpack.c.l.bf16 %v6164
    %v6172 = vunpack.c.h.bf16 %v6164
    %6177 = vrot.lane.b32.xlu0 %v6169, 113
    %v6178 = vpop.permute.xlu0 %6177
    %6179 = vrot.lane.b32.xlu0 %v6170, 113
    %v6180 = vpop.permute.xlu0 %6179
    %6181 = vrot.lane.b32.xlu0 %v6171, 113
    %v6182 = vpop.permute.xlu0 %6181
    %6183 = vrot.lane.b32.xlu0 %v6172, 113
    %v6184 = vpop.permute.xlu0 %6183
    %v6185 = vsel %vm401, %v6178, %v6180
    %v6186 = vsel %vm401, %v6182, %v6184
    %v6191 = vadd.f32 %v6165, %v6185
    %v6192 = vadd.f32 %v6166, %v6180
    %v6193 = vadd.f32 %v6167, %v6186
    %v6194 = vadd.f32 %v6168, %v6184
    %v6195 = vpack.c.bf16 %v6192, %v6191
    %v6196 = vpack.c.bf16 %v6194, %v6193
    %v6197 = vld [vmem:[%s2] sm:$0x1]
    %6199 = vst [vmem:[#allocation1] ss:$9 sm:$0xff] %v6197
    %v6200 = vld [vmem:[#allocation1] sm:$0xff]
    %6202 = vrot.lane.b32.xlu0 %v6200, 125
    %v6203 = vpop.permute.xlu0 %6202
    %s6205 = vtos %v6203
    %v6206 = vstv %s6205
    %v6207 = vpack.i.b16 %v6206, %v6206
    %v6209 = vunpack.c.l.bf16 %v6195
    %v6210 = vunpack.c.h.bf16 %v6195
    %v6211 = vunpack.c.l.bf16 %v6196
    %v6212 = vunpack.c.h.bf16 %v6196
    %v6213 = vunpack.c.l.bf16 %v6207
    %v6214 = vadd.f32 %v6209, %v6213
    %v6215 = vadd.f32 %v6210, %v6213
    %v6216 = vadd.f32 %v6211, %v6213
    %v6217 = vadd.f32 %v6212, %v6213
    %v6218 = vpack.c.bf16 %v6215, %v6214
    %v6219 = vpack.c.bf16 %v6217, %v6216
    %v6220 = vunpack.c.l.bf16 %v6218
    %v6221 = vunpack.c.h.bf16 %v6218
    %v6222 = vunpack.c.l.bf16 %v6219
    %v6223 = vunpack.c.h.bf16 %v6219
    %v6224 = vmax.f32 %v6220, 0.0
    %v6225 = vmax.f32 %v6221, 0.0
    %v6226 = vmax.f32 %v6222, 0.0
    %v6227 = vmax.f32 %v6223, 0.0
    %v6228 = vpack.c.bf16 %v6225, %v6224
    %v6229 = vpack.c.bf16 %v6227, %v6226
    %v6230 = vld [vmem:[#allocation2 + $0x18] sm:$0xff]
    %v6231 = vld [vmem:[#allocation2 + $0x40] sm:$0xff]
    %v6232 = vunpack.c.l.bf16 %v6230
    %v6233 = vunpack.c.h.bf16 %v6230
    %v6234 = vunpack.c.l.bf16 %v6231
    %v6235 = vunpack.c.h.bf16 %v6231
    %v6236 = vunpack.c.l.bf16 %v6228
    %v6237 = vunpack.c.h.bf16 %v6228
    %v6238 = vunpack.c.l.bf16 %v6229
    %v6239 = vunpack.c.h.bf16 %v6229
    %v6240 = vmax.f32 %v6232, %v6236
    %v6241 = vmax.f32 %v6233, %v6237
    %v6242 = vmax.f32 %v6234, %v6238
    %v6243 = vmax.f32 %v6235, %v6239
    %v6244 = vpack.c.bf16 %v6241, %v6240
    %v6245 = vpack.c.bf16 %v6243, %v6242
    %6246 = vst.msk [vmem:[#allocation2 + $0x18] sm:$0xff] %vm445, %v6244
    %6247 = vst.msk [vmem:[#allocation2 + $0x40] sm:$0xff] %vm445, %v6245
    %v6248 = vld [vmem:[%s1] sm:$0x1]
    %6250 = vst [vmem:[#allocation1] ss:$9 sm:$0xff] %v6248
    %v6251 = vld [vmem:[#allocation1] sm:$0xff]
    %6253 = vrot.lane.b32.xlu0 %v6251, 92
    %v6254 = vpop.permute.xlu0 %6253
    %s6256 = vtos %v6254
    %v6257 = vstv %s6256
    %v6258 = vpack.i.b16 %v6257, %v6257
    %v6260 = vunpack.c.l.bf16 %v6258
    %v6261 = vmul.f32 %v4412, %v6260
    %v6262 = vmul.f32 %v4413, %v6260
    %v6263 = vmul.f32 %v4414, %v6260
    %v6264 = vmul.f32 %v4415, %v6260
    %v6265 = vpack.c.bf16 %v6262, %v6261
    %v6266 = vpack.c.bf16 %v6264, %v6263
    %v6267 = vld [vmem:[%s1] sm:$0x1]
    %6269 = vst [vmem:[#allocation1] ss:$9 sm:$0xff] %v6267
    %v6270 = vld [vmem:[#allocation1] sm:$0xff]
    %6272 = vrot.lane.b32.xlu0 %v6270, 91
    %v6273 = vpop.permute.xlu0 %6272
    %s6275 = vtos %v6273
    %v6276 = vstv %s6275
    %v6277 = vpack.i.b16 %v6276, %v6276
    %v6279 = vunpack.c.l.bf16 %v6277
    %v6280 = vmul.f32 %v4433, %v6279
    %v6281 = vmul.f32 %v4434, %v6279
    %v6282 = vmul.f32 %v4435, %v6279
    %v6283 = vmul.f32 %v4436, %v6279
    %v6284 = vpack.c.bf16 %v6281, %v6280
    %v6285 = vpack.c.bf16 %v6283, %v6282
    %v6286 = vunpack.c.l.bf16 %v6265
    %v6287 = vunpack.c.h.bf16 %v6265
    %v6288 = vunpack.c.l.bf16 %v6266
    %v6289 = vunpack.c.h.bf16 %v6266
    %v6290 = vunpack.c.l.bf16 %v6284
    %v6291 = vunpack.c.h.bf16 %v6284
    %v6292 = vunpack.c.l.bf16 %v6285
    %v6293 = vunpack.c.h.bf16 %v6285
    %v6294 = vadd.f32 %v6286, %v6290
    %v6295 = vadd.f32 %v6287, %v6291
    %v6296 = vadd.f32 %v6288, %v6292
    %v6297 = vadd.f32 %v6289, %v6293
    %v6298 = vpack.c.bf16 %v6295, %v6294
    %v6299 = vpack.c.bf16 %v6297, %v6296
    %v6300 = vld [vmem:[%s1] sm:$0x1]
    %6302 = vst [vmem:[#allocation1] ss:$9 sm:$0xff] %v6300
    %v6303 = vld [vmem:[#allocation1] sm:$0xff]
    %6305 = vrot.lane.b32.xlu0 %v6303, 90
    %v6306 = vpop.permute.xlu0 %6305
    %s6308 = vtos %v6306
    %v6309 = vstv %s6308
    %v6310 = vpack.i.b16 %v6309, %v6309
    %v6312 = vunpack.c.l.bf16 %v6310
    %v6313 = vmul.f32 %v4412, %v6312
    %v6314 = vmul.f32 %v4413, %v6312
    %v6315 = vmul.f32 %v4414, %v6312
    %v6316 = vmul.f32 %v4415, %v6312
    %v6317 = vpack.c.bf16 %v6314, %v6313
    %v6318 = vpack.c.bf16 %v6316, %v6315
    %v6319 = vunpack.c.l.bf16 %v6298
    %v6320 = vunpack.c.h.bf16 %v6298
    %v6321 = vunpack.c.l.bf16 %v6299
    %v6322 = vunpack.c.h.bf16 %v6299
    %v6323 = vunpack.c.l.bf16 %v6317
    %v6324 = vunpack.c.h.bf16 %v6317
    %v6325 = vunpack.c.l.bf16 %v6318
    %v6326 = vunpack.c.h.bf16 %v6318
    %6331 = vrot.lane.b32.xlu0 %v6323, 127
    %v6332 = vpop.permute.xlu0 %6331
    %6333 = vrot.lane.b32.xlu0 %v6324, 127
    %v6334 = vpop.permute.xlu0 %6333
    %6335 = vrot.lane.b32.xlu0 %v6325, 127
    %v6336 = vpop.permute.xlu0 %6335
    %6337 = vrot.lane.b32.xlu0 %v6326, 127
    %v6338 = vpop.permute.xlu0 %6337
    %v6339 = vsel %vm121, %v6332, %v6334
    %v6340 = vsel %vm121, %v6336, %v6338
    %v6345 = vadd.f32 %v6319, %v6339
    %v6346 = vadd.f32 %v6320, %v6334
    %v6347 = vadd.f32 %v6321, %v6340
    %v6348 = vadd.f32 %v6322, %v6338
    %v6349 = vpack.c.bf16 %v6346, %v6345
    %v6350 = vpack.c.bf16 %v6348, %v6347
    %v6351 = vld [vmem:[%s1] sm:$0x1]
    %6353 = vst [vmem:[#allocation1] ss:$9 sm:$0xff] %v6351
    %v6354 = vld [vmem:[#allocation1] sm:$0xff]
    %6356 = vrot.lane.b32.xlu0 %v6354, 89
    %v6357 = vpop.permute.xlu0 %6356
    %s6359 = vtos %v6357
    %v6360 = vstv %s6359
    %v6361 = vpack.i.b16 %v6360, %v6360
    %v6363 = vunpack.c.l.bf16 %v6361
    %v6364 = vmul.f32 %v4521, %v6363
    %v6365 = vmul.f32 %v4522, %v6363
    %v6366 = vmul.f32 %v4523, %v6363
    %v6367 = vmul.f32 %v4524, %v6363
    %v6368 = vpack.c.bf16 %v6365, %v6364
    %v6369 = vpack.c.bf16 %v6367, %v6366
    %v6370 = vunpack.c.l.bf16 %v6349
    %v6371 = vunpack.c.h.bf16 %v6349
    %v6372 = vunpack.c.l.bf16 %v6350
    %v6373 = vunpack.c.h.bf16 %v6350
    %v6374 = vunpack.c.l.bf16 %v6368
    %v6375 = vunpack.c.h.bf16 %v6368
    %v6376 = vunpack.c.l.bf16 %v6369
    %v6377 = vunpack.c.h.bf16 %v6369
    %6382 = vrot.lane.b32.xlu0 %v6374, 114
    %v6383 = vpop.permute.xlu0 %6382
    %6384 = vrot.lane.b32.xlu0 %v6375, 114
    %v6385 = vpop.permute.xlu0 %6384
    %6386 = vrot.lane.b32.xlu0 %v6376, 114
    %v6387 = vpop.permute.xlu0 %6386
    %6388 = vrot.lane.b32.xlu0 %v6377, 114
    %v6389 = vpop.permute.xlu0 %6388
    %v6390 = vsel %vm298, %v6383, %v6385
    %v6391 = vsel %vm298, %v6387, %v6389
    %v6396 = vadd.f32 %v6370, %v6390
    %v6397 = vadd.f32 %v6371, %v6385
    %v6398 = vadd.f32 %v6372, %v6391
    %v6399 = vadd.f32 %v6373, %v6389
    %v6400 = vpack.c.bf16 %v6397, %v6396
    %v6401 = vpack.c.bf16 %v6399, %v6398
    %v6402 = vld [vmem:[%s1] sm:$0x1]
    %6404 = vst [vmem:[#allocation1] ss:$9 sm:$0xff] %v6402
    %v6405 = vld [vmem:[#allocation1] sm:$0xff]
    %6407 = vrot.lane.b32.xlu0 %v6405, 88
    %v6408 = vpop.permute.xlu0 %6407
    %s6410 = vtos %v6408
    %v6411 = vstv %s6410
    %v6412 = vpack.i.b16 %v6411, %v6411
    %v6414 = vunpack.c.l.bf16 %v6412
    %v6415 = vmul.f32 %v4576, %v6414
    %v6416 = vmul.f32 %v4577, %v6414
    %v6417 = vmul.f32 %v4578, %v6414
    %v6418 = vmul.f32 %v4579, %v6414
    %v6419 = vpack.c.bf16 %v6416, %v6415
    %v6420 = vpack.c.bf16 %v6418, %v6417
    %v6421 = vunpack.c.l.bf16 %v6400
    %v6422 = vunpack.c.h.bf16 %v6400
    %v6423 = vunpack.c.l.bf16 %v6401
    %v6424 = vunpack.c.h.bf16 %v6401
    %v6425 = vunpack.c.l.bf16 %v6419
    %v6426 = vunpack.c.h.bf16 %v6419
    %v6427 = vunpack.c.l.bf16 %v6420
    %v6428 = vunpack.c.h.bf16 %v6420
    %6433 = vrot.lane.b32.xlu0 %v6425, 114
    %v6434 = vpop.permute.xlu0 %6433
    %6435 = vrot.lane.b32.xlu0 %v6426, 114
    %v6436 = vpop.permute.xlu0 %6435
    %6437 = vrot.lane.b32.xlu0 %v6427, 114
    %v6438 = vpop.permute.xlu0 %6437
    %6439 = vrot.lane.b32.xlu0 %v6428, 114
    %v6440 = vpop.permute.xlu0 %6439
    %v6441 = vsel %vm298, %v6434, %v6436
    %v6442 = vsel %vm298, %v6438, %v6440
    %v6447 = vadd.f32 %v6421, %v6441
    %v6448 = vadd.f32 %v6422, %v6436
    %v6449 = vadd.f32 %v6423, %v6442
    %v6450 = vadd.f32 %v6424, %v6440
    %v6451 = vpack.c.bf16 %v6448, %v6447
    %v6452 = vpack.c.bf16 %v6450, %v6449
    %v6453 = vld [vmem:[%s1] sm:$0x1]
    %6455 = vst [vmem:[#allocation1] ss:$9 sm:$0xff] %v6453
    %v6456 = vld [vmem:[#allocation1] sm:$0xff]
    %6458 = vrot.lane.b32.xlu0 %v6456, 87
    %v6459 = vpop.permute.xlu0 %6458
    %s6461 = vtos %v6459
    %v6462 = vstv %s6461
    %v6463 = vpack.i.b16 %v6462, %v6462
    %v6465 = vunpack.c.l.bf16 %v6463
    %v6466 = vmul.f32 %v4521, %v6465
    %v6467 = vmul.f32 %v4522, %v6465
    %v6468 = vmul.f32 %v4523, %v6465
    %v6469 = vmul.f32 %v4524, %v6465
    %v6470 = vpack.c.bf16 %v6467, %v6466
    %v6471 = vpack.c.bf16 %v6469, %v6468
    %v6472 = vunpack.c.l.bf16 %v6451
    %v6473 = vunpack.c.h.bf16 %v6451
    %v6474 = vunpack.c.l.bf16 %v6452
    %v6475 = vunpack.c.h.bf16 %v6452
    %v6476 = vunpack.c.l.bf16 %v6470
    %v6477 = vunpack.c.h.bf16 %v6470
    %v6478 = vunpack.c.l.bf16 %v6471
    %v6479 = vunpack.c.h.bf16 %v6471
    %6484 = vrot.lane.b32.xlu0 %v6476, 113
    %v6485 = vpop.permute.xlu0 %6484
    %6486 = vrot.lane.b32.xlu0 %v6477, 113
    %v6487 = vpop.permute.xlu0 %6486
    %6488 = vrot.lane.b32.xlu0 %v6478, 113
    %v6489 = vpop.permute.xlu0 %6488
    %6490 = vrot.lane.b32.xlu0 %v6479, 113
    %v6491 = vpop.permute.xlu0 %6490
    %v6492 = vsel %vm401, %v6485, %v6487
    %v6493 = vsel %vm401, %v6489, %v6491
    %v6498 = vadd.f32 %v6472, %v6492
    %v6499 = vadd.f32 %v6473, %v6487
    %v6500 = vadd.f32 %v6474, %v6493
    %v6501 = vadd.f32 %v6475, %v6491
    %v6502 = vpack.c.bf16 %v6499, %v6498
    %v6503 = vpack.c.bf16 %v6501, %v6500
    %v6504 = vld [vmem:[%s1] sm:$0x1]
    %6506 = vst [vmem:[#allocation1] ss:$9 sm:$0xff] %v6504
    %v6507 = vld [vmem:[#allocation1] sm:$0xff]
    %6509 = vrot.lane.b32.xlu0 %v6507, 86
    %v6510 = vpop.permute.xlu0 %6509
    %s6512 = vtos %v6510
    %v6513 = vstv %s6512
    %v6514 = vpack.i.b16 %v6513, %v6513
    %v6516 = vunpack.c.l.bf16 %v6514
    %v6517 = vmul.f32 %v4412, %v6516
    %v6518 = vmul.f32 %v4413, %v6516
    %v6519 = vmul.f32 %v4414, %v6516
    %v6520 = vmul.f32 %v4415, %v6516
    %v6521 = vpack.c.bf16 %v6518, %v6517
    %v6522 = vpack.c.bf16 %v6520, %v6519
    %v6523 = vunpack.c.l.bf16 %v6502
    %v6524 = vunpack.c.h.bf16 %v6502
    %v6525 = vunpack.c.l.bf16 %v6503
    %v6526 = vunpack.c.h.bf16 %v6503
    %v6527 = vunpack.c.l.bf16 %v6521
    %v6528 = vunpack.c.h.bf16 %v6521
    %v6529 = vunpack.c.l.bf16 %v6522
    %v6530 = vunpack.c.h.bf16 %v6522
    %6535 = vrot.lane.b32.xlu0 %v6527, 114
    %v6536 = vpop.permute.xlu0 %6535
    %6537 = vrot.lane.b32.xlu0 %v6528, 114
    %v6538 = vpop.permute.xlu0 %6537
    %6539 = vrot.lane.b32.xlu0 %v6529, 114
    %v6540 = vpop.permute.xlu0 %6539
    %6541 = vrot.lane.b32.xlu0 %v6530, 114
    %v6542 = vpop.permute.xlu0 %6541
    %v6543 = vsel %vm298, %v6536, %v6538
    %v6544 = vsel %vm298, %v6540, %v6542
    %v6549 = vadd.f32 %v6523, %v6543
    %v6550 = vadd.f32 %v6524, %v6538
    %v6551 = vadd.f32 %v6525, %v6544
    %v6552 = vadd.f32 %v6526, %v6542
    %v6553 = vpack.c.bf16 %v6550, %v6549
    %v6554 = vpack.c.bf16 %v6552, %v6551
    %v6555 = vld [vmem:[%s1] sm:$0x1]
    %6557 = vst [vmem:[#allocation1] ss:$9 sm:$0xff] %v6555
    %v6558 = vld [vmem:[#allocation1] sm:$0xff]
    %6560 = vrot.lane.b32.xlu0 %v6558, 85
    %v6561 = vpop.permute.xlu0 %6560
    %s6563 = vtos %v6561
    %v6564 = vstv %s6563
    %v6565 = vpack.i.b16 %v6564, %v6564
    %v6567 = vunpack.c.l.bf16 %v6565
    %v6568 = vmul.f32 %v4433, %v6567
    %v6569 = vmul.f32 %v4434, %v6567
    %v6570 = vmul.f32 %v4435, %v6567
    %v6571 = vmul.f32 %v4436, %v6567
    %v6572 = vpack.c.bf16 %v6569, %v6568
    %v6573 = vpack.c.bf16 %v6571, %v6570
    %v6574 = vunpack.c.l.bf16 %v6553
    %v6575 = vunpack.c.h.bf16 %v6553
    %v6576 = vunpack.c.l.bf16 %v6554
    %v6577 = vunpack.c.h.bf16 %v6554
    %v6578 = vunpack.c.l.bf16 %v6572
    %v6579 = vunpack.c.h.bf16 %v6572
    %v6580 = vunpack.c.l.bf16 %v6573
    %v6581 = vunpack.c.h.bf16 %v6573
    %6586 = vrot.lane.b32.xlu0 %v6578, 114
    %v6587 = vpop.permute.xlu0 %6586
    %6588 = vrot.lane.b32.xlu0 %v6579, 114
    %v6589 = vpop.permute.xlu0 %6588
    %6590 = vrot.lane.b32.xlu0 %v6580, 114
    %v6591 = vpop.permute.xlu0 %6590
    %6592 = vrot.lane.b32.xlu0 %v6581, 114
    %v6593 = vpop.permute.xlu0 %6592
    %v6594 = vsel %vm298, %v6587, %v6589
    %v6595 = vsel %vm298, %v6591, %v6593
    %v6600 = vadd.f32 %v6574, %v6594
    %v6601 = vadd.f32 %v6575, %v6589
    %v6602 = vadd.f32 %v6576, %v6595
    %v6603 = vadd.f32 %v6577, %v6593
    %v6604 = vpack.c.bf16 %v6601, %v6600
    %v6605 = vpack.c.bf16 %v6603, %v6602
    %v6606 = vld [vmem:[%s1] sm:$0x1]
    %6608 = vst [vmem:[#allocation1] ss:$9 sm:$0xff] %v6606
    %v6609 = vld [vmem:[#allocation1] sm:$0xff]
    %6611 = vrot.lane.b32.xlu0 %v6609, 84
    %v6612 = vpop.permute.xlu0 %6611
    %s6614 = vtos %v6612
    %v6615 = vstv %s6614
    %v6616 = vpack.i.b16 %v6615, %v6615
    %v6618 = vunpack.c.l.bf16 %v6616
    %v6619 = vmul.f32 %v4412, %v6618
    %v6620 = vmul.f32 %v4413, %v6618
    %v6621 = vmul.f32 %v4414, %v6618
    %v6622 = vmul.f32 %v4415, %v6618
    %v6623 = vpack.c.bf16 %v6620, %v6619
    %v6624 = vpack.c.bf16 %v6622, %v6621
    %v6625 = vunpack.c.l.bf16 %v6604
    %v6626 = vunpack.c.h.bf16 %v6604
    %v6627 = vunpack.c.l.bf16 %v6605
    %v6628 = vunpack.c.h.bf16 %v6605
    %v6629 = vunpack.c.l.bf16 %v6623
    %v6630 = vunpack.c.h.bf16 %v6623
    %v6631 = vunpack.c.l.bf16 %v6624
    %v6632 = vunpack.c.h.bf16 %v6624
    %6637 = vrot.lane.b32.xlu0 %v6629, 113
    %v6638 = vpop.permute.xlu0 %6637
    %6639 = vrot.lane.b32.xlu0 %v6630, 113
    %v6640 = vpop.permute.xlu0 %6639
    %6641 = vrot.lane.b32.xlu0 %v6631, 113
    %v6642 = vpop.permute.xlu0 %6641
    %6643 = vrot.lane.b32.xlu0 %v6632, 113
    %v6644 = vpop.permute.xlu0 %6643
    %v6645 = vsel %vm401, %v6638, %v6640
    %v6646 = vsel %vm401, %v6642, %v6644
    %v6651 = vadd.f32 %v6625, %v6645
    %v6652 = vadd.f32 %v6626, %v6640
    %v6653 = vadd.f32 %v6627, %v6646
    %v6654 = vadd.f32 %v6628, %v6644
    %v6655 = vpack.c.bf16 %v6652, %v6651
    %v6656 = vpack.c.bf16 %v6654, %v6653
    %v6657 = vld [vmem:[%s2] sm:$0x1]
    %6659 = vst [vmem:[#allocation1] ss:$9 sm:$0xff] %v6657
    %v6660 = vld [vmem:[#allocation1] sm:$0xff]
    %6662 = vrot.lane.b32.xlu0 %v6660, 124
    %v6663 = vpop.permute.xlu0 %6662
    %s6665 = vtos %v6663
    %v6666 = vstv %s6665
    %v6667 = vpack.i.b16 %v6666, %v6666
    %v6669 = vunpack.c.l.bf16 %v6655
    %v6670 = vunpack.c.h.bf16 %v6655
    %v6671 = vunpack.c.l.bf16 %v6656
    %v6672 = vunpack.c.h.bf16 %v6656
    %v6673 = vunpack.c.l.bf16 %v6667
    %v6674 = vadd.f32 %v6669, %v6673
    %v6675 = vadd.f32 %v6670, %v6673
    %v6676 = vadd.f32 %v6671, %v6673
    %v6677 = vadd.f32 %v6672, %v6673
    %v6678 = vpack.c.bf16 %v6675, %v6674
    %v6679 = vpack.c.bf16 %v6677, %v6676
    %v6680 = vunpack.c.l.bf16 %v6678
    %v6681 = vunpack.c.h.bf16 %v6678
    %v6682 = vunpack.c.l.bf16 %v6679
    %v6683 = vunpack.c.h.bf16 %v6679
    %v6684 = vmax.f32 %v6680, 0.0
    %v6685 = vmax.f32 %v6681, 0.0
    %v6686 = vmax.f32 %v6682, 0.0
    %v6687 = vmax.f32 %v6683, 0.0
    %v6688 = vpack.c.bf16 %v6685, %v6684
    %v6689 = vpack.c.bf16 %v6687, %v6686
    %v6690 = vld [vmem:[#allocation2 + $0x20] sm:$0xff]
    %v6691 = vld [vmem:[#allocation2 + $0x48] sm:$0xff]
    %v6692 = vunpack.c.l.bf16 %v6690
    %v6693 = vunpack.c.h.bf16 %v6690
    %v6694 = vunpack.c.l.bf16 %v6691
    %v6695 = vunpack.c.h.bf16 %v6691
    %v6696 = vunpack.c.l.bf16 %v6688
    %v6697 = vunpack.c.h.bf16 %v6688
    %v6698 = vunpack.c.l.bf16 %v6689
    %v6699 = vunpack.c.h.bf16 %v6689
    %v6700 = vmax.f32 %v6692, %v6696
    %v6701 = vmax.f32 %v6693, %v6697
    %v6702 = vmax.f32 %v6694, %v6698
    %v6703 = vmax.f32 %v6695, %v6699
    %v6704 = vpack.c.bf16 %v6701, %v6700
    %v6705 = vpack.c.bf16 %v6703, %v6702
    %6706 = vst.msk [vmem:[#allocation2 + $0x20] sm:$0xff] %vm445, %v6704
    %6707 = vst.msk [vmem:[#allocation2 + $0x48] sm:$0xff] %vm445, %v6705
    %v6708 = vld [vmem:[%s0 + $0x18] sm:$0xff]
    %v6709 = vld [vmem:[%s0 + $0x38] sm:$0xff]
    %v6710 = vld [vmem:[%s0 + $0x10] sm:$0xff]
    %v6711 = vld [vmem:[%s0 + $0x30] sm:$0xff]
    %v6712 = vld [vmem:[%s0 + $0x8] sm:$0xff]
    %v6713 = vld [vmem:[%s0 + $0x28] sm:$0xff]
    %v6714 = vld [vmem:[%s0] sm:$0xff]
    %v6715 = vld [vmem:[%s0 + $0x20] sm:$0xff]
    %v6716 = vld [vmem:[%s1] sm:$0x1]
    %s6718 = vtos %v6716
    %v6719 = vstv %s6718
    %v6720 = vpack.i.b16 %v6719, %v6719
    %v6722 = vunpack.c.l.bf16 %v6708
    %v6723 = vunpack.c.h.bf16 %v6708
    %v6724 = vunpack.c.l.bf16 %v6709
    %v6725 = vunpack.c.h.bf16 %v6709
    %v6726 = vunpack.c.l.bf16 %v6720
    %v6727 = vmul.f32 %v6722, %v6726
    %v6728 = vmul.f32 %v6723, %v6726
    %v6729 = vmul.f32 %v6724, %v6726
    %v6730 = vmul.f32 %v6725, %v6726
    %v6731 = vpack.c.bf16 %v6728, %v6727
    %v6732 = vpack.c.bf16 %v6730, %v6729
    %6733 = vst [vmem:[#allocation1] ss:$9 sm:$0xff] %v6716
    %v6734 = vld [vmem:[#allocation1] sm:$0xff]
    %6736 = vrot.lane.b32.xlu0 %v6734, 127
    %v6737 = vpop.permute.xlu0 %6736
    %s6739 = vtos %v6737
    %v6740 = vstv %s6739
    %v6741 = vpack.i.b16 %v6740, %v6740
    %v6743 = vunpack.c.l.bf16 %v6710
    %v6744 = vunpack.c.h.bf16 %v6710
    %v6745 = vunpack.c.l.bf16 %v6711
    %v6746 = vunpack.c.h.bf16 %v6711
    %v6747 = vunpack.c.l.bf16 %v6741
    %v6748 = vmul.f32 %v6743, %v6747
    %v6749 = vmul.f32 %v6744, %v6747
    %v6750 = vmul.f32 %v6745, %v6747
    %v6751 = vmul.f32 %v6746, %v6747
    %v6752 = vpack.c.bf16 %v6749, %v6748
    %v6753 = vpack.c.bf16 %v6751, %v6750
    %v6754 = vunpack.c.l.bf16 %v6731
    %v6755 = vunpack.c.h.bf16 %v6731
    %v6756 = vunpack.c.l.bf16 %v6732
    %v6757 = vunpack.c.h.bf16 %v6732
    %v6758 = vunpack.c.l.bf16 %v6752
    %v6759 = vunpack.c.h.bf16 %v6752
    %v6760 = vunpack.c.l.bf16 %v6753
    %v6761 = vunpack.c.h.bf16 %v6753
    %6766 = vrot.lane.b32.xlu0 %v6758, 127
    %v6767 = vpop.permute.xlu0 %6766
    %6768 = vrot.lane.b32.xlu0 %v6759, 127
    %v6769 = vpop.permute.xlu0 %6768
    %6770 = vrot.lane.b32.xlu0 %v6760, 127
    %v6771 = vpop.permute.xlu0 %6770
    %6772 = vrot.lane.b32.xlu0 %v6761, 127
    %v6773 = vpop.permute.xlu0 %6772
    %v6774 = vsel %vm121, %v6767, %v6769
    %v6775 = vsel %vm121, %v6771, %v6773
    %v6780 = vadd.f32 %v6754, %v6774
    %v6781 = vadd.f32 %v6755, %v6769
    %v6782 = vadd.f32 %v6756, %v6775
    %v6783 = vadd.f32 %v6757, %v6773
    %v6784 = vpack.c.bf16 %v6781, %v6780
    %v6785 = vpack.c.bf16 %v6783, %v6782
    %v6786 = vld [vmem:[%s1] sm:$0x1]
    %6788 = vst [vmem:[#allocation1] ss:$9 sm:$0xff] %v6786
    %v6789 = vld [vmem:[#allocation1] sm:$0xff]
    %6791 = vrot.lane.b32.xlu0 %v6789, 126
    %v6792 = vpop.permute.xlu0 %6791
    %s6794 = vtos %v6792
    %v6795 = vstv %s6794
    %v6796 = vpack.i.b16 %v6795, %v6795
    %v6798 = vunpack.c.l.bf16 %v6796
    %v6799 = vmul.f32 %v6722, %v6798
    %v6800 = vmul.f32 %v6723, %v6798
    %v6801 = vmul.f32 %v6724, %v6798
    %v6802 = vmul.f32 %v6725, %v6798
    %v6803 = vpack.c.bf16 %v6800, %v6799
    %v6804 = vpack.c.bf16 %v6802, %v6801
    %v6805 = vunpack.c.l.bf16 %v6784
    %v6806 = vunpack.c.h.bf16 %v6784
    %v6807 = vunpack.c.l.bf16 %v6785
    %v6808 = vunpack.c.h.bf16 %v6785
    %v6809 = vunpack.c.l.bf16 %v6803
    %v6810 = vunpack.c.h.bf16 %v6803
    %v6811 = vunpack.c.l.bf16 %v6804
    %v6812 = vunpack.c.h.bf16 %v6804
    %6817 = vrot.lane.b32.xlu0 %v6809, 127
    %v6818 = vpop.permute.xlu0 %6817
    %6819 = vrot.lane.b32.xlu0 %v6810, 127
    %v6820 = vpop.permute.xlu0 %6819
    %6821 = vrot.lane.b32.xlu0 %v6811, 127
    %v6822 = vpop.permute.xlu0 %6821
    %6823 = vrot.lane.b32.xlu0 %v6812, 127
    %v6824 = vpop.permute.xlu0 %6823
    %v6825 = vsel %vm121, %v6818, %v6820
    %v6826 = vsel %vm121, %v6822, %v6824
    %v6831 = vadd.f32 %v6805, %v6825
    %v6832 = vadd.f32 %v6806, %v6820
    %v6833 = vadd.f32 %v6807, %v6826
    %v6834 = vadd.f32 %v6808, %v6824
    %v6835 = vpack.c.bf16 %v6832, %v6831
    %v6836 = vpack.c.bf16 %v6834, %v6833
    %v6837 = vld [vmem:[%s1] sm:$0x1]
    %6839 = vst [vmem:[#allocation1] ss:$9 sm:$0xff] %v6837
    %v6840 = vld [vmem:[#allocation1] sm:$0xff]
    %6842 = vrot.lane.b32.xlu0 %v6840, 125
    %v6843 = vpop.permute.xlu0 %6842
    %s6845 = vtos %v6843
    %v6846 = vstv %s6845
    %v6847 = vpack.i.b16 %v6846, %v6846
    %v6849 = vunpack.c.l.bf16 %v6712
    %v6850 = vunpack.c.h.bf16 %v6712
    %v6851 = vunpack.c.l.bf16 %v6713
    %v6852 = vunpack.c.h.bf16 %v6713
    %v6853 = vunpack.c.l.bf16 %v6847
    %v6854 = vmul.f32 %v6849, %v6853
    %v6855 = vmul.f32 %v6850, %v6853
    %v6856 = vmul.f32 %v6851, %v6853
    %v6857 = vmul.f32 %v6852, %v6853
    %v6858 = vpack.c.bf16 %v6855, %v6854
    %v6859 = vpack.c.bf16 %v6857, %v6856
    %v6860 = vunpack.c.l.bf16 %v6835
    %v6861 = vunpack.c.h.bf16 %v6835
    %v6862 = vunpack.c.l.bf16 %v6836
    %v6863 = vunpack.c.h.bf16 %v6836
    %v6864 = vunpack.c.l.bf16 %v6858
    %v6865 = vunpack.c.h.bf16 %v6858
    %v6866 = vunpack.c.l.bf16 %v6859
    %v6867 = vunpack.c.h.bf16 %v6859
    %6872 = vrot.lane.b32.xlu0 %v6864, 114
    %v6873 = vpop.permute.xlu0 %6872
    %6874 = vrot.lane.b32.xlu0 %v6865, 114
    %v6875 = vpop.permute.xlu0 %6874
    %6876 = vrot.lane.b32.xlu0 %v6866, 114
    %v6877 = vpop.permute.xlu0 %6876
    %6878 = vrot.lane.b32.xlu0 %v6867, 114
    %v6879 = vpop.permute.xlu0 %6878
    %v6880 = vsel %vm298, %v6873, %v6875
    %v6881 = vsel %vm298, %v6877, %v6879
    %v6886 = vadd.f32 %v6860, %v6880
    %v6887 = vadd.f32 %v6861, %v6875
    %v6888 = vadd.f32 %v6862, %v6881
    %v6889 = vadd.f32 %v6863, %v6879
    %v6890 = vpack.c.bf16 %v6887, %v6886
    %v6891 = vpack.c.bf16 %v6889, %v6888
    %v6892 = vld [vmem:[%s1] sm:$0x1]
    %6894 = vst [vmem:[#allocation1] ss:$9 sm:$0xff] %v6892
    %v6895 = vld [vmem:[#allocation1] sm:$0xff]
    %6897 = vrot.lane.b32.xlu0 %v6895, 124
    %v6898 = vpop.permute.xlu0 %6897
    %s6900 = vtos %v6898
    %v6901 = vstv %s6900
    %v6902 = vpack.i.b16 %v6901, %v6901
    %v6904 = vunpack.c.l.bf16 %v6714
    %v6905 = vunpack.c.h.bf16 %v6714
    %v6906 = vunpack.c.l.bf16 %v6715
    %v6907 = vunpack.c.h.bf16 %v6715
    %v6908 = vunpack.c.l.bf16 %v6902
    %v6909 = vmul.f32 %v6904, %v6908
    %v6910 = vmul.f32 %v6905, %v6908
    %v6911 = vmul.f32 %v6906, %v6908
    %v6912 = vmul.f32 %v6907, %v6908
    %v6913 = vpack.c.bf16 %v6910, %v6909
    %v6914 = vpack.c.bf16 %v6912, %v6911
    %v6915 = vunpack.c.l.bf16 %v6890
    %v6916 = vunpack.c.h.bf16 %v6890
    %v6917 = vunpack.c.l.bf16 %v6891
    %v6918 = vunpack.c.h.bf16 %v6891
    %v6919 = vunpack.c.l.bf16 %v6913
    %v6920 = vunpack.c.h.bf16 %v6913
    %v6921 = vunpack.c.l.bf16 %v6914
    %v6922 = vunpack.c.h.bf16 %v6914
    %6927 = vrot.lane.b32.xlu0 %v6919, 113
    %v6928 = vpop.permute.xlu0 %6927
    %6929 = vrot.lane.b32.xlu0 %v6920, 113
    %v6930 = vpop.permute.xlu0 %6929
    %6931 = vrot.lane.b32.xlu0 %v6921, 113
    %v6932 = vpop.permute.xlu0 %6931
    %6933 = vrot.lane.b32.xlu0 %v6922, 113
    %v6934 = vpop.permute.xlu0 %6933
    %v6935 = vsel %vm401, %v6928, %v6930
    %v6936 = vsel %vm401, %v6932, %v6934
    %v6941 = vadd.f32 %v6915, %v6935
    %v6942 = vadd.f32 %v6916, %v6930
    %v6943 = vadd.f32 %v6917, %v6936
    %v6944 = vadd.f32 %v6918, %v6934
    %v6945 = vpack.c.bf16 %v6942, %v6941
    %v6946 = vpack.c.bf16 %v6944, %v6943
    %v6947 = vld [vmem:[%s1] sm:$0x1]
    %6949 = vst [vmem:[#allocation1] ss:$9 sm:$0xff] %v6947
    %v6950 = vld [vmem:[#allocation1] sm:$0xff]
    %6952 = vrot.lane.b32.xlu0 %v6950, 123
    %v6953 = vpop.permute.xlu0 %6952
    %s6955 = vtos %v6953
    %v6956 = vstv %s6955
    %v6957 = vpack.i.b16 %v6956, %v6956
    %v6959 = vunpack.c.l.bf16 %v6957
    %v6960 = vmul.f32 %v6849, %v6959
    %v6961 = vmul.f32 %v6850, %v6959
    %v6962 = vmul.f32 %v6851, %v6959
    %v6963 = vmul.f32 %v6852, %v6959
    %v6964 = vpack.c.bf16 %v6961, %v6960
    %v6965 = vpack.c.bf16 %v6963, %v6962
    %v6966 = vunpack.c.l.bf16 %v6945
    %v6967 = vunpack.c.h.bf16 %v6945
    %v6968 = vunpack.c.l.bf16 %v6946
    %v6969 = vunpack.c.h.bf16 %v6946
    %v6970 = vunpack.c.l.bf16 %v6964
    %v6971 = vunpack.c.h.bf16 %v6964
    %v6972 = vunpack.c.l.bf16 %v6965
    %v6973 = vunpack.c.h.bf16 %v6965
    %6978 = vrot.lane.b32.xlu0 %v6970, 113
    %v6979 = vpop.permute.xlu0 %6978
    %6980 = vrot.lane.b32.xlu0 %v6971, 113
    %v6981 = vpop.permute.xlu0 %6980
    %6982 = vrot.lane.b32.xlu0 %v6972, 113
    %v6983 = vpop.permute.xlu0 %6982
    %6984 = vrot.lane.b32.xlu0 %v6973, 113
    %v6985 = vpop.permute.xlu0 %6984
    %v6986 = vsel %vm401, %v6979, %v6981
    %v6987 = vsel %vm401, %v6983, %v6985
    %v6992 = vadd.f32 %v6966, %v6986
    %v6993 = vadd.f32 %v6967, %v6981
    %v6994 = vadd.f32 %v6968, %v6987
    %v6995 = vadd.f32 %v6969, %v6985
    %v6996 = vpack.c.bf16 %v6993, %v6992
    %v6997 = vpack.c.bf16 %v6995, %v6994
    %v6998 = vld [vmem:[%s1] sm:$0x1]
    %7000 = vst [vmem:[#allocation1] ss:$9 sm:$0xff] %v6998
    %v7001 = vld [vmem:[#allocation1] sm:$0xff]
    %7003 = vrot.lane.b32.xlu0 %v7001, 122
    %v7004 = vpop.permute.xlu0 %7003
    %s7006 = vtos %v7004
    %v7007 = vstv %s7006
    %v7008 = vpack.i.b16 %v7007, %v7007
    %v7010 = vunpack.c.l.bf16 %v7008
    %v7011 = vmul.f32 %v6722, %v7010
    %v7012 = vmul.f32 %v6723, %v7010
    %v7013 = vmul.f32 %v6724, %v7010
    %v7014 = vmul.f32 %v6725, %v7010
    %v7015 = vpack.c.bf16 %v7012, %v7011
    %v7016 = vpack.c.bf16 %v7014, %v7013
    %v7017 = vunpack.c.l.bf16 %v6996
    %v7018 = vunpack.c.h.bf16 %v6996
    %v7019 = vunpack.c.l.bf16 %v6997
    %v7020 = vunpack.c.h.bf16 %v6997
    %v7021 = vunpack.c.l.bf16 %v7015
    %v7022 = vunpack.c.h.bf16 %v7015
    %v7023 = vunpack.c.l.bf16 %v7016
    %v7024 = vunpack.c.h.bf16 %v7016
    %7029 = vrot.lane.b32.xlu0 %v7021, 114
    %v7030 = vpop.permute.xlu0 %7029
    %7031 = vrot.lane.b32.xlu0 %v7022, 114
    %v7032 = vpop.permute.xlu0 %7031
    %7033 = vrot.lane.b32.xlu0 %v7023, 114
    %v7034 = vpop.permute.xlu0 %7033
    %7035 = vrot.lane.b32.xlu0 %v7024, 114
    %v7036 = vpop.permute.xlu0 %7035
    %v7037 = vsel %vm298, %v7030, %v7032
    %v7038 = vsel %vm298, %v7034, %v7036
    %v7043 = vadd.f32 %v7017, %v7037
    %v7044 = vadd.f32 %v7018, %v7032
    %v7045 = vadd.f32 %v7019, %v7038
    %v7046 = vadd.f32 %v7020, %v7036
    %v7047 = vpack.c.bf16 %v7044, %v7043
    %v7048 = vpack.c.bf16 %v7046, %v7045
    %v7049 = vld [vmem:[%s1] sm:$0x1]
    %7051 = vst [vmem:[#allocation1] ss:$9 sm:$0xff] %v7049
    %v7052 = vld [vmem:[#allocation1] sm:$0xff]
    %7054 = vrot.lane.b32.xlu0 %v7052, 121
    %v7055 = vpop.permute.xlu0 %7054
    %s7057 = vtos %v7055
    %v7058 = vstv %s7057
    %v7059 = vpack.i.b16 %v7058, %v7058
    %v7061 = vunpack.c.l.bf16 %v7059
    %v7062 = vmul.f32 %v6743, %v7061
    %v7063 = vmul.f32 %v6744, %v7061
    %v7064 = vmul.f32 %v6745, %v7061
    %v7065 = vmul.f32 %v6746, %v7061
    %v7066 = vpack.c.bf16 %v7063, %v7062
    %v7067 = vpack.c.bf16 %v7065, %v7064
    %v7068 = vunpack.c.l.bf16 %v7047
    %v7069 = vunpack.c.h.bf16 %v7047
    %v7070 = vunpack.c.l.bf16 %v7048
    %v7071 = vunpack.c.h.bf16 %v7048
    %v7072 = vunpack.c.l.bf16 %v7066
    %v7073 = vunpack.c.h.bf16 %v7066
    %v7074 = vunpack.c.l.bf16 %v7067
    %v7075 = vunpack.c.h.bf16 %v7067
    %7080 = vrot.lane.b32.xlu0 %v7072, 113
    %v7081 = vpop.permute.xlu0 %7080
    %7082 = vrot.lane.b32.xlu0 %v7073, 113
    %v7083 = vpop.permute.xlu0 %7082
    %7084 = vrot.lane.b32.xlu0 %v7074, 113
    %v7085 = vpop.permute.xlu0 %7084
    %7086 = vrot.lane.b32.xlu0 %v7075, 113
    %v7087 = vpop.permute.xlu0 %7086
    %v7088 = vsel %vm401, %v7081, %v7083
    %v7089 = vsel %vm401, %v7085, %v7087
    %v7094 = vadd.f32 %v7068, %v7088
    %v7095 = vadd.f32 %v7069, %v7083
    %v7096 = vadd.f32 %v7070, %v7089
    %v7097 = vadd.f32 %v7071, %v7087
    %v7098 = vpack.c.bf16 %v7095, %v7094
    %v7099 = vpack.c.bf16 %v7097, %v7096
    %v7100 = vld [vmem:[%s1] sm:$0x1]
    %7102 = vst [vmem:[#allocation1] ss:$9 sm:$0xff] %v7100
    %v7103 = vld [vmem:[#allocation1] sm:$0xff]
    %7105 = vrot.lane.b32.xlu0 %v7103, 120
    %v7106 = vpop.permute.xlu0 %7105
    %s7108 = vtos %v7106
    %v7109 = vstv %s7108
    %v7110 = vpack.i.b16 %v7109, %v7109
    %v7112 = vunpack.c.l.bf16 %v7110
    %v7113 = vmul.f32 %v6722, %v7112
    %v7114 = vmul.f32 %v6723, %v7112
    %v7115 = vmul.f32 %v6724, %v7112
    %v7116 = vmul.f32 %v6725, %v7112
    %v7117 = vpack.c.bf16 %v7114, %v7113
    %v7118 = vpack.c.bf16 %v7116, %v7115
    %v7119 = vunpack.c.l.bf16 %v7098
    %v7120 = vunpack.c.h.bf16 %v7098
    %v7121 = vunpack.c.l.bf16 %v7099
    %v7122 = vunpack.c.h.bf16 %v7099
    %v7123 = vunpack.c.l.bf16 %v7117
    %v7124 = vunpack.c.h.bf16 %v7117
    %v7125 = vunpack.c.l.bf16 %v7118
    %v7126 = vunpack.c.h.bf16 %v7118
    %7131 = vrot.lane.b32.xlu0 %v7123, 113
    %v7132 = vpop.permute.xlu0 %7131
    %7133 = vrot.lane.b32.xlu0 %v7124, 113
    %v7134 = vpop.permute.xlu0 %7133
    %7135 = vrot.lane.b32.xlu0 %v7125, 113
    %v7136 = vpop.permute.xlu0 %7135
    %7137 = vrot.lane.b32.xlu0 %v7126, 113
    %v7138 = vpop.permute.xlu0 %7137
    %v7139 = vsel %vm401, %v7132, %v7134
    %v7140 = vsel %vm401, %v7136, %v7138
    %v7145 = vadd.f32 %v7119, %v7139
    %v7146 = vadd.f32 %v7120, %v7134
    %v7147 = vadd.f32 %v7121, %v7140
    %v7148 = vadd.f32 %v7122, %v7138
    %v7149 = vpack.c.bf16 %v7146, %v7145
    %v7150 = vpack.c.bf16 %v7148, %v7147
    %v7151 = vld [vmem:[%s2] sm:$0x1]
    %s7153 = vtos %v7151
    %v7154 = vstv %s7153
    %v7155 = vpack.i.b16 %v7154, %v7154
    %v7157 = vunpack.c.l.bf16 %v7149
    %v7158 = vunpack.c.h.bf16 %v7149
    %v7159 = vunpack.c.l.bf16 %v7150
    %v7160 = vunpack.c.h.bf16 %v7150
    %v7161 = vunpack.c.l.bf16 %v7155
    %v7162 = vadd.f32 %v7157, %v7161
    %v7163 = vadd.f32 %v7158, %v7161
    %v7164 = vadd.f32 %v7159, %v7161
    %v7165 = vadd.f32 %v7160, %v7161
    %v7166 = vpack.c.bf16 %v7163, %v7162
    %v7167 = vpack.c.bf16 %v7165, %v7164
    %v7168 = vunpack.c.l.bf16 %v7166
    %v7169 = vunpack.c.h.bf16 %v7166
    %v7170 = vunpack.c.l.bf16 %v7167
    %v7171 = vunpack.c.h.bf16 %v7167
    %v7172 = vmax.f32 %v7168, 0.0
    %v7173 = vmax.f32 %v7169, 0.0
    %v7174 = vmax.f32 %v7170, 0.0
    %v7175 = vmax.f32 %v7171, 0.0
    %v7176 = vpack.c.bf16 %v7173, %v7172
    %v7177 = vpack.c.bf16 %v7175, %v7174
    %v7178 = vld [vmem:[#allocation2] sm:$0xff]
    %v7179 = vld [vmem:[#allocation2 + $0x28] sm:$0xff]
    %v7180 = vunpack.c.l.bf16 %v7178
    %v7181 = vunpack.c.h.bf16 %v7178
    %v7182 = vunpack.c.l.bf16 %v7179
    %v7183 = vunpack.c.h.bf16 %v7179
    %v7184 = vunpack.c.l.bf16 %v7176
    %v7185 = vunpack.c.h.bf16 %v7176
    %v7186 = vunpack.c.l.bf16 %v7177
    %v7187 = vunpack.c.h.bf16 %v7177
    %v7188 = vmax.f32 %v7180, %v7184
    %v7189 = vmax.f32 %v7181, %v7185
    %v7190 = vmax.f32 %v7182, %v7186
    %v7191 = vmax.f32 %v7183, %v7187
    %v7192 = vpack.c.bf16 %v7189, %v7188
    %v7193 = vpack.c.bf16 %v7191, %v7190
    %7194 = vst.msk [vmem:[#allocation2] sm:$0xff] %vm445, %v7192
    %7195 = vst.msk [vmem:[#allocation2 + $0x28] sm:$0xff] %vm445, %v7193
    %v7196 = vld [vmem:[%s1] sm:$0x1]
    %7198 = vst [vmem:[#allocation1] ss:$9 sm:$0xff] %v7196
    %v7199 = vld [vmem:[#allocation1] sm:$0xff]
    %7201 = vrot.lane.b32.xlu0 %v7199, 119
    %v7202 = vpop.permute.xlu0 %7201
    %s7204 = vtos %v7202
    %v7205 = vstv %s7204
    %v7206 = vpack.i.b16 %v7205, %v7205
    %v7208 = vunpack.c.l.bf16 %v7206
    %v7209 = vmul.f32 %v6722, %v7208
    %v7210 = vmul.f32 %v6723, %v7208
    %v7211 = vmul.f32 %v6724, %v7208
    %v7212 = vmul.f32 %v6725, %v7208
    %v7213 = vpack.c.bf16 %v7210, %v7209
    %v7214 = vpack.c.bf16 %v7212, %v7211
    %v7215 = vld [vmem:[%s1] sm:$0x1]
    %7217 = vst [vmem:[#allocation1] ss:$9 sm:$0xff] %v7215
    %v7218 = vld [vmem:[#allocation1] sm:$0xff]
    %7220 = vrot.lane.b32.xlu0 %v7218, 118
    %v7221 = vpop.permute.xlu0 %7220
    %s7223 = vtos %v7221
    %v7224 = vstv %s7223
    %v7225 = vpack.i.b16 %v7224, %v7224
    %v7227 = vunpack.c.l.bf16 %v7225
    %v7228 = vmul.f32 %v6743, %v7227
    %v7229 = vmul.f32 %v6744, %v7227
    %v7230 = vmul.f32 %v6745, %v7227
    %v7231 = vmul.f32 %v6746, %v7227
    %v7232 = vpack.c.bf16 %v7229, %v7228
    %v7233 = vpack.c.bf16 %v7231, %v7230
    %v7234 = vunpack.c.l.bf16 %v7213
    %v7235 = vunpack.c.h.bf16 %v7213
    %v7236 = vunpack.c.l.bf16 %v7214
    %v7237 = vunpack.c.h.bf16 %v7214
    %v7238 = vunpack.c.l.bf16 %v7232
    %v7239 = vunpack.c.h.bf16 %v7232
    %v7240 = vunpack.c.l.bf16 %v7233
    %v7241 = vunpack.c.h.bf16 %v7233
    %7246 = vrot.lane.b32.xlu0 %v7238, 127
    %v7247 = vpop.permute.xlu0 %7246
    %7248 = vrot.lane.b32.xlu0 %v7239, 127
    %v7249 = vpop.permute.xlu0 %7248
    %7250 = vrot.lane.b32.xlu0 %v7240, 127
    %v7251 = vpop.permute.xlu0 %7250
    %7252 = vrot.lane.b32.xlu0 %v7241, 127
    %v7253 = vpop.permute.xlu0 %7252
    %v7254 = vsel %vm121, %v7247, %v7249
    %v7255 = vsel %vm121, %v7251, %v7253
    %v7260 = vadd.f32 %v7234, %v7254
    %v7261 = vadd.f32 %v7235, %v7249
    %v7262 = vadd.f32 %v7236, %v7255
    %v7263 = vadd.f32 %v7237, %v7253
    %v7264 = vpack.c.bf16 %v7261, %v7260
    %v7265 = vpack.c.bf16 %v7263, %v7262
    %v7266 = vld [vmem:[%s1] sm:$0x1]
    %7268 = vst [vmem:[#allocation1] ss:$9 sm:$0xff] %v7266
    %v7269 = vld [vmem:[#allocation1] sm:$0xff]
    %7271 = vrot.lane.b32.xlu0 %v7269, 117
    %v7272 = vpop.permute.xlu0 %7271
    %s7274 = vtos %v7272
    %v7275 = vstv %s7274
    %v7276 = vpack.i.b16 %v7275, %v7275
    %v7278 = vunpack.c.l.bf16 %v7276
    %v7279 = vmul.f32 %v6722, %v7278
    %v7280 = vmul.f32 %v6723, %v7278
    %v7281 = vmul.f32 %v6724, %v7278
    %v7282 = vmul.f32 %v6725, %v7278
    %v7283 = vpack.c.bf16 %v7280, %v7279
    %v7284 = vpack.c.bf16 %v7282, %v7281
    %v7285 = vunpack.c.l.bf16 %v7264
    %v7286 = vunpack.c.h.bf16 %v7264
    %v7287 = vunpack.c.l.bf16 %v7265
    %v7288 = vunpack.c.h.bf16 %v7265
    %v7289 = vunpack.c.l.bf16 %v7283
    %v7290 = vunpack.c.h.bf16 %v7283
    %v7291 = vunpack.c.l.bf16 %v7284
    %v7292 = vunpack.c.h.bf16 %v7284
    %7297 = vrot.lane.b32.xlu0 %v7289, 127
    %v7298 = vpop.permute.xlu0 %7297
    %7299 = vrot.lane.b32.xlu0 %v7290, 127
    %v7300 = vpop.permute.xlu0 %7299
    %7301 = vrot.lane.b32.xlu0 %v7291, 127
    %v7302 = vpop.permute.xlu0 %7301
    %7303 = vrot.lane.b32.xlu0 %v7292, 127
    %v7304 = vpop.permute.xlu0 %7303
    %v7305 = vsel %vm121, %v7298, %v7300
    %v7306 = vsel %vm121, %v7302, %v7304
    %v7311 = vadd.f32 %v7285, %v7305
    %v7312 = vadd.f32 %v7286, %v7300
    %v7313 = vadd.f32 %v7287, %v7306
    %v7314 = vadd.f32 %v7288, %v7304
    %v7315 = vpack.c.bf16 %v7312, %v7311
    %v7316 = vpack.c.bf16 %v7314, %v7313
    %v7317 = vld [vmem:[%s1] sm:$0x1]
    %7319 = vst [vmem:[#allocation1] ss:$9 sm:$0xff] %v7317
    %v7320 = vld [vmem:[#allocation1] sm:$0xff]
    %7322 = vrot.lane.b32.xlu0 %v7320, 116
    %v7323 = vpop.permute.xlu0 %7322
    %s7325 = vtos %v7323
    %v7326 = vstv %s7325
    %v7327 = vpack.i.b16 %v7326, %v7326
    %v7329 = vunpack.c.l.bf16 %v7327
    %v7330 = vmul.f32 %v6849, %v7329
    %v7331 = vmul.f32 %v6850, %v7329
    %v7332 = vmul.f32 %v6851, %v7329
    %v7333 = vmul.f32 %v6852, %v7329
    %v7334 = vpack.c.bf16 %v7331, %v7330
    %v7335 = vpack.c.bf16 %v7333, %v7332
    %v7336 = vunpack.c.l.bf16 %v7315
    %v7337 = vunpack.c.h.bf16 %v7315
    %v7338 = vunpack.c.l.bf16 %v7316
    %v7339 = vunpack.c.h.bf16 %v7316
    %v7340 = vunpack.c.l.bf16 %v7334
    %v7341 = vunpack.c.h.bf16 %v7334
    %v7342 = vunpack.c.l.bf16 %v7335
    %v7343 = vunpack.c.h.bf16 %v7335
    %7348 = vrot.lane.b32.xlu0 %v7340, 114
    %v7349 = vpop.permute.xlu0 %7348
    %7350 = vrot.lane.b32.xlu0 %v7341, 114
    %v7351 = vpop.permute.xlu0 %7350
    %7352 = vrot.lane.b32.xlu0 %v7342, 114
    %v7353 = vpop.permute.xlu0 %7352
    %7354 = vrot.lane.b32.xlu0 %v7343, 114
    %v7355 = vpop.permute.xlu0 %7354
    %v7356 = vsel %vm298, %v7349, %v7351
    %v7357 = vsel %vm298, %v7353, %v7355
    %v7362 = vadd.f32 %v7336, %v7356
    %v7363 = vadd.f32 %v7337, %v7351
    %v7364 = vadd.f32 %v7338, %v7357
    %v7365 = vadd.f32 %v7339, %v7355
    %v7366 = vpack.c.bf16 %v7363, %v7362
    %v7367 = vpack.c.bf16 %v7365, %v7364
    %v7368 = vld [vmem:[%s1] sm:$0x1]
    %7370 = vst [vmem:[#allocation1] ss:$9 sm:$0xff] %v7368
    %v7371 = vld [vmem:[#allocation1] sm:$0xff]
    %7373 = vrot.lane.b32.xlu0 %v7371, 115
    %v7374 = vpop.permute.xlu0 %7373
    %s7376 = vtos %v7374
    %v7377 = vstv %s7376
    %v7378 = vpack.i.b16 %v7377, %v7377
    %v7380 = vunpack.c.l.bf16 %v7378
    %v7381 = vmul.f32 %v6904, %v7380
    %v7382 = vmul.f32 %v6905, %v7380
    %v7383 = vmul.f32 %v6906, %v7380
    %v7384 = vmul.f32 %v6907, %v7380
    %v7385 = vpack.c.bf16 %v7382, %v7381
    %v7386 = vpack.c.bf16 %v7384, %v7383
    %v7387 = vunpack.c.l.bf16 %v7366
    %v7388 = vunpack.c.h.bf16 %v7366
    %v7389 = vunpack.c.l.bf16 %v7367
    %v7390 = vunpack.c.h.bf16 %v7367
    %v7391 = vunpack.c.l.bf16 %v7385
    %v7392 = vunpack.c.h.bf16 %v7385
    %v7393 = vunpack.c.l.bf16 %v7386
    %v7394 = vunpack.c.h.bf16 %v7386
    %7399 = vrot.lane.b32.xlu0 %v7391, 113
    %v7400 = vpop.permute.xlu0 %7399
    %7401 = vrot.lane.b32.xlu0 %v7392, 113
    %v7402 = vpop.permute.xlu0 %7401
    %7403 = vrot.lane.b32.xlu0 %v7393, 113
    %v7404 = vpop.permute.xlu0 %7403
    %7405 = vrot.lane.b32.xlu0 %v7394, 113
    %v7406 = vpop.permute.xlu0 %7405
    %v7407 = vsel %vm401, %v7400, %v7402
    %v7408 = vsel %vm401, %v7404, %v7406
    %v7413 = vadd.f32 %v7387, %v7407
    %v7414 = vadd.f32 %v7388, %v7402
    %v7415 = vadd.f32 %v7389, %v7408
    %v7416 = vadd.f32 %v7390, %v7406
    %v7417 = vpack.c.bf16 %v7414, %v7413
    %v7418 = vpack.c.bf16 %v7416, %v7415
    %v7419 = vld [vmem:[%s1] sm:$0x1]
    %7421 = vst [vmem:[#allocation1] ss:$9 sm:$0xff] %v7419
    %v7422 = vld [vmem:[#allocation1] sm:$0xff]
    %7424 = vrot.lane.b32.xlu0 %v7422, 114
    %v7425 = vpop.permute.xlu0 %7424
    %s7427 = vtos %v7425
    %v7428 = vstv %s7427
    %v7429 = vpack.i.b16 %v7428, %v7428
    %v7431 = vunpack.c.l.bf16 %v7429
    %v7432 = vmul.f32 %v6849, %v7431
    %v7433 = vmul.f32 %v6850, %v7431
    %v7434 = vmul.f32 %v6851, %v7431
    %v7435 = vmul.f32 %v6852, %v7431
    %v7436 = vpack.c.bf16 %v7433, %v7432
    %v7437 = vpack.c.bf16 %v7435, %v7434
    %v7438 = vunpack.c.l.bf16 %v7417
    %v7439 = vunpack.c.h.bf16 %v7417
    %v7440 = vunpack.c.l.bf16 %v7418
    %v7441 = vunpack.c.h.bf16 %v7418
    %v7442 = vunpack.c.l.bf16 %v7436
    %v7443 = vunpack.c.h.bf16 %v7436
    %v7444 = vunpack.c.l.bf16 %v7437
    %v7445 = vunpack.c.h.bf16 %v7437
    %7450 = vrot.lane.b32.xlu0 %v7442, 113
    %v7451 = vpop.permute.xlu0 %7450
    %7452 = vrot.lane.b32.xlu0 %v7443, 113
    %v7453 = vpop.permute.xlu0 %7452
    %7454 = vrot.lane.b32.xlu0 %v7444, 113
    %v7455 = vpop.permute.xlu0 %7454
    %7456 = vrot.lane.b32.xlu0 %v7445, 113
    %v7457 = vpop.permute.xlu0 %7456
    %v7458 = vsel %vm401, %v7451, %v7453
    %v7459 = vsel %vm401, %v7455, %v7457
    %v7464 = vadd.f32 %v7438, %v7458
    %v7465 = vadd.f32 %v7439, %v7453
    %v7466 = vadd.f32 %v7440, %v7459
    %v7467 = vadd.f32 %v7441, %v7457
    %v7468 = vpack.c.bf16 %v7465, %v7464
    %v7469 = vpack.c.bf16 %v7467, %v7466
    %v7470 = vld [vmem:[%s1] sm:$0x1]
    %7472 = vst [vmem:[#allocation1] ss:$9 sm:$0xff] %v7470
    %v7473 = vld [vmem:[#allocation1] sm:$0xff]
    %7475 = vrot.lane.b32.xlu0 %v7473, 113
    %v7476 = vpop.permute.xlu0 %7475
    %s7478 = vtos %v7476
    %v7479 = vstv %s7478
    %v7480 = vpack.i.b16 %v7479, %v7479
    %v7482 = vunpack.c.l.bf16 %v7480
    %v7483 = vmul.f32 %v6722, %v7482
    %v7484 = vmul.f32 %v6723, %v7482
    %v7485 = vmul.f32 %v6724, %v7482
    %v7486 = vmul.f32 %v6725, %v7482
    %v7487 = vpack.c.bf16 %v7484, %v7483
    %v7488 = vpack.c.bf16 %v7486, %v7485
    %v7489 = vunpack.c.l.bf16 %v7468
    %v7490 = vunpack.c.h.bf16 %v7468
    %v7491 = vunpack.c.l.bf16 %v7469
    %v7492 = vunpack.c.h.bf16 %v7469
    %v7493 = vunpack.c.l.bf16 %v7487
    %v7494 = vunpack.c.h.bf16 %v7487
    %v7495 = vunpack.c.l.bf16 %v7488
    %v7496 = vunpack.c.h.bf16 %v7488
    %7501 = vrot.lane.b32.xlu0 %v7493, 114
    %v7502 = vpop.permute.xlu0 %7501
    %7503 = vrot.lane.b32.xlu0 %v7494, 114
    %v7504 = vpop.permute.xlu0 %7503
    %7505 = vrot.lane.b32.xlu0 %v7495, 114
    %v7506 = vpop.permute.xlu0 %7505
    %7507 = vrot.lane.b32.xlu0 %v7496, 114
    %v7508 = vpop.permute.xlu0 %7507
    %v7509 = vsel %vm298, %v7502, %v7504
    %v7510 = vsel %vm298, %v7506, %v7508
    %v7515 = vadd.f32 %v7489, %v7509
    %v7516 = vadd.f32 %v7490, %v7504
    %v7517 = vadd.f32 %v7491, %v7510
    %v7518 = vadd.f32 %v7492, %v7508
    %v7519 = vpack.c.bf16 %v7516, %v7515
    %v7520 = vpack.c.bf16 %v7518, %v7517
    %v7521 = vld [vmem:[%s1] sm:$0x1]
    %7523 = vst [vmem:[#allocation1] ss:$9 sm:$0xff] %v7521
    %v7524 = vld [vmem:[#allocation1] sm:$0xff]
    %7526 = vrot.lane.b32.xlu0 %v7524, 112
    %v7527 = vpop.permute.xlu0 %7526
    %s7529 = vtos %v7527
    %v7530 = vstv %s7529
    %v7531 = vpack.i.b16 %v7530, %v7530
    %v7533 = vunpack.c.l.bf16 %v7531
    %v7534 = vmul.f32 %v6743, %v7533
    %v7535 = vmul.f32 %v6744, %v7533
    %v7536 = vmul.f32 %v6745, %v7533
    %v7537 = vmul.f32 %v6746, %v7533
    %v7538 = vpack.c.bf16 %v7535, %v7534
    %v7539 = vpack.c.bf16 %v7537, %v7536
    %v7540 = vunpack.c.l.bf16 %v7519
    %v7541 = vunpack.c.h.bf16 %v7519
    %v7542 = vunpack.c.l.bf16 %v7520
    %v7543 = vunpack.c.h.bf16 %v7520
    %v7544 = vunpack.c.l.bf16 %v7538
    %v7545 = vunpack.c.h.bf16 %v7538
    %v7546 = vunpack.c.l.bf16 %v7539
    %v7547 = vunpack.c.h.bf16 %v7539
    %7552 = vrot.lane.b32.xlu0 %v7544, 113
    %v7553 = vpop.permute.xlu0 %7552
    %7554 = vrot.lane.b32.xlu0 %v7545, 113
    %v7555 = vpop.permute.xlu0 %7554
    %7556 = vrot.lane.b32.xlu0 %v7546, 113
    %v7557 = vpop.permute.xlu0 %7556
    %7558 = vrot.lane.b32.xlu0 %v7547, 113
    %v7559 = vpop.permute.xlu0 %7558
    %v7560 = vsel %vm401, %v7553, %v7555
    %v7561 = vsel %vm401, %v7557, %v7559
    %v7566 = vadd.f32 %v7540, %v7560
    %v7567 = vadd.f32 %v7541, %v7555
    %v7568 = vadd.f32 %v7542, %v7561
    %v7569 = vadd.f32 %v7543, %v7559
    %v7570 = vpack.c.bf16 %v7567, %v7566
    %v7571 = vpack.c.bf16 %v7569, %v7568
    %v7572 = vld [vmem:[%s1] sm:$0x1]
    %7574 = vst [vmem:[#allocation1] ss:$9 sm:$0xff] %v7572
    %v7575 = vld [vmem:[#allocation1] sm:$0xff]
    %7577 = vrot.lane.b32.xlu0 %v7575, 111
    %v7578 = vpop.permute.xlu0 %7577
    %s7580 = vtos %v7578
    %v7581 = vstv %s7580
    %v7582 = vpack.i.b16 %v7581, %v7581
    %v7584 = vunpack.c.l.bf16 %v7582
    %v7585 = vmul.f32 %v6722, %v7584
    %v7586 = vmul.f32 %v6723, %v7584
    %v7587 = vmul.f32 %v6724, %v7584
    %v7588 = vmul.f32 %v6725, %v7584
    %v7589 = vpack.c.bf16 %v7586, %v7585
    %v7590 = vpack.c.bf16 %v7588, %v7587
    %v7591 = vunpack.c.l.bf16 %v7570
    %v7592 = vunpack.c.h.bf16 %v7570
    %v7593 = vunpack.c.l.bf16 %v7571
    %v7594 = vunpack.c.h.bf16 %v7571
    %v7595 = vunpack.c.l.bf16 %v7589
    %v7596 = vunpack.c.h.bf16 %v7589
    %v7597 = vunpack.c.l.bf16 %v7590
    %v7598 = vunpack.c.h.bf16 %v7590
    %7603 = vrot.lane.b32.xlu0 %v7595, 113
    %v7604 = vpop.permute.xlu0 %7603
    %7605 = vrot.lane.b32.xlu0 %v7596, 113
    %v7606 = vpop.permute.xlu0 %7605
    %7607 = vrot.lane.b32.xlu0 %v7597, 113
    %v7608 = vpop.permute.xlu0 %7607
    %7609 = vrot.lane.b32.xlu0 %v7598, 113
    %v7610 = vpop.permute.xlu0 %7609
    %v7611 = vsel %vm401, %v7604, %v7606
    %v7612 = vsel %vm401, %v7608, %v7610
    %v7617 = vadd.f32 %v7591, %v7611
    %v7618 = vadd.f32 %v7592, %v7606
    %v7619 = vadd.f32 %v7593, %v7612
    %v7620 = vadd.f32 %v7594, %v7610
    %v7621 = vpack.c.bf16 %v7618, %v7617
    %v7622 = vpack.c.bf16 %v7620, %v7619
    %v7623 = vld [vmem:[%s2] sm:$0x1]
    %7625 = vst [vmem:[#allocation1] ss:$9 sm:$0xff] %v7623
    %v7626 = vld [vmem:[#allocation1] sm:$0xff]
    %7628 = vrot.lane.b32.xlu0 %v7626, 127
    %v7629 = vpop.permute.xlu0 %7628
    %s7631 = vtos %v7629
    %v7632 = vstv %s7631
    %v7633 = vpack.i.b16 %v7632, %v7632
    %v7635 = vunpack.c.l.bf16 %v7621
    %v7636 = vunpack.c.h.bf16 %v7621
    %v7637 = vunpack.c.l.bf16 %v7622
    %v7638 = vunpack.c.h.bf16 %v7622
    %v7639 = vunpack.c.l.bf16 %v7633
    %v7640 = vadd.f32 %v7635, %v7639
    %v7641 = vadd.f32 %v7636, %v7639
    %v7642 = vadd.f32 %v7637, %v7639
    %v7643 = vadd.f32 %v7638, %v7639
    %v7644 = vpack.c.bf16 %v7641, %v7640
    %v7645 = vpack.c.bf16 %v7643, %v7642
    %v7646 = vunpack.c.l.bf16 %v7644
    %v7647 = vunpack.c.h.bf16 %v7644
    %v7648 = vunpack.c.l.bf16 %v7645
    %v7649 = vunpack.c.h.bf16 %v7645
    %v7650 = vmax.f32 %v7646, 0.0
    %v7651 = vmax.f32 %v7647, 0.0
    %v7652 = vmax.f32 %v7648, 0.0
    %v7653 = vmax.f32 %v7649, 0.0
    %v7654 = vpack.c.bf16 %v7651, %v7650
    %v7655 = vpack.c.bf16 %v7653, %v7652
    %v7656 = vld [vmem:[#allocation2 + $0x8] sm:$0xff]
    %v7657 = vld [vmem:[#allocation2 + $0x30] sm:$0xff]
    %v7658 = vunpack.c.l.bf16 %v7656
    %v7659 = vunpack.c.h.bf16 %v7656
    %v7660 = vunpack.c.l.bf16 %v7657
    %v7661 = vunpack.c.h.bf16 %v7657
    %v7662 = vunpack.c.l.bf16 %v7654
    %v7663 = vunpack.c.h.bf16 %v7654
    %v7664 = vunpack.c.l.bf16 %v7655
    %v7665 = vunpack.c.h.bf16 %v7655
    %v7666 = vmax.f32 %v7658, %v7662
    %v7667 = vmax.f32 %v7659, %v7663
    %v7668 = vmax.f32 %v7660, %v7664
    %v7669 = vmax.f32 %v7661, %v7665
    %v7670 = vpack.c.bf16 %v7667, %v7666
    %v7671 = vpack.c.bf16 %v7669, %v7668
    %7672 = vst.msk [vmem:[#allocation2 + $0x8] sm:$0xff] %vm445, %v7670
    %7673 = vst.msk [vmem:[#allocation2 + $0x30] sm:$0xff] %vm445, %v7671
    %v7674 = vld [vmem:[%s1] sm:$0x1]
    %7676 = vst [vmem:[#allocation1] ss:$9 sm:$0xff] %v7674
    %v7677 = vld [vmem:[#allocation1] sm:$0xff]
    %7679 = vrot.lane.b32.xlu0 %v7677, 110
    %v7680 = vpop.permute.xlu0 %7679
    %s7682 = vtos %v7680
    %v7683 = vstv %s7682
    %v7684 = vpack.i.b16 %v7683, %v7683
    %v7686 = vunpack.c.l.bf16 %v7684
    %v7687 = vmul.f32 %v6722, %v7686
    %v7688 = vmul.f32 %v6723, %v7686
    %v7689 = vmul.f32 %v6724, %v7686
    %v7690 = vmul.f32 %v6725, %v7686
    %v7691 = vpack.c.bf16 %v7688, %v7687
    %v7692 = vpack.c.bf16 %v7690, %v7689
    %v7693 = vld [vmem:[%s1] sm:$0x1]
    %7695 = vst [vmem:[#allocation1] ss:$9 sm:$0xff] %v7693
    %v7696 = vld [vmem:[#allocation1] sm:$0xff]
    %7698 = vrot.lane.b32.xlu0 %v7696, 109
    %v7699 = vpop.permute.xlu0 %7698
    %s7701 = vtos %v7699
    %v7702 = vstv %s7701
    %v7703 = vpack.i.b16 %v7702, %v7702
    %v7705 = vunpack.c.l.bf16 %v7703
    %v7706 = vmul.f32 %v6743, %v7705
    %v7707 = vmul.f32 %v6744, %v7705
    %v7708 = vmul.f32 %v6745, %v7705
    %v7709 = vmul.f32 %v6746, %v7705
    %v7710 = vpack.c.bf16 %v7707, %v7706
    %v7711 = vpack.c.bf16 %v7709, %v7708
    %v7712 = vunpack.c.l.bf16 %v7691
    %v7713 = vunpack.c.h.bf16 %v7691
    %v7714 = vunpack.c.l.bf16 %v7692
    %v7715 = vunpack.c.h.bf16 %v7692
    %v7716 = vunpack.c.l.bf16 %v7710
    %v7717 = vunpack.c.h.bf16 %v7710
    %v7718 = vunpack.c.l.bf16 %v7711
    %v7719 = vunpack.c.h.bf16 %v7711
    %7724 = vrot.lane.b32.xlu0 %v7716, 127
    %v7725 = vpop.permute.xlu0 %7724
    %7726 = vrot.lane.b32.xlu0 %v7717, 127
    %v7727 = vpop.permute.xlu0 %7726
    %7728 = vrot.lane.b32.xlu0 %v7718, 127
    %v7729 = vpop.permute.xlu0 %7728
    %7730 = vrot.lane.b32.xlu0 %v7719, 127
    %v7731 = vpop.permute.xlu0 %7730
    %v7732 = vsel %vm121, %v7725, %v7727
    %v7733 = vsel %vm121, %v7729, %v7731
    %v7738 = vadd.f32 %v7712, %v7732
    %v7739 = vadd.f32 %v7713, %v7727
    %v7740 = vadd.f32 %v7714, %v7733
    %v7741 = vadd.f32 %v7715, %v7731
    %v7742 = vpack.c.bf16 %v7739, %v7738
    %v7743 = vpack.c.bf16 %v7741, %v7740
    %v7744 = vld [vmem:[%s1] sm:$0x1]
    %7746 = vst [vmem:[#allocation1] ss:$9 sm:$0xff] %v7744
    %v7747 = vld [vmem:[#allocation1] sm:$0xff]
    %7749 = vrot.lane.b32.xlu0 %v7747, 108
    %v7750 = vpop.permute.xlu0 %7749
    %s7752 = vtos %v7750
    %v7753 = vstv %s7752
    %v7754 = vpack.i.b16 %v7753, %v7753
    %v7756 = vunpack.c.l.bf16 %v7754
    %v7757 = vmul.f32 %v6722, %v7756
    %v7758 = vmul.f32 %v6723, %v7756
    %v7759 = vmul.f32 %v6724, %v7756
    %v7760 = vmul.f32 %v6725, %v7756
    %v7761 = vpack.c.bf16 %v7758, %v7757
    %v7762 = vpack.c.bf16 %v7760, %v7759
    %v7763 = vunpack.c.l.bf16 %v7742
    %v7764 = vunpack.c.h.bf16 %v7742
    %v7765 = vunpack.c.l.bf16 %v7743
    %v7766 = vunpack.c.h.bf16 %v7743
    %v7767 = vunpack.c.l.bf16 %v7761
    %v7768 = vunpack.c.h.bf16 %v7761
    %v7769 = vunpack.c.l.bf16 %v7762
    %v7770 = vunpack.c.h.bf16 %v7762
    %7775 = vrot.lane.b32.xlu0 %v7767, 127
    %v7776 = vpop.permute.xlu0 %7775
    %7777 = vrot.lane.b32.xlu0 %v7768, 127
    %v7778 = vpop.permute.xlu0 %7777
    %7779 = vrot.lane.b32.xlu0 %v7769, 127
    %v7780 = vpop.permute.xlu0 %7779
    %7781 = vrot.lane.b32.xlu0 %v7770, 127
    %v7782 = vpop.permute.xlu0 %7781
    %v7783 = vsel %vm121, %v7776, %v7778
    %v7784 = vsel %vm121, %v7780, %v7782
    %v7789 = vadd.f32 %v7763, %v7783
    %v7790 = vadd.f32 %v7764, %v7778
    %v7791 = vadd.f32 %v7765, %v7784
    %v7792 = vadd.f32 %v7766, %v7782
    %v7793 = vpack.c.bf16 %v7790, %v7789
    %v7794 = vpack.c.bf16 %v7792, %v7791
    %v7795 = vld [vmem:[%s1] sm:$0x1]
    %7797 = vst [vmem:[#allocation1] ss:$9 sm:$0xff] %v7795
    %v7798 = vld [vmem:[#allocation1] sm:$0xff]
    %7800 = vrot.lane.b32.xlu0 %v7798, 107
    %v7801 = vpop.permute.xlu0 %7800
    %s7803 = vtos %v7801
    %v7804 = vstv %s7803
    %v7805 = vpack.i.b16 %v7804, %v7804
    %v7807 = vunpack.c.l.bf16 %v7805
    %v7808 = vmul.f32 %v6849, %v7807
    %v7809 = vmul.f32 %v6850, %v7807
    %v7810 = vmul.f32 %v6851, %v7807
    %v7811 = vmul.f32 %v6852, %v7807
    %v7812 = vpack.c.bf16 %v7809, %v7808
    %v7813 = vpack.c.bf16 %v7811, %v7810
    %v7814 = vunpack.c.l.bf16 %v7793
    %v7815 = vunpack.c.h.bf16 %v7793
    %v7816 = vunpack.c.l.bf16 %v7794
    %v7817 = vunpack.c.h.bf16 %v7794
    %v7818 = vunpack.c.l.bf16 %v7812
    %v7819 = vunpack.c.h.bf16 %v7812
    %v7820 = vunpack.c.l.bf16 %v7813
    %v7821 = vunpack.c.h.bf16 %v7813
    %7826 = vrot.lane.b32.xlu0 %v7818, 114
    %v7827 = vpop.permute.xlu0 %7826
    %7828 = vrot.lane.b32.xlu0 %v7819, 114
    %v7829 = vpop.permute.xlu0 %7828
    %7830 = vrot.lane.b32.xlu0 %v7820, 114
    %v7831 = vpop.permute.xlu0 %7830
    %7832 = vrot.lane.b32.xlu0 %v7821, 114
    %v7833 = vpop.permute.xlu0 %7832
    %v7834 = vsel %vm298, %v7827, %v7829
    %v7835 = vsel %vm298, %v7831, %v7833
    %v7840 = vadd.f32 %v7814, %v7834
    %v7841 = vadd.f32 %v7815, %v7829
    %v7842 = vadd.f32 %v7816, %v7835
    %v7843 = vadd.f32 %v7817, %v7833
    %v7844 = vpack.c.bf16 %v7841, %v7840
    %v7845 = vpack.c.bf16 %v7843, %v7842
    %v7846 = vld [vmem:[%s1] sm:$0x1]
    %7848 = vst [vmem:[#allocation1] ss:$9 sm:$0xff] %v7846
    %v7849 = vld [vmem:[#allocation1] sm:$0xff]
    %7851 = vrot.lane.b32.xlu0 %v7849, 106
    %v7852 = vpop.permute.xlu0 %7851
    %s7854 = vtos %v7852
    %v7855 = vstv %s7854
    %v7856 = vpack.i.b16 %v7855, %v7855
    %v7858 = vunpack.c.l.bf16 %v7856
    %v7859 = vmul.f32 %v6904, %v7858
    %v7860 = vmul.f32 %v6905, %v7858
    %v7861 = vmul.f32 %v6906, %v7858
    %v7862 = vmul.f32 %v6907, %v7858
    %v7863 = vpack.c.bf16 %v7860, %v7859
    %v7864 = vpack.c.bf16 %v7862, %v7861
    %v7865 = vunpack.c.l.bf16 %v7844
    %v7866 = vunpack.c.h.bf16 %v7844
    %v7867 = vunpack.c.l.bf16 %v7845
    %v7868 = vunpack.c.h.bf16 %v7845
    %v7869 = vunpack.c.l.bf16 %v7863
    %v7870 = vunpack.c.h.bf16 %v7863
    %v7871 = vunpack.c.l.bf16 %v7864
    %v7872 = vunpack.c.h.bf16 %v7864
    %7877 = vrot.lane.b32.xlu0 %v7869, 113
    %v7878 = vpop.permute.xlu0 %7877
    %7879 = vrot.lane.b32.xlu0 %v7870, 113
    %v7880 = vpop.permute.xlu0 %7879
    %7881 = vrot.lane.b32.xlu0 %v7871, 113
    %v7882 = vpop.permute.xlu0 %7881
    %7883 = vrot.lane.b32.xlu0 %v7872, 113
    %v7884 = vpop.permute.xlu0 %7883
    %v7885 = vsel %vm401, %v7878, %v7880
    %v7886 = vsel %vm401, %v7882, %v7884
    %v7891 = vadd.f32 %v7865, %v7885
    %v7892 = vadd.f32 %v7866, %v7880
    %v7893 = vadd.f32 %v7867, %v7886
    %v7894 = vadd.f32 %v7868, %v7884
    %v7895 = vpack.c.bf16 %v7892, %v7891
    %v7896 = vpack.c.bf16 %v7894, %v7893
    %v7897 = vld [vmem:[%s1] sm:$0x1]
    %7899 = vst [vmem:[#allocation1] ss:$9 sm:$0xff] %v7897
    %v7900 = vld [vmem:[#allocation1] sm:$0xff]
    %7902 = vrot.lane.b32.xlu0 %v7900, 105
    %v7903 = vpop.permute.xlu0 %7902
    %s7905 = vtos %v7903
    %v7906 = vstv %s7905
    %v7907 = vpack.i.b16 %v7906, %v7906
    %v7909 = vunpack.c.l.bf16 %v7907
    %v7910 = vmul.f32 %v6849, %v7909
    %v7911 = vmul.f32 %v6850, %v7909
    %v7912 = vmul.f32 %v6851, %v7909
    %v7913 = vmul.f32 %v6852, %v7909
    %v7914 = vpack.c.bf16 %v7911, %v7910
    %v7915 = vpack.c.bf16 %v7913, %v7912
    %v7916 = vunpack.c.l.bf16 %v7895
    %v7917 = vunpack.c.h.bf16 %v7895
    %v7918 = vunpack.c.l.bf16 %v7896
    %v7919 = vunpack.c.h.bf16 %v7896
    %v7920 = vunpack.c.l.bf16 %v7914
    %v7921 = vunpack.c.h.bf16 %v7914
    %v7922 = vunpack.c.l.bf16 %v7915
    %v7923 = vunpack.c.h.bf16 %v7915
    %7928 = vrot.lane.b32.xlu0 %v7920, 113
    %v7929 = vpop.permute.xlu0 %7928
    %7930 = vrot.lane.b32.xlu0 %v7921, 113
    %v7931 = vpop.permute.xlu0 %7930
    %7932 = vrot.lane.b32.xlu0 %v7922, 113
    %v7933 = vpop.permute.xlu0 %7932
    %7934 = vrot.lane.b32.xlu0 %v7923, 113
    %v7935 = vpop.permute.xlu0 %7934
    %v7936 = vsel %vm401, %v7929, %v7931
    %v7937 = vsel %vm401, %v7933, %v7935
    %v7942 = vadd.f32 %v7916, %v7936
    %v7943 = vadd.f32 %v7917, %v7931
    %v7944 = vadd.f32 %v7918, %v7937
    %v7945 = vadd.f32 %v7919, %v7935
    %v7946 = vpack.c.bf16 %v7943, %v7942
    %v7947 = vpack.c.bf16 %v7945, %v7944
    %v7948 = vld [vmem:[%s1] sm:$0x1]
    %7950 = vst [vmem:[#allocation1] ss:$9 sm:$0xff] %v7948
    %v7951 = vld [vmem:[#allocation1] sm:$0xff]
    %7953 = vrot.lane.b32.xlu0 %v7951, 104
    %v7954 = vpop.permute.xlu0 %7953
    %s7956 = vtos %v7954
    %v7957 = vstv %s7956
    %v7958 = vpack.i.b16 %v7957, %v7957
    %v7960 = vunpack.c.l.bf16 %v7958
    %v7961 = vmul.f32 %v6722, %v7960
    %v7962 = vmul.f32 %v6723, %v7960
    %v7963 = vmul.f32 %v6724, %v7960
    %v7964 = vmul.f32 %v6725, %v7960
    %v7965 = vpack.c.bf16 %v7962, %v7961
    %v7966 = vpack.c.bf16 %v7964, %v7963
    %v7967 = vunpack.c.l.bf16 %v7946
    %v7968 = vunpack.c.h.bf16 %v7946
    %v7969 = vunpack.c.l.bf16 %v7947
    %v7970 = vunpack.c.h.bf16 %v7947
    %v7971 = vunpack.c.l.bf16 %v7965
    %v7972 = vunpack.c.h.bf16 %v7965
    %v7973 = vunpack.c.l.bf16 %v7966
    %v7974 = vunpack.c.h.bf16 %v7966
    %7979 = vrot.lane.b32.xlu0 %v7971, 114
    %v7980 = vpop.permute.xlu0 %7979
    %7981 = vrot.lane.b32.xlu0 %v7972, 114
    %v7982 = vpop.permute.xlu0 %7981
    %7983 = vrot.lane.b32.xlu0 %v7973, 114
    %v7984 = vpop.permute.xlu0 %7983
    %7985 = vrot.lane.b32.xlu0 %v7974, 114
    %v7986 = vpop.permute.xlu0 %7985
    %v7987 = vsel %vm298, %v7980, %v7982
    %v7988 = vsel %vm298, %v7984, %v7986
    %v7993 = vadd.f32 %v7967, %v7987
    %v7994 = vadd.f32 %v7968, %v7982
    %v7995 = vadd.f32 %v7969, %v7988
    %v7996 = vadd.f32 %v7970, %v7986
    %v7997 = vpack.c.bf16 %v7994, %v7993
    %v7998 = vpack.c.bf16 %v7996, %v7995
    %v7999 = vld [vmem:[%s1] sm:$0x1]
    %8001 = vst [vmem:[#allocation1] ss:$9 sm:$0xff] %v7999
    %v8002 = vld [vmem:[#allocation1] sm:$0xff]
    %8004 = vrot.lane.b32.xlu0 %v8002, 103
    %v8005 = vpop.permute.xlu0 %8004
    %s8007 = vtos %v8005
    %v8008 = vstv %s8007
    %v8009 = vpack.i.b16 %v8008, %v8008
    %v8011 = vunpack.c.l.bf16 %v8009
    %v8012 = vmul.f32 %v6743, %v8011
    %v8013 = vmul.f32 %v6744, %v8011
    %v8014 = vmul.f32 %v6745, %v8011
    %v8015 = vmul.f32 %v6746, %v8011
    %v8016 = vpack.c.bf16 %v8013, %v8012
    %v8017 = vpack.c.bf16 %v8015, %v8014
    %v8018 = vunpack.c.l.bf16 %v7997
    %v8019 = vunpack.c.h.bf16 %v7997
    %v8020 = vunpack.c.l.bf16 %v7998
    %v8021 = vunpack.c.h.bf16 %v7998
    %v8022 = vunpack.c.l.bf16 %v8016
    %v8023 = vunpack.c.h.bf16 %v8016
    %v8024 = vunpack.c.l.bf16 %v8017
    %v8025 = vunpack.c.h.bf16 %v8017
    %8030 = vrot.lane.b32.xlu0 %v8022, 113
    %v8031 = vpop.permute.xlu0 %8030
    %8032 = vrot.lane.b32.xlu0 %v8023, 113
    %v8033 = vpop.permute.xlu0 %8032
    %8034 = vrot.lane.b32.xlu0 %v8024, 113
    %v8035 = vpop.permute.xlu0 %8034
    %8036 = vrot.lane.b32.xlu0 %v8025, 113
    %v8037 = vpop.permute.xlu0 %8036
    %v8038 = vsel %vm401, %v8031, %v8033
    %v8039 = vsel %vm401, %v8035, %v8037
    %v8044 = vadd.f32 %v8018, %v8038
    %v8045 = vadd.f32 %v8019, %v8033
    %v8046 = vadd.f32 %v8020, %v8039
    %v8047 = vadd.f32 %v8021, %v8037
    %v8048 = vpack.c.bf16 %v8045, %v8044
    %v8049 = vpack.c.bf16 %v8047, %v8046
    %v8050 = vld [vmem:[%s1] sm:$0x1]
    %8052 = vst [vmem:[#allocation1] ss:$9 sm:$0xff] %v8050
    %v8053 = vld [vmem:[#allocation1] sm:$0xff]
    %8055 = vrot.lane.b32.xlu0 %v8053, 102
    %v8056 = vpop.permute.xlu0 %8055
    %s8058 = vtos %v8056
    %v8059 = vstv %s8058
    %v8060 = vpack.i.b16 %v8059, %v8059
    %v8062 = vunpack.c.l.bf16 %v8060
    %v8063 = vmul.f32 %v6722, %v8062
    %v8064 = vmul.f32 %v6723, %v8062
    %v8065 = vmul.f32 %v6724, %v8062
    %v8066 = vmul.f32 %v6725, %v8062
    %v8067 = vpack.c.bf16 %v8064, %v8063
    %v8068 = vpack.c.bf16 %v8066, %v8065
    %v8069 = vunpack.c.l.bf16 %v8048
    %v8070 = vunpack.c.h.bf16 %v8048
    %v8071 = vunpack.c.l.bf16 %v8049
    %v8072 = vunpack.c.h.bf16 %v8049
    %v8073 = vunpack.c.l.bf16 %v8067
    %v8074 = vunpack.c.h.bf16 %v8067
    %v8075 = vunpack.c.l.bf16 %v8068
    %v8076 = vunpack.c.h.bf16 %v8068
    %8081 = vrot.lane.b32.xlu0 %v8073, 113
    %v8082 = vpop.permute.xlu0 %8081
    %8083 = vrot.lane.b32.xlu0 %v8074, 113
    %v8084 = vpop.permute.xlu0 %8083
    %8085 = vrot.lane.b32.xlu0 %v8075, 113
    %v8086 = vpop.permute.xlu0 %8085
    %8087 = vrot.lane.b32.xlu0 %v8076, 113
    %v8088 = vpop.permute.xlu0 %8087
    %v8089 = vsel %vm401, %v8082, %v8084
    %v8090 = vsel %vm401, %v8086, %v8088
    %v8095 = vadd.f32 %v8069, %v8089
    %v8096 = vadd.f32 %v8070, %v8084
    %v8097 = vadd.f32 %v8071, %v8090
    %v8098 = vadd.f32 %v8072, %v8088
    %v8099 = vpack.c.bf16 %v8096, %v8095
    %v8100 = vpack.c.bf16 %v8098, %v8097
    %v8101 = vld [vmem:[%s2] sm:$0x1]
    %8103 = vst [vmem:[#allocation1] ss:$9 sm:$0xff] %v8101
    %v8104 = vld [vmem:[#allocation1] sm:$0xff]
    %8106 = vrot.lane.b32.xlu0 %v8104, 126
    %v8107 = vpop.permute.xlu0 %8106
    %s8109 = vtos %v8107
    %v8110 = vstv %s8109
    %v8111 = vpack.i.b16 %v8110, %v8110
    %v8113 = vunpack.c.l.bf16 %v8099
    %v8114 = vunpack.c.h.bf16 %v8099
    %v8115 = vunpack.c.l.bf16 %v8100
    %v8116 = vunpack.c.h.bf16 %v8100
    %v8117 = vunpack.c.l.bf16 %v8111
    %v8118 = vadd.f32 %v8113, %v8117
    %v8119 = vadd.f32 %v8114, %v8117
    %v8120 = vadd.f32 %v8115, %v8117
    %v8121 = vadd.f32 %v8116, %v8117
    %v8122 = vpack.c.bf16 %v8119, %v8118
    %v8123 = vpack.c.bf16 %v8121, %v8120
    %v8124 = vunpack.c.l.bf16 %v8122
    %v8125 = vunpack.c.h.bf16 %v8122
    %v8126 = vunpack.c.l.bf16 %v8123
    %v8127 = vunpack.c.h.bf16 %v8123
    %v8128 = vmax.f32 %v8124, 0.0
    %v8129 = vmax.f32 %v8125, 0.0
    %v8130 = vmax.f32 %v8126, 0.0
    %v8131 = vmax.f32 %v8127, 0.0
    %v8132 = vpack.c.bf16 %v8129, %v8128
    %v8133 = vpack.c.bf16 %v8131, %v8130
    %v8134 = vld [vmem:[#allocation2 + $0x10] sm:$0xff]
    %v8135 = vld [vmem:[#allocation2 + $0x38] sm:$0xff]
    %v8136 = vunpack.c.l.bf16 %v8134
    %v8137 = vunpack.c.h.bf16 %v8134
    %v8138 = vunpack.c.l.bf16 %v8135
    %v8139 = vunpack.c.h.bf16 %v8135
    %v8140 = vunpack.c.l.bf16 %v8132
    %v8141 = vunpack.c.h.bf16 %v8132
    %v8142 = vunpack.c.l.bf16 %v8133
    %v8143 = vunpack.c.h.bf16 %v8133
    %v8144 = vmax.f32 %v8136, %v8140
    %v8145 = vmax.f32 %v8137, %v8141
    %v8146 = vmax.f32 %v8138, %v8142
    %v8147 = vmax.f32 %v8139, %v8143
    %v8148 = vpack.c.bf16 %v8145, %v8144
    %v8149 = vpack.c.bf16 %v8147, %v8146
    %8150 = vst.msk [vmem:[#allocation2 + $0x10] sm:$0xff] %vm445, %v8148
    %8151 = vst.msk [vmem:[#allocation2 + $0x38] sm:$0xff] %vm445, %v8149
    %v8152 = vld [vmem:[%s1] sm:$0x1]
    %8154 = vst [vmem:[#allocation1] ss:$9 sm:$0xff] %v8152
    %v8155 = vld [vmem:[#allocation1] sm:$0xff]
    %8157 = vrot.lane.b32.xlu0 %v8155, 101
    %v8158 = vpop.permute.xlu0 %8157
    %s8160 = vtos %v8158
    %v8161 = vstv %s8160
    %v8162 = vpack.i.b16 %v8161, %v8161
    %v8164 = vunpack.c.l.bf16 %v8162
    %v8165 = vmul.f32 %v6722, %v8164
    %v8166 = vmul.f32 %v6723, %v8164
    %v8167 = vmul.f32 %v6724, %v8164
    %v8168 = vmul.f32 %v6725, %v8164
    %v8169 = vpack.c.bf16 %v8166, %v8165
    %v8170 = vpack.c.bf16 %v8168, %v8167
    %v8171 = vld [vmem:[%s1] sm:$0x1]
    %8173 = vst [vmem:[#allocation1] ss:$9 sm:$0xff] %v8171
    %v8174 = vld [vmem:[#allocation1] sm:$0xff]
    %8176 = vrot.lane.b32.xlu0 %v8174, 100
    %v8177 = vpop.permute.xlu0 %8176
    %s8179 = vtos %v8177
    %v8180 = vstv %s8179
    %v8181 = vpack.i.b16 %v8180, %v8180
    %v8183 = vunpack.c.l.bf16 %v8181
    %v8184 = vmul.f32 %v6743, %v8183
    %v8185 = vmul.f32 %v6744, %v8183
    %v8186 = vmul.f32 %v6745, %v8183
    %v8187 = vmul.f32 %v6746, %v8183
    %v8188 = vpack.c.bf16 %v8185, %v8184
    %v8189 = vpack.c.bf16 %v8187, %v8186
    %v8190 = vunpack.c.l.bf16 %v8169
    %v8191 = vunpack.c.h.bf16 %v8169
    %v8192 = vunpack.c.l.bf16 %v8170
    %v8193 = vunpack.c.h.bf16 %v8170
    %v8194 = vunpack.c.l.bf16 %v8188
    %v8195 = vunpack.c.h.bf16 %v8188
    %v8196 = vunpack.c.l.bf16 %v8189
    %v8197 = vunpack.c.h.bf16 %v8189
    %8202 = vrot.lane.b32.xlu0 %v8194, 127
    %v8203 = vpop.permute.xlu0 %8202
    %8204 = vrot.lane.b32.xlu0 %v8195, 127
    %v8205 = vpop.permute.xlu0 %8204
    %8206 = vrot.lane.b32.xlu0 %v8196, 127
    %v8207 = vpop.permute.xlu0 %8206
    %8208 = vrot.lane.b32.xlu0 %v8197, 127
    %v8209 = vpop.permute.xlu0 %8208
    %v8210 = vsel %vm121, %v8203, %v8205
    %v8211 = vsel %vm121, %v8207, %v8209
    %v8216 = vadd.f32 %v8190, %v8210
    %v8217 = vadd.f32 %v8191, %v8205
    %v8218 = vadd.f32 %v8192, %v8211
    %v8219 = vadd.f32 %v8193, %v8209
    %v8220 = vpack.c.bf16 %v8217, %v8216
    %v8221 = vpack.c.bf16 %v8219, %v8218
    %v8222 = vld [vmem:[%s1] sm:$0x1]
    %8224 = vst [vmem:[#allocation1] ss:$9 sm:$0xff] %v8222
    %v8225 = vld [vmem:[#allocation1] sm:$0xff]
    %8227 = vrot.lane.b32.xlu0 %v8225, 99
    %v8228 = vpop.permute.xlu0 %8227
    %s8230 = vtos %v8228
    %v8231 = vstv %s8230
    %v8232 = vpack.i.b16 %v8231, %v8231
    %v8234 = vunpack.c.l.bf16 %v8232
    %v8235 = vmul.f32 %v6722, %v8234
    %v8236 = vmul.f32 %v6723, %v8234
    %v8237 = vmul.f32 %v6724, %v8234
    %v8238 = vmul.f32 %v6725, %v8234
    %v8239 = vpack.c.bf16 %v8236, %v8235
    %v8240 = vpack.c.bf16 %v8238, %v8237
    %v8241 = vunpack.c.l.bf16 %v8220
    %v8242 = vunpack.c.h.bf16 %v8220
    %v8243 = vunpack.c.l.bf16 %v8221
    %v8244 = vunpack.c.h.bf16 %v8221
    %v8245 = vunpack.c.l.bf16 %v8239
    %v8246 = vunpack.c.h.bf16 %v8239
    %v8247 = vunpack.c.l.bf16 %v8240
    %v8248 = vunpack.c.h.bf16 %v8240
    %8253 = vrot.lane.b32.xlu0 %v8245, 127
    %v8254 = vpop.permute.xlu0 %8253
    %8255 = vrot.lane.b32.xlu0 %v8246, 127
    %v8256 = vpop.permute.xlu0 %8255
    %8257 = vrot.lane.b32.xlu0 %v8247, 127
    %v8258 = vpop.permute.xlu0 %8257
    %8259 = vrot.lane.b32.xlu0 %v8248, 127
    %v8260 = vpop.permute.xlu0 %8259
    %v8261 = vsel %vm121, %v8254, %v8256
    %v8262 = vsel %vm121, %v8258, %v8260
    %v8267 = vadd.f32 %v8241, %v8261
    %v8268 = vadd.f32 %v8242, %v8256
    %v8269 = vadd.f32 %v8243, %v8262
    %v8270 = vadd.f32 %v8244, %v8260
    %v8271 = vpack.c.bf16 %v8268, %v8267
    %v8272 = vpack.c.bf16 %v8270, %v8269
    %v8273 = vld [vmem:[%s1] sm:$0x1]
    %8275 = vst [vmem:[#allocation1] ss:$9 sm:$0xff] %v8273
    %v8276 = vld [vmem:[#allocation1] sm:$0xff]
    %8278 = vrot.lane.b32.xlu0 %v8276, 98
    %v8279 = vpop.permute.xlu0 %8278
    %s8281 = vtos %v8279
    %v8282 = vstv %s8281
    %v8283 = vpack.i.b16 %v8282, %v8282
    %v8285 = vunpack.c.l.bf16 %v8283
    %v8286 = vmul.f32 %v6849, %v8285
    %v8287 = vmul.f32 %v6850, %v8285
    %v8288 = vmul.f32 %v6851, %v8285
    %v8289 = vmul.f32 %v6852, %v8285
    %v8290 = vpack.c.bf16 %v8287, %v8286
    %v8291 = vpack.c.bf16 %v8289, %v8288
    %v8292 = vunpack.c.l.bf16 %v8271
    %v8293 = vunpack.c.h.bf16 %v8271
    %v8294 = vunpack.c.l.bf16 %v8272
    %v8295 = vunpack.c.h.bf16 %v8272
    %v8296 = vunpack.c.l.bf16 %v8290
    %v8297 = vunpack.c.h.bf16 %v8290
    %v8298 = vunpack.c.l.bf16 %v8291
    %v8299 = vunpack.c.h.bf16 %v8291
    %8304 = vrot.lane.b32.xlu0 %v8296, 114
    %v8305 = vpop.permute.xlu0 %8304
    %8306 = vrot.lane.b32.xlu0 %v8297, 114
    %v8307 = vpop.permute.xlu0 %8306
    %8308 = vrot.lane.b32.xlu0 %v8298, 114
    %v8309 = vpop.permute.xlu0 %8308
    %8310 = vrot.lane.b32.xlu0 %v8299, 114
    %v8311 = vpop.permute.xlu0 %8310
    %v8312 = vsel %vm298, %v8305, %v8307
    %v8313 = vsel %vm298, %v8309, %v8311
    %v8318 = vadd.f32 %v8292, %v8312
    %v8319 = vadd.f32 %v8293, %v8307
    %v8320 = vadd.f32 %v8294, %v8313
    %v8321 = vadd.f32 %v8295, %v8311
    %v8322 = vpack.c.bf16 %v8319, %v8318
    %v8323 = vpack.c.bf16 %v8321, %v8320
    %v8324 = vld [vmem:[%s1] sm:$0x1]
    %8326 = vst [vmem:[#allocation1] ss:$9 sm:$0xff] %v8324
    %v8327 = vld [vmem:[#allocation1] sm:$0xff]
    %8329 = vrot.lane.b32.xlu0 %v8327, 97
    %v8330 = vpop.permute.xlu0 %8329
    %s8332 = vtos %v8330
    %v8333 = vstv %s8332
    %v8334 = vpack.i.b16 %v8333, %v8333
    %v8336 = vunpack.c.l.bf16 %v8334
    %v8337 = vmul.f32 %v6904, %v8336
    %v8338 = vmul.f32 %v6905, %v8336
    %v8339 = vmul.f32 %v6906, %v8336
    %v8340 = vmul.f32 %v6907, %v8336
    %v8341 = vpack.c.bf16 %v8338, %v8337
    %v8342 = vpack.c.bf16 %v8340, %v8339
    %v8343 = vunpack.c.l.bf16 %v8322
    %v8344 = vunpack.c.h.bf16 %v8322
    %v8345 = vunpack.c.l.bf16 %v8323
    %v8346 = vunpack.c.h.bf16 %v8323
    %v8347 = vunpack.c.l.bf16 %v8341
    %v8348 = vunpack.c.h.bf16 %v8341
    %v8349 = vunpack.c.l.bf16 %v8342
    %v8350 = vunpack.c.h.bf16 %v8342
    %8355 = vrot.lane.b32.xlu0 %v8347, 113
    %v8356 = vpop.permute.xlu0 %8355
    %8357 = vrot.lane.b32.xlu0 %v8348, 113
    %v8358 = vpop.permute.xlu0 %8357
    %8359 = vrot.lane.b32.xlu0 %v8349, 113
    %v8360 = vpop.permute.xlu0 %8359
    %8361 = vrot.lane.b32.xlu0 %v8350, 113
    %v8362 = vpop.permute.xlu0 %8361
    %v8363 = vsel %vm401, %v8356, %v8358
    %v8364 = vsel %vm401, %v8360, %v8362
    %v8369 = vadd.f32 %v8343, %v8363
    %v8370 = vadd.f32 %v8344, %v8358
    %v8371 = vadd.f32 %v8345, %v8364
    %v8372 = vadd.f32 %v8346, %v8362
    %v8373 = vpack.c.bf16 %v8370, %v8369
    %v8374 = vpack.c.bf16 %v8372, %v8371
    %v8375 = vld [vmem:[%s1] sm:$0x1]
    %8377 = vst [vmem:[#allocation1] ss:$9 sm:$0xff] %v8375
    %v8378 = vld [vmem:[#allocation1] sm:$0xff]
    %8380 = vrot.lane.b32.xlu0 %v8378, 96
    %v8381 = vpop.permute.xlu0 %8380
    %s8383 = vtos %v8381
    %v8384 = vstv %s8383
    %v8385 = vpack.i.b16 %v8384, %v8384
    %v8387 = vunpack.c.l.bf16 %v8385
    %v8388 = vmul.f32 %v6849, %v8387
    %v8389 = vmul.f32 %v6850, %v8387
    %v8390 = vmul.f32 %v6851, %v8387
    %v8391 = vmul.f32 %v6852, %v8387
    %v8392 = vpack.c.bf16 %v8389, %v8388
    %v8393 = vpack.c.bf16 %v8391, %v8390
    %v8394 = vunpack.c.l.bf16 %v8373
    %v8395 = vunpack.c.h.bf16 %v8373
    %v8396 = vunpack.c.l.bf16 %v8374
    %v8397 = vunpack.c.h.bf16 %v8374
    %v8398 = vunpack.c.l.bf16 %v8392
    %v8399 = vunpack.c.h.bf16 %v8392
    %v8400 = vunpack.c.l.bf16 %v8393
    %v8401 = vunpack.c.h.bf16 %v8393
    %8406 = vrot.lane.b32.xlu0 %v8398, 113
    %v8407 = vpop.permute.xlu0 %8406
    %8408 = vrot.lane.b32.xlu0 %v8399, 113
    %v8409 = vpop.permute.xlu0 %8408
    %8410 = vrot.lane.b32.xlu0 %v8400, 113
    %v8411 = vpop.permute.xlu0 %8410
    %8412 = vrot.lane.b32.xlu0 %v8401, 113
    %v8413 = vpop.permute.xlu0 %8412
    %v8414 = vsel %vm401, %v8407, %v8409
    %v8415 = vsel %vm401, %v8411, %v8413
    %v8420 = vadd.f32 %v8394, %v8414
    %v8421 = vadd.f32 %v8395, %v8409
    %v8422 = vadd.f32 %v8396, %v8415
    %v8423 = vadd.f32 %v8397, %v8413
    %v8424 = vpack.c.bf16 %v8421, %v8420
    %v8425 = vpack.c.bf16 %v8423, %v8422
    %v8426 = vld [vmem:[%s1] sm:$0x1]
    %8428 = vst [vmem:[#allocation1] ss:$9 sm:$0xff] %v8426
    %v8429 = vld [vmem:[#allocation1] sm:$0xff]
    %8431 = vrot.lane.b32.xlu0 %v8429, 95
    %v8432 = vpop.permute.xlu0 %8431
    %s8434 = vtos %v8432
    %v8435 = vstv %s8434
    %v8436 = vpack.i.b16 %v8435, %v8435
    %v8438 = vunpack.c.l.bf16 %v8436
    %v8439 = vmul.f32 %v6722, %v8438
    %v8440 = vmul.f32 %v6723, %v8438
    %v8441 = vmul.f32 %v6724, %v8438
    %v8442 = vmul.f32 %v6725, %v8438
    %v8443 = vpack.c.bf16 %v8440, %v8439
    %v8444 = vpack.c.bf16 %v8442, %v8441
    %v8445 = vunpack.c.l.bf16 %v8424
    %v8446 = vunpack.c.h.bf16 %v8424
    %v8447 = vunpack.c.l.bf16 %v8425
    %v8448 = vunpack.c.h.bf16 %v8425
    %v8449 = vunpack.c.l.bf16 %v8443
    %v8450 = vunpack.c.h.bf16 %v8443
    %v8451 = vunpack.c.l.bf16 %v8444
    %v8452 = vunpack.c.h.bf16 %v8444
    %8457 = vrot.lane.b32.xlu0 %v8449, 114
    %v8458 = vpop.permute.xlu0 %8457
    %8459 = vrot.lane.b32.xlu0 %v8450, 114
    %v8460 = vpop.permute.xlu0 %8459
    %8461 = vrot.lane.b32.xlu0 %v8451, 114
    %v8462 = vpop.permute.xlu0 %8461
    %8463 = vrot.lane.b32.xlu0 %v8452, 114
    %v8464 = vpop.permute.xlu0 %8463
    %v8465 = vsel %vm298, %v8458, %v8460
    %v8466 = vsel %vm298, %v8462, %v8464
    %v8471 = vadd.f32 %v8445, %v8465
    %v8472 = vadd.f32 %v8446, %v8460
    %v8473 = vadd.f32 %v8447, %v8466
    %v8474 = vadd.f32 %v8448, %v8464
    %v8475 = vpack.c.bf16 %v8472, %v8471
    %v8476 = vpack.c.bf16 %v8474, %v8473
    %v8477 = vld [vmem:[%s1] sm:$0x1]
    %8479 = vst [vmem:[#allocation1] ss:$9 sm:$0xff] %v8477
    %v8480 = vld [vmem:[#allocation1] sm:$0xff]
    %8482 = vrot.lane.b32.xlu0 %v8480, 94
    %v8483 = vpop.permute.xlu0 %8482
    %s8485 = vtos %v8483
    %v8486 = vstv %s8485
    %v8487 = vpack.i.b16 %v8486, %v8486
    %v8489 = vunpack.c.l.bf16 %v8487
    %v8490 = vmul.f32 %v6743, %v8489
    %v8491 = vmul.f32 %v6744, %v8489
    %v8492 = vmul.f32 %v6745, %v8489
    %v8493 = vmul.f32 %v6746, %v8489
    %v8494 = vpack.c.bf16 %v8491, %v8490
    %v8495 = vpack.c.bf16 %v8493, %v8492
    %v8496 = vunpack.c.l.bf16 %v8475
    %v8497 = vunpack.c.h.bf16 %v8475
    %v8498 = vunpack.c.l.bf16 %v8476
    %v8499 = vunpack.c.h.bf16 %v8476
    %v8500 = vunpack.c.l.bf16 %v8494
    %v8501 = vunpack.c.h.bf16 %v8494
    %v8502 = vunpack.c.l.bf16 %v8495
    %v8503 = vunpack.c.h.bf16 %v8495
    %8508 = vrot.lane.b32.xlu0 %v8500, 113
    %v8509 = vpop.permute.xlu0 %8508
    %8510 = vrot.lane.b32.xlu0 %v8501, 113
    %v8511 = vpop.permute.xlu0 %8510
    %8512 = vrot.lane.b32.xlu0 %v8502, 113
    %v8513 = vpop.permute.xlu0 %8512
    %8514 = vrot.lane.b32.xlu0 %v8503, 113
    %v8515 = vpop.permute.xlu0 %8514
    %v8516 = vsel %vm401, %v8509, %v8511
    %v8517 = vsel %vm401, %v8513, %v8515
    %v8522 = vadd.f32 %v8496, %v8516
    %v8523 = vadd.f32 %v8497, %v8511
    %v8524 = vadd.f32 %v8498, %v8517
    %v8525 = vadd.f32 %v8499, %v8515
    %v8526 = vpack.c.bf16 %v8523, %v8522
    %v8527 = vpack.c.bf16 %v8525, %v8524
    %v8528 = vld [vmem:[%s1] sm:$0x1]
    %8530 = vst [vmem:[#allocation1] ss:$9 sm:$0xff] %v8528
    %v8531 = vld [vmem:[#allocation1] sm:$0xff]
    %8533 = vrot.lane.b32.xlu0 %v8531, 93
    %v8534 = vpop.permute.xlu0 %8533
    %s8536 = vtos %v8534
    %v8537 = vstv %s8536
    %v8538 = vpack.i.b16 %v8537, %v8537
    %v8540 = vunpack.c.l.bf16 %v8538
    %v8541 = vmul.f32 %v6722, %v8540
    %v8542 = vmul.f32 %v6723, %v8540
    %v8543 = vmul.f32 %v6724, %v8540
    %v8544 = vmul.f32 %v6725, %v8540
    %v8545 = vpack.c.bf16 %v8542, %v8541
    %v8546 = vpack.c.bf16 %v8544, %v8543
    %v8547 = vunpack.c.l.bf16 %v8526
    %v8548 = vunpack.c.h.bf16 %v8526
    %v8549 = vunpack.c.l.bf16 %v8527
    %v8550 = vunpack.c.h.bf16 %v8527
    %v8551 = vunpack.c.l.bf16 %v8545
    %v8552 = vunpack.c.h.bf16 %v8545
    %v8553 = vunpack.c.l.bf16 %v8546
    %v8554 = vunpack.c.h.bf16 %v8546
    %8559 = vrot.lane.b32.xlu0 %v8551, 113
    %v8560 = vpop.permute.xlu0 %8559
    %8561 = vrot.lane.b32.xlu0 %v8552, 113
    %v8562 = vpop.permute.xlu0 %8561
    %8563 = vrot.lane.b32.xlu0 %v8553, 113
    %v8564 = vpop.permute.xlu0 %8563
    %8565 = vrot.lane.b32.xlu0 %v8554, 113
    %v8566 = vpop.permute.xlu0 %8565
    %v8567 = vsel %vm401, %v8560, %v8562
    %v8568 = vsel %vm401, %v8564, %v8566
    %v8573 = vadd.f32 %v8547, %v8567
    %v8574 = vadd.f32 %v8548, %v8562
    %v8575 = vadd.f32 %v8549, %v8568
    %v8576 = vadd.f32 %v8550, %v8566
    %v8577 = vpack.c.bf16 %v8574, %v8573
    %v8578 = vpack.c.bf16 %v8576, %v8575
    %v8579 = vld [vmem:[%s2] sm:$0x1]
    %8581 = vst [vmem:[#allocation1] ss:$9 sm:$0xff] %v8579
    %v8582 = vld [vmem:[#allocation1] sm:$0xff]
    %8584 = vrot.lane.b32.xlu0 %v8582, 125
    %v8585 = vpop.permute.xlu0 %8584
    %s8587 = vtos %v8585
    %v8588 = vstv %s8587
    %v8589 = vpack.i.b16 %v8588, %v8588
    %v8591 = vunpack.c.l.bf16 %v8577
    %v8592 = vunpack.c.h.bf16 %v8577
    %v8593 = vunpack.c.l.bf16 %v8578
    %v8594 = vunpack.c.h.bf16 %v8578
    %v8595 = vunpack.c.l.bf16 %v8589
    %v8596 = vadd.f32 %v8591, %v8595
    %v8597 = vadd.f32 %v8592, %v8595
    %v8598 = vadd.f32 %v8593, %v8595
    %v8599 = vadd.f32 %v8594, %v8595
    %v8600 = vpack.c.bf16 %v8597, %v8596
    %v8601 = vpack.c.bf16 %v8599, %v8598
    %v8602 = vunpack.c.l.bf16 %v8600
    %v8603 = vunpack.c.h.bf16 %v8600
    %v8604 = vunpack.c.l.bf16 %v8601
    %v8605 = vunpack.c.h.bf16 %v8601
    %v8606 = vmax.f32 %v8602, 0.0
    %v8607 = vmax.f32 %v8603, 0.0
    %v8608 = vmax.f32 %v8604, 0.0
    %v8609 = vmax.f32 %v8605, 0.0
    %v8610 = vpack.c.bf16 %v8607, %v8606
    %v8611 = vpack.c.bf16 %v8609, %v8608
    %v8612 = vld [vmem:[#allocation2 + $0x18] sm:$0xff]
    %v8613 = vld [vmem:[#allocation2 + $0x40] sm:$0xff]
    %v8614 = vunpack.c.l.bf16 %v8612
    %v8615 = vunpack.c.h.bf16 %v8612
    %v8616 = vunpack.c.l.bf16 %v8613
    %v8617 = vunpack.c.h.bf16 %v8613
    %v8618 = vunpack.c.l.bf16 %v8610
    %v8619 = vunpack.c.h.bf16 %v8610
    %v8620 = vunpack.c.l.bf16 %v8611
    %v8621 = vunpack.c.h.bf16 %v8611
    %v8622 = vmax.f32 %v8614, %v8618
    %v8623 = vmax.f32 %v8615, %v8619
    %v8624 = vmax.f32 %v8616, %v8620
    %v8625 = vmax.f32 %v8617, %v8621
    %v8626 = vpack.c.bf16 %v8623, %v8622
    %v8627 = vpack.c.bf16 %v8625, %v8624
    %8628 = vst.msk [vmem:[#allocation2 + $0x18] sm:$0xff] %vm445, %v8626
    %8629 = vst.msk [vmem:[#allocation2 + $0x40] sm:$0xff] %vm445, %v8627
    %v8630 = vld [vmem:[%s1] sm:$0x1]
    %8632 = vst [vmem:[#allocation1] ss:$9 sm:$0xff] %v8630
    %v8633 = vld [vmem:[#allocation1] sm:$0xff]
    %8635 = vrot.lane.b32.xlu0 %v8633, 92
    %v8636 = vpop.permute.xlu0 %8635
    %s8638 = vtos %v8636
    %v8639 = vstv %s8638
    %v8640 = vpack.i.b16 %v8639, %v8639
    %v8642 = vunpack.c.l.bf16 %v8640
    %v8643 = vmul.f32 %v6722, %v8642
    %v8644 = vmul.f32 %v6723, %v8642
    %v8645 = vmul.f32 %v6724, %v8642
    %v8646 = vmul.f32 %v6725, %v8642
    %v8647 = vpack.c.bf16 %v8644, %v8643
    %v8648 = vpack.c.bf16 %v8646, %v8645
    %v8649 = vld [vmem:[%s1] sm:$0x1]
    %8651 = vst [vmem:[#allocation1] ss:$9 sm:$0xff] %v8649
    %v8652 = vld [vmem:[#allocation1] sm:$0xff]
    %8654 = vrot.lane.b32.xlu0 %v8652, 91
    %v8655 = vpop.permute.xlu0 %8654
    %s8657 = vtos %v8655
    %v8658 = vstv %s8657
    %v8659 = vpack.i.b16 %v8658, %v8658
    %v8661 = vunpack.c.l.bf16 %v8659
    %v8662 = vmul.f32 %v6743, %v8661
    %v8663 = vmul.f32 %v6744, %v8661
    %v8664 = vmul.f32 %v6745, %v8661
    %v8665 = vmul.f32 %v6746, %v8661
    %v8666 = vpack.c.bf16 %v8663, %v8662
    %v8667 = vpack.c.bf16 %v8665, %v8664
    %v8668 = vunpack.c.l.bf16 %v8647
    %v8669 = vunpack.c.h.bf16 %v8647
    %v8670 = vunpack.c.l.bf16 %v8648
    %v8671 = vunpack.c.h.bf16 %v8648
    %v8672 = vunpack.c.l.bf16 %v8666
    %v8673 = vunpack.c.h.bf16 %v8666
    %v8674 = vunpack.c.l.bf16 %v8667
    %v8675 = vunpack.c.h.bf16 %v8667
    %8680 = vrot.lane.b32.xlu0 %v8672, 127
    %v8681 = vpop.permute.xlu0 %8680
    %8682 = vrot.lane.b32.xlu0 %v8673, 127
    %v8683 = vpop.permute.xlu0 %8682
    %8684 = vrot.lane.b32.xlu0 %v8674, 127
    %v8685 = vpop.permute.xlu0 %8684
    %8686 = vrot.lane.b32.xlu0 %v8675, 127
    %v8687 = vpop.permute.xlu0 %8686
    %v8688 = vsel %vm121, %v8681, %v8683
    %v8689 = vsel %vm121, %v8685, %v8687
    %v8694 = vadd.f32 %v8668, %v8688
    %v8695 = vadd.f32 %v8669, %v8683
    %v8696 = vadd.f32 %v8670, %v8689
    %v8697 = vadd.f32 %v8671, %v8687
    %v8698 = vpack.c.bf16 %v8695, %v8694
    %v8699 = vpack.c.bf16 %v8697, %v8696
    %v8700 = vld [vmem:[%s1] sm:$0x1]
    %8702 = vst [vmem:[#allocation1] ss:$9 sm:$0xff] %v8700
    %v8703 = vld [vmem:[#allocation1] sm:$0xff]
    %8705 = vrot.lane.b32.xlu0 %v8703, 90
    %v8706 = vpop.permute.xlu0 %8705
    %s8708 = vtos %v8706
    %v8709 = vstv %s8708
    %v8710 = vpack.i.b16 %v8709, %v8709
    %v8712 = vunpack.c.l.bf16 %v8710
    %v8713 = vmul.f32 %v6722, %v8712
    %v8714 = vmul.f32 %v6723, %v8712
    %v8715 = vmul.f32 %v6724, %v8712
    %v8716 = vmul.f32 %v6725, %v8712
    %v8717 = vpack.c.bf16 %v8714, %v8713
    %v8718 = vpack.c.bf16 %v8716, %v8715
    %v8719 = vunpack.c.l.bf16 %v8698
    %v8720 = vunpack.c.h.bf16 %v8698
    %v8721 = vunpack.c.l.bf16 %v8699
    %v8722 = vunpack.c.h.bf16 %v8699
    %v8723 = vunpack.c.l.bf16 %v8717
    %v8724 = vunpack.c.h.bf16 %v8717
    %v8725 = vunpack.c.l.bf16 %v8718
    %v8726 = vunpack.c.h.bf16 %v8718
    %8731 = vrot.lane.b32.xlu0 %v8723, 127
    %v8732 = vpop.permute.xlu0 %8731
    %8733 = vrot.lane.b32.xlu0 %v8724, 127
    %v8734 = vpop.permute.xlu0 %8733
    %8735 = vrot.lane.b32.xlu0 %v8725, 127
    %v8736 = vpop.permute.xlu0 %8735
    %8737 = vrot.lane.b32.xlu0 %v8726, 127
    %v8738 = vpop.permute.xlu0 %8737
    %v8739 = vsel %vm121, %v8732, %v8734
    %v8740 = vsel %vm121, %v8736, %v8738
    %v8745 = vadd.f32 %v8719, %v8739
    %v8746 = vadd.f32 %v8720, %v8734
    %v8747 = vadd.f32 %v8721, %v8740
    %v8748 = vadd.f32 %v8722, %v8738
    %v8749 = vpack.c.bf16 %v8746, %v8745
    %v8750 = vpack.c.bf16 %v8748, %v8747
    %v8751 = vld [vmem:[%s1] sm:$0x1]
    %8753 = vst [vmem:[#allocation1] ss:$9 sm:$0xff] %v8751
    %v8754 = vld [vmem:[#allocation1] sm:$0xff]
    %8756 = vrot.lane.b32.xlu0 %v8754, 89
    %v8757 = vpop.permute.xlu0 %8756
    %s8759 = vtos %v8757
    %v8760 = vstv %s8759
    %v8761 = vpack.i.b16 %v8760, %v8760
    %v8763 = vunpack.c.l.bf16 %v8761
    %v8764 = vmul.f32 %v6849, %v8763
    %v8765 = vmul.f32 %v6850, %v8763
    %v8766 = vmul.f32 %v6851, %v8763
    %v8767 = vmul.f32 %v6852, %v8763
    %v8768 = vpack.c.bf16 %v8765, %v8764
    %v8769 = vpack.c.bf16 %v8767, %v8766
    %v8770 = vunpack.c.l.bf16 %v8749
    %v8771 = vunpack.c.h.bf16 %v8749
    %v8772 = vunpack.c.l.bf16 %v8750
    %v8773 = vunpack.c.h.bf16 %v8750
    %v8774 = vunpack.c.l.bf16 %v8768
    %v8775 = vunpack.c.h.bf16 %v8768
    %v8776 = vunpack.c.l.bf16 %v8769
    %v8777 = vunpack.c.h.bf16 %v8769
    %8782 = vrot.lane.b32.xlu0 %v8774, 114
    %v8783 = vpop.permute.xlu0 %8782
    %8784 = vrot.lane.b32.xlu0 %v8775, 114
    %v8785 = vpop.permute.xlu0 %8784
    %8786 = vrot.lane.b32.xlu0 %v8776, 114
    %v8787 = vpop.permute.xlu0 %8786
    %8788 = vrot.lane.b32.xlu0 %v8777, 114
    %v8789 = vpop.permute.xlu0 %8788
    %v8790 = vsel %vm298, %v8783, %v8785
    %v8791 = vsel %vm298, %v8787, %v8789
    %v8796 = vadd.f32 %v8770, %v8790
    %v8797 = vadd.f32 %v8771, %v8785
    %v8798 = vadd.f32 %v8772, %v8791
    %v8799 = vadd.f32 %v8773, %v8789
    %v8800 = vpack.c.bf16 %v8797, %v8796
    %v8801 = vpack.c.bf16 %v8799, %v8798
    %v8802 = vld [vmem:[%s1] sm:$0x1]
    %8804 = vst [vmem:[#allocation1] ss:$9 sm:$0xff] %v8802
    %v8805 = vld [vmem:[#allocation1] sm:$0xff]
    %8807 = vrot.lane.b32.xlu0 %v8805, 88
    %v8808 = vpop.permute.xlu0 %8807
    %s8810 = vtos %v8808
    %v8811 = vstv %s8810
    %v8812 = vpack.i.b16 %v8811, %v8811
    %v8814 = vunpack.c.l.bf16 %v8812
    %v8815 = vmul.f32 %v6904, %v8814
    %v8816 = vmul.f32 %v6905, %v8814
    %v8817 = vmul.f32 %v6906, %v8814
    %v8818 = vmul.f32 %v6907, %v8814
    %v8819 = vpack.c.bf16 %v8816, %v8815
    %v8820 = vpack.c.bf16 %v8818, %v8817
    %v8821 = vunpack.c.l.bf16 %v8800
    %v8822 = vunpack.c.h.bf16 %v8800
    %v8823 = vunpack.c.l.bf16 %v8801
    %v8824 = vunpack.c.h.bf16 %v8801
    %v8825 = vunpack.c.l.bf16 %v8819
    %v8826 = vunpack.c.h.bf16 %v8819
    %v8827 = vunpack.c.l.bf16 %v8820
    %v8828 = vunpack.c.h.bf16 %v8820
    %8833 = vrot.lane.b32.xlu0 %v8825, 113
    %v8834 = vpop.permute.xlu0 %8833
    %8835 = vrot.lane.b32.xlu0 %v8826, 113
    %v8836 = vpop.permute.xlu0 %8835
    %8837 = vrot.lane.b32.xlu0 %v8827, 113
    %v8838 = vpop.permute.xlu0 %8837
    %8839 = vrot.lane.b32.xlu0 %v8828, 113
    %v8840 = vpop.permute.xlu0 %8839
    %v8841 = vsel %vm401, %v8834, %v8836
    %v8842 = vsel %vm401, %v8838, %v8840
    %v8847 = vadd.f32 %v8821, %v8841
    %v8848 = vadd.f32 %v8822, %v8836
    %v8849 = vadd.f32 %v8823, %v8842
    %v8850 = vadd.f32 %v8824, %v8840
    %v8851 = vpack.c.bf16 %v8848, %v8847
    %v8852 = vpack.c.bf16 %v8850, %v8849
    %v8853 = vld [vmem:[%s1] sm:$0x1]
    %8855 = vst [vmem:[#allocation1] ss:$9 sm:$0xff] %v8853
    %v8856 = vld [vmem:[#allocation1] sm:$0xff]
    %8858 = vrot.lane.b32.xlu0 %v8856, 87
    %v8859 = vpop.permute.xlu0 %8858
    %s8861 = vtos %v8859
    %v8862 = vstv %s8861
    %v8863 = vpack.i.b16 %v8862, %v8862
    %v8865 = vunpack.c.l.bf16 %v8863
    %v8866 = vmul.f32 %v6849, %v8865
    %v8867 = vmul.f32 %v6850, %v8865
    %v8868 = vmul.f32 %v6851, %v8865
    %v8869 = vmul.f32 %v6852, %v8865
    %v8870 = vpack.c.bf16 %v8867, %v8866
    %v8871 = vpack.c.bf16 %v8869, %v8868
    %v8872 = vunpack.c.l.bf16 %v8851
    %v8873 = vunpack.c.h.bf16 %v8851
    %v8874 = vunpack.c.l.bf16 %v8852
    %v8875 = vunpack.c.h.bf16 %v8852
    %v8876 = vunpack.c.l.bf16 %v8870
    %v8877 = vunpack.c.h.bf16 %v8870
    %v8878 = vunpack.c.l.bf16 %v8871
    %v8879 = vunpack.c.h.bf16 %v8871
    %8884 = vrot.lane.b32.xlu0 %v8876, 113
    %v8885 = vpop.permute.xlu0 %8884
    %8886 = vrot.lane.b32.xlu0 %v8877, 113
    %v8887 = vpop.permute.xlu0 %8886
    %8888 = vrot.lane.b32.xlu0 %v8878, 113
    %v8889 = vpop.permute.xlu0 %8888
    %8890 = vrot.lane.b32.xlu0 %v8879, 113
    %v8891 = vpop.permute.xlu0 %8890
    %v8892 = vsel %vm401, %v8885, %v8887
    %v8893 = vsel %vm401, %v8889, %v8891
    %v8898 = vadd.f32 %v8872, %v8892
    %v8899 = vadd.f32 %v8873, %v8887
    %v8900 = vadd.f32 %v8874, %v8893
    %v8901 = vadd.f32 %v8875, %v8891
    %v8902 = vpack.c.bf16 %v8899, %v8898
    %v8903 = vpack.c.bf16 %v8901, %v8900
    %v8904 = vld [vmem:[%s1] sm:$0x1]
    %8906 = vst [vmem:[#allocation1] ss:$9 sm:$0xff] %v8904
    %v8907 = vld [vmem:[#allocation1] sm:$0xff]
    %8909 = vrot.lane.b32.xlu0 %v8907, 86
    %v8910 = vpop.permute.xlu0 %8909
    %s8912 = vtos %v8910
    %v8913 = vstv %s8912
    %v8914 = vpack.i.b16 %v8913, %v8913
    %v8916 = vunpack.c.l.bf16 %v8914
    %v8917 = vmul.f32 %v6722, %v8916
    %v8918 = vmul.f32 %v6723, %v8916
    %v8919 = vmul.f32 %v6724, %v8916
    %v8920 = vmul.f32 %v6725, %v8916
    %v8921 = vpack.c.bf16 %v8918, %v8917
    %v8922 = vpack.c.bf16 %v8920, %v8919
    %v8923 = vunpack.c.l.bf16 %v8902
    %v8924 = vunpack.c.h.bf16 %v8902
    %v8925 = vunpack.c.l.bf16 %v8903
    %v8926 = vunpack.c.h.bf16 %v8903
    %v8927 = vunpack.c.l.bf16 %v8921
    %v8928 = vunpack.c.h.bf16 %v8921
    %v8929 = vunpack.c.l.bf16 %v8922
    %v8930 = vunpack.c.h.bf16 %v8922
    %8935 = vrot.lane.b32.xlu0 %v8927, 114
    %v8936 = vpop.permute.xlu0 %8935
    %8937 = vrot.lane.b32.xlu0 %v8928, 114
    %v8938 = vpop.permute.xlu0 %8937
    %8939 = vrot.lane.b32.xlu0 %v8929, 114
    %v8940 = vpop.permute.xlu0 %8939
    %8941 = vrot.lane.b32.xlu0 %v8930, 114
    %v8942 = vpop.permute.xlu0 %8941
    %v8943 = vsel %vm298, %v8936, %v8938
    %v8944 = vsel %vm298, %v8940, %v8942
    %v8949 = vadd.f32 %v8923, %v8943
    %v8950 = vadd.f32 %v8924, %v8938
    %v8951 = vadd.f32 %v8925, %v8944
    %v8952 = vadd.f32 %v8926, %v8942
    %v8953 = vpack.c.bf16 %v8950, %v8949
    %v8954 = vpack.c.bf16 %v8952, %v8951
    %v8955 = vld [vmem:[%s1] sm:$0x1]
    %8957 = vst [vmem:[#allocation1] ss:$9 sm:$0xff] %v8955
    %v8958 = vld [vmem:[#allocation1] sm:$0xff]
    %8960 = vrot.lane.b32.xlu0 %v8958, 85
    %v8961 = vpop.permute.xlu0 %8960
    %s8963 = vtos %v8961
    %v8964 = vstv %s8963
    %v8965 = vpack.i.b16 %v8964, %v8964
    %v8967 = vunpack.c.l.bf16 %v8965
    %v8968 = vmul.f32 %v6743, %v8967
    %v8969 = vmul.f32 %v6744, %v8967
    %v8970 = vmul.f32 %v6745, %v8967
    %v8971 = vmul.f32 %v6746, %v8967
    %v8972 = vpack.c.bf16 %v8969, %v8968
    %v8973 = vpack.c.bf16 %v8971, %v8970
    %v8974 = vunpack.c.l.bf16 %v8953
    %v8975 = vunpack.c.h.bf16 %v8953
    %v8976 = vunpack.c.l.bf16 %v8954
    %v8977 = vunpack.c.h.bf16 %v8954
    %v8978 = vunpack.c.l.bf16 %v8972
    %v8979 = vunpack.c.h.bf16 %v8972
    %v8980 = vunpack.c.l.bf16 %v8973
    %v8981 = vunpack.c.h.bf16 %v8973
    %8986 = vrot.lane.b32.xlu0 %v8978, 113
    %v8987 = vpop.permute.xlu0 %8986
    %8988 = vrot.lane.b32.xlu0 %v8979, 113
    %v8989 = vpop.permute.xlu0 %8988
    %8990 = vrot.lane.b32.xlu0 %v8980, 113
    %v8991 = vpop.permute.xlu0 %8990
    %8992 = vrot.lane.b32.xlu0 %v8981, 113
    %v8993 = vpop.permute.xlu0 %8992
    %v8994 = vsel %vm401, %v8987, %v8989
    %v8995 = vsel %vm401, %v8991, %v8993
    %v9000 = vadd.f32 %v8974, %v8994
    %v9001 = vadd.f32 %v8975, %v8989
    %v9002 = vadd.f32 %v8976, %v8995
    %v9003 = vadd.f32 %v8977, %v8993
    %v9004 = vpack.c.bf16 %v9001, %v9000
    %v9005 = vpack.c.bf16 %v9003, %v9002
    %v9006 = vld [vmem:[%s1] sm:$0x1]
    %9008 = vst [vmem:[#allocation1] ss:$9 sm:$0xff] %v9006
    %v9009 = vld [vmem:[#allocation1] sm:$0xff]
    %9011 = vrot.lane.b32.xlu0 %v9009, 84
    %v9012 = vpop.permute.xlu0 %9011
    %s9014 = vtos %v9012
    %v9015 = vstv %s9014
    %v9016 = vpack.i.b16 %v9015, %v9015
    %v9018 = vunpack.c.l.bf16 %v9016
    %v9019 = vmul.f32 %v6722, %v9018
    %v9020 = vmul.f32 %v6723, %v9018
    %v9021 = vmul.f32 %v6724, %v9018
    %v9022 = vmul.f32 %v6725, %v9018
    %v9023 = vpack.c.bf16 %v9020, %v9019
    %v9024 = vpack.c.bf16 %v9022, %v9021
    %v9025 = vunpack.c.l.bf16 %v9004
    %v9026 = vunpack.c.h.bf16 %v9004
    %v9027 = vunpack.c.l.bf16 %v9005
    %v9028 = vunpack.c.h.bf16 %v9005
    %v9029 = vunpack.c.l.bf16 %v9023
    %v9030 = vunpack.c.h.bf16 %v9023
    %v9031 = vunpack.c.l.bf16 %v9024
    %v9032 = vunpack.c.h.bf16 %v9024
    %9037 = vrot.lane.b32.xlu0 %v9029, 113
    %v9038 = vpop.permute.xlu0 %9037
    %9039 = vrot.lane.b32.xlu0 %v9030, 113
    %v9040 = vpop.permute.xlu0 %9039
    %9041 = vrot.lane.b32.xlu0 %v9031, 113
    %v9042 = vpop.permute.xlu0 %9041
    %9043 = vrot.lane.b32.xlu0 %v9032, 113
    %v9044 = vpop.permute.xlu0 %9043
    %v9045 = vsel %vm401, %v9038, %v9040
    %v9046 = vsel %vm401, %v9042, %v9044
    %v9051 = vadd.f32 %v9025, %v9045
    %v9052 = vadd.f32 %v9026, %v9040
    %v9053 = vadd.f32 %v9027, %v9046
    %v9054 = vadd.f32 %v9028, %v9044
    %v9055 = vpack.c.bf16 %v9052, %v9051
    %v9056 = vpack.c.bf16 %v9054, %v9053
    %v9057 = vld [vmem:[%s2] sm:$0x1]
    %9059 = vst [vmem:[#allocation1] ss:$9 sm:$0xff] %v9057
    %v9060 = vld [vmem:[#allocation1] sm:$0xff]
    %9062 = vrot.lane.b32.xlu0 %v9060, 124
    %v9063 = vpop.permute.xlu0 %9062
    %s9065 = vtos %v9063
    %v9066 = vstv %s9065
    %v9067 = vpack.i.b16 %v9066, %v9066
    %v9069 = vunpack.c.l.bf16 %v9055
    %v9070 = vunpack.c.h.bf16 %v9055
    %v9071 = vunpack.c.l.bf16 %v9056
    %v9072 = vunpack.c.h.bf16 %v9056
    %v9073 = vunpack.c.l.bf16 %v9067
    %v9074 = vadd.f32 %v9069, %v9073
    %v9075 = vadd.f32 %v9070, %v9073
    %v9076 = vadd.f32 %v9071, %v9073
    %v9077 = vadd.f32 %v9072, %v9073
    %v9078 = vpack.c.bf16 %v9075, %v9074
    %v9079 = vpack.c.bf16 %v9077, %v9076
    %v9080 = vunpack.c.l.bf16 %v9078
    %v9081 = vunpack.c.h.bf16 %v9078
    %v9082 = vunpack.c.l.bf16 %v9079
    %v9083 = vunpack.c.h.bf16 %v9079
    %v9084 = vmax.f32 %v9080, 0.0
    %v9085 = vmax.f32 %v9081, 0.0
    %v9086 = vmax.f32 %v9082, 0.0
    %v9087 = vmax.f32 %v9083, 0.0
    %v9088 = vpack.c.bf16 %v9085, %v9084
    %v9089 = vpack.c.bf16 %v9087, %v9086
    %v9090 = vld [vmem:[#allocation2 + $0x20] sm:$0xff]
    %v9091 = vld [vmem:[#allocation2 + $0x48] sm:$0xff]
    %v9092 = vunpack.c.l.bf16 %v9090
    %v9093 = vunpack.c.h.bf16 %v9090
    %v9094 = vunpack.c.l.bf16 %v9091
    %v9095 = vunpack.c.h.bf16 %v9091
    %v9096 = vunpack.c.l.bf16 %v9088
    %v9097 = vunpack.c.h.bf16 %v9088
    %v9098 = vunpack.c.l.bf16 %v9089
    %v9099 = vunpack.c.h.bf16 %v9089
    %v9100 = vmax.f32 %v9092, %v9096
    %v9101 = vmax.f32 %v9093, %v9097
    %v9102 = vmax.f32 %v9094, %v9098
    %v9103 = vmax.f32 %v9095, %v9099
    %v9104 = vpack.c.bf16 %v9101, %v9100
    %v9105 = vpack.c.bf16 %v9103, %v9102
    %9106 = vst.msk [vmem:[#allocation2 + $0x20] sm:$0xff] %vm445, %v9104
    %9107 = vst.msk [vmem:[#allocation2 + $0x48] sm:$0xff] %vm445, %v9105
    %v9108 = vld [vmem:[#allocation2] sm:$0xff]
    %v9109 = vld [vmem:[#allocation2 + $0x8] sm:$0xff]
    %v9110 = vld [vmem:[#allocation2 + $0x10] sm:$0xff]
    %v9111 = vld [vmem:[#allocation2 + $0x18] sm:$0xff]
    %v9112 = vld [vmem:[#allocation2 + $0x20] sm:$0xff]
    %v9113 = vld [vmem:[#allocation2 + $0x28] sm:$0xff]
    %v9114 = vld [vmem:[#allocation2 + $0x30] sm:$0xff]
    %v9115 = vld [vmem:[#allocation2 + $0x38] sm:$0xff]
    %v9116 = vld [vmem:[#allocation2 + $0x40] sm:$0xff]
    %v9117 = vld [vmem:[#allocation2 + $0x48] sm:$0xff]
    %v9118 = vld [vmem:[%s3] sm:$0xf]
    %v9119 = vld [vmem:[%s3 + $0x4] sm:$0xf]
    %v9120 = vld [vmem:[%s3 + $0x8] sm:$0xf]
    %v9121 = vld [vmem:[%s3 + $0xc] sm:$0xf]
    %v9122 = vld [vmem:[%s3 + $0x10] sm:$0xf]
    %v9123 = vld [vmem:[%s3 + $0x14] sm:$0xf]
    %v9124 = vld [vmem:[%s3 + $0x18] sm:$0xf]
    %v9125 = vld [vmem:[%s3 + $0x1c] sm:$0xf]
    %v9126 = vld [vmem:[%s3 + $0x20] sm:$0xf]
    %v9127 = vld [vmem:[%s3 + $0x24] sm:$0xf]
    %v9128 = vld [vmem:[%s3 + $0x28] sm:$0xf]
    %v9129 = vld [vmem:[%s3 + $0x2c] sm:$0xf]
    %v9130 = vld [vmem:[%s3 + $0x30] sm:$0xf]
    %v9131 = vld [vmem:[%s3 + $0x34] sm:$0xf]
    %v9132 = vld [vmem:[%s3 + $0x38] sm:$0xf]
    %v9133 = vld [vmem:[%s3 + $0x3c] sm:$0xf]
    %v9134 = vld [vmem:[%s3 + $0x40] sm:$0xf]
    %v9135 = vld [vmem:[%s3 + $0x44] sm:$0xf]
    %v9136 = vld [vmem:[%s3 + $0x48] sm:$0xf]
    %v9137 = vld [vmem:[%s3 + $0x4c] sm:$0xf]
    %v9138 = vld [vmem:[%s3 + $0x50] sm:$0xf]
    %v9139 = vld [vmem:[%s3 + $0x54] sm:$0xf]
    %v9140 = vld [vmem:[%s3 + $0x58] sm:$0xf]
    %v9141 = vld [vmem:[%s3 + $0x5c] sm:$0xf]
    %v9142 = vld [vmem:[%s3 + $0x60] sm:$0xf]
    %v9143 = vld [vmem:[%s3 + $0x64] sm:$0xf]
    %v9144 = vld [vmem:[%s3 + $0x68] sm:$0xf]
    %v9145 = vld [vmem:[%s3 + $0x6c] sm:$0xf]
    %v9146 = vld [vmem:[%s3 + $0x70] sm:$0xf]
    %v9147 = vld [vmem:[%s3 + $0x74] sm:$0xf]
    %v9148 = vld [vmem:[%s3 + $0x78] sm:$0xf]
    %v9149 = vld [vmem:[%s3 + $0x7c] sm:$0xf]
    %v9150 = vld [vmem:[%s3 + $0x80] sm:$0xf]
    %v9151 = vld [vmem:[%s3 + $0x84] sm:$0xf]
    %v9152 = vld [vmem:[%s3 + $0x88] sm:$0xf]
    %v9153 = vld [vmem:[%s3 + $0x8c] sm:$0xf]
    %v9154 = vld [vmem:[%s3 + $0x90] sm:$0xf]
    %v9155 = vld [vmem:[%s3 + $0x94] sm:$0xf]
    %v9156 = vld [vmem:[%s3 + $0x98] sm:$0xf]
    %v9157 = vld [vmem:[%s3 + $0x9c] sm:$0xf]
    %v9158 = vld [vmem:[%s3 + $0xa0] sm:$0xf]
    %v9159 = vld [vmem:[%s3 + $0xa4] sm:$0xf]
    %v9160 = vld [vmem:[%s3 + $0xa8] sm:$0xf]
    %v9161 = vld [vmem:[%s3 + $0xac] sm:$0xf]
    %v9162 = vld [vmem:[%s3 + $0xb0] sm:$0xf]
    %v9163 = vld [vmem:[%s3 + $0xb4] sm:$0xf]
    %v9164 = vld [vmem:[%s3 + $0xb8] sm:$0xf]
    %v9165 = vld [vmem:[%s3 + $0xbc] sm:$0xf]
    %v9166 = vld [vmem:[%s3 + $0xc0] sm:$0xf]
    %v9167 = vld [vmem:[%s3 + $0xc4] sm:$0xf]
    %v9168 = vld [vmem:[%s3 + $0xc8] sm:$0xf]
    %v9169 = vld [vmem:[%s3 + $0xcc] sm:$0xf]
    %v9170 = vld [vmem:[%s3 + $0xd0] sm:$0xf]
    %v9171 = vld [vmem:[%s3 + $0xd4] sm:$0xf]
    %v9172 = vld [vmem:[%s3 + $0xd8] sm:$0xf]
    %v9173 = vld [vmem:[%s3 + $0xdc] sm:$0xf]
    %v9174 = vld [vmem:[%s3 + $0xe0] sm:$0xf]
    %v9175 = vld [vmem:[%s3 + $0xe4] sm:$0xf]
    %v9176 = vld [vmem:[%s3 + $0xe8] sm:$0xf]
    %v9177 = vld [vmem:[%s3 + $0xec] sm:$0xf]
    %v9178 = vld [vmem:[%s3 + $0xf0] sm:$0xf]
    %v9179 = vld [vmem:[%s3 + $0xf4] sm:$0xf]
    %v9180 = vld [vmem:[%s3 + $0xf8] sm:$0xf]
    %v9181 = vld [vmem:[%s3 + $0xfc] sm:$0xf]
    %v9182 = vld [vmem:[%s3 + $0x100] sm:$0xf]
    %v9183 = vld [vmem:[%s3 + $0x104] sm:$0xf]
    %v9184 = vld [vmem:[%s3 + $0x108] sm:$0xf]
    %v9185 = vld [vmem:[%s3 + $0x10c] sm:$0xf]
    %v9186 = vld [vmem:[%s3 + $0x110] sm:$0xf]
    %v9187 = vld [vmem:[%s3 + $0x114] sm:$0xf]
    %v9188 = vld [vmem:[%s3 + $0x118] sm:$0xf]
    %v9189 = vld [vmem:[%s3 + $0x11c] sm:$0xf]
    %v9190 = vld [vmem:[%s3 + $0x120] sm:$0xf]
    %v9191 = vld [vmem:[%s3 + $0x124] sm:$0xf]
    %v9192 = vld [vmem:[%s3 + $0x128] sm:$0xf]
    %v9193 = vld [vmem:[%s3 + $0x12c] sm:$0xf]
    %v9194 = vld [vmem:[%s3 + $0x130] sm:$0xf]
    %v9195 = vld [vmem:[%s3 + $0x134] sm:$0xf]
    %v9196 = vld [vmem:[%s3 + $0x138] sm:$0xf]
    %v9197 = vld [vmem:[%s3 + $0x13c] sm:$0xf]
    %v9198 = vld [vmem:[%s3 + $0x140] sm:$0xf]
    %v9199 = vld [vmem:[%s3 + $0x144] sm:$0xf]
    %v9200 = vld [vmem:[%s3 + $0x148] sm:$0xf]
    %v9201 = vld [vmem:[%s3 + $0x14c] sm:$0xf]
    %v9202 = vld [vmem:[%s3 + $0x150] sm:$0xf]
    %v9203 = vld [vmem:[%s3 + $0x154] sm:$0xf]
    %v9204 = vld [vmem:[%s3 + $0x158] sm:$0xf]
    %v9205 = vld [vmem:[%s3 + $0x15c] sm:$0xf]
    %v9206 = vld [vmem:[%s3 + $0x160] sm:$0xf]
    %v9207 = vld [vmem:[%s3 + $0x164] sm:$0xf]
    %v9208 = vld [vmem:[%s3 + $0x168] sm:$0xf]
    %v9209 = vld [vmem:[%s3 + $0x16c] sm:$0xf]
    %v9210 = vld [vmem:[%s3 + $0x170] sm:$0xf]
    %v9211 = vld [vmem:[%s3 + $0x174] sm:$0xf]
    %v9212 = vld [vmem:[%s3 + $0x178] sm:$0xf]
    %v9213 = vld [vmem:[%s3 + $0x17c] sm:$0xf]
    %v9214 = vld [vmem:[%s3 + $0x180] sm:$0xf]
    %v9215 = vld [vmem:[%s3 + $0x184] sm:$0xf]
    %v9216 = vld [vmem:[%s3 + $0x188] sm:$0xf]
    %v9217 = vld [vmem:[%s3 + $0x18c] sm:$0xf]
    %v9218 = vld [vmem:[%s3 + $0x190] sm:$0xf]
    %v9219 = vld [vmem:[%s3 + $0x194] sm:$0xf]
    %v9220 = vld [vmem:[%s3 + $0x198] sm:$0xf]
    %v9221 = vld [vmem:[%s3 + $0x19c] sm:$0xf]
    %v9222 = vld [vmem:[%s3 + $0x1a0] sm:$0xf]
    %v9223 = vld [vmem:[%s3 + $0x1a4] sm:$0xf]
    %v9224 = vld [vmem:[%s3 + $0x1a8] sm:$0xf]
    %v9225 = vld [vmem:[%s3 + $0x1ac] sm:$0xf]
    %v9226 = vld [vmem:[%s3 + $0x1b0] sm:$0xf]
    %v9227 = vld [vmem:[%s3 + $0x1b4] sm:$0xf]
    %v9228 = vld [vmem:[%s3 + $0x1b8] sm:$0xf]
    %v9229 = vld [vmem:[%s3 + $0x1bc] sm:$0xf]
    %v9230 = vld [vmem:[%s3 + $0x1c0] sm:$0xf]
    %v9231 = vld [vmem:[%s3 + $0x1c4] sm:$0xf]
    %v9232 = vld [vmem:[%s3 + $0x1c8] sm:$0xf]
    %v9233 = vld [vmem:[%s3 + $0x1cc] sm:$0xf]
    %v9234 = vld [vmem:[%s3 + $0x1d0] sm:$0xf]
    %v9235 = vld [vmem:[%s3 + $0x1d4] sm:$0xf]
    %v9236 = vld [vmem:[%s3 + $0x1d8] sm:$0xf]
    %v9237 = vld [vmem:[%s3 + $0x1dc] sm:$0xf]
    %v9238 = vld [vmem:[%s3 + $0x1e0] sm:$0xf]
    %v9239 = vld [vmem:[%s3 + $0x1e4] sm:$0xf]
    %v9240 = vld [vmem:[%s3 + $0x1e8] sm:$0xf]
    %v9241 = vld [vmem:[%s3 + $0x1ec] sm:$0xf]
    %v9242 = vld [vmem:[%s3 + $0x1f0] sm:$0xf]
    %v9243 = vld [vmem:[%s3 + $0x1f4] sm:$0xf]
    %v9244 = vld [vmem:[%s3 + $0x1f8] sm:$0xf]
    %v9245 = vld [vmem:[%s3 + $0x1fc] sm:$0xf]
    %v9246 = vld [vmem:[%s3 + $0x200] sm:$0xf]
    %v9247 = vld [vmem:[%s3 + $0x204] sm:$0xf]
    %v9248 = vld [vmem:[%s3 + $0x208] sm:$0xf]
    %v9249 = vld [vmem:[%s3 + $0x20c] sm:$0xf]
    %v9250 = vld [vmem:[%s3 + $0x210] sm:$0xf]
    %v9251 = vld [vmem:[%s3 + $0x214] sm:$0xf]
    %v9252 = vld [vmem:[%s3 + $0x218] sm:$0xf]
    %v9253 = vld [vmem:[%s3 + $0x21c] sm:$0xf]
    %v9254 = vld [vmem:[%s3 + $0x220] sm:$0xf]
    %v9255 = vld [vmem:[%s3 + $0x224] sm:$0xf]
    %v9256 = vld [vmem:[%s3 + $0x228] sm:$0xf]
    %v9257 = vld [vmem:[%s3 + $0x22c] sm:$0xf]
    %v9258 = vld [vmem:[%s3 + $0x230] sm:$0xf]
    %v9259 = vld [vmem:[%s3 + $0x234] sm:$0xf]
    %v9260 = vld [vmem:[%s3 + $0x238] sm:$0xf]
    %v9261 = vld [vmem:[%s3 + $0x23c] sm:$0xf]
    %v9262 = vld [vmem:[%s3 + $0x240] sm:$0xf]
    %v9263 = vld [vmem:[%s3 + $0x244] sm:$0xf]
    %v9264 = vld [vmem:[%s3 + $0x248] sm:$0xf]
    %v9265 = vld [vmem:[%s3 + $0x24c] sm:$0xf]
    %v9266 = vld [vmem:[%s3 + $0x250] sm:$0xf]
    %v9267 = vld [vmem:[%s3 + $0x254] sm:$0xf]
    %v9268 = vld [vmem:[%s3 + $0x258] sm:$0xf]
    %v9269 = vld [vmem:[%s3 + $0x25c] sm:$0xf]
    %v9270 = vld [vmem:[%s3 + $0x260] sm:$0xf]
    %v9271 = vld [vmem:[%s3 + $0x264] sm:$0xf]
    %v9272 = vld [vmem:[%s3 + $0x268] sm:$0xf]
    %v9273 = vld [vmem:[%s3 + $0x26c] sm:$0xf]
    %v9274 = vld [vmem:[%s3 + $0x270] sm:$0xf]
    %v9275 = vld [vmem:[%s3 + $0x274] sm:$0xf]
    %v9276 = vld [vmem:[%s3 + $0x278] sm:$0xf]
    %v9277 = vld [vmem:[%s3 + $0x27c] sm:$0xf]
    %v9278 = vld [vmem:[%s4] sm:$0x1]
    %v9280 = vperm.slane %v9278, 0
    %v9292 = vunpack.c.l.b16 %v9108
    %v9293 = vunpack.c.h.b16 %v9108
    %v9294 = vunpack.c.l.b16 %v9109
    %v9295 = vunpack.c.h.b16 %v9109
    %v9296 = vunpack.c.l.b16 %v9110
    %v9297 = vunpack.c.h.b16 %v9110
    %v9298 = vunpack.c.l.b16 %v9111
    %v9299 = vunpack.c.h.b16 %v9111
    %v9300 = vunpack.c.l.b16 %v9112
    %v9301 = vunpack.c.h.b16 %v9112
    %v9302 = vunpack.c.l.b16 %v9113
    %v9303 = vunpack.c.h.b16 %v9113
    %v9304 = vunpack.c.l.b16 %v9114
    %v9305 = vunpack.c.h.b16 %v9114
    %v9306 = vunpack.c.l.b16 %v9115
    %v9307 = vunpack.c.h.b16 %v9115
    %v9308 = vunpack.c.l.b16 %v9116
    %v9309 = vunpack.c.h.b16 %v9116
    %v9310 = vunpack.c.l.b16 %v9117
    %v9311 = vunpack.c.h.b16 %v9117
    %v9312 = vpack.c.b16 %v9302, %v9292
    %v9313 = vpack.c.b16 %v9303, %v9293
    %v9314 = vpack.c.b16 %v9304, %v9294
    %v9315 = vpack.c.b16 %v9305, %v9295
    %v9316 = vpack.c.b16 %v9306, %v9296
    %v9317 = vpack.c.b16 %v9307, %v9297
    %v9318 = vpack.c.b16 %v9308, %v9298
    %v9319 = vpack.c.b16 %v9309, %v9299
    %v9320 = vpack.c.b16 %v9310, %v9300
    %v9321 = vpack.c.b16 %v9311, %v9301
    %v9492 = vunpack.c.l.b16 %v9118
    %v9493 = vunpack.c.l.b16 %v9119
    %v9494 = vunpack.c.l.b16 %v9120
    %v9495 = vunpack.c.l.b16 %v9121
    %v9496 = vunpack.c.l.b16 %v9122
    %v9497 = vunpack.c.l.b16 %v9123
    %v9498 = vunpack.c.l.b16 %v9124
    %v9499 = vunpack.c.l.b16 %v9125
    %v9500 = vunpack.c.l.b16 %v9126
    %v9501 = vunpack.c.l.b16 %v9127
    %v9502 = vunpack.c.l.b16 %v9128
    %v9503 = vunpack.c.l.b16 %v9129
    %v9504 = vunpack.c.l.b16 %v9130
    %v9505 = vunpack.c.l.b16 %v9131
    %v9506 = vunpack.c.l.b16 %v9132
    %v9507 = vunpack.c.l.b16 %v9133
    %v9508 = vunpack.c.l.b16 %v9134
    %v9509 = vunpack.c.l.b16 %v9135
    %v9510 = vunpack.c.l.b16 %v9136
    %v9511 = vunpack.c.l.b16 %v9137
    %v9512 = vunpack.c.l.b16 %v9138
    %v9513 = vunpack.c.l.b16 %v9139
    %v9514 = vunpack.c.l.b16 %v9140
    %v9515 = vunpack.c.l.b16 %v9141
    %v9516 = vunpack.c.l.b16 %v9142
    %v9517 = vunpack.c.l.b16 %v9143
    %v9518 = vunpack.c.l.b16 %v9144
    %v9519 = vunpack.c.l.b16 %v9145
    %v9520 = vunpack.c.l.b16 %v9146
    %v9521 = vunpack.c.l.b16 %v9147
    %v9522 = vunpack.c.l.b16 %v9148
    %v9523 = vunpack.c.l.b16 %v9149
    %v9524 = vunpack.c.l.b16 %v9150
    %v9525 = vunpack.c.l.b16 %v9151
    %v9526 = vunpack.c.l.b16 %v9152
    %v9527 = vunpack.c.l.b16 %v9153
    %v9528 = vunpack.c.l.b16 %v9154
    %v9529 = vunpack.c.l.b16 %v9155
    %v9530 = vunpack.c.l.b16 %v9156
    %v9531 = vunpack.c.l.b16 %v9157
    %v9532 = vunpack.c.l.b16 %v9158
    %v9533 = vunpack.c.l.b16 %v9159
    %v9534 = vunpack.c.l.b16 %v9160
    %v9535 = vunpack.c.l.b16 %v9161
    %v9536 = vunpack.c.l.b16 %v9162
    %v9537 = vunpack.c.l.b16 %v9163
    %v9538 = vunpack.c.l.b16 %v9164
    %v9539 = vunpack.c.l.b16 %v9165
    %v9540 = vunpack.c.l.b16 %v9166
    %v9541 = vunpack.c.l.b16 %v9167
    %v9542 = vunpack.c.l.b16 %v9168
    %v9543 = vunpack.c.l.b16 %v9169
    %v9544 = vunpack.c.l.b16 %v9170
    %v9545 = vunpack.c.l.b16 %v9171
    %v9546 = vunpack.c.l.b16 %v9172
    %v9547 = vunpack.c.l.b16 %v9173
    %v9548 = vunpack.c.l.b16 %v9174
    %v9549 = vunpack.c.l.b16 %v9175
    %v9550 = vunpack.c.l.b16 %v9176
    %v9551 = vunpack.c.l.b16 %v9177
    %v9552 = vunpack.c.l.b16 %v9178
    %v9553 = vunpack.c.l.b16 %v9179
    %v9554 = vunpack.c.l.b16 %v9180
    %v9555 = vunpack.c.l.b16 %v9181
    %v9556 = vunpack.c.l.b16 %v9182
    %v9557 = vunpack.c.l.b16 %v9183
    %v9558 = vunpack.c.l.b16 %v9184
    %v9559 = vunpack.c.l.b16 %v9185
    %v9560 = vunpack.c.l.b16 %v9186
    %v9561 = vunpack.c.l.b16 %v9187
    %v9562 = vunpack.c.l.b16 %v9188
    %v9563 = vunpack.c.l.b16 %v9189
    %v9564 = vunpack.c.l.b16 %v9190
    %v9565 = vunpack.c.l.b16 %v9191
    %v9566 = vunpack.c.l.b16 %v9192
    %v9567 = vunpack.c.l.b16 %v9193
    %v9568 = vunpack.c.l.b16 %v9194
    %v9569 = vunpack.c.l.b16 %v9195
    %v9570 = vunpack.c.l.b16 %v9196
    %v9571 = vunpack.c.l.b16 %v9197
    %v9572 = vunpack.c.l.b16 %v9198
    %v9573 = vunpack.c.l.b16 %v9199
    %v9574 = vunpack.c.l.b16 %v9200
    %v9575 = vunpack.c.l.b16 %v9201
    %v9576 = vunpack.c.l.b16 %v9202
    %v9577 = vunpack.c.l.b16 %v9203
    %v9578 = vunpack.c.l.b16 %v9204
    %v9579 = vunpack.c.l.b16 %v9205
    %v9580 = vunpack.c.l.b16 %v9206
    %v9581 = vunpack.c.l.b16 %v9207
    %v9582 = vunpack.c.l.b16 %v9208
    %v9583 = vunpack.c.l.b16 %v9209
    %v9584 = vunpack.c.l.b16 %v9210
    %v9585 = vunpack.c.l.b16 %v9211
    %v9586 = vunpack.c.l.b16 %v9212
    %v9587 = vunpack.c.l.b16 %v9213
    %v9588 = vunpack.c.l.b16 %v9214
    %v9589 = vunpack.c.l.b16 %v9215
    %v9590 = vunpack.c.l.b16 %v9216
    %v9591 = vunpack.c.l.b16 %v9217
    %v9592 = vunpack.c.l.b16 %v9218
    %v9593 = vunpack.c.l.b16 %v9219
    %v9594 = vunpack.c.l.b16 %v9220
    %v9595 = vunpack.c.l.b16 %v9221
    %v9596 = vunpack.c.l.b16 %v9222
    %v9597 = vunpack.c.l.b16 %v9223
    %v9598 = vunpack.c.l.b16 %v9224
    %v9599 = vunpack.c.l.b16 %v9225
    %v9600 = vunpack.c.l.b16 %v9226
    %v9601 = vunpack.c.l.b16 %v9227
    %v9602 = vunpack.c.l.b16 %v9228
    %v9603 = vunpack.c.l.b16 %v9229
    %v9604 = vunpack.c.l.b16 %v9230
    %v9605 = vunpack.c.l.b16 %v9231
    %v9606 = vunpack.c.l.b16 %v9232
    %v9607 = vunpack.c.l.b16 %v9233
    %v9608 = vunpack.c.l.b16 %v9234
    %v9609 = vunpack.c.l.b16 %v9235
    %v9610 = vunpack.c.l.b16 %v9236
    %v9611 = vunpack.c.l.b16 %v9237
    %v9612 = vunpack.c.l.b16 %v9238
    %v9613 = vunpack.c.l.b16 %v9239
    %v9614 = vunpack.c.l.b16 %v9240
    %v9615 = vunpack.c.l.b16 %v9241
    %v9616 = vunpack.c.l.b16 %v9242
    %v9617 = vunpack.c.l.b16 %v9243
    %v9618 = vunpack.c.l.b16 %v9244
    %v9619 = vunpack.c.l.b16 %v9245
    %v9620 = vunpack.c.l.b16 %v9246
    %v9621 = vunpack.c.l.b16 %v9247
    %v9622 = vunpack.c.l.b16 %v9248
    %v9623 = vunpack.c.l.b16 %v9249
    %v9624 = vunpack.c.l.b16 %v9250
    %v9625 = vunpack.c.l.b16 %v9251
    %v9626 = vunpack.c.l.b16 %v9252
    %v9627 = vunpack.c.l.b16 %v9253
    %v9628 = vunpack.c.l.b16 %v9254
    %v9629 = vunpack.c.l.b16 %v9255
    %v9630 = vunpack.c.l.b16 %v9256
    %v9631 = vunpack.c.l.b16 %v9257
    %v9632 = vunpack.c.l.b16 %v9258
    %v9633 = vunpack.c.l.b16 %v9259
    %v9634 = vunpack.c.l.b16 %v9260
    %v9635 = vunpack.c.l.b16 %v9261
    %v9636 = vunpack.c.l.b16 %v9262
    %v9637 = vunpack.c.l.b16 %v9263
    %v9638 = vunpack.c.l.b16 %v9264
    %v9639 = vunpack.c.l.b16 %v9265
    %v9640 = vunpack.c.l.b16 %v9266
    %v9641 = vunpack.c.l.b16 %v9267
    %v9642 = vunpack.c.l.b16 %v9268
    %v9643 = vunpack.c.l.b16 %v9269
    %v9644 = vunpack.c.l.b16 %v9270
    %v9645 = vunpack.c.l.b16 %v9271
    %v9646 = vunpack.c.l.b16 %v9272
    %v9647 = vunpack.c.l.b16 %v9273
    %v9648 = vunpack.c.l.b16 %v9274
    %v9649 = vunpack.c.l.b16 %v9275
    %v9650 = vunpack.c.l.b16 %v9276
    %v9651 = vunpack.c.l.b16 %v9277
    %v9652 = vpack.c.b16 %v9493, %v9492
    %v9653 = vpack.c.b16 %v9495, %v9494
    %v9654 = vpack.c.b16 %v9497, %v9496
    %v9655 = vpack.c.b16 %v9499, %v9498
    %v9656 = vpack.c.b16 %v9501, %v9500
    %v9657 = vpack.c.b16 %v9503, %v9502
    %v9658 = vpack.c.b16 %v9505, %v9504
    %v9659 = vpack.c.b16 %v9507, %v9506
    %v9660 = vpack.c.b16 %v9509, %v9508
    %v9661 = vpack.c.b16 %v9511, %v9510
    %v9662 = vpack.c.b16 %v9513, %v9512
    %v9663 = vpack.c.b16 %v9515, %v9514
    %v9664 = vpack.c.b16 %v9517, %v9516
    %v9665 = vpack.c.b16 %v9519, %v9518
    %v9666 = vpack.c.b16 %v9521, %v9520
    %v9667 = vpack.c.b16 %v9523, %v9522
    %v9668 = vpack.c.b16 %v9525, %v9524
    %v9669 = vpack.c.b16 %v9527, %v9526
    %v9670 = vpack.c.b16 %v9529, %v9528
    %v9671 = vpack.c.b16 %v9531, %v9530
    %v9672 = vpack.c.b16 %v9533, %v9532
    %v9673 = vpack.c.b16 %v9535, %v9534
    %v9674 = vpack.c.b16 %v9537, %v9536
    %v9675 = vpack.c.b16 %v9539, %v9538
    %v9676 = vpack.c.b16 %v9541, %v9540
    %v9677 = vpack.c.b16 %v9543, %v9542
    %v9678 = vpack.c.b16 %v9545, %v9544
    %v9679 = vpack.c.b16 %v9547, %v9546
    %v9680 = vpack.c.b16 %v9549, %v9548
    %v9681 = vpack.c.b16 %v9551, %v9550
    %v9682 = vpack.c.b16 %v9553, %v9552
    %v9683 = vpack.c.b16 %v9555, %v9554
    %v9684 = vpack.c.b16 %v9557, %v9556
    %v9685 = vpack.c.b16 %v9559, %v9558
    %v9686 = vpack.c.b16 %v9561, %v9560
    %v9687 = vpack.c.b16 %v9563, %v9562
    %v9688 = vpack.c.b16 %v9565, %v9564
    %v9689 = vpack.c.b16 %v9567, %v9566
    %v9690 = vpack.c.b16 %v9569, %v9568
    %v9691 = vpack.c.b16 %v9571, %v9570
    %v9692 = vpack.c.b16 %v9573, %v9572
    %v9693 = vpack.c.b16 %v9575, %v9574
    %v9694 = vpack.c.b16 %v9577, %v9576
    %v9695 = vpack.c.b16 %v9579, %v9578
    %v9696 = vpack.c.b16 %v9581, %v9580
    %v9697 = vpack.c.b16 %v9583, %v9582
    %v9698 = vpack.c.b16 %v9585, %v9584
    %v9699 = vpack.c.b16 %v9587, %v9586
    %v9700 = vpack.c.b16 %v9589, %v9588
    %v9701 = vpack.c.b16 %v9591, %v9590
    %v9702 = vpack.c.b16 %v9593, %v9592
    %v9703 = vpack.c.b16 %v9595, %v9594
    %v9704 = vpack.c.b16 %v9597, %v9596
    %v9705 = vpack.c.b16 %v9599, %v9598
    %v9706 = vpack.c.b16 %v9601, %v9600
    %v9707 = vpack.c.b16 %v9603, %v9602
    %v9708 = vpack.c.b16 %v9605, %v9604
    %v9709 = vpack.c.b16 %v9607, %v9606
    %v9710 = vpack.c.b16 %v9609, %v9608
    %v9711 = vpack.c.b16 %v9611, %v9610
    %v9712 = vpack.c.b16 %v9613, %v9612
    %v9713 = vpack.c.b16 %v9615, %v9614
    %v9714 = vpack.c.b16 %v9617, %v9616
    %v9715 = vpack.c.b16 %v9619, %v9618
    %v9716 = vpack.c.b16 %v9621, %v9620
    %v9717 = vpack.c.b16 %v9623, %v9622
    %v9718 = vpack.c.b16 %v9625, %v9624
    %v9719 = vpack.c.b16 %v9627, %v9626
    %v9720 = vpack.c.b16 %v9629, %v9628
    %v9721 = vpack.c.b16 %v9631, %v9630
    %v9722 = vpack.c.b16 %v9633, %v9632
    %v9723 = vpack.c.b16 %v9635, %v9634
    %v9724 = vpack.c.b16 %v9637, %v9636
    %v9725 = vpack.c.b16 %v9639, %v9638
    %v9726 = vpack.c.b16 %v9641, %v9640
    %v9727 = vpack.c.b16 %v9643, %v9642
    %v9728 = vpack.c.b16 %v9645, %v9644
    %v9729 = vpack.c.b16 %v9647, %v9646
    %v9730 = vpack.c.b16 %v9649, %v9648
    %v9731 = vpack.c.b16 %v9651, %v9650
    %9812 = vmatpush.bf16.msra.mxu0 %v9659
    %9813 = vmatpush.bf16.msra.mxu0 %v9658
    %9814 = vmatpush.bf16.msra.mxu0 %v9657
    %9815 = vmatpush.bf16.msra.mxu0 %v9656
    %9816 = vmatpush.bf16.msra.mxu0 %v9655
    %9817 = vmatpush.bf16.msra.mxu0 %v9654
    %9818 = vmatpush.bf16.msra.mxu0 %v9653
    %9819 = vmatpush.bf16.msra.mxu0 %v9652
    %9820 = vmatmul.bf16.gmra.mxu0 %v9312
    %v9821 = vpop.f32.mrf.mxu0
    %v9822 = vadd.f32 %v9280, %v9821
    %v9823 = vpop.f32.mrf.mxu0
    %v9824 = vadd.f32 %v9280, %v9823
    %9825 = vdwg.mxu0
    %9826 = vmatpush.bf16.msra.mxu0 %v9667
    %9827 = vmatpush.bf16.msra.mxu0 %v9666
    %9828 = vmatpush.bf16.msra.mxu0 %v9665
    %9829 = vmatpush.bf16.msra.mxu0 %v9664
    %9830 = vmatpush.bf16.msra.mxu0 %v9663
    %9831 = vmatpush.bf16.msra.mxu0 %v9662
    %9832 = vmatpush.bf16.msra.mxu0 %v9661
    %9833 = vmatpush.bf16.msra.mxu0 %v9660
    %9834 = vmatmul.bf16.gmra.mxu0 %v9313
    %v9835 = vpop.f32.mrf.mxu0
    %v9836 = vadd.f32 %v9822, %v9835
    %v9837 = vpop.f32.mrf.mxu0
    %v9838 = vadd.f32 %v9824, %v9837
    %9839 = vdwg.mxu0
    %9840 = vmatpush.bf16.msra.mxu0 %v9675
    %9841 = vmatpush.bf16.msra.mxu0 %v9674
    %9842 = vmatpush.bf16.msra.mxu0 %v9673
    %9843 = vmatpush.bf16.msra.mxu0 %v9672
    %9844 = vmatpush.bf16.msra.mxu0 %v9671
    %9845 = vmatpush.bf16.msra.mxu0 %v9670
    %9846 = vmatpush.bf16.msra.mxu0 %v9669
    %9847 = vmatpush.bf16.msra.mxu0 %v9668
    %9848 = vmatmul.bf16.gmra.mxu0 %v9314
    %v9849 = vpop.f32.mrf.mxu0
    %v9850 = vadd.f32 %v9836, %v9849
    %v9851 = vpop.f32.mrf.mxu0
    %v9852 = vadd.f32 %v9838, %v9851
    %9853 = vdwg.mxu0
    %9854 = vmatpush.bf16.msra.mxu0 %v9683
    %9855 = vmatpush.bf16.msra.mxu0 %v9682
    %9856 = vmatpush.bf16.msra.mxu0 %v9681
    %9857 = vmatpush.bf16.msra.mxu0 %v9680
    %9858 = vmatpush.bf16.msra.mxu0 %v9679
    %9859 = vmatpush.bf16.msra.mxu0 %v9678
    %9860 = vmatpush.bf16.msra.mxu0 %v9677
    %9861 = vmatpush.bf16.msra.mxu0 %v9676
    %9862 = vmatmul.bf16.gmra.mxu0 %v9315
    %v9863 = vpop.f32.mrf.mxu0
    %v9864 = vadd.f32 %v9850, %v9863
    %v9865 = vpop.f32.mrf.mxu0
    %v9866 = vadd.f32 %v9852, %v9865
    %9867 = vdwg.mxu0
    %9868 = vmatpush.bf16.msra.mxu0 %v9691
    %9869 = vmatpush.bf16.msra.mxu0 %v9690
    %9870 = vmatpush.bf16.msra.mxu0 %v9689
    %9871 = vmatpush.bf16.msra.mxu0 %v9688
    %9872 = vmatpush.bf16.msra.mxu0 %v9687
    %9873 = vmatpush.bf16.msra.mxu0 %v9686
    %9874 = vmatpush.bf16.msra.mxu0 %v9685
    %9875 = vmatpush.bf16.msra.mxu0 %v9684
    %9876 = vmatmul.bf16.gmra.mxu0 %v9316
    %v9877 = vpop.f32.mrf.mxu0
    %v9878 = vadd.f32 %v9864, %v9877
    %v9879 = vpop.f32.mrf.mxu0
    %v9880 = vadd.f32 %v9866, %v9879
    %9881 = vdwg.mxu0
    %9882 = vmatpush.bf16.msra.mxu0 %v9699
    %9883 = vmatpush.bf16.msra.mxu0 %v9698
    %9884 = vmatpush.bf16.msra.mxu0 %v9697
    %9885 = vmatpush.bf16.msra.mxu0 %v9696
    %9886 = vmatpush.bf16.msra.mxu0 %v9695
    %9887 = vmatpush.bf16.msra.mxu0 %v9694
    %9888 = vmatpush.bf16.msra.mxu0 %v9693
    %9889 = vmatpush.bf16.msra.mxu0 %v9692
    %9890 = vmatmul.bf16.gmra.mxu0 %v9317
    %v9891 = vpop.f32.mrf.mxu0
    %v9892 = vadd.f32 %v9878, %v9891
    %v9893 = vpop.f32.mrf.mxu0
    %v9894 = vadd.f32 %v9880, %v9893
    %9895 = vdwg.mxu0
    %9896 = vmatpush.bf16.msra.mxu0 %v9707
    %9897 = vmatpush.bf16.msra.mxu0 %v9706
    %9898 = vmatpush.bf16.msra.mxu0 %v9705
    %9899 = vmatpush.bf16.msra.mxu0 %v9704
    %9900 = vmatpush.bf16.msra.mxu0 %v9703
    %9901 = vmatpush.bf16.msra.mxu0 %v9702
    %9902 = vmatpush.bf16.msra.mxu0 %v9701
    %9903 = vmatpush.bf16.msra.mxu0 %v9700
    %9904 = vmatmul.bf16.gmra.mxu0 %v9318
    %v9905 = vpop.f32.mrf.mxu0
    %v9906 = vadd.f32 %v9892, %v9905
    %v9907 = vpop.f32.mrf.mxu0
    %v9908 = vadd.f32 %v9894, %v9907
    %9909 = vdwg.mxu0
    %9910 = vmatpush.bf16.msra.mxu0 %v9715
    %9911 = vmatpush.bf16.msra.mxu0 %v9714
    %9912 = vmatpush.bf16.msra.mxu0 %v9713
    %9913 = vmatpush.bf16.msra.mxu0 %v9712
    %9914 = vmatpush.bf16.msra.mxu0 %v9711
    %9915 = vmatpush.bf16.msra.mxu0 %v9710
    %9916 = vmatpush.bf16.msra.mxu0 %v9709
    %9917 = vmatpush.bf16.msra.mxu0 %v9708
    %9918 = vmatmul.bf16.gmra.mxu0 %v9319
    %v9919 = vpop.f32.mrf.mxu0
    %v9920 = vadd.f32 %v9906, %v9919
    %v9921 = vpop.f32.mrf.mxu0
    %v9922 = vadd.f32 %v9908, %v9921
    %9923 = vdwg.mxu0
    %9924 = vmatpush.bf16.msra.mxu0 %v9723
    %9925 = vmatpush.bf16.msra.mxu0 %v9722
    %9926 = vmatpush.bf16.msra.mxu0 %v9721
    %9927 = vmatpush.bf16.msra.mxu0 %v9720
    %9928 = vmatpush.bf16.msra.mxu0 %v9719
    %9929 = vmatpush.bf16.msra.mxu0 %v9718
    %9930 = vmatpush.bf16.msra.mxu0 %v9717
    %9931 = vmatpush.bf16.msra.mxu0 %v9716
    %9932 = vmatmul.bf16.gmra.mxu0 %v9320
    %v9933 = vpop.f32.mrf.mxu0
    %v9934 = vadd.f32 %v9920, %v9933
    %v9935 = vpop.f32.mrf.mxu0
    %v9936 = vadd.f32 %v9922, %v9935
    %9937 = vdwg.mxu0
    %9938 = vmatpush.bf16.msra.mxu0 %v9731
    %9939 = vmatpush.bf16.msra.mxu0 %v9730
    %9940 = vmatpush.bf16.msra.mxu0 %v9729
    %9941 = vmatpush.bf16.msra.mxu0 %v9728
    %9942 = vmatpush.bf16.msra.mxu0 %v9727
    %9943 = vmatpush.bf16.msra.mxu0 %v9726
    %9944 = vmatpush.bf16.msra.mxu0 %v9725
    %9945 = vmatpush.bf16.msra.mxu0 %v9724
    %9946 = vmatmul.bf16.gmra.mxu0 %v9321
    %v9947 = vpop.f32.mrf.mxu0
    %v9948 = vadd.f32 %v9934, %v9947
    %v9949 = vpop.f32.mrf.mxu0
    %v9950 = vadd.f32 %v9936, %v9949
    %9951 = vdwg.mxu0
    %vm9952 = vcmask 80896
    %9953 = vst.msk [vmem:[#allocation3] sm:$0xff] %vm9952, %v9948
    %9954 = vst.msk [vmem:[#allocation3 + $0x8] sm:$0xff] %vm9952, %v9950
    // Predicated region
    $region22: #{tpu_custom_call.1} parent=1 // pred_check
      _
    $region23: #{tpu_custom_call.1} parent=1 // pred_check_branch
      %9956 = sbr.rel (0) target = $region25
    $region24: #{tpu_custom_call.1} parent=1 // pred_region
      %9958 = vsyncadd [#allocation4], 0
      %s9959 = sshll.u32 [#allocation3], 4
      %s9960 = int_to_ptr.vmem [resolvable:$true] %s9959
      %s9961 = sshll.u32 %s5, 4
      %s9962 = int_to_ptr.hbm [resolvable:$true] %s9961
      %9967 = dma.vmem_to_hbm [thread:$0]  %s9960, 256, %s9962, [#allocation4], 128, 128, 8
    $region25: #{tpu_custom_call.1} parent=1 // pred_fallthru
      _
    // Predicated region
    $region26: #{tpu_custom_call.1} parent=1 // pred_check
      _
    $region27: #{tpu_custom_call.1} parent=1 // pred_check_branch
      %9969 = sbr.rel (0) target = $region29
    $region28: #{tpu_custom_call.1} parent=1 // pred_region
      %9971 = dma.done [#allocation4], 256
    $region29: #{tpu_custom_call.1} parent=1 // pred_fallthru
      _
    %9972 = vsyncpa [#allocation4], 1

</llo_original>
